<compile_context>
chip_gen: v7x
topology: tpu7x:2x2x1
jax: 0.10.0
libtpu: 0.0.40
codegen_flags: <defaults>
</compile_context>

<pallas_src>
import functools

import numpy as np
import jax
import jax.numpy as jnp
from jax.experimental import pallas as pl
from jax.experimental.pallas import tpu as pltpu


# --------------------------- host-side constant builders ---------------------------

def _reflect(q, T):
    # TODO(synk): single reflection only; silently wrong if a tap offset exceeds 2*(T-1)
    # (only possible for very short T relative to bank_size / kernel_size).
    if q < 0:
        q = -q
    if q >= T:
        q = 2 * (T - 1) - q
    return q


def _tap_mats(T, K, stride=1):
    """Per-tap (T, T_out) selection matrices: reflect pad + tap shift + stride, folded."""
    pad_l = K // 2
    pad_r = K // 2 - 1 if K % 2 == 0 else K // 2
    T_out = (T + pad_l + pad_r - K) // stride + 1
    mats = []
    for k in range(K):
        A = np.zeros((T, T_out), np.float32)
        for t in range(T_out):
            A[_reflect(stride * t + k - pad_l, T), t] = 1.0
        mats.append(A)
    return mats, T_out


def _pool_mat(T, k):
    # torch avg_pool1d(ceil_mode=True).
    # TODO(synk): ragged-tail divisor uses the clipped window size; exact only when T % k == 0
    # (true at the shapes exercised here).
    T_out = -(-T // k)
    A = np.zeros((T, T_out), np.float32)
    for j in range(T_out):
        n = min((j + 1) * k, T) - j * k
        A[j * k:j * k + n, j] = 1.0 / n
    return A, T_out


def _upsample_mat(T, scale):
    # TODO(synk): reference upsample() hardcodes scale_factor=2; identical here since up == 2.
    A = np.zeros((T, T * scale), np.float32)
    for t in range(T):
        A[t, t * scale:(t + 1) * scale] = 1.0
    return A


def _shuffle_mat(T, scale, s):
    E = np.zeros((T, T * scale), np.float32)
    for t in range(T):
        E[t, t * scale + s] = 1.0
    return E


class _Blob:
    """Packs many small 2-D f32 arrays into ONE contiguous blob (one DMA instead of dozens).

    Every entry starts at an 8-aligned row so all in-kernel sublane slices are aligned.
    An entry is (row_offset, rows, cols); the kernel carves it with a static ref slice."""

    def __init__(self):
        self._parts = []
        self._rows = 0
        self._cols = 0
        self.payload = 0          # un-padded element count (for the cost estimate)

    def add(self, arr):
        a = np.asarray(arr, np.float32)
        if a.ndim == 1:
            a = a.reshape(-1, 1)
        assert a.ndim == 2
        r, c = a.shape
        ent = (self._rows, r, c)
        self._parts.append(a)
        self._rows += -(-r // 8) * 8
        self._cols = max(self._cols, c)
        self.payload += r * c
        return ent

    def finalize(self):
        blob = np.zeros((max(self._rows, 8), max(self._cols, 1)), np.float32)
        off = 0
        for a in self._parts:
            r, c = a.shape
            blob[off:off + r, :c] = a
            off += -(-r // 8) * 8
        return jnp.asarray(blob)


def _tap_entries(mk, cache, T, K, stride):
    """De-duplicated tap matrices shared by the two encoders."""
    key = (T, K, stride)
    if key not in cache:
        mats, T_out = _tap_mats(T, K, stride)
        cache[key] = ([mk.add(a) for a in mats], T_out)
    return cache[key]


def _stack_taps(w):
    """(C_out, C_in, K) -> (K*C_out, C_in): tap blocks stacked along rows so the K channel
    matmuls become ONE stacked MXU matmul."""
    w = np.asarray(w, np.float32)
    return np.concatenate([w[:, :, k] for k in range(w.shape[2])], axis=0)


# ----------------------------- parameter repacking (host side) -----------------------------

def _prep_encoder(p, pk, mk, cache, T, kernel_size, subsample):
    c_h = int(np.asarray(p["in_conv"]["w"]).shape[0])
    plan = {"c_h": c_h}

    # conv bank + fused 1x1 in_conv: split in_conv columns per concatenated block.
    w_in = np.asarray(p["in_conv"]["w"])[:, :, 0]            # (c_h, n_bank*c_h + c_in)
    col = 0
    bank = []
    for layer in p["bank"]:
        w = np.asarray(layer["w"])                           # (c_b, c_in, K)
        c_b, _, K = w.shape
        taps, _ = _tap_entries(mk, cache, T, K, 1)
        bank.append({"c_b": c_b,
                     "w": pk.add(_stack_taps(w)),
                     "b": pk.add(layer["b"]),
                     "w_in": pk.add(w_in[:, col:col + c_b]),
                     "taps": taps})
        col += c_b
    plan["bank"] = bank
    plan["in_x"] = {"w": pk.add(w_in[:, col:]), "b": pk.add(p["in_conv"]["b"])}

    t = T
    conv = []
    for l in range(len(p["first_conv"])):
        sub = subsample[l]
        taps1, _ = _tap_entries(mk, cache, t, kernel_size, 1)
        taps2, t2 = _tap_entries(mk, cache, t, kernel_size, sub)
        blk = {"w1": pk.add(_stack_taps(p["first_conv"][l]["w"])),
               "b1": pk.add(p["first_conv"][l]["b"]),
               "w2": pk.add(_stack_taps(p["second_conv"][l]["w"])),
               "b2": pk.add(p["second_conv"][l]["b"]),
               "gamma": pk.add(p["conv_norm"][l]["gamma"]),
               "beta": pk.add(p["conv_norm"][l]["beta"]),
               "taps1": taps1, "taps2": taps2,
               "pool": None}
        if sub > 1:
            key = ("pool", t, sub)
            if key not in cache:
                cache[key] = mk.add(_pool_mat(t, sub)[0])
            blk["pool"] = cache[key]
        conv.append(blk)
        t = t2
    plan["conv"] = conv

    dense = []
    for l in range(len(p["first_dense"])):
        dense.append({"w1": pk.add(np.asarray(p["first_dense"][l]["w"])[:, :, 0]),
                      "b1": pk.add(p["first_dense"][l]["b"]),
                      "w2": pk.add(np.asarray(p["second_dense"][l]["w"])[:, :, 0]),
                      "b2": pk.add(p["second_dense"][l]["b"]),
                      "gamma": pk.add(p["dense_norm"][l]["gamma"]),
                      "beta": pk.add(p["dense_norm"][l]["beta"])})
    plan["dense"] = dense
    plan["out"] = {"w": pk.add(np.asarray(p["out_conv"]["w"])[:, :, 0]),
                   "b": pk.add(p["out_conv"]["b"])}
    plan["T_out"] = t
    return plan


def _prep_decoder(p, pk, mk, cache, T_in, kernel_size, upsample_cfg, c_h):
    plan = {"c_h": c_h,
            "in": {"w": pk.add(np.asarray(p["in_conv"]["w"])[:, :, 0]),
                   "b": pk.add(p["in_conv"]["b"])}}
    t = T_in
    conv = []
    for l in range(len(p["first_conv"])):
        up = upsample_cfg[l]
        taps, _ = _tap_entries(mk, cache, t, kernel_size, 1)
        w1 = np.asarray(p["first_conv"][l]["w"])             # (c_h, c_h + c_cond, K)
        w2 = np.asarray(p["second_conv"][l]["w"])            # (c_h*up, c_h + c_cond, K)
        b2 = np.asarray(p["second_conv"][l]["b"])
        # append_cond fused: weight columns split into activation / cond parts; cond is
        # time-constant so its K taps collapse into a single (c, c_cond) matvec.
        blk = {"up": up, "taps": taps,
               "w1x": pk.add(_stack_taps(w1[:, :c_h, :])),
               "w1c": pk.add(w1[:, c_h:, :].sum(axis=-1)),
               "b1": pk.add(p["first_conv"][l]["b"]),
               "groups": []}
        for s in range(up):
            rows = np.arange(c_h) * up + s                   # pixel-shuffle phase s
            grp = {"wx": pk.add(_stack_taps(w2[rows][:, :c_h, :])),
                   "wc": pk.add(w2[rows][:, c_h:, :].sum(axis=-1)),
                   "b": pk.add(b2[rows])}
            if up > 1:
                grp["shuffle"] = mk.add(_shuffle_mat(t, up, s))
            blk["groups"].append(grp)
        if up > 1:
            blk["ups"] = mk.add(_upsample_mat(t, up))
            t = t * up
        conv.append(blk)
    plan["conv"] = conv

    dense = []
    for l in range(len(p["first_dense"])):
        w1 = np.asarray(p["first_dense"][l]["w"])[:, :, 0]
        w2 = np.asarray(p["second_dense"][l]["w"])[:, :, 0]
        dense.append({"w1x": pk.add(w1[:, :c_h]), "w1c": pk.add(w1[:, c_h:]),
                      "b1": pk.add(p["first_dense"][l]["b"]),
                      "w2x": pk.add(w2[:, :c_h]), "w2c": pk.add(w2[:, c_h:]),
                      "b2": pk.add(p["second_dense"][l]["b"])})
    plan["dense"] = dense
    plan["out"] = {"w": pk.add(np.asarray(p["out_conv"]["w"])[:, :, 0]),
                   "b": pk.add(p["out_conv"]["b"])}
    plan["T_out"] = t
    return plan


# ----------------------------- in-kernel math (traced once) -----------------------------

def _g(ref, ent):
    off, r, c = ent
    return ref[off:off + r, :c]                  # static, 8-row-aligned blob slice


def _mm(a, b):
    return jnp.dot(a, b, preferred_element_type=jnp.float32)


def _conv(pref, mref, x, w_ent, tap_ents, c_out):
    """Reflect-padded (optionally strided) 1-D conv, no bias.

    One stacked channel matmul (K*c_out, c_in) @ (c_in, T), then K small (T, T_out)
    tap-shift matmuls accumulated."""
    p = _mm(_g(pref, w_ent), x)                  # (K*c_out, T)
    acc = None
    for k, te in enumerate(tap_ents):
        term = _mm(p[k * c_out:(k + 1) * c_out, :], _g(mref, te))
        acc = term if acc is None else acc + term
    return acc


def _inorm(x, gamma, beta, eps=1e-5):
    # InstanceNorm1d(affine=True): per-(instance, channel) stats via lane reductions (XLU),
    # rsqrt on the EUP -- no mean/broadcast matmuls, no constant matrices.
    mu = jnp.mean(x, axis=-1, keepdims=True)
    xc = x - mu
    var = jnp.mean(xc * xc, axis=-1, keepdims=True)
    return xc * jax.lax.rsqrt(var + eps) * gamma + beta


def _encoder(pref, mref, plan, act, x):
    c_h = plan["c_h"]
    # fused conv bank + act + channel concat + 1x1 in_conv (the concat never materializes)
    inx = plan["in_x"]
    out = _mm(_g(pref, inx["w"]), x) + _g(pref, inx["b"])
    for br in plan["bank"]:
        y = act(_conv(pref, mref, x, br["w"], br["taps"], br["c_b"]) + _g(pref, br["b"]))
        out = out + _mm(_g(pref, br["w_in"]), y)
    # conv blocks (second conv evaluated directly at strided output positions)
    for blk in plan["conv"]:
        y = act(_conv(pref, mref, out, blk["w1"], blk["taps1"], c_h) + _g(pref, blk["b1"]))
        y = act(_conv(pref, mref, y, blk["w2"], blk["taps2"], c_h) + _g(pref, blk["b2"]))
        y = _inorm(y, _g(pref, blk["gamma"]), _g(pref, blk["beta"]))
        if blk["pool"] is not None:
            out = _mm(out, _g(mref, blk["pool"]))
        out = y + out
    # dense blocks (1x1 convs)
    for blk in plan["dense"]:
        y = act(_mm(_g(pref, blk["w1"]), out) + _g(pref, blk["b1"]))
        y = act(_mm(_g(pref, blk["w2"]), y) + _g(pref, blk["b2"]))
        y = _inorm(y, _g(pref, blk["gamma"]), _g(pref, blk["beta"]))
        out = out + y
    return _mm(_g(pref, plan["out"]["w"]), out) + _g(pref, plan["out"]["b"])


def _decoder(pref, mref, plan, act, x, cond):
    c_h = plan["c_h"]
    out = _mm(_g(pref, plan["in"]["w"]), x) + _g(pref, plan["in"]["b"])
    for blk in plan["conv"]:
        # first conv with fused append_cond (cond contribution is a single matvec, broadcast over T)
        y = _conv(pref, mref, out, blk["w1x"], blk["taps"], c_h)
        y = act(y + _mm(_g(pref, blk["w1c"]), cond) + _g(pref, blk["b1"]))
        # second conv: one weight group per pixel-shuffle phase
        ys = []
        for gp in blk["groups"]:
            g = _conv(pref, mref, y, gp["wx"], blk["taps"], c_h)
            ys.append(act(g + _mm(_g(pref, gp["wc"]), cond) + _g(pref, gp["b"])))
        if blk["up"] > 1:
            y_sh = None
            for g, gp in zip(ys, blk["groups"]):
                term = _mm(g, _g(mref, gp["shuffle"]))       # scatter group s into lanes t*up+s
                y_sh = term if y_sh is None else y_sh + term
            out = y_sh + _mm(out, _g(mref, blk["ups"]))      # + nearest-upsampled skip
        else:
            out = ys[0] + out
    # dense blocks (1x1 convs with fused append_cond)
    for blk in plan["dense"]:
        y = act(_mm(_g(pref, blk["w1x"]), out) + _mm(_g(pref, blk["w1c"]), cond)
                + _g(pref, blk["b1"]))
        y = act(_mm(_g(pref, blk["w2x"]), y) + _mm(_g(pref, blk["w2c"]), cond)
                + _g(pref, blk["b2"]))
        out = out + y
    return _mm(_g(pref, plan["out"]["w"]), out) + _g(pref, plan["out"]["b"])


def _ae_kernel(plan, alpha, x_ref, xpos_ref, prm_ref, mat_ref, enc_ref, emb_ref, dec_ref):
    # Dropout is identity (rate 0 / eval semantics).
    if alpha == 0.0:
        act = lambda v: jnp.maximum(v, 0.0)                  # relu
    else:
        act = lambda v: jnp.where(v > 0, v, alpha * v)       # leaky relu

    # static encoder + avg-pool over time -> speaker embedding (c_cond, 1)
    enc_s = _encoder(prm_ref, mat_ref, plan["static"], act, xpos_ref[...])
    emb = jnp.mean(enc_s, axis=-1, keepdims=True)
    # dynamic encoder -> latent (c_latent, T_enc)
    enc = _encoder(prm_ref, mat_ref, plan["dynamic"], act, x_ref[...])
    # decoder -> reconstruction (c_out, T_dec)
    dec = _decoder(prm_ref, mat_ref, plan["decoder"], act, enc, emb)

    enc_ref[...] = enc.astype(enc_ref.dtype)
    emb_ref[...] = emb.astype(emb_ref.dtype)
    dec_ref[...] = dec.astype(dec_ref.dtype)


# ----------------------------- model forward (mode == 'ae') -----------------------------

def ae_forward(params, cfg, x, x_pos):
    """Returns (enc, emb_pos, dec) — equivalent to AE.forward(x, x_pos, None, mode='ae')."""
    B, c_in, T = x.shape
    pk, mk, cache = _Blob(), _Blob(), {}
    plan = {
        "static": _prep_encoder(params["static"], pk, mk, cache, T,
                                cfg["kernel_size"], cfg["s_subsample"]),
        "dynamic": _prep_encoder(params["dynamic"], pk, mk, cache, T,
                                 cfg["kernel_size"], cfg["d_subsample"]),
    }
    T_enc = plan["dynamic"]["T_out"]
    plan["decoder"] = _prep_decoder(params["decoder"], pk, mk, cache, T_enc,
                                    cfg["kernel_size"], cfg["upsample"], cfg["c_h"])
    T_dec = plan["decoder"]["T_out"]
    prm, mat = pk.finalize(), mk.finalize()

    c_latent = int(np.asarray(params["dynamic"]["out_conv"]["w"]).shape[0])
    c_cond = int(np.asarray(params["static"]["out_conv"]["w"]).shape[0])
    c_out = int(np.asarray(params["decoder"]["out_conv"]["w"]).shape[0])
    alpha = 0.01 if cfg.get("act") == "lrelu" else 0.0

    # rough advisory cost so XLA schedules surrounding ops around the custom call
    flops = int(2 * B * (pk.payload * T + mk.payload * cfg["c_h"]))
    bytes_accessed = int(4 * (x.size + x_pos.size + prm.size + mat.size
                              + B * (c_latent * T_enc + c_cond + c_out * T_dec)))

    kernel = functools.partial(_ae_kernel, plan, alpha)
    enc, emb, dec = pl.pallas_call(
        kernel,
        grid=(B,),
        in_specs=[
            pl.BlockSpec((None, c_in, T), lambda b: (b, 0, 0)),
            pl.BlockSpec((None, c_in, T), lambda b: (b, 0, 0)),
            pl.BlockSpec(prm.shape, lambda b: (0, 0)),   # constant block index -> stays resident
            pl.BlockSpec(mat.shape, lambda b: (0, 0)),
        ],
        out_specs=(
            pl.BlockSpec((None, c_latent, T_enc), lambda b: (b, 0, 0)),
            pl.BlockSpec((None, c_cond, 1), lambda b: (b, 0, 0)),
            pl.BlockSpec((None, c_out, T_dec), lambda b: (b, 0, 0)),
        ),
        out_shape=(
            jax.ShapeDtypeStruct((B, c_latent, T_enc), jnp.float32),
            jax.ShapeDtypeStruct((B, c_cond, 1), jnp.float32),
            jax.ShapeDtypeStruct((B, c_out, T_dec), jnp.float32),
        ),
        compiler_params=pltpu.CompilerParams(dimension_semantics=("parallel",)),
        cost_estimate=pl.CostEstimate(flops=max(flops, 1), transcendentals=B * 64,
                                      bytes_accessed=max(bytes_accessed, 1)),
    )(x, x_pos, prm, mat)
    return enc, emb[:, :, 0], dec


# ----------------------------- parameter init (PyTorch-like layout) -----------------------------

def conv_params(key, c_out, c_in, k):
    kw, kb = jax.random.split(key)
    return {"w": jax.random.normal(kw, (c_out, c_in, k), jnp.float32) * 0.1,
            "b": jax.random.normal(kb, (c_out,), jnp.float32) * 0.1}


def init_encoder(key, c_in, c_h, c_out, kernel_size, bank_size, bank_scale,
                 n_conv_blocks, n_dense_blocks):
    keys = iter(jax.random.split(key, 64))
    bank_ks = list(range(bank_scale, bank_size + 1, bank_scale))
    p = {"bank": [conv_params(next(keys), c_h, c_in, k) for k in bank_ks]}
    in_channels = c_h * (bank_size // bank_scale) + c_in
    p["in_conv"] = conv_params(next(keys), c_h, in_channels, 1)
    p["first_conv"] = [conv_params(next(keys), c_h, c_h, kernel_size) for _ in range(n_conv_blocks)]
    p["second_conv"] = [conv_params(next(keys), c_h, c_h, kernel_size) for _ in range(n_conv_blocks)]
    p["conv_norm"] = [{"gamma": jnp.ones((c_h,), jnp.float32),
                       "beta": jnp.zeros((c_h,), jnp.float32)} for _ in range(n_conv_blocks)]
    p["first_dense"] = [conv_params(next(keys), c_h, c_h, 1) for _ in range(n_dense_blocks)]
    p["second_dense"] = [conv_params(next(keys), c_h, c_h, 1) for _ in range(n_dense_blocks)]
    p["dense_norm"] = [{"gamma": jnp.ones((c_h,), jnp.float32),
                        "beta": jnp.zeros((c_h,), jnp.float32)} for _ in range(n_dense_blocks)]
    p["out_conv"] = conv_params(next(keys), c_out, c_h, 1)
    return p


def init_decoder(key, c_in, c_cond, c_h, c_out, kernel_size,
                 n_conv_blocks, upsample, n_dense_blocks):
    keys = iter(jax.random.split(key, 64))
    p = {"in_conv": conv_params(next(keys), c_h, c_in, 1)}
    p["first_conv"] = [conv_params(next(keys), c_h, c_h + c_cond, kernel_size)
                       for _ in range(n_conv_blocks)]
    p["second_conv"] = [conv_params(next(keys), c_h * up, c_h + c_cond, kernel_size)
                        for _, up in zip(range(n_conv_blocks), upsample)]
    p["first_dense"] = [conv_params(next(keys), c_h, c_h + c_cond, 1) for _ in range(n_dense_blocks)]
    p["second_dense"] = [conv_params(next(keys), c_h, c_h + c_cond, 1) for _ in range(n_dense_blocks)]
    p["out_conv"] = conv_params(next(keys), c_out, c_h, 1)
    return p


# -------------------------------------------- main --------------------------------------------

if __name__ == "__main__":
    cfg = dict(
        c_in=4, c_h=8, c_latent=8, c_cond=8, c_out=4,
        kernel_size=3, bank_size=4, bank_scale=2,
        s_enc_n_conv_blocks=1, s_enc_n_dense_blocks=1,
        d_enc_n_conv_blocks=1, d_enc_n_dense_blocks=1,
        s_subsample=[2], d_subsample=[2],
        dec_n_conv_blocks=1, dec_n_dense_blocks=1,
        upsample=[2], act="relu", dropout_rate=0.0,
    )

    root = jax.random.PRNGKey(0)
    k_se, k_de, k_dec, k_x, k_xp = jax.random.split(root, 5)

    params = {
        "static": init_encoder(k_se, cfg["c_in"], cfg["c_h"], cfg["c_cond"],
                               cfg["kernel_size"], cfg["bank_size"], cfg["bank_scale"],
                               cfg["s_enc_n_conv_blocks"], cfg["s_enc_n_dense_blocks"]),
        "dynamic": init_encoder(k_de, cfg["c_in"], cfg["c_h"], cfg["c_latent"],
                                cfg["kernel_size"], cfg["bank_size"], cfg["bank_scale"],
                                cfg["d_enc_n_conv_blocks"], cfg["d_enc_n_dense_blocks"]),
        "decoder": init_decoder(k_dec, cfg["c_latent"], cfg["c_cond"], cfg["c_h"],
                                cfg["c_out"], cfg["kernel_size"],
                                cfg["dec_n_conv_blocks"], cfg["upsample"],
                                cfg["dec_n_dense_blocks"]),
    }

    B, T = 2, 16
    x = jax.random.normal(k_x, (B, cfg["c_in"], T), jnp.float32)
    x_pos = jax.random.normal(k_xp, (B, cfg["c_in"], T), jnp.float32)

    enc, emb_pos, dec = ae_forward(params, cfg, x, x_pos)
    jax.block_until_ready((enc, emb_pos, dec))

    assert enc.shape == (B, cfg["c_latent"], T // 2)
    assert emb_pos.shape == (B, cfg["c_cond"])
    assert dec.shape == (B, cfg["c_out"], T)
    assert np.all(np.isfinite(np.asarray(enc)))
    assert np.all(np.isfinite(np.asarray(emb_pos)))
    assert np.all(np.isfinite(np.asarray(dec)))
    print("KERNEL_OK")
</pallas_src>

<mosaic_0001>
module attributes {stable_mosaic.version = 11 : i64} {
  func.func @_ae_kernel(%arg0: i32, %arg1: memref<1x4x16xf32, #tpu.memory_space<vmem>>, %arg2: memref<1x4x16xf32, #tpu.memory_space<vmem>>, %arg3: memref<680x8xf32, #tpu.memory_space<vmem>>, %arg4: memref<256x16xf32, #tpu.memory_space<vmem>>, %arg5: memref<1x8x8xf32, #tpu.memory_space<vmem>>, %arg6: memref<1x8x1xf32, #tpu.memory_space<vmem>>, %arg7: memref<1x4x16xf32, #tpu.memory_space<vmem>>) attributes {dimension_semantics = [#tpu.dimension_semantics<parallel>], iteration_bounds = array<i64: 2>, scalar_prefetch = 0 : i64, scratch_operands = 0 : i64, tpu.core_type = #tpu.core_type<tc>, window_params = [{transform_indices = @transform_0, window_bounds = array<i64: 1, 4, 16>}, {transform_indices = @transform_1, window_bounds = array<i64: 1, 4, 16>}, {pipeline_mode = #tpu.pipeline_mode<synchronous>, transform_indices = @transform_2, window_bounds = array<i64: 680, 8>}, {pipeline_mode = #tpu.pipeline_mode<synchronous>, transform_indices = @transform_3, window_bounds = array<i64: 256, 16>}, {transform_indices = @transform_4, window_bounds = array<i64: 1, 8, 8>}, {transform_indices = @transform_5, window_bounds = array<i64: 1, 8, 1>}, {transform_indices = @transform_6, window_bounds = array<i64: 1, 4, 16>}]} {
    %c0 = arith.constant 0 : index
    %c0_0 = arith.constant 0 : index
    %c0_1 = arith.constant 0 : index
    %0 = vector.load %arg2[%c0, %c0_0, %c0_1] : memref<1x4x16xf32, #tpu.memory_space<vmem>>, vector<1x4x16xf32>
    %1 = vector.shape_cast %0 : vector<1x4x16xf32> to vector<4x16xf32>
    %c80 = arith.constant 80 : index
    %c0_2 = arith.constant 0 : index
    %2 = vector.load %arg3[%c80, %c0_2] : memref<680x8xf32, #tpu.memory_space<vmem>>, vector<8x4xf32>
    %cst = arith.constant dense<0.000000e+00> : vector<8x16xf32>
    %3 = tpu.matmul %2, %1, %cst {dimension_numbers = #tpu.dot_dimension_numbers<[1], [0], [0], [1], [0, 0, 1, 1], [], []>} : vector<8x4xf32>, vector<4x16xf32>, vector<8x16xf32> -> vector<8x16xf32>
    %c88 = arith.constant 88 : index
    %c0_3 = arith.constant 0 : index
    %4 = vector.load %arg3[%c88, %c0_3] : memref<680x8xf32, #tpu.memory_space<vmem>>, vector<8x1xf32>
    %5 = vector.broadcast %4 : vector<8x1xf32> to vector<8x16xf32>
    %6 = arith.addf %3, %5 : vector<8x16xf32>
    %c0_4 = arith.constant 0 : index
    %c0_5 = arith.constant 0 : index
    %7 = vector.load %arg3[%c0_4, %c0_5] : memref<680x8xf32, #tpu.memory_space<vmem>>, vector<16x4xf32>
    %cst_6 = arith.constant dense<0.000000e+00> : vector<16x16xf32>
    %8 = tpu.matmul %7, %1, %cst_6 {dimension_numbers = #tpu.dot_dimension_numbers<[1], [0], [0], [1], [0, 0, 1, 1], [], []>} : vector<16x4xf32>, vector<4x16xf32>, vector<16x16xf32> -> vector<16x16xf32>
    %9 = vector.extract_strided_slice %8 {offsets = [0, 0], sizes = [8, 16], strides = [1, 1]} : vector<16x16xf32> to vector<8x16xf32>
    %c0_7 = arith.constant 0 : index
    %c0_8 = arith.constant 0 : index
    %10 = vector.load %arg4[%c0_7, %c0_8] : memref<256x16xf32, #tpu.memory_space<vmem>>, vector<16x16xf32>
    %cst_9 = arith.constant dense<0.000000e+00> : vector<8x16xf32>
    %11 = tpu.matmul %9, %10, %cst_9 {dimension_numbers = #tpu.dot_dimension_numbers<[1], [0], [0], [1], [0, 0, 1, 1], [], []>} : vector<8x16xf32>, vector<16x16xf32>, vector<8x16xf32> -> vector<8x16xf32>
    %12 = vector.extract_strided_slice %8 {offsets = [8, 0], sizes = [8, 16], strides = [1, 1]} : vector<16x16xf32> to vector<8x16xf32>
    %c16 = arith.constant 16 : index
    %c0_10 = arith.constant 0 : index
    %13 = vector.load %arg4[%c16, %c0_10] : memref<256x16xf32, #tpu.memory_space<vmem>>, vector<16x16xf32>
    %cst_11 = arith.constant dense<0.000000e+00> : vector<8x16xf32>
    %14 = tpu.matmul %12, %13, %cst_11 {dimension_numbers = #tpu.dot_dimension_numbers<[1], [0], [0], [1], [0, 0, 1, 1], [], []>} : vector<8x16xf32>, vector<16x16xf32>, vector<8x16xf32> -> vector<8x16xf32>
    %15 = arith.addf %11, %14 : vector<8x16xf32>
    %c16_12 = arith.constant 16 : index
    %c0_13 = arith.constant 0 : index
    %16 = vector.load %arg3[%c16_12, %c0_13] : memref<680x8xf32, #tpu.memory_space<vmem>>, vector<8x1xf32>
    %17 = vector.broadcast %16 : vector<8x1xf32> to vector<8x16xf32>
    %18 = arith.addf %15, %17 : vector<8x16xf32>
    %cst_14 = arith.constant 0.000000e+00 : f32
    %19 = vector.broadcast %cst_14 : f32 to vector<8x16xf32>
    %20 = arith.maximumf %18, %19 : vector<8x16xf32>
    %c24 = arith.constant 24 : index
    %c0_15 = arith.constant 0 : index
    %21 = vector.load %arg3[%c24, %c0_15] : memref<680x8xf32, #tpu.memory_space<vmem>>, vector<8x8xf32>
    %cst_16 = arith.constant dense<0.000000e+00> : vector<8x16xf32>
    %22 = tpu.matmul %21, %20, %cst_16 {dimension_numbers = #tpu.dot_dimension_numbers<[1], [0], [0], [1], [0, 0, 1, 1], [], []>} : vector<8x8xf32>, vector<8x16xf32>, vector<8x16xf32> -> vector<8x16xf32>
    %23 = arith.addf %6, %22 : vector<8x16xf32>
    %c32 = arith.constant 32 : index
    %c0_17 = arith.constant 0 : index
    %24 = vector.load %arg3[%c32, %c0_17] : memref<680x8xf32, #tpu.memory_space<vmem>>, vector<32x4xf32>
    %cst_18 = arith.constant dense<0.000000e+00> : vector<32x16xf32>
    %25 = tpu.matmul %24, %1, %cst_18 {dimension_numbers = #tpu.dot_dimension_numbers<[1], [0], [0], [1], [0, 0, 1, 1], [], []>} : vector<32x4xf32>, vector<4x16xf32>, vector<32x16xf32> -> vector<32x16xf32>
    %26 = vector.extract_strided_slice %25 {offsets = [0, 0], sizes = [8, 16], strides = [1, 1]} : vector<32x16xf32> to vector<8x16xf32>
    %c32_19 = arith.constant 32 : index
    %c0_20 = arith.constant 0 : index
    %27 = vector.load %arg4[%c32_19, %c0_20] : memref<256x16xf32, #tpu.memory_space<vmem>>, vector<16x16xf32>
    %cst_21 = arith.constant dense<0.000000e+00> : vector<8x16xf32>
    %28 = tpu.matmul %26, %27, %cst_21 {dimension_numbers = #tpu.dot_dimension_numbers<[1], [0], [0], [1], [0, 0, 1, 1], [], []>} : vector<8x16xf32>, vector<16x16xf32>, vector<8x16xf32> -> vector<8x16xf32>
    %29 = vector.extract_strided_slice %25 {offsets = [8, 0], sizes = [8, 16], strides = [1, 1]} : vector<32x16xf32> to vector<8x16xf32>
    %c48 = arith.constant 48 : index
    %c0_22 = arith.constant 0 : index
    %30 = vector.load %arg4[%c48, %c0_22] : memref<256x16xf32, #tpu.memory_space<vmem>>, vector<16x16xf32>
    %cst_23 = arith.constant dense<0.000000e+00> : vector<8x16xf32>
    %31 = tpu.matmul %29, %30, %cst_23 {dimension_numbers = #tpu.dot_dimension_numbers<[1], [0], [0], [1], [0, 0, 1, 1], [], []>} : vector<8x16xf32>, vector<16x16xf32>, vector<8x16xf32> -> vector<8x16xf32>
    %32 = arith.addf %28, %31 : vector<8x16xf32>
    %33 = vector.extract_strided_slice %25 {offsets = [16, 0], sizes = [8, 16], strides = [1, 1]} : vector<32x16xf32> to vector<8x16xf32>
    %c64 = arith.constant 64 : index
    %c0_24 = arith.constant 0 : index
    %34 = vector.load %arg4[%c64, %c0_24] : memref<256x16xf32, #tpu.memory_space<vmem>>, vector<16x16xf32>
    %cst_25 = arith.constant dense<0.000000e+00> : vector<8x16xf32>
    %35 = tpu.matmul %33, %34, %cst_25 {dimension_numbers = #tpu.dot_dimension_numbers<[1], [0], [0], [1], [0, 0, 1, 1], [], []>} : vector<8x16xf32>, vector<16x16xf32>, vector<8x16xf32> -> vector<8x16xf32>
    %36 = arith.addf %32, %35 : vector<8x16xf32>
    %37 = vector.extract_strided_slice %25 {offsets = [24, 0], sizes = [8, 16], strides = [1, 1]} : vector<32x16xf32> to vector<8x16xf32>
    %c80_26 = arith.constant 80 : index
    %c0_27 = arith.constant 0 : index
    %38 = vector.load %arg4[%c80_26, %c0_27] : memref<256x16xf32, #tpu.memory_space<vmem>>, vector<16x16xf32>
    %cst_28 = arith.constant dense<0.000000e+00> : vector<8x16xf32>
    %39 = tpu.matmul %37, %38, %cst_28 {dimension_numbers = #tpu.dot_dimension_numbers<[1], [0], [0], [1], [0, 0, 1, 1], [], []>} : vector<8x16xf32>, vector<16x16xf32>, vector<8x16xf32> -> vector<8x16xf32>
    %40 = arith.addf %36, %39 : vector<8x16xf32>
    %c64_29 = arith.constant 64 : index
    %c0_30 = arith.constant 0 : index
    %41 = vector.load %arg3[%c64_29, %c0_30] : memref<680x8xf32, #tpu.memory_space<vmem>>, vector<8x1xf32>
    %42 = vector.broadcast %41 : vector<8x1xf32> to vector<8x16xf32>
    %43 = arith.addf %40, %42 : vector<8x16xf32>
    %cst_31 = arith.constant 0.000000e+00 : f32
    %44 = vector.broadcast %cst_31 : f32 to vector<8x16xf32>
    %45 = arith.maximumf %43, %44 : vector<8x16xf32>
    %c72 = arith.constant 72 : index
    %c0_32 = arith.constant 0 : index
    %46 = vector.load %arg3[%c72, %c0_32] : memref<680x8xf32, #tpu.memory_space<vmem>>, vector<8x8xf32>
    %cst_33 = arith.constant dense<0.000000e+00> : vector<8x16xf32>
    %47 = tpu.matmul %46, %45, %cst_33 {dimension_numbers = #tpu.dot_dimension_numbers<[1], [0], [0], [1], [0, 0, 1, 1], [], []>} : vector<8x8xf32>, vector<8x16xf32>, vector<8x16xf32> -> vector<8x16xf32>
    %48 = arith.addf %23, %47 : vector<8x16xf32>
    %c96 = arith.constant 96 : index
    %c0_34 = arith.constant 0 : index
    %49 = vector.load %arg3[%c96, %c0_34] : memref<680x8xf32, #tpu.memory_space<vmem>>, vector<24x8xf32>
    %cst_35 = arith.constant dense<0.000000e+00> : vector<24x16xf32>
    %50 = tpu.matmul %49, %48, %cst_35 {dimension_numbers = #tpu.dot_dimension_numbers<[1], [0], [0], [1], [0, 0, 1, 1], [], []>} : vector<24x8xf32>, vector<8x16xf32>, vector<24x16xf32> -> vector<24x16xf32>
    %51 = vector.extract_strided_slice %50 {offsets = [0, 0], sizes = [8, 16], strides = [1, 1]} : vector<24x16xf32> to vector<8x16xf32>
    %c96_36 = arith.constant 96 : index
    %c0_37 = arith.constant 0 : index
    %52 = vector.load %arg4[%c96_36, %c0_37] : memref<256x16xf32, #tpu.memory_space<vmem>>, vector<16x16xf32>
    %cst_38 = arith.constant dense<0.000000e+00> : vector<8x16xf32>
    %53 = tpu.matmul %51, %52, %cst_38 {dimension_numbers = #tpu.dot_dimension_numbers<[1], [0], [0], [1], [0, 0, 1, 1], [], []>} : vector<8x16xf32>, vector<16x16xf32>, vector<8x16xf32> -> vector<8x16xf32>
    %54 = vector.extract_strided_slice %50 {offsets = [8, 0], sizes = [8, 16], strides = [1, 1]} : vector<24x16xf32> to vector<8x16xf32>
    %c112 = arith.constant 112 : index
    %c0_39 = arith.constant 0 : index
    %55 = vector.load %arg4[%c112, %c0_39] : memref<256x16xf32, #tpu.memory_space<vmem>>, vector<16x16xf32>
    %cst_40 = arith.constant dense<0.000000e+00> : vector<8x16xf32>
    %56 = tpu.matmul %54, %55, %cst_40 {dimension_numbers = #tpu.dot_dimension_numbers<[1], [0], [0], [1], [0, 0, 1, 1], [], []>} : vector<8x16xf32>, vector<16x16xf32>, vector<8x16xf32> -> vector<8x16xf32>
    %57 = arith.addf %53, %56 : vector<8x16xf32>
    %58 = vector.extract_strided_slice %50 {offsets = [16, 0], sizes = [8, 16], strides = [1, 1]} : vector<24x16xf32> to vector<8x16xf32>
    %c128 = arith.constant 128 : index
    %c0_41 = arith.constant 0 : index
    %59 = vector.load %arg4[%c128, %c0_41] : memref<256x16xf32, #tpu.memory_space<vmem>>, vector<16x16xf32>
    %cst_42 = arith.constant dense<0.000000e+00> : vector<8x16xf32>
    %60 = tpu.matmul %58, %59, %cst_42 {dimension_numbers = #tpu.dot_dimension_numbers<[1], [0], [0], [1], [0, 0, 1, 1], [], []>} : vector<8x16xf32>, vector<16x16xf32>, vector<8x16xf32> -> vector<8x16xf32>
    %61 = arith.addf %57, %60 : vector<8x16xf32>
    %c120 = arith.constant 120 : index
    %c0_43 = arith.constant 0 : index
    %62 = vector.load %arg3[%c120, %c0_43] : memref<680x8xf32, #tpu.memory_space<vmem>>, vector<8x1xf32>
    %63 = vector.broadcast %62 : vector<8x1xf32> to vector<8x16xf32>
    %64 = arith.addf %61, %63 : vector<8x16xf32>
    %cst_44 = arith.constant 0.000000e+00 : f32
    %65 = vector.broadcast %cst_44 : f32 to vector<8x16xf32>
    %66 = arith.maximumf %64, %65 : vector<8x16xf32>
    %c128_45 = arith.constant 128 : index
    %c0_46 = arith.constant 0 : index
    %67 = vector.load %arg3[%c128_45, %c0_46] : memref<680x8xf32, #tpu.memory_space<vmem>>, vector<24x8xf32>
    %cst_47 = arith.constant dense<0.000000e+00> : vector<24x16xf32>
    %68 = tpu.matmul %67, %66, %cst_47 {dimension_numbers = #tpu.dot_dimension_numbers<[1], [0], [0], [1], [0, 0, 1, 1], [], []>} : vector<24x8xf32>, vector<8x16xf32>, vector<24x16xf32> -> vector<24x16xf32>
    %69 = vector.extract_strided_slice %68 {offsets = [0, 0], sizes = [8, 16], strides = [1, 1]} : vector<24x16xf32> to vector<8x16xf32>
    %c144 = arith.constant 144 : index
    %c0_48 = arith.constant 0 : index
    %70 = vector.load %arg4[%c144, %c0_48] : memref<256x16xf32, #tpu.memory_space<vmem>>, vector<16x8xf32>
    %cst_49 = arith.constant dense<0.000000e+00> : vector<8x8xf32>
    %71 = tpu.matmul %69, %70, %cst_49 {dimension_numbers = #tpu.dot_dimension_numbers<[1], [0], [0], [1], [0, 0, 1, 1], [], []>} : vector<8x16xf32>, vector<16x8xf32>, vector<8x8xf32> -> vector<8x8xf32>
    %72 = vector.extract_strided_slice %68 {offsets = [8, 0], sizes = [8, 16], strides = [1, 1]} : vector<24x16xf32> to vector<8x16xf32>
    %c160 = arith.constant 160 : index
    %c0_50 = arith.constant 0 : index
    %73 = vector.load %arg4[%c160, %c0_50] : memref<256x16xf32, #tpu.memory_space<vmem>>, vector<16x8xf32>
    %cst_51 = arith.constant dense<0.000000e+00> : vector<8x8xf32>
    %74 = tpu.matmul %72, %73, %cst_51 {dimension_numbers = #tpu.dot_dimension_numbers<[1], [0], [0], [1], [0, 0, 1, 1], [], []>} : vector<8x16xf32>, vector<16x8xf32>, vector<8x8xf32> -> vector<8x8xf32>
    %75 = arith.addf %71, %74 : vector<8x8xf32>
    %76 = vector.extract_strided_slice %68 {offsets = [16, 0], sizes = [8, 16], strides = [1, 1]} : vector<24x16xf32> to vector<8x16xf32>
    %c176 = arith.constant 176 : index
    %c0_52 = arith.constant 0 : index
    %77 = vector.load %arg4[%c176, %c0_52] : memref<256x16xf32, #tpu.memory_space<vmem>>, vector<16x8xf32>
    %cst_53 = arith.constant dense<0.000000e+00> : vector<8x8xf32>
    %78 = tpu.matmul %76, %77, %cst_53 {dimension_numbers = #tpu.dot_dimension_numbers<[1], [0], [0], [1], [0, 0, 1, 1], [], []>} : vector<8x16xf32>, vector<16x8xf32>, vector<8x8xf32> -> vector<8x8xf32>
    %79 = arith.addf %75, %78 : vector<8x8xf32>
    %c152 = arith.constant 152 : index
    %c0_54 = arith.constant 0 : index
    %80 = vector.load %arg3[%c152, %c0_54] : memref<680x8xf32, #tpu.memory_space<vmem>>, vector<8x1xf32>
    %81 = vector.broadcast %80 : vector<8x1xf32> to vector<8x8xf32>
    %82 = arith.addf %79, %81 : vector<8x8xf32>
    %cst_55 = arith.constant 0.000000e+00 : f32
    %83 = vector.broadcast %cst_55 : f32 to vector<8x8xf32>
    %84 = arith.maximumf %82, %83 : vector<8x8xf32>
    %c160_56 = arith.constant 160 : index
    %c0_57 = arith.constant 0 : index
    %85 = vector.load %arg3[%c160_56, %c0_57] : memref<680x8xf32, #tpu.memory_space<vmem>>, vector<8x1xf32>
    %c168 = arith.constant 168 : index
    %c0_58 = arith.constant 0 : index
    %86 = vector.load %arg3[%c168, %c0_58] : memref<680x8xf32, #tpu.memory_space<vmem>>, vector<8x1xf32>
    %cst_59 = arith.constant dense<0.000000e+00> : vector<8xf32>
    %87 = vector.multi_reduction <add>, %84, %cst_59 [1] : vector<8x8xf32> to vector<8xf32>
    %88 = vector.shape_cast %87 : vector<8xf32> to vector<8x1xf32>
    %cst_60 = arith.constant 8.000000e+00 : f32
    %89 = vector.broadcast %cst_60 : f32 to vector<8x1xf32>
    %90 = arith.divf %88, %89 : vector<8x1xf32>
    %91 = vector.broadcast %90 : vector<8x1xf32> to vector<8x8xf32>
    %92 = arith.subf %84, %91 : vector<8x8xf32>
    %93 = arith.mulf %92, %92 : vector<8x8xf32>
    %cst_61 = arith.constant dense<0.000000e+00> : vector<8xf32>
    %94 = vector.multi_reduction <add>, %93, %cst_61 [1] : vector<8x8xf32> to vector<8xf32>
    %95 = vector.shape_cast %94 : vector<8xf32> to vector<8x1xf32>
    %cst_62 = arith.constant 8.000000e+00 : f32
    %96 = vector.broadcast %cst_62 : f32 to vector<8x1xf32>
    %97 = arith.divf %95, %96 : vector<8x1xf32>
    %cst_63 = arith.constant 9.99999974E-6 : f32
    %98 = vector.broadcast %cst_63 : f32 to vector<8x1xf32>
    %99 = arith.addf %97, %98 : vector<8x1xf32>
    %100 = math.rsqrt %99 : vector<8x1xf32>
    %101 = vector.broadcast %100 : vector<8x1xf32> to vector<8x8xf32>
    %102 = arith.mulf %92, %101 : vector<8x8xf32>
    %103 = vector.broadcast %85 : vector<8x1xf32> to vector<8x8xf32>
    %104 = arith.mulf %102, %103 : vector<8x8xf32>
    %105 = vector.broadcast %86 : vector<8x1xf32> to vector<8x8xf32>
    %106 = arith.addf %104, %105 : vector<8x8xf32>
    %c192 = arith.constant 192 : index
    %c0_64 = arith.constant 0 : index
    %107 = vector.load %arg4[%c192, %c0_64] : memref<256x16xf32, #tpu.memory_space<vmem>>, vector<16x8xf32>
    %cst_65 = arith.constant dense<0.000000e+00> : vector<8x8xf32>
    %108 = tpu.matmul %48, %107, %cst_65 {dimension_numbers = #tpu.dot_dimension_numbers<[1], [0], [0], [1], [0, 0, 1, 1], [], []>} : vector<8x16xf32>, vector<16x8xf32>, vector<8x8xf32> -> vector<8x8xf32>
    %109 = arith.addf %106, %108 : vector<8x8xf32>
    %c176_66 = arith.constant 176 : index
    %c0_67 = arith.constant 0 : index
    %110 = vector.load %arg3[%c176_66, %c0_67] : memref<680x8xf32, #tpu.memory_space<vmem>>, vector<8x8xf32>
    %cst_68 = arith.constant dense<0.000000e+00> : vector<8x8xf32>
    %111 = tpu.matmul %110, %109, %cst_68 {dimension_numbers = #tpu.dot_dimension_numbers<[1], [0], [0], [1], [0, 0, 1, 1], [], []>} : vector<8x8xf32>, vector<8x8xf32>, vector<8x8xf32> -> vector<8x8xf32>
    %c184 = arith.constant 184 : index
    %c0_69 = arith.constant 0 : index
    %112 = vector.load %arg3[%c184, %c0_69] : memref<680x8xf32, #tpu.memory_space<vmem>>, vector<8x1xf32>
    %113 = vector.broadcast %112 : vector<8x1xf32> to vector<8x8xf32>
    %114 = arith.addf %111, %113 : vector<8x8xf32>
    %cst_70 = arith.constant 0.000000e+00 : f32
    %115 = vector.broadcast %cst_70 : f32 to vector<8x8xf32>
    %116 = arith.maximumf %114, %115 : vector<8x8xf32>
    %c192_71 = arith.constant 192 : index
    %c0_72 = arith.constant 0 : index
    %117 = vector.load %arg3[%c192_71, %c0_72] : memref<680x8xf32, #tpu.memory_space<vmem>>, vector<8x8xf32>
    %cst_73 = arith.constant dense<0.000000e+00> : vector<8x8xf32>
    %118 = tpu.matmul %117, %116, %cst_73 {dimension_numbers = #tpu.dot_dimension_numbers<[1], [0], [0], [1], [0, 0, 1, 1], [], []>} : vector<8x8xf32>, vector<8x8xf32>, vector<8x8xf32> -> vector<8x8xf32>
    %c200 = arith.constant 200 : index
    %c0_74 = arith.constant 0 : index
    %119 = vector.load %arg3[%c200, %c0_74] : memref<680x8xf32, #tpu.memory_space<vmem>>, vector<8x1xf32>
    %120 = vector.broadcast %119 : vector<8x1xf32> to vector<8x8xf32>
    %121 = arith.addf %118, %120 : vector<8x8xf32>
    %cst_75 = arith.constant 0.000000e+00 : f32
    %122 = vector.broadcast %cst_75 : f32 to vector<8x8xf32>
    %123 = arith.maximumf %121, %122 : vector<8x8xf32>
    %c208 = arith.constant 208 : index
    %c0_76 = arith.constant 0 : index
    %124 = vector.load %arg3[%c208, %c0_76] : memref<680x8xf32, #tpu.memory_space<vmem>>, vector<8x1xf32>
    %c216 = arith.constant 216 : index
    %c0_77 = arith.constant 0 : index
    %125 = vector.load %arg3[%c216, %c0_77] : memref<680x8xf32, #tpu.memory_space<vmem>>, vector<8x1xf32>
    %cst_78 = arith.constant dense<0.000000e+00> : vector<8xf32>
    %126 = vector.multi_reduction <add>, %123, %cst_78 [1] : vector<8x8xf32> to vector<8xf32>
    %127 = vector.shape_cast %126 : vector<8xf32> to vector<8x1xf32>
    %cst_79 = arith.constant 8.000000e+00 : f32
    %128 = vector.broadcast %cst_79 : f32 to vector<8x1xf32>
    %129 = arith.divf %127, %128 : vector<8x1xf32>
    %130 = vector.broadcast %129 : vector<8x1xf32> to vector<8x8xf32>
    %131 = arith.subf %123, %130 : vector<8x8xf32>
    %132 = arith.mulf %131, %131 : vector<8x8xf32>
    %cst_80 = arith.constant dense<0.000000e+00> : vector<8xf32>
    %133 = vector.multi_reduction <add>, %132, %cst_80 [1] : vector<8x8xf32> to vector<8xf32>
    %134 = vector.shape_cast %133 : vector<8xf32> to vector<8x1xf32>
    %cst_81 = arith.constant 8.000000e+00 : f32
    %135 = vector.broadcast %cst_81 : f32 to vector<8x1xf32>
    %136 = arith.divf %134, %135 : vector<8x1xf32>
    %cst_82 = arith.constant 9.99999974E-6 : f32
    %137 = vector.broadcast %cst_82 : f32 to vector<8x1xf32>
    %138 = arith.addf %136, %137 : vector<8x1xf32>
    %139 = math.rsqrt %138 : vector<8x1xf32>
    %140 = vector.broadcast %139 : vector<8x1xf32> to vector<8x8xf32>
    %141 = arith.mulf %131, %140 : vector<8x8xf32>
    %142 = vector.broadcast %124 : vector<8x1xf32> to vector<8x8xf32>
    %143 = arith.mulf %141, %142 : vector<8x8xf32>
    %144 = vector.broadcast %125 : vector<8x1xf32> to vector<8x8xf32>
    %145 = arith.addf %143, %144 : vector<8x8xf32>
    %146 = arith.addf %109, %145 : vector<8x8xf32>
    %c224 = arith.constant 224 : index
    %c0_83 = arith.constant 0 : index
    %147 = vector.load %arg3[%c224, %c0_83] : memref<680x8xf32, #tpu.memory_space<vmem>>, vector<8x8xf32>
    %cst_84 = arith.constant dense<0.000000e+00> : vector<8x8xf32>
    %148 = tpu.matmul %147, %146, %cst_84 {dimension_numbers = #tpu.dot_dimension_numbers<[1], [0], [0], [1], [0, 0, 1, 1], [], []>} : vector<8x8xf32>, vector<8x8xf32>, vector<8x8xf32> -> vector<8x8xf32>
    %c232 = arith.constant 232 : index
    %c0_85 = arith.constant 0 : index
    %149 = vector.load %arg3[%c232, %c0_85] : memref<680x8xf32, #tpu.memory_space<vmem>>, vector<8x1xf32>
    %150 = vector.broadcast %149 : vector<8x1xf32> to vector<8x8xf32>
    %151 = arith.addf %148, %150 : vector<8x8xf32>
    %cst_86 = arith.constant dense<0.000000e+00> : vector<8xf32>
    %152 = vector.multi_reduction <add>, %151, %cst_86 [1] : vector<8x8xf32> to vector<8xf32>
    %153 = vector.shape_cast %152 : vector<8xf32> to vector<8x1xf32>
    %cst_87 = arith.constant 8.000000e+00 : f32
    %154 = vector.broadcast %cst_87 : f32 to vector<8x1xf32>
    %155 = arith.divf %153, %154 : vector<8x1xf32>
    %c0_88 = arith.constant 0 : index
    %c0_89 = arith.constant 0 : index
    %c0_90 = arith.constant 0 : index
    %156 = vector.load %arg1[%c0_88, %c0_89, %c0_90] : memref<1x4x16xf32, #tpu.memory_space<vmem>>, vector<1x4x16xf32>
    %157 = vector.shape_cast %156 : vector<1x4x16xf32> to vector<4x16xf32>
    %c320 = arith.constant 320 : index
    %c0_91 = arith.constant 0 : index
    %158 = vector.load %arg3[%c320, %c0_91] : memref<680x8xf32, #tpu.memory_space<vmem>>, vector<8x4xf32>
    %cst_92 = arith.constant dense<0.000000e+00> : vector<8x16xf32>
    %159 = tpu.matmul %158, %157, %cst_92 {dimension_numbers = #tpu.dot_dimension_numbers<[1], [0], [0], [1], [0, 0, 1, 1], [], []>} : vector<8x4xf32>, vector<4x16xf32>, vector<8x16xf32> -> vector<8x16xf32>
    %c328 = arith.constant 328 : index
    %c0_93 = arith.constant 0 : index
    %160 = vector.load %arg3[%c328, %c0_93] : memref<680x8xf32, #tpu.memory_space<vmem>>, vector<8x1xf32>
    %161 = vector.broadcast %160 : vector<8x1xf32> to vector<8x16xf32>
    %162 = arith.addf %159, %161 : vector<8x16xf32>
    %c240 = arith.constant 240 : index
    %c0_94 = arith.constant 0 : index
    %163 = vector.load %arg3[%c240, %c0_94] : memref<680x8xf32, #tpu.memory_space<vmem>>, vector<16x4xf32>
    %cst_95 = arith.constant dense<0.000000e+00> : vector<16x16xf32>
    %164 = tpu.matmul %163, %157, %cst_95 {dimension_numbers = #tpu.dot_dimension_numbers<[1], [0], [0], [1], [0, 0, 1, 1], [], []>} : vector<16x4xf32>, vector<4x16xf32>, vector<16x16xf32> -> vector<16x16xf32>
    %165 = vector.extract_strided_slice %164 {offsets = [0, 0], sizes = [8, 16], strides = [1, 1]} : vector<16x16xf32> to vector<8x16xf32>
    %c0_96 = arith.constant 0 : index
    %c0_97 = arith.constant 0 : index
    %166 = vector.load %arg4[%c0_96, %c0_97] : memref<256x16xf32, #tpu.memory_space<vmem>>, vector<16x16xf32>
    %cst_98 = arith.constant dense<0.000000e+00> : vector<8x16xf32>
    %167 = tpu.matmul %165, %166, %cst_98 {dimension_numbers = #tpu.dot_dimension_numbers<[1], [0], [0], [1], [0, 0, 1, 1], [], []>} : vector<8x16xf32>, vector<16x16xf32>, vector<8x16xf32> -> vector<8x16xf32>
    %168 = vector.extract_strided_slice %164 {offsets = [8, 0], sizes = [8, 16], strides = [1, 1]} : vector<16x16xf32> to vector<8x16xf32>
    %c16_99 = arith.constant 16 : index
    %c0_100 = arith.constant 0 : index
    %169 = vector.load %arg4[%c16_99, %c0_100] : memref<256x16xf32, #tpu.memory_space<vmem>>, vector<16x16xf32>
    %cst_101 = arith.constant dense<0.000000e+00> : vector<8x16xf32>
    %170 = tpu.matmul %168, %169, %cst_101 {dimension_numbers = #tpu.dot_dimension_numbers<[1], [0], [0], [1], [0, 0, 1, 1], [], []>} : vector<8x16xf32>, vector<16x16xf32>, vector<8x16xf32> -> vector<8x16xf32>
    %171 = arith.addf %167, %170 : vector<8x16xf32>
    %c256 = arith.constant 256 : index
    %c0_102 = arith.constant 0 : index
    %172 = vector.load %arg3[%c256, %c0_102] : memref<680x8xf32, #tpu.memory_space<vmem>>, vector<8x1xf32>
    %173 = vector.broadcast %172 : vector<8x1xf32> to vector<8x16xf32>
    %174 = arith.addf %171, %173 : vector<8x16xf32>
    %cst_103 = arith.constant 0.000000e+00 : f32
    %175 = vector.broadcast %cst_103 : f32 to vector<8x16xf32>
    %176 = arith.maximumf %174, %175 : vector<8x16xf32>
    %c264 = arith.constant 264 : index
    %c0_104 = arith.constant 0 : index
    %177 = vector.load %arg3[%c264, %c0_104] : memref<680x8xf32, #tpu.memory_space<vmem>>, vector<8x8xf32>
    %cst_105 = arith.constant dense<0.000000e+00> : vector<8x16xf32>
    %178 = tpu.matmul %177, %176, %cst_105 {dimension_numbers = #tpu.dot_dimension_numbers<[1], [0], [0], [1], [0, 0, 1, 1], [], []>} : vector<8x8xf32>, vector<8x16xf32>, vector<8x16xf32> -> vector<8x16xf32>
    %179 = arith.addf %162, %178 : vector<8x16xf32>
    %c272 = arith.constant 272 : index
    %c0_106 = arith.constant 0 : index
    %180 = vector.load %arg3[%c272, %c0_106] : memref<680x8xf32, #tpu.memory_space<vmem>>, vector<32x4xf32>
    %cst_107 = arith.constant dense<0.000000e+00> : vector<32x16xf32>
    %181 = tpu.matmul %180, %157, %cst_107 {dimension_numbers = #tpu.dot_dimension_numbers<[1], [0], [0], [1], [0, 0, 1, 1], [], []>} : vector<32x4xf32>, vector<4x16xf32>, vector<32x16xf32> -> vector<32x16xf32>
    %182 = vector.extract_strided_slice %181 {offsets = [0, 0], sizes = [8, 16], strides = [1, 1]} : vector<32x16xf32> to vector<8x16xf32>
    %c32_108 = arith.constant 32 : index
    %c0_109 = arith.constant 0 : index
    %183 = vector.load %arg4[%c32_108, %c0_109] : memref<256x16xf32, #tpu.memory_space<vmem>>, vector<16x16xf32>
    %cst_110 = arith.constant dense<0.000000e+00> : vector<8x16xf32>
    %184 = tpu.matmul %182, %183, %cst_110 {dimension_numbers = #tpu.dot_dimension_numbers<[1], [0], [0], [1], [0, 0, 1, 1], [], []>} : vector<8x16xf32>, vector<16x16xf32>, vector<8x16xf32> -> vector<8x16xf32>
    %185 = vector.extract_strided_slice %181 {offsets = [8, 0], sizes = [8, 16], strides = [1, 1]} : vector<32x16xf32> to vector<8x16xf32>
    %c48_111 = arith.constant 48 : index
    %c0_112 = arith.constant 0 : index
    %186 = vector.load %arg4[%c48_111, %c0_112] : memref<256x16xf32, #tpu.memory_space<vmem>>, vector<16x16xf32>
    %cst_113 = arith.constant dense<0.000000e+00> : vector<8x16xf32>
    %187 = tpu.matmul %185, %186, %cst_113 {dimension_numbers = #tpu.dot_dimension_numbers<[1], [0], [0], [1], [0, 0, 1, 1], [], []>} : vector<8x16xf32>, vector<16x16xf32>, vector<8x16xf32> -> vector<8x16xf32>
    %188 = arith.addf %184, %187 : vector<8x16xf32>
    %189 = vector.extract_strided_slice %181 {offsets = [16, 0], sizes = [8, 16], strides = [1, 1]} : vector<32x16xf32> to vector<8x16xf32>
    %c64_114 = arith.constant 64 : index
    %c0_115 = arith.constant 0 : index
    %190 = vector.load %arg4[%c64_114, %c0_115] : memref<256x16xf32, #tpu.memory_space<vmem>>, vector<16x16xf32>
    %cst_116 = arith.constant dense<0.000000e+00> : vector<8x16xf32>
    %191 = tpu.matmul %189, %190, %cst_116 {dimension_numbers = #tpu.dot_dimension_numbers<[1], [0], [0], [1], [0, 0, 1, 1], [], []>} : vector<8x16xf32>, vector<16x16xf32>, vector<8x16xf32> -> vector<8x16xf32>
    %192 = arith.addf %188, %191 : vector<8x16xf32>
    %193 = vector.extract_strided_slice %181 {offsets = [24, 0], sizes = [8, 16], strides = [1, 1]} : vector<32x16xf32> to vector<8x16xf32>
    %c80_117 = arith.constant 80 : index
    %c0_118 = arith.constant 0 : index
    %194 = vector.load %arg4[%c80_117, %c0_118] : memref<256x16xf32, #tpu.memory_space<vmem>>, vector<16x16xf32>
    %cst_119 = arith.constant dense<0.000000e+00> : vector<8x16xf32>
    %195 = tpu.matmul %193, %194, %cst_119 {dimension_numbers = #tpu.dot_dimension_numbers<[1], [0], [0], [1], [0, 0, 1, 1], [], []>} : vector<8x16xf32>, vector<16x16xf32>, vector<8x16xf32> -> vector<8x16xf32>
    %196 = arith.addf %192, %195 : vector<8x16xf32>
    %c304 = arith.constant 304 : index
    %c0_120 = arith.constant 0 : index
    %197 = vector.load %arg3[%c304, %c0_120] : memref<680x8xf32, #tpu.memory_space<vmem>>, vector<8x1xf32>
    %198 = vector.broadcast %197 : vector<8x1xf32> to vector<8x16xf32>
    %199 = arith.addf %196, %198 : vector<8x16xf32>
    %cst_121 = arith.constant 0.000000e+00 : f32
    %200 = vector.broadcast %cst_121 : f32 to vector<8x16xf32>
    %201 = arith.maximumf %199, %200 : vector<8x16xf32>
    %c312 = arith.constant 312 : index
    %c0_122 = arith.constant 0 : index
    %202 = vector.load %arg3[%c312, %c0_122] : memref<680x8xf32, #tpu.memory_space<vmem>>, vector<8x8xf32>
    %cst_123 = arith.constant dense<0.000000e+00> : vector<8x16xf32>
    %203 = tpu.matmul %202, %201, %cst_123 {dimension_numbers = #tpu.dot_dimension_numbers<[1], [0], [0], [1], [0, 0, 1, 1], [], []>} : vector<8x8xf32>, vector<8x16xf32>, vector<8x16xf32> -> vector<8x16xf32>
    %204 = arith.addf %179, %203 : vector<8x16xf32>
    %c336 = arith.constant 336 : index
    %c0_124 = arith.constant 0 : index
    %205 = vector.load %arg3[%c336, %c0_124] : memref<680x8xf32, #tpu.memory_space<vmem>>, vector<24x8xf32>
    %cst_125 = arith.constant dense<0.000000e+00> : vector<24x16xf32>
    %206 = tpu.matmul %205, %204, %cst_125 {dimension_numbers = #tpu.dot_dimension_numbers<[1], [0], [0], [1], [0, 0, 1, 1], [], []>} : vector<24x8xf32>, vector<8x16xf32>, vector<24x16xf32> -> vector<24x16xf32>
    %207 = vector.extract_strided_slice %206 {offsets = [0, 0], sizes = [8, 16], strides = [1, 1]} : vector<24x16xf32> to vector<8x16xf32>
    %c96_126 = arith.constant 96 : index
    %c0_127 = arith.constant 0 : index
    %208 = vector.load %arg4[%c96_126, %c0_127] : memref<256x16xf32, #tpu.memory_space<vmem>>, vector<16x16xf32>
    %cst_128 = arith.constant dense<0.000000e+00> : vector<8x16xf32>
    %209 = tpu.matmul %207, %208, %cst_128 {dimension_numbers = #tpu.dot_dimension_numbers<[1], [0], [0], [1], [0, 0, 1, 1], [], []>} : vector<8x16xf32>, vector<16x16xf32>, vector<8x16xf32> -> vector<8x16xf32>
    %210 = vector.extract_strided_slice %206 {offsets = [8, 0], sizes = [8, 16], strides = [1, 1]} : vector<24x16xf32> to vector<8x16xf32>
    %c112_129 = arith.constant 112 : index
    %c0_130 = arith.constant 0 : index
    %211 = vector.load %arg4[%c112_129, %c0_130] : memref<256x16xf32, #tpu.memory_space<vmem>>, vector<16x16xf32>
    %cst_131 = arith.constant dense<0.000000e+00> : vector<8x16xf32>
    %212 = tpu.matmul %210, %211, %cst_131 {dimension_numbers = #tpu.dot_dimension_numbers<[1], [0], [0], [1], [0, 0, 1, 1], [], []>} : vector<8x16xf32>, vector<16x16xf32>, vector<8x16xf32> -> vector<8x16xf32>
    %213 = arith.addf %209, %212 : vector<8x16xf32>
    %214 = vector.extract_strided_slice %206 {offsets = [16, 0], sizes = [8, 16], strides = [1, 1]} : vector<24x16xf32> to vector<8x16xf32>
    %c128_132 = arith.constant 128 : index
    %c0_133 = arith.constant 0 : index
    %215 = vector.load %arg4[%c128_132, %c0_133] : memref<256x16xf32, #tpu.memory_space<vmem>>, vector<16x16xf32>
    %cst_134 = arith.constant dense<0.000000e+00> : vector<8x16xf32>
    %216 = tpu.matmul %214, %215, %cst_134 {dimension_numbers = #tpu.dot_dimension_numbers<[1], [0], [0], [1], [0, 0, 1, 1], [], []>} : vector<8x16xf32>, vector<16x16xf32>, vector<8x16xf32> -> vector<8x16xf32>
    %217 = arith.addf %213, %216 : vector<8x16xf32>
    %c360 = arith.constant 360 : index
    %c0_135 = arith.constant 0 : index
    %218 = vector.load %arg3[%c360, %c0_135] : memref<680x8xf32, #tpu.memory_space<vmem>>, vector<8x1xf32>
    %219 = vector.broadcast %218 : vector<8x1xf32> to vector<8x16xf32>
    %220 = arith.addf %217, %219 : vector<8x16xf32>
    %cst_136 = arith.constant 0.000000e+00 : f32
    %221 = vector.broadcast %cst_136 : f32 to vector<8x16xf32>
    %222 = arith.maximumf %220, %221 : vector<8x16xf32>
    %c368 = arith.constant 368 : index
    %c0_137 = arith.constant 0 : index
    %223 = vector.load %arg3[%c368, %c0_137] : memref<680x8xf32, #tpu.memory_space<vmem>>, vector<24x8xf32>
    %cst_138 = arith.constant dense<0.000000e+00> : vector<24x16xf32>
    %224 = tpu.matmul %223, %222, %cst_138 {dimension_numbers = #tpu.dot_dimension_numbers<[1], [0], [0], [1], [0, 0, 1, 1], [], []>} : vector<24x8xf32>, vector<8x16xf32>, vector<24x16xf32> -> vector<24x16xf32>
    %225 = vector.extract_strided_slice %224 {offsets = [0, 0], sizes = [8, 16], strides = [1, 1]} : vector<24x16xf32> to vector<8x16xf32>
    %c144_139 = arith.constant 144 : index
    %c0_140 = arith.constant 0 : index
    %226 = vector.load %arg4[%c144_139, %c0_140] : memref<256x16xf32, #tpu.memory_space<vmem>>, vector<16x8xf32>
    %cst_141 = arith.constant dense<0.000000e+00> : vector<8x8xf32>
    %227 = tpu.matmul %225, %226, %cst_141 {dimension_numbers = #tpu.dot_dimension_numbers<[1], [0], [0], [1], [0, 0, 1, 1], [], []>} : vector<8x16xf32>, vector<16x8xf32>, vector<8x8xf32> -> vector<8x8xf32>
    %228 = vector.extract_strided_slice %224 {offsets = [8, 0], sizes = [8, 16], strides = [1, 1]} : vector<24x16xf32> to vector<8x16xf32>
    %c160_142 = arith.constant 160 : index
    %c0_143 = arith.constant 0 : index
    %229 = vector.load %arg4[%c160_142, %c0_143] : memref<256x16xf32, #tpu.memory_space<vmem>>, vector<16x8xf32>
    %cst_144 = arith.constant dense<0.000000e+00> : vector<8x8xf32>
    %230 = tpu.matmul %228, %229, %cst_144 {dimension_numbers = #tpu.dot_dimension_numbers<[1], [0], [0], [1], [0, 0, 1, 1], [], []>} : vector<8x16xf32>, vector<16x8xf32>, vector<8x8xf32> -> vector<8x8xf32>
    %231 = arith.addf %227, %230 : vector<8x8xf32>
    %232 = vector.extract_strided_slice %224 {offsets = [16, 0], sizes = [8, 16], strides = [1, 1]} : vector<24x16xf32> to vector<8x16xf32>
    %c176_145 = arith.constant 176 : index
    %c0_146 = arith.constant 0 : index
    %233 = vector.load %arg4[%c176_145, %c0_146] : memref<256x16xf32, #tpu.memory_space<vmem>>, vector<16x8xf32>
    %cst_147 = arith.constant dense<0.000000e+00> : vector<8x8xf32>
    %234 = tpu.matmul %232, %233, %cst_147 {dimension_numbers = #tpu.dot_dimension_numbers<[1], [0], [0], [1], [0, 0, 1, 1], [], []>} : vector<8x16xf32>, vector<16x8xf32>, vector<8x8xf32> -> vector<8x8xf32>
    %235 = arith.addf %231, %234 : vector<8x8xf32>
    %c392 = arith.constant 392 : index
    %c0_148 = arith.constant 0 : index
    %236 = vector.load %arg3[%c392, %c0_148] : memref<680x8xf32, #tpu.memory_space<vmem>>, vector<8x1xf32>
    %237 = vector.broadcast %236 : vector<8x1xf32> to vector<8x8xf32>
    %238 = arith.addf %235, %237 : vector<8x8xf32>
    %cst_149 = arith.constant 0.000000e+00 : f32
    %239 = vector.broadcast %cst_149 : f32 to vector<8x8xf32>
    %240 = arith.maximumf %238, %239 : vector<8x8xf32>
    %c400 = arith.constant 400 : index
    %c0_150 = arith.constant 0 : index
    %241 = vector.load %arg3[%c400, %c0_150] : memref<680x8xf32, #tpu.memory_space<vmem>>, vector<8x1xf32>
    %c408 = arith.constant 408 : index
    %c0_151 = arith.constant 0 : index
    %242 = vector.load %arg3[%c408, %c0_151] : memref<680x8xf32, #tpu.memory_space<vmem>>, vector<8x1xf32>
    %cst_152 = arith.constant dense<0.000000e+00> : vector<8xf32>
    %243 = vector.multi_reduction <add>, %240, %cst_152 [1] : vector<8x8xf32> to vector<8xf32>
    %244 = vector.shape_cast %243 : vector<8xf32> to vector<8x1xf32>
    %cst_153 = arith.constant 8.000000e+00 : f32
    %245 = vector.broadcast %cst_153 : f32 to vector<8x1xf32>
    %246 = arith.divf %244, %245 : vector<8x1xf32>
    %247 = vector.broadcast %246 : vector<8x1xf32> to vector<8x8xf32>
    %248 = arith.subf %240, %247 : vector<8x8xf32>
    %249 = arith.mulf %248, %248 : vector<8x8xf32>
    %cst_154 = arith.constant dense<0.000000e+00> : vector<8xf32>
    %250 = vector.multi_reduction <add>, %249, %cst_154 [1] : vector<8x8xf32> to vector<8xf32>
    %251 = vector.shape_cast %250 : vector<8xf32> to vector<8x1xf32>
    %cst_155 = arith.constant 8.000000e+00 : f32
    %252 = vector.broadcast %cst_155 : f32 to vector<8x1xf32>
    %253 = arith.divf %251, %252 : vector<8x1xf32>
    %cst_156 = arith.constant 9.99999974E-6 : f32
    %254 = vector.broadcast %cst_156 : f32 to vector<8x1xf32>
    %255 = arith.addf %253, %254 : vector<8x1xf32>
    %256 = math.rsqrt %255 : vector<8x1xf32>
    %257 = vector.broadcast %256 : vector<8x1xf32> to vector<8x8xf32>
    %258 = arith.mulf %248, %257 : vector<8x8xf32>
    %259 = vector.broadcast %241 : vector<8x1xf32> to vector<8x8xf32>
    %260 = arith.mulf %258, %259 : vector<8x8xf32>
    %261 = vector.broadcast %242 : vector<8x1xf32> to vector<8x8xf32>
    %262 = arith.addf %260, %261 : vector<8x8xf32>
    %c192_157 = arith.constant 192 : index
    %c0_158 = arith.constant 0 : index
    %263 = vector.load %arg4[%c192_157, %c0_158] : memref<256x16xf32, #tpu.memory_space<vmem>>, vector<16x8xf32>
    %cst_159 = arith.constant dense<0.000000e+00> : vector<8x8xf32>
    %264 = tpu.matmul %204, %263, %cst_159 {dimension_numbers = #tpu.dot_dimension_numbers<[1], [0], [0], [1], [0, 0, 1, 1], [], []>} : vector<8x16xf32>, vector<16x8xf32>, vector<8x8xf32> -> vector<8x8xf32>
    %265 = arith.addf %262, %264 : vector<8x8xf32>
    %c416 = arith.constant 416 : index
    %c0_160 = arith.constant 0 : index
    %266 = vector.load %arg3[%c416, %c0_160] : memref<680x8xf32, #tpu.memory_space<vmem>>, vector<8x8xf32>
    %cst_161 = arith.constant dense<0.000000e+00> : vector<8x8xf32>
    %267 = tpu.matmul %266, %265, %cst_161 {dimension_numbers = #tpu.dot_dimension_numbers<[1], [0], [0], [1], [0, 0, 1, 1], [], []>} : vector<8x8xf32>, vector<8x8xf32>, vector<8x8xf32> -> vector<8x8xf32>
    %c424 = arith.constant 424 : index
    %c0_162 = arith.constant 0 : index
    %268 = vector.load %arg3[%c424, %c0_162] : memref<680x8xf32, #tpu.memory_space<vmem>>, vector<8x1xf32>
    %269 = vector.broadcast %268 : vector<8x1xf32> to vector<8x8xf32>
    %270 = arith.addf %267, %269 : vector<8x8xf32>
    %cst_163 = arith.constant 0.000000e+00 : f32
    %271 = vector.broadcast %cst_163 : f32 to vector<8x8xf32>
    %272 = arith.maximumf %270, %271 : vector<8x8xf32>
    %c432 = arith.constant 432 : index
    %c0_164 = arith.constant 0 : index
    %273 = vector.load %arg3[%c432, %c0_164] : memref<680x8xf32, #tpu.memory_space<vmem>>, vector<8x8xf32>
    %cst_165 = arith.constant dense<0.000000e+00> : vector<8x8xf32>
    %274 = tpu.matmul %273, %272, %cst_165 {dimension_numbers = #tpu.dot_dimension_numbers<[1], [0], [0], [1], [0, 0, 1, 1], [], []>} : vector<8x8xf32>, vector<8x8xf32>, vector<8x8xf32> -> vector<8x8xf32>
    %c440 = arith.constant 440 : index
    %c0_166 = arith.constant 0 : index
    %275 = vector.load %arg3[%c440, %c0_166] : memref<680x8xf32, #tpu.memory_space<vmem>>, vector<8x1xf32>
    %276 = vector.broadcast %275 : vector<8x1xf32> to vector<8x8xf32>
    %277 = arith.addf %274, %276 : vector<8x8xf32>
    %cst_167 = arith.constant 0.000000e+00 : f32
    %278 = vector.broadcast %cst_167 : f32 to vector<8x8xf32>
    %279 = arith.maximumf %277, %278 : vector<8x8xf32>
    %c448 = arith.constant 448 : index
    %c0_168 = arith.constant 0 : index
    %280 = vector.load %arg3[%c448, %c0_168] : memref<680x8xf32, #tpu.memory_space<vmem>>, vector<8x1xf32>
    %c456 = arith.constant 456 : index
    %c0_169 = arith.constant 0 : index
    %281 = vector.load %arg3[%c456, %c0_169] : memref<680x8xf32, #tpu.memory_space<vmem>>, vector<8x1xf32>
    %cst_170 = arith.constant dense<0.000000e+00> : vector<8xf32>
    %282 = vector.multi_reduction <add>, %279, %cst_170 [1] : vector<8x8xf32> to vector<8xf32>
    %283 = vector.shape_cast %282 : vector<8xf32> to vector<8x1xf32>
    %cst_171 = arith.constant 8.000000e+00 : f32
    %284 = vector.broadcast %cst_171 : f32 to vector<8x1xf32>
    %285 = arith.divf %283, %284 : vector<8x1xf32>
    %286 = vector.broadcast %285 : vector<8x1xf32> to vector<8x8xf32>
    %287 = arith.subf %279, %286 : vector<8x8xf32>
    %288 = arith.mulf %287, %287 : vector<8x8xf32>
    %cst_172 = arith.constant dense<0.000000e+00> : vector<8xf32>
    %289 = vector.multi_reduction <add>, %288, %cst_172 [1] : vector<8x8xf32> to vector<8xf32>
    %290 = vector.shape_cast %289 : vector<8xf32> to vector<8x1xf32>
    %cst_173 = arith.constant 8.000000e+00 : f32
    %291 = vector.broadcast %cst_173 : f32 to vector<8x1xf32>
    %292 = arith.divf %290, %291 : vector<8x1xf32>
    %cst_174 = arith.constant 9.99999974E-6 : f32
    %293 = vector.broadcast %cst_174 : f32 to vector<8x1xf32>
    %294 = arith.addf %292, %293 : vector<8x1xf32>
    %295 = math.rsqrt %294 : vector<8x1xf32>
    %296 = vector.broadcast %295 : vector<8x1xf32> to vector<8x8xf32>
    %297 = arith.mulf %287, %296 : vector<8x8xf32>
    %298 = vector.broadcast %280 : vector<8x1xf32> to vector<8x8xf32>
    %299 = arith.mulf %297, %298 : vector<8x8xf32>
    %300 = vector.broadcast %281 : vector<8x1xf32> to vector<8x8xf32>
    %301 = arith.addf %299, %300 : vector<8x8xf32>
    %302 = arith.addf %265, %301 : vector<8x8xf32>
    %c464 = arith.constant 464 : index
    %c0_175 = arith.constant 0 : index
    %303 = vector.load %arg3[%c464, %c0_175] : memref<680x8xf32, #tpu.memory_space<vmem>>, vector<8x8xf32>
    %cst_176 = arith.constant dense<0.000000e+00> : vector<8x8xf32>
    %304 = tpu.matmul %303, %302, %cst_176 {dimension_numbers = #tpu.dot_dimension_numbers<[1], [0], [0], [1], [0, 0, 1, 1], [], []>} : vector<8x8xf32>, vector<8x8xf32>, vector<8x8xf32> -> vector<8x8xf32>
    %c472 = arith.constant 472 : index
    %c0_177 = arith.constant 0 : index
    %305 = vector.load %arg3[%c472, %c0_177] : memref<680x8xf32, #tpu.memory_space<vmem>>, vector<8x1xf32>
    %306 = vector.broadcast %305 : vector<8x1xf32> to vector<8x8xf32>
    %307 = arith.addf %304, %306 : vector<8x8xf32>
    %c480 = arith.constant 480 : index
    %c0_178 = arith.constant 0 : index
    %308 = vector.load %arg3[%c480, %c0_178] : memref<680x8xf32, #tpu.memory_space<vmem>>, vector<8x8xf32>
    %cst_179 = arith.constant dense<0.000000e+00> : vector<8x8xf32>
    %309 = tpu.matmul %308, %307, %cst_179 {dimension_numbers = #tpu.dot_dimension_numbers<[1], [0], [0], [1], [0, 0, 1, 1], [], []>} : vector<8x8xf32>, vector<8x8xf32>, vector<8x8xf32> -> vector<8x8xf32>
    %c488 = arith.constant 488 : index
    %c0_180 = arith.constant 0 : index
    %310 = vector.load %arg3[%c488, %c0_180] : memref<680x8xf32, #tpu.memory_space<vmem>>, vector<8x1xf32>
    %311 = vector.broadcast %310 : vector<8x1xf32> to vector<8x8xf32>
    %312 = arith.addf %309, %311 : vector<8x8xf32>
    %c496 = arith.constant 496 : index
    %c0_181 = arith.constant 0 : index
    %313 = vector.load %arg3[%c496, %c0_181] : memref<680x8xf32, #tpu.memory_space<vmem>>, vector<24x8xf32>
    %cst_182 = arith.constant dense<0.000000e+00> : vector<24x8xf32>
    %314 = tpu.matmul %313, %312, %cst_182 {dimension_numbers = #tpu.dot_dimension_numbers<[1], [0], [0], [1], [0, 0, 1, 1], [], []>} : vector<24x8xf32>, vector<8x8xf32>, vector<24x8xf32> -> vector<24x8xf32>
    %315 = vector.extract_strided_slice %314 {offsets = [0, 0], sizes = [8, 8], strides = [1, 1]} : vector<24x8xf32> to vector<8x8xf32>
    %c208_183 = arith.constant 208 : index
    %c0_184 = arith.constant 0 : index
    %316 = vector.load %arg4[%c208_183, %c0_184] : memref<256x16xf32, #tpu.memory_space<vmem>>, vector<8x8xf32>
    %cst_185 = arith.constant dense<0.000000e+00> : vector<8x8xf32>
    %317 = tpu.matmul %315, %316, %cst_185 {dimension_numbers = #tpu.dot_dimension_numbers<[1], [0], [0], [1], [0, 0, 1, 1], [], []>} : vector<8x8xf32>, vector<8x8xf32>, vector<8x8xf32> -> vector<8x8xf32>
    %318 = vector.extract_strided_slice %314 {offsets = [8, 0], sizes = [8, 8], strides = [1, 1]} : vector<24x8xf32> to vector<8x8xf32>
    %c216_186 = arith.constant 216 : index
    %c0_187 = arith.constant 0 : index
    %319 = vector.load %arg4[%c216_186, %c0_187] : memref<256x16xf32, #tpu.memory_space<vmem>>, vector<8x8xf32>
    %cst_188 = arith.constant dense<0.000000e+00> : vector<8x8xf32>
    %320 = tpu.matmul %318, %319, %cst_188 {dimension_numbers = #tpu.dot_dimension_numbers<[1], [0], [0], [1], [0, 0, 1, 1], [], []>} : vector<8x8xf32>, vector<8x8xf32>, vector<8x8xf32> -> vector<8x8xf32>
    %321 = arith.addf %317, %320 : vector<8x8xf32>
    %322 = vector.extract_strided_slice %314 {offsets = [16, 0], sizes = [8, 8], strides = [1, 1]} : vector<24x8xf32> to vector<8x8xf32>
    %c224_189 = arith.constant 224 : index
    %c0_190 = arith.constant 0 : index
    %323 = vector.load %arg4[%c224_189, %c0_190] : memref<256x16xf32, #tpu.memory_space<vmem>>, vector<8x8xf32>
    %cst_191 = arith.constant dense<0.000000e+00> : vector<8x8xf32>
    %324 = tpu.matmul %322, %323, %cst_191 {dimension_numbers = #tpu.dot_dimension_numbers<[1], [0], [0], [1], [0, 0, 1, 1], [], []>} : vector<8x8xf32>, vector<8x8xf32>, vector<8x8xf32> -> vector<8x8xf32>
    %325 = arith.addf %321, %324 : vector<8x8xf32>
    %c520 = arith.constant 520 : index
    %c0_192 = arith.constant 0 : index
    %326 = vector.load %arg3[%c520, %c0_192] : memref<680x8xf32, #tpu.memory_space<vmem>>, vector<8x8xf32>
    %cst_193 = arith.constant dense<0.000000e+00> : vector<8x1xf32>
    %327 = tpu.matmul %326, %155, %cst_193 {dimension_numbers = #tpu.dot_dimension_numbers<[1], [0], [0], [1], [0, 0, 1, 1], [], []>} : vector<8x8xf32>, vector<8x1xf32>, vector<8x1xf32> -> vector<8x1xf32>
    %328 = vector.broadcast %327 : vector<8x1xf32> to vector<8x8xf32>
    %329 = arith.addf %325, %328 : vector<8x8xf32>
    %c528 = arith.constant 528 : index
    %c0_194 = arith.constant 0 : index
    %330 = vector.load %arg3[%c528, %c0_194] : memref<680x8xf32, #tpu.memory_space<vmem>>, vector<8x1xf32>
    %331 = vector.broadcast %330 : vector<8x1xf32> to vector<8x8xf32>
    %332 = arith.addf %329, %331 : vector<8x8xf32>
    %cst_195 = arith.constant 0.000000e+00 : f32
    %333 = vector.broadcast %cst_195 : f32 to vector<8x8xf32>
    %334 = arith.maximumf %332, %333 : vector<8x8xf32>
    %c536 = arith.constant 536 : index
    %c0_196 = arith.constant 0 : index
    %335 = vector.load %arg3[%c536, %c0_196] : memref<680x8xf32, #tpu.memory_space<vmem>>, vector<24x8xf32>
    %cst_197 = arith.constant dense<0.000000e+00> : vector<24x8xf32>
    %336 = tpu.matmul %335, %334, %cst_197 {dimension_numbers = #tpu.dot_dimension_numbers<[1], [0], [0], [1], [0, 0, 1, 1], [], []>} : vector<24x8xf32>, vector<8x8xf32>, vector<24x8xf32> -> vector<24x8xf32>
    %337 = vector.extract_strided_slice %336 {offsets = [0, 0], sizes = [8, 8], strides = [1, 1]} : vector<24x8xf32> to vector<8x8xf32>
    %c208_198 = arith.constant 208 : index
    %c0_199 = arith.constant 0 : index
    %338 = vector.load %arg4[%c208_198, %c0_199] : memref<256x16xf32, #tpu.memory_space<vmem>>, vector<8x8xf32>
    %cst_200 = arith.constant dense<0.000000e+00> : vector<8x8xf32>
    %339 = tpu.matmul %337, %338, %cst_200 {dimension_numbers = #tpu.dot_dimension_numbers<[1], [0], [0], [1], [0, 0, 1, 1], [], []>} : vector<8x8xf32>, vector<8x8xf32>, vector<8x8xf32> -> vector<8x8xf32>
    %340 = vector.extract_strided_slice %336 {offsets = [8, 0], sizes = [8, 8], strides = [1, 1]} : vector<24x8xf32> to vector<8x8xf32>
    %c216_201 = arith.constant 216 : index
    %c0_202 = arith.constant 0 : index
    %341 = vector.load %arg4[%c216_201, %c0_202] : memref<256x16xf32, #tpu.memory_space<vmem>>, vector<8x8xf32>
    %cst_203 = arith.constant dense<0.000000e+00> : vector<8x8xf32>
    %342 = tpu.matmul %340, %341, %cst_203 {dimension_numbers = #tpu.dot_dimension_numbers<[1], [0], [0], [1], [0, 0, 1, 1], [], []>} : vector<8x8xf32>, vector<8x8xf32>, vector<8x8xf32> -> vector<8x8xf32>
    %343 = arith.addf %339, %342 : vector<8x8xf32>
    %344 = vector.extract_strided_slice %336 {offsets = [16, 0], sizes = [8, 8], strides = [1, 1]} : vector<24x8xf32> to vector<8x8xf32>
    %c224_204 = arith.constant 224 : index
    %c0_205 = arith.constant 0 : index
    %345 = vector.load %arg4[%c224_204, %c0_205] : memref<256x16xf32, #tpu.memory_space<vmem>>, vector<8x8xf32>
    %cst_206 = arith.constant dense<0.000000e+00> : vector<8x8xf32>
    %346 = tpu.matmul %344, %345, %cst_206 {dimension_numbers = #tpu.dot_dimension_numbers<[1], [0], [0], [1], [0, 0, 1, 1], [], []>} : vector<8x8xf32>, vector<8x8xf32>, vector<8x8xf32> -> vector<8x8xf32>
    %347 = arith.addf %343, %346 : vector<8x8xf32>
    %c560 = arith.constant 560 : index
    %c0_207 = arith.constant 0 : index
    %348 = vector.load %arg3[%c560, %c0_207] : memref<680x8xf32, #tpu.memory_space<vmem>>, vector<8x8xf32>
    %cst_208 = arith.constant dense<0.000000e+00> : vector<8x1xf32>
    %349 = tpu.matmul %348, %155, %cst_208 {dimension_numbers = #tpu.dot_dimension_numbers<[1], [0], [0], [1], [0, 0, 1, 1], [], []>} : vector<8x8xf32>, vector<8x1xf32>, vector<8x1xf32> -> vector<8x1xf32>
    %350 = vector.broadcast %349 : vector<8x1xf32> to vector<8x8xf32>
    %351 = arith.addf %347, %350 : vector<8x8xf32>
    %c568 = arith.constant 568 : index
    %c0_209 = arith.constant 0 : index
    %352 = vector.load %arg3[%c568, %c0_209] : memref<680x8xf32, #tpu.memory_space<vmem>>, vector<8x1xf32>
    %353 = vector.broadcast %352 : vector<8x1xf32> to vector<8x8xf32>
    %354 = arith.addf %351, %353 : vector<8x8xf32>
    %cst_210 = arith.constant 0.000000e+00 : f32
    %355 = vector.broadcast %cst_210 : f32 to vector<8x8xf32>
    %356 = arith.maximumf %354, %355 : vector<8x8xf32>
    %c576 = arith.constant 576 : index
    %c0_211 = arith.constant 0 : index
    %357 = vector.load %arg3[%c576, %c0_211] : memref<680x8xf32, #tpu.memory_space<vmem>>, vector<24x8xf32>
    %cst_212 = arith.constant dense<0.000000e+00> : vector<24x8xf32>
    %358 = tpu.matmul %357, %334, %cst_212 {dimension_numbers = #tpu.dot_dimension_numbers<[1], [0], [0], [1], [0, 0, 1, 1], [], []>} : vector<24x8xf32>, vector<8x8xf32>, vector<24x8xf32> -> vector<24x8xf32>
    %359 = vector.extract_strided_slice %358 {offsets = [0, 0], sizes = [8, 8], strides = [1, 1]} : vector<24x8xf32> to vector<8x8xf32>
    %c208_213 = arith.constant 208 : index
    %c0_214 = arith.constant 0 : index
    %360 = vector.load %arg4[%c208_213, %c0_214] : memref<256x16xf32, #tpu.memory_space<vmem>>, vector<8x8xf32>
    %cst_215 = arith.constant dense<0.000000e+00> : vector<8x8xf32>
    %361 = tpu.matmul %359, %360, %cst_215 {dimension_numbers = #tpu.dot_dimension_numbers<[1], [0], [0], [1], [0, 0, 1, 1], [], []>} : vector<8x8xf32>, vector<8x8xf32>, vector<8x8xf32> -> vector<8x8xf32>
    %362 = vector.extract_strided_slice %358 {offsets = [8, 0], sizes = [8, 8], strides = [1, 1]} : vector<24x8xf32> to vector<8x8xf32>
    %c216_216 = arith.constant 216 : index
    %c0_217 = arith.constant 0 : index
    %363 = vector.load %arg4[%c216_216, %c0_217] : memref<256x16xf32, #tpu.memory_space<vmem>>, vector<8x8xf32>
    %cst_218 = arith.constant dense<0.000000e+00> : vector<8x8xf32>
    %364 = tpu.matmul %362, %363, %cst_218 {dimension_numbers = #tpu.dot_dimension_numbers<[1], [0], [0], [1], [0, 0, 1, 1], [], []>} : vector<8x8xf32>, vector<8x8xf32>, vector<8x8xf32> -> vector<8x8xf32>
    %365 = arith.addf %361, %364 : vector<8x8xf32>
    %366 = vector.extract_strided_slice %358 {offsets = [16, 0], sizes = [8, 8], strides = [1, 1]} : vector<24x8xf32> to vector<8x8xf32>
    %c224_219 = arith.constant 224 : index
    %c0_220 = arith.constant 0 : index
    %367 = vector.load %arg4[%c224_219, %c0_220] : memref<256x16xf32, #tpu.memory_space<vmem>>, vector<8x8xf32>
    %cst_221 = arith.constant dense<0.000000e+00> : vector<8x8xf32>
    %368 = tpu.matmul %366, %367, %cst_221 {dimension_numbers = #tpu.dot_dimension_numbers<[1], [0], [0], [1], [0, 0, 1, 1], [], []>} : vector<8x8xf32>, vector<8x8xf32>, vector<8x8xf32> -> vector<8x8xf32>
    %369 = arith.addf %365, %368 : vector<8x8xf32>
    %c600 = arith.constant 600 : index
    %c0_222 = arith.constant 0 : index
    %370 = vector.load %arg3[%c600, %c0_222] : memref<680x8xf32, #tpu.memory_space<vmem>>, vector<8x8xf32>
    %cst_223 = arith.constant dense<0.000000e+00> : vector<8x1xf32>
    %371 = tpu.matmul %370, %155, %cst_223 {dimension_numbers = #tpu.dot_dimension_numbers<[1], [0], [0], [1], [0, 0, 1, 1], [], []>} : vector<8x8xf32>, vector<8x1xf32>, vector<8x1xf32> -> vector<8x1xf32>
    %372 = vector.broadcast %371 : vector<8x1xf32> to vector<8x8xf32>
    %373 = arith.addf %369, %372 : vector<8x8xf32>
    %c608 = arith.constant 608 : index
    %c0_224 = arith.constant 0 : index
    %374 = vector.load %arg3[%c608, %c0_224] : memref<680x8xf32, #tpu.memory_space<vmem>>, vector<8x1xf32>
    %375 = vector.broadcast %374 : vector<8x1xf32> to vector<8x8xf32>
    %376 = arith.addf %373, %375 : vector<8x8xf32>
    %cst_225 = arith.constant 0.000000e+00 : f32
    %377 = vector.broadcast %cst_225 : f32 to vector<8x8xf32>
    %378 = arith.maximumf %376, %377 : vector<8x8xf32>
    %c232_226 = arith.constant 232 : index
    %c0_227 = arith.constant 0 : index
    %379 = vector.load %arg4[%c232_226, %c0_227] : memref<256x16xf32, #tpu.memory_space<vmem>>, vector<8x16xf32>
    %cst_228 = arith.constant dense<0.000000e+00> : vector<8x16xf32>
    %380 = tpu.matmul %356, %379, %cst_228 {dimension_numbers = #tpu.dot_dimension_numbers<[1], [0], [0], [1], [0, 0, 1, 1], [], []>} : vector<8x8xf32>, vector<8x16xf32>, vector<8x16xf32> -> vector<8x16xf32>
    %c240_229 = arith.constant 240 : index
    %c0_230 = arith.constant 0 : index
    %381 = vector.load %arg4[%c240_229, %c0_230] : memref<256x16xf32, #tpu.memory_space<vmem>>, vector<8x16xf32>
    %cst_231 = arith.constant dense<0.000000e+00> : vector<8x16xf32>
    %382 = tpu.matmul %378, %381, %cst_231 {dimension_numbers = #tpu.dot_dimension_numbers<[1], [0], [0], [1], [0, 0, 1, 1], [], []>} : vector<8x8xf32>, vector<8x16xf32>, vector<8x16xf32> -> vector<8x16xf32>
    %383 = arith.addf %380, %382 : vector<8x16xf32>
    %c248 = arith.constant 248 : index
    %c0_232 = arith.constant 0 : index
    %384 = vector.load %arg4[%c248, %c0_232] : memref<256x16xf32, #tpu.memory_space<vmem>>, vector<8x16xf32>
    %cst_233 = arith.constant dense<0.000000e+00> : vector<8x16xf32>
    %385 = tpu.matmul %312, %384, %cst_233 {dimension_numbers = #tpu.dot_dimension_numbers<[1], [0], [0], [1], [0, 0, 1, 1], [], []>} : vector<8x8xf32>, vector<8x16xf32>, vector<8x16xf32> -> vector<8x16xf32>
    %386 = arith.addf %383, %385 : vector<8x16xf32>
    %c616 = arith.constant 616 : index
    %c0_234 = arith.constant 0 : index
    %387 = vector.load %arg3[%c616, %c0_234] : memref<680x8xf32, #tpu.memory_space<vmem>>, vector<8x8xf32>
    %cst_235 = arith.constant dense<0.000000e+00> : vector<8x16xf32>
    %388 = tpu.matmul %387, %386, %cst_235 {dimension_numbers = #tpu.dot_dimension_numbers<[1], [0], [0], [1], [0, 0, 1, 1], [], []>} : vector<8x8xf32>, vector<8x16xf32>, vector<8x16xf32> -> vector<8x16xf32>
    %c624 = arith.constant 624 : index
    %c0_236 = arith.constant 0 : index
    %389 = vector.load %arg3[%c624, %c0_236] : memref<680x8xf32, #tpu.memory_space<vmem>>, vector<8x8xf32>
    %cst_237 = arith.constant dense<0.000000e+00> : vector<8x1xf32>
    %390 = tpu.matmul %389, %155, %cst_237 {dimension_numbers = #tpu.dot_dimension_numbers<[1], [0], [0], [1], [0, 0, 1, 1], [], []>} : vector<8x8xf32>, vector<8x1xf32>, vector<8x1xf32> -> vector<8x1xf32>
    %391 = vector.broadcast %390 : vector<8x1xf32> to vector<8x16xf32>
    %392 = arith.addf %388, %391 : vector<8x16xf32>
    %c632 = arith.constant 632 : index
    %c0_238 = arith.constant 0 : index
    %393 = vector.load %arg3[%c632, %c0_238] : memref<680x8xf32, #tpu.memory_space<vmem>>, vector<8x1xf32>
    %394 = vector.broadcast %393 : vector<8x1xf32> to vector<8x16xf32>
    %395 = arith.addf %392, %394 : vector<8x16xf32>
    %cst_239 = arith.constant 0.000000e+00 : f32
    %396 = vector.broadcast %cst_239 : f32 to vector<8x16xf32>
    %397 = arith.maximumf %395, %396 : vector<8x16xf32>
    %c640 = arith.constant 640 : index
    %c0_240 = arith.constant 0 : index
    %398 = vector.load %arg3[%c640, %c0_240] : memref<680x8xf32, #tpu.memory_space<vmem>>, vector<8x8xf32>
    %cst_241 = arith.constant dense<0.000000e+00> : vector<8x16xf32>
    %399 = tpu.matmul %398, %397, %cst_241 {dimension_numbers = #tpu.dot_dimension_numbers<[1], [0], [0], [1], [0, 0, 1, 1], [], []>} : vector<8x8xf32>, vector<8x16xf32>, vector<8x16xf32> -> vector<8x16xf32>
    %c648 = arith.constant 648 : index
    %c0_242 = arith.constant 0 : index
    %400 = vector.load %arg3[%c648, %c0_242] : memref<680x8xf32, #tpu.memory_space<vmem>>, vector<8x8xf32>
    %cst_243 = arith.constant dense<0.000000e+00> : vector<8x1xf32>
    %401 = tpu.matmul %400, %155, %cst_243 {dimension_numbers = #tpu.dot_dimension_numbers<[1], [0], [0], [1], [0, 0, 1, 1], [], []>} : vector<8x8xf32>, vector<8x1xf32>, vector<8x1xf32> -> vector<8x1xf32>
    %402 = vector.broadcast %401 : vector<8x1xf32> to vector<8x16xf32>
    %403 = arith.addf %399, %402 : vector<8x16xf32>
    %c656 = arith.constant 656 : index
    %c0_244 = arith.constant 0 : index
    %404 = vector.load %arg3[%c656, %c0_244] : memref<680x8xf32, #tpu.memory_space<vmem>>, vector<8x1xf32>
    %405 = vector.broadcast %404 : vector<8x1xf32> to vector<8x16xf32>
    %406 = arith.addf %403, %405 : vector<8x16xf32>
    %cst_245 = arith.constant 0.000000e+00 : f32
    %407 = vector.broadcast %cst_245 : f32 to vector<8x16xf32>
    %408 = arith.maximumf %406, %407 : vector<8x16xf32>
    %409 = arith.addf %386, %408 : vector<8x16xf32>
    %c664 = arith.constant 664 : index
    %c0_246 = arith.constant 0 : index
    %410 = vector.load %arg3[%c664, %c0_246] : memref<680x8xf32, #tpu.memory_space<vmem>>, vector<4x8xf32>
    %cst_247 = arith.constant dense<0.000000e+00> : vector<4x16xf32>
    %411 = tpu.matmul %410, %409, %cst_247 {dimension_numbers = #tpu.dot_dimension_numbers<[1], [0], [0], [1], [0, 0, 1, 1], [], []>} : vector<4x8xf32>, vector<8x16xf32>, vector<4x16xf32> -> vector<4x16xf32>
    %c672 = arith.constant 672 : index
    %c0_248 = arith.constant 0 : index
    %412 = vector.load %arg3[%c672, %c0_248] : memref<680x8xf32, #tpu.memory_space<vmem>>, vector<4x1xf32>
    %413 = vector.broadcast %412 : vector<4x1xf32> to vector<4x16xf32>
    %414 = arith.addf %411, %413 : vector<4x16xf32>
    %c0_249 = arith.constant 0 : index
    %c0_250 = arith.constant 0 : index
    %c0_251 = arith.constant 0 : index
    %415 = vector.load %arg5[%c0_249, %c0_250, %c0_251] : memref<1x8x8xf32, #tpu.memory_space<vmem>>, vector<1x8x8xf32>
    %416 = vector.shape_cast %415 : vector<1x8x8xf32> to vector<8x8xf32>
    %417 = vector.shape_cast %307 : vector<8x8xf32> to vector<1x8x8xf32>
    tpu.vector_store %arg5[%c0_249, %c0_250, %c0_251], %417 {strides = array<i32>} : memref<1x8x8xf32, #tpu.memory_space<vmem>>, vector<1x8x8xf32>,
    %c0_252 = arith.constant 0 : index
    %c0_253 = arith.constant 0 : index
    %c0_254 = arith.constant 0 : index
    %418 = vector.load %arg6[%c0_252, %c0_253, %c0_254] : memref<1x8x1xf32, #tpu.memory_space<vmem>>, vector<1x8x1xf32>
    %419 = vector.shape_cast %418 : vector<1x8x1xf32> to vector<8x1xf32>
    %420 = vector.shape_cast %155 : vector<8x1xf32> to vector<1x8x1xf32>
    tpu.vector_store %arg6[%c0_252, %c0_253, %c0_254], %420 {strides = array<i32>} : memref<1x8x1xf32, #tpu.memory_space<vmem>>, vector<1x8x1xf32>,
    %c0_255 = arith.constant 0 : index
    %c0_256 = arith.constant 0 : index
    %c0_257 = arith.constant 0 : index
    %421 = vector.load %arg7[%c0_255, %c0_256, %c0_257] : memref<1x4x16xf32, #tpu.memory_space<vmem>>, vector<1x4x16xf32>
    %422 = vector.shape_cast %421 : vector<1x4x16xf32> to vector<4x16xf32>
    %423 = vector.shape_cast %414 : vector<4x16xf32> to vector<1x4x16xf32>
    tpu.vector_store %arg7[%c0_255, %c0_256, %c0_257], %423 {strides = array<i32>} : memref<1x4x16xf32, #tpu.memory_space<vmem>>, vector<1x4x16xf32>,
    return
  }
  func.func @transform_0(%arg0: i32) -> (i32, i32, i32) {
    %c0_i32 = arith.constant 0 : i32
    %c0_i32_0 = arith.constant 0 : i32
    %c0_i32_1 = arith.constant 0 : i32
    return %arg0, %c0_i32, %c0_i32_0 : i32, i32, i32
  }
  func.func @transform_1(%arg0: i32) -> (i32, i32, i32) {
    %c0_i32 = arith.constant 0 : i32
    %c0_i32_0 = arith.constant 0 : i32
    %c0_i32_1 = arith.constant 0 : i32
    return %arg0, %c0_i32, %c0_i32_0 : i32, i32, i32
  }
  func.func @transform_2(%arg0: i32) -> (i32, i32) {
    %c0_i32 = arith.constant 0 : i32
    %c0_i32_0 = arith.constant 0 : i32
    %c0_i32_1 = arith.constant 0 : i32
    return %c0_i32, %c0_i32_0 : i32, i32
  }
  func.func @transform_3(%arg0: i32) -> (i32, i32) {
    %c0_i32 = arith.constant 0 : i32
    %c0_i32_0 = arith.constant 0 : i32
    %c0_i32_1 = arith.constant 0 : i32
    return %c0_i32, %c0_i32_0 : i32, i32
  }
  func.func @transform_4(%arg0: i32) -> (i32, i32, i32) {
    %c0_i32 = arith.constant 0 : i32
    %c0_i32_0 = arith.constant 0 : i32
    %c0_i32_1 = arith.constant 0 : i32
    return %arg0, %c0_i32, %c0_i32_0 : i32, i32, i32
  }
  func.func @transform_5(%arg0: i32) -> (i32, i32, i32) {
    %c0_i32 = arith.constant 0 : i32
    %c0_i32_0 = arith.constant 0 : i32
    %c0_i32_1 = arith.constant 0 : i32
    return %arg0, %c0_i32, %c0_i32_0 : i32, i32, i32
  }
  func.func @transform_6(%arg0: i32) -> (i32, i32, i32) {
    %c0_i32 = arith.constant 0 : i32
    %c0_i32_0 = arith.constant 0 : i32
    %c0_i32_1 = arith.constant 0 : i32
    return %arg0, %c0_i32, %c0_i32_0 : i32, i32, i32
  }
}

</mosaic_0001>

<llo_original>
// kernel: tpu_custom_call.1
$region0: #{tpu_custom_call.1}
  #allocation0 [shape = 'u32[]', space=smem, size = 0x4, offset = 0x4, fixed_abs, tag = 'smem constant byte address 0x4 - core index']
  #allocation1 [shape = 'u32[144,128]{1,0:T(1,128)}', space=vmem, size = 0x12000, scoped, tag = 'internal scratch']
  %s0 = inlined_call_operand.vmem [shape: f32[2,4,16], index: 0, kind: input, shape index: {}]
  %s1 = inlined_call_operand.vmem [shape: f32[2,4,16], index: 1, kind: input, shape index: {}]
  %s2 = inlined_call_operand.vmem [shape: f32[680,8], index: 2, kind: input, shape index: {}]
  %s3 = inlined_call_operand.vmem [shape: f32[256,16], index: 3, kind: input, shape index: {}]
  %s4 = inlined_call_operand.hbm [shape: f32[2,8,8], index: 4, kind: output, shape index: {0}]
  %s5 = inlined_call_operand.vmem [shape: f32[2,8,1], index: 5, kind: output, shape index: {1}]
  %s6 = inlined_call_operand.hbm [shape: f32[2,4,16], index: 6, kind: output, shape index: {2}]
  %7 = xla_tuple %s4, %s5, %s6
  %s8 = sld [smem:[#allocation0]]
  $region65: #{tpu_custom_call.1} parent=0
    _
  %s10 = ssub.s32 1, %s8
  %s11 = scalar_select 0, %s10, %s8
  $region1: #{tpu_custom_call.1} parent=0
    #allocation2 [shape = 'u8[8192]{0}', space=vmem, size = 0x2000, scoped, tag = 'output window, operand 0']
    #allocation3 [shape = 's32[2]{0}', space=sflag, size = 0x8, scoped, tag = 'scoped memory for tpu_custom_call.1']
    #allocation4 [shape = 'u8[4096]{0}', space=vmem, size = 0x1000, scoped, tag = 'output window, operand 2']
    #allocation5 [shape = 's32[2]{0}', space=sflag, size = 0x8, scoped, tag = 'scoped memory for tpu_custom_call.1']
    %12 = vsyncpa [#allocation3], 0
    %s13 = scalar_lea.sflag [#allocation3], 1
    %14 = vsyncpa %s13, 0
    %15 = vsyncpa [#allocation5], 0
    %s16 = scalar_lea.sflag [#allocation5], 1
    %17 = vsyncpa %s16, 0
    loop: start=0, step=1, limit=4
    $region2: #{tpu_custom_call.1} parent=1 // loop_pre_header
      _
    $region3: #{tpu_custom_call.1} parent=1 // loop_header
      %s19 = sphi 0, %s23
      %p20 = scmp.ge.s32.totalorder %s19, 4
      %s29 = sphi 0, %s31
      %s32 = sphi 0, %s29
      %s33 = sphi 0, %s32
      %s49 = sphi 0, %s33
      %s55 = sphi 0, %s57
      %s58 = sphi 0, %s55
      %s59 = sphi 0, %s58
      %s75 = sphi 0, %s59
      %s79 = sphi 0, %s79
      %s81 = sphi 0, %s79
      %s82 = sphi 0, %s81
      %s96 = sphi 0, %s82
      %s100 = sphi 0, %s100
      %s102 = sphi 0, %s100
      %s103 = sphi 0, %s102
      %s117 = sphi 0, %s103
      %s123 = sphi 0, %s125
      %s126 = sphi 0, %s123
      %s127 = sphi 0, %s126
      %s143 = sphi 0, %s127
      %s149 = sphi 0, %s151
      %s152 = sphi 0, %s149
      %s153 = sphi 0, %s152
      %s169 = sphi 0, %s153
      %s175 = sphi 0, %s177
      %s178 = sphi 0, %s175
      %s179 = sphi 0, %s178
      %s195 = sphi 0, %s179
    $region4: #{tpu_custom_call.1} parent=1 // loop_header_branch
      %22 = sbr.rel (%p20) target = $region8
    $region5: #{tpu_custom_call.1} parent=1 // loop_body
      %s24 = ssub.s32 %s19, 1
      %s25 = ssub.s32 %s19, 2
      %s26 = sadd.s32 %s19, 1
      %s27 = ssub.s32 %s19, %s26
      %p28 = scmp.eq.s32.totalorder %s27, 0
      %s30 = sadd.s32 %s29, 1
      %s31 = scalar_select %p28, %s29, %s30
      %p34 = pneg %p28
      %p35 = scmp.eq.s32.totalorder %s19, 1
      %p36 = por %p34, %p35
      %p37 = scmp.ne.s32.totalorder %s29, %s32
      %p38 = scmp.eq.s32.totalorder %s19, 0
      %p39 = por %p37, %p38
      %p40 = scmp.ne.s32.totalorder %s29, %s32
      %p41 = scmp.eq.s32.totalorder %s24, 1
      %p42 = por %p40, %p41
      %p43 = scmp.ne.s32.totalorder %s32, %s33
      %p44 = scmp.eq.s32.totalorder %s24, 0
      %p45 = por %p43, %p44
      %p46 = scmp.ne.s32.totalorder %s32, %s33
      %p47 = scmp.eq.s32.totalorder %s25, 1
      %p48 = por %p46, %p47
      %p50 = scmp.ne.s32.totalorder %s33, %s49
      %p51 = scmp.eq.s32.totalorder %s25, 0
      %p52 = por %p50, %p51
      %s53 = ssub.s32 %s19, %s26
      %p54 = scmp.eq.s32.totalorder %s53, 0
      %s56 = sadd.s32 %s55, 1
      %s57 = scalar_select %p54, %s55, %s56
      %p60 = pneg %p54
      %p61 = scmp.eq.s32.totalorder %s19, 1
      %p62 = por %p60, %p61
      %p63 = scmp.ne.s32.totalorder %s55, %s58
      %p64 = scmp.eq.s32.totalorder %s19, 0
      %p65 = por %p63, %p64
      %p66 = scmp.ne.s32.totalorder %s55, %s58
      %p67 = scmp.eq.s32.totalorder %s24, 1
      %p68 = por %p66, %p67
      %p69 = scmp.ne.s32.totalorder %s58, %s59
      %p70 = scmp.eq.s32.totalorder %s24, 0
      %p71 = por %p69, %p70
      %p72 = scmp.ne.s32.totalorder %s58, %s59
      %p73 = scmp.eq.s32.totalorder %s25, 1
      %p74 = por %p72, %p73
      %p76 = scmp.ne.s32.totalorder %s59, %s75
      %p77 = scmp.eq.s32.totalorder %s25, 0
      %p78 = por %p76, %p77
      %s80 = sadd.s32 %s79, 1
      %p83 = scmp.eq.s32.totalorder %s19, 1
      %p84 = scmp.ne.s32.totalorder %s79, %s81
      %p85 = scmp.eq.s32.totalorder %s19, 0
      %p86 = por %p84, %p85
      %p87 = scmp.ne.s32.totalorder %s79, %s81
      %p88 = scmp.eq.s32.totalorder %s24, 1
      %p89 = por %p87, %p88
      %p90 = scmp.ne.s32.totalorder %s81, %s82
      %p91 = scmp.eq.s32.totalorder %s24, 0
      %p92 = por %p90, %p91
      %p93 = scmp.ne.s32.totalorder %s81, %s82
      %p94 = scmp.eq.s32.totalorder %s25, 1
      %p95 = por %p93, %p94
      %p97 = scmp.ne.s32.totalorder %s82, %s96
      %p98 = scmp.eq.s32.totalorder %s25, 0
      %p99 = por %p97, %p98
      %s101 = sadd.s32 %s100, 1
      %p104 = scmp.eq.s32.totalorder %s19, 1
      %p105 = scmp.ne.s32.totalorder %s100, %s102
      %p106 = scmp.eq.s32.totalorder %s19, 0
      %p107 = por %p105, %p106
      %p108 = scmp.ne.s32.totalorder %s100, %s102
      %p109 = scmp.eq.s32.totalorder %s24, 1
      %p110 = por %p108, %p109
      %p111 = scmp.ne.s32.totalorder %s102, %s103
      %p112 = scmp.eq.s32.totalorder %s24, 0
      %p113 = por %p111, %p112
      %p114 = scmp.ne.s32.totalorder %s102, %s103
      %p115 = scmp.eq.s32.totalorder %s25, 1
      %p116 = por %p114, %p115
      %p118 = scmp.ne.s32.totalorder %s103, %s117
      %p119 = scmp.eq.s32.totalorder %s25, 0
      %p120 = por %p118, %p119
      %s121 = ssub.s32 %s19, %s26
      %p122 = scmp.eq.s32.totalorder %s121, 0
      %s124 = sadd.s32 %s123, 1
      %s125 = scalar_select %p122, %s123, %s124
      %p128 = pneg %p122
      %p129 = scmp.eq.s32.totalorder %s19, 1
      %p130 = por %p128, %p129
      %p131 = scmp.ne.s32.totalorder %s123, %s126
      %p132 = scmp.eq.s32.totalorder %s19, 0
      %p133 = por %p131, %p132
      %p134 = scmp.ne.s32.totalorder %s123, %s126
      %p135 = scmp.eq.s32.totalorder %s24, 1
      %p136 = por %p134, %p135
      %p137 = scmp.ne.s32.totalorder %s126, %s127
      %p138 = scmp.eq.s32.totalorder %s24, 0
      %p139 = por %p137, %p138
      %p140 = scmp.ne.s32.totalorder %s126, %s127
      %p141 = scmp.eq.s32.totalorder %s25, 1
      %p142 = por %p140, %p141
      %p144 = scmp.ne.s32.totalorder %s127, %s143
      %p145 = scmp.eq.s32.totalorder %s25, 0
      %p146 = por %p144, %p145
      %s147 = ssub.s32 %s19, %s26
      %p148 = scmp.eq.s32.totalorder %s147, 0
      %s150 = sadd.s32 %s149, 1
      %s151 = scalar_select %p148, %s149, %s150
      %p154 = pneg %p148
      %p155 = scmp.eq.s32.totalorder %s19, 1
      %p156 = por %p154, %p155
      %p157 = scmp.ne.s32.totalorder %s149, %s152
      %p158 = scmp.eq.s32.totalorder %s19, 0
      %p159 = por %p157, %p158
      %p160 = scmp.ne.s32.totalorder %s149, %s152
      %p161 = scmp.eq.s32.totalorder %s24, 1
      %p162 = por %p160, %p161
      %p163 = scmp.ne.s32.totalorder %s152, %s153
      %p164 = scmp.eq.s32.totalorder %s24, 0
      %p165 = por %p163, %p164
      %p166 = scmp.ne.s32.totalorder %s152, %s153
      %p167 = scmp.eq.s32.totalorder %s25, 1
      %p168 = por %p166, %p167
      %p170 = scmp.ne.s32.totalorder %s153, %s169
      %p171 = scmp.eq.s32.totalorder %s25, 0
      %p172 = por %p170, %p171
      %s173 = ssub.s32 %s19, %s26
      %p174 = scmp.eq.s32.totalorder %s173, 0
      %s176 = sadd.s32 %s175, 1
      %s177 = scalar_select %p174, %s175, %s176
      %p180 = pneg %p174
      %p181 = scmp.eq.s32.totalorder %s19, 1
      %p182 = por %p180, %p181
      %p183 = scmp.ne.s32.totalorder %s175, %s178
      %p184 = scmp.eq.s32.totalorder %s19, 0
      %p185 = por %p183, %p184
      %p186 = scmp.ne.s32.totalorder %s175, %s178
      %p187 = scmp.eq.s32.totalorder %s24, 1
      %p188 = por %p186, %p187
      %p189 = scmp.ne.s32.totalorder %s178, %s179
      %p190 = scmp.eq.s32.totalorder %s24, 0
      %p191 = por %p189, %p190
      %p192 = scmp.ne.s32.totalorder %s178, %s179
      %p193 = scmp.eq.s32.totalorder %s25, 1
      %p194 = por %p192, %p193
      %p196 = scmp.ne.s32.totalorder %s179, %s195
      %p197 = scmp.eq.s32.totalorder %s25, 0
      %p198 = por %p196, %p197
      %p199 = scmp.le.s32.totalorder 1, %s19
      %p200 = scmp.lt.s32.totalorder %s19, 3
      %p201 = pnand %p199, %p200
      %p202 = pneg %p201
      // Predicated region
      $region9: #{tpu_custom_call.1} parent=5 // pred_check
        _
      $region10: #{tpu_custom_call.1} parent=5 // pred_check_branch
        %204 = sbr.rel (%p201) target = $region12
      $region11: #{tpu_custom_call.1} parent=5 // pred_region
        %s205 = ssub.s32 %s19, 1
        // Predicated region
        $region13: #{tpu_custom_call.1} parent=11 // pred_check
          %p206 = pneg %p92
        $region14: #{tpu_custom_call.1} parent=11 // pred_check_branch
          %208 = sbr.rel (%p206) target = $region16
        $region15: #{tpu_custom_call.1} parent=11 // pred_region
          _
        $region16: #{tpu_custom_call.1} parent=11 // pred_fallthru
          _
        // Predicated region
        $region17: #{tpu_custom_call.1} parent=11 // pred_check
          %p209 = pneg %p113
        $region18: #{tpu_custom_call.1} parent=11 // pred_check_branch
          %211 = sbr.rel (%p209) target = $region20
        $region19: #{tpu_custom_call.1} parent=11 // pred_region
          _
        $region20: #{tpu_custom_call.1} parent=11 // pred_fallthru
          _
      $region12: #{tpu_custom_call.1} parent=5 // pred_fallthru
        _
      %p212 = scmp.lt.s32.totalorder %s19, 2
      // Predicated region
      $region21: #{tpu_custom_call.1} parent=5 // pred_check
        %p213 = pneg %p212
      $region22: #{tpu_custom_call.1} parent=5 // pred_check_branch
        %215 = sbr.rel (%p213) target = $region24
      $region23: #{tpu_custom_call.1} parent=5 // pred_region
        // Predicated region
        $region25: #{tpu_custom_call.1} parent=23 // pred_check
          %p216 = pneg %p39
        $region26: #{tpu_custom_call.1} parent=23 // pred_check_branch
          %218 = sbr.rel (%p216) target = $region28
        $region27: #{tpu_custom_call.1} parent=23 // pred_region
          %p219 = scmp.lt.s32.totalorder %s19, 1
          %s220 = scalar_select %p219, %s19, 1
          %s221 = smul.addr %s220, 4
          %s222 = scalar_lea.vmem %s0, %s221
        $region28: #{tpu_custom_call.1} parent=23 // pred_fallthru
          _
        // Predicated region
        $region29: #{tpu_custom_call.1} parent=23 // pred_check
          %p223 = pneg %p65
        $region30: #{tpu_custom_call.1} parent=23 // pred_check_branch
          %225 = sbr.rel (%p223) target = $region32
        $region31: #{tpu_custom_call.1} parent=23 // pred_region
          %p226 = scmp.lt.s32.totalorder %s19, 1
          %s227 = scalar_select %p226, %s19, 1
          %s228 = smul.addr %s227, 4
          %s229 = scalar_lea.vmem %s1, %s228
        $region32: #{tpu_custom_call.1} parent=23 // pred_fallthru
          _
      $region24: #{tpu_custom_call.1} parent=5 // pred_fallthru
        _
      %p230 = scmp.le.s32.totalorder 1, %s19
      %p231 = scmp.lt.s32.totalorder %s19, 3
      %p232 = pnand %p230, %p231
      %p233 = pneg %p232
      // Predicated region
      $region33: #{tpu_custom_call.1} parent=5 // pred_check
        _
      $region34: #{tpu_custom_call.1} parent=5 // pred_check_branch
        %235 = sbr.rel (%p232) target = $region36
      $region35: #{tpu_custom_call.1} parent=5 // pred_region
        %s236 = ssub.s32 %s19, 1
        %p237 = scmp.lt.s32.totalorder %s24, 1
        %s238 = scalar_select %p237, %s24, 1
        %s239 = smul.addr %s238, 4
        %s240 = scalar_lea.vmem %s0, %s239
        %p241 = pneg %p45
        %p242 = pneg %p42
        %p243 = scmp.lt.s32.totalorder %s24, 1
        %s244 = scalar_select %p243, %s24, 1
        %s245 = smul.addr %s244, 4
        %s246 = scalar_lea.vmem %s1, %s245
        %p247 = pneg %p71
        %p248 = pneg %p68
        %p249 = pneg %p92
        %p250 = pneg %p89
        %p251 = pneg %p113
        %p252 = pneg %p110
        %p253 = pneg %p139
        %p254 = pneg %p136
        %s255 = sand.u32 %s126, 1
        %s256 = scalar_lea.sflag [#allocation3], %s255
        %s257 = sand.u32 %s126, 1
        %s258 = smul.addr %s257, 8
        %s259 = scalar_lea.vmem [#allocation2], %s258
        %p260 = pneg %p165
        %p261 = pneg %p162
        %p262 = scmp.lt.s32.totalorder %s24, 1
        %s263 = scalar_select %p262, %s24, 1
        %s264 = smul.addr %s263, 8
        %s265 = scalar_lea.vmem %s5, %s264
        %p266 = pneg %p191
        %p267 = pneg %p188
        %s268 = sand.u32 %s178, 1
        %s269 = scalar_lea.sflag [#allocation5], %s268
        %s270 = sand.u32 %s178, 1
        %s271 = smul.addr %s270, 4
        %s272 = scalar_lea.vmem [#allocation4], %s271
        %p273 = scmp.lt.s32.totalorder %s24, 1
        %s274 = scalar_select %p273, %s24, 1
        %s275 = smul.addr %s274, 4
        %s276 = scalar_lea.vmem %s0, %s275
        %p277 = scmp.lt.s32.totalorder %s24, 1
        %s278 = scalar_select %p277, %s24, 1
        %s279 = smul.addr %s278, 4
        %s280 = scalar_lea.vmem %s1, %s279
        %p281 = scmp.lt.s32.totalorder %s24, 1
        %s282 = scalar_select %p281, %s24, 1
        %s283 = smul.addr %s282, 8
        %s284 = scalar_lea.vmem %s5, %s283
        %v285 = vld [vmem:[%s280] sm:$0xf]
        %v286 = vld [vmem:[%s2 + $0x50] sm:$0xff]
        %v287 = vld [vmem:[%s2 + $0x58] sm:$0xff]
        %289 = vset.pattern.permute.xlu0 0
        %290 = vperm.xlu0 %289, %v287
        %v291 = vpop.permute.xlu0 %290
        %vm293 = vcmask 31744
        %v295 = vsel %vm293, %v286, 0
        %vm297 = vcmask 1043456
        %v299 = vsel %vm297, %v285, 0
        %301 = vmatprep.subr.mxu0 0.0
        %302 = vmatpush1.msra.mxu0 %v299
        %303 = vmatprep.subr.mxu0 0.0
        %304 = vmatpush1.msra.mxu0 0.0
        %305 = vmatprep.subr.mxu0 0.0
        %306 = vmatpush1.msra.mxu0 0.0
        %307 = vmatprep.subr.mxu0 0.0
        %308 = vmatpush1.msra.mxu0 0.0
        %309 = vmatprep.subr.mxu0 0.0
        %310 = vmatpush1.msra.mxu0 0.0
        %311 = vmatprep.subr.mxu0 0.0
        %312 = vmatpush1.msra.mxu0 0.0
        %313 = vmatprep.subr.mxu0 0.0
        %314 = vmatpush1.msra.mxu0 0.0
        %315 = vmatprep.subr.mxu0 0.0
        %316 = vmatpush1.msra.mxu0 0.0
        %317 = vmatprep.subr.mxu0 0.0
        %318 = vmatpush1.msra.mxu0 0.0
        %319 = vmatprep.subr.mxu0 0.0
        %320 = vmatpush1.msra.mxu0 0.0
        %321 = vmatprep.subr.mxu0 0.0
        %322 = vmatpush1.msra.mxu0 0.0
        %323 = vmatprep.subr.mxu0 0.0
        %324 = vmatpush1.msra.mxu0 0.0
        %325 = vmatprep.subr.mxu0 0.0
        %326 = vmatpush1.msra.mxu0 0.0
        %327 = vmatprep.subr.mxu0 0.0
        %328 = vmatpush1.msra.mxu0 0.0
        %329 = vmatprep.subr.mxu0 0.0
        %330 = vmatpush1.msra.mxu0 0.0
        %331 = vmatprep.subr.mxu0 0.0
        %332 = vmatpush1.msra.mxu0 0.0
        %333 = vmatprep.subr.mxu0 0.0
        %334 = vmatpush1.msra.mxu0 0.0
        %335 = vmatprep.subr.mxu0 0.0
        %336 = vmatpush1.msra.mxu0 0.0
        %337 = vmatprep.subr.mxu0 0.0
        %338 = vmatpush1.msra.mxu0 0.0
        %339 = vmatprep.subr.mxu0 0.0
        %340 = vmatpush1.msra.mxu0 0.0
        %341 = vmatprep.subr.mxu0 0.0
        %342 = vmatpush1.msra.mxu0 0.0
        %343 = vmatprep.subr.mxu0 0.0
        %344 = vmatpush1.msra.mxu0 0.0
        %345 = vmatprep.subr.mxu0 0.0
        %346 = vmatpush1.msra.mxu0 0.0
        %347 = vmatprep.subr.mxu0 0.0
        %348 = vmatpush1.msra.mxu0 0.0
        %349 = vmatprep.subr.mxu0 0.0
        %350 = vmatpush1.msra.mxu0 0.0
        %351 = vmatprep.subr.mxu0 0.0
        %352 = vmatpush1.msra.mxu0 0.0
        %353 = vmatprep.subr.mxu0 0.0
        %354 = vmatpush1.msra.mxu0 0.0
        %355 = vmatprep.subr.mxu0 0.0
        %356 = vmatpush1.msra.mxu0 0.0
        %357 = vmatprep.subr.mxu0 0.0
        %358 = vmatpush1.msra.mxu0 0.0
        %359 = vmatprep.subr.mxu0 0.0
        %360 = vmatpush1.msra.mxu0 0.0
        %361 = vmatprep.subr.mxu0 0.0
        %362 = vmatpush1.msra.mxu0 0.0
        %363 = vmatprep.subr.mxu0 0.0
        %364 = vmatpush1.msra.mxu0 0.0
        %365 = vmatprep.mubr.f32.mxu0 0.0
        %366 = vmatmul.mubr.f32.gmra.mrb[0].mxu0 %v295
        %v367 = vpop.f32.mrb[0].mxu0
        %v368 = vadd.f32 %v291, %v367
        %v369 = vpop.f32.mrb[0].mxu0
        %370 = vdwg.mxu0
        %v371 = vld [vmem:[%s2] sm:$0xff]
        %v372 = vld [vmem:[%s2 + $0x8] sm:$0xff]
        %v374 = vsel %vm293, %v371, 0
        %v377 = vsel %vm293, %v372, 0
        %379 = vmatprep.subr.mxu0 0.0
        %380 = vmatpush1.msra.mxu0 %v299
        %381 = vmatprep.subr.mxu0 0.0
        %382 = vmatpush1.msra.mxu0 0.0
        %383 = vmatprep.subr.mxu0 0.0
        %384 = vmatpush1.msra.mxu0 0.0
        %385 = vmatprep.subr.mxu0 0.0
        %386 = vmatpush1.msra.mxu0 0.0
        %387 = vmatprep.subr.mxu0 0.0
        %388 = vmatpush1.msra.mxu0 0.0
        %389 = vmatprep.subr.mxu0 0.0
        %390 = vmatpush1.msra.mxu0 0.0
        %391 = vmatprep.subr.mxu0 0.0
        %392 = vmatpush1.msra.mxu0 0.0
        %393 = vmatprep.subr.mxu0 0.0
        %394 = vmatpush1.msra.mxu0 0.0
        %395 = vmatprep.subr.mxu0 0.0
        %396 = vmatpush1.msra.mxu0 0.0
        %397 = vmatprep.subr.mxu0 0.0
        %398 = vmatpush1.msra.mxu0 0.0
        %399 = vmatprep.subr.mxu0 0.0
        %400 = vmatpush1.msra.mxu0 0.0
        %401 = vmatprep.subr.mxu0 0.0
        %402 = vmatpush1.msra.mxu0 0.0
        %403 = vmatprep.subr.mxu0 0.0
        %404 = vmatpush1.msra.mxu0 0.0
        %405 = vmatprep.subr.mxu0 0.0
        %406 = vmatpush1.msra.mxu0 0.0
        %407 = vmatprep.subr.mxu0 0.0
        %408 = vmatpush1.msra.mxu0 0.0
        %409 = vmatprep.subr.mxu0 0.0
        %410 = vmatpush1.msra.mxu0 0.0
        %411 = vmatprep.subr.mxu0 0.0
        %412 = vmatpush1.msra.mxu0 0.0
        %413 = vmatprep.subr.mxu0 0.0
        %414 = vmatpush1.msra.mxu0 0.0
        %415 = vmatprep.subr.mxu0 0.0
        %416 = vmatpush1.msra.mxu0 0.0
        %417 = vmatprep.subr.mxu0 0.0
        %418 = vmatpush1.msra.mxu0 0.0
        %419 = vmatprep.subr.mxu0 0.0
        %420 = vmatpush1.msra.mxu0 0.0
        %421 = vmatprep.subr.mxu0 0.0
        %422 = vmatpush1.msra.mxu0 0.0
        %423 = vmatprep.subr.mxu0 0.0
        %424 = vmatpush1.msra.mxu0 0.0
        %425 = vmatprep.subr.mxu0 0.0
        %426 = vmatpush1.msra.mxu0 0.0
        %427 = vmatprep.subr.mxu0 0.0
        %428 = vmatpush1.msra.mxu0 0.0
        %429 = vmatprep.subr.mxu0 0.0
        %430 = vmatpush1.msra.mxu0 0.0
        %431 = vmatprep.subr.mxu0 0.0
        %432 = vmatpush1.msra.mxu0 0.0
        %433 = vmatprep.subr.mxu0 0.0
        %434 = vmatpush1.msra.mxu0 0.0
        %435 = vmatprep.subr.mxu0 0.0
        %436 = vmatpush1.msra.mxu0 0.0
        %437 = vmatprep.subr.mxu0 0.0
        %438 = vmatpush1.msra.mxu0 0.0
        %439 = vmatprep.subr.mxu0 0.0
        %440 = vmatpush1.msra.mxu0 0.0
        %441 = vmatprep.subr.mxu0 0.0
        %442 = vmatpush1.msra.mxu0 0.0
        %443 = vmatprep.mubr.f32.mxu0 0.0
        %444 = vmatmul.mubr.f32.gmra.mrb[0].mxu0 %v374
        %v445 = vpop.f32.mrb[0].mxu0
        %v446 = vadd.f32 0.0, %v445
        %v447 = vpop.f32.mrb[0].mxu0
        %448 = vmatprep.mubr.f32.mxu0 0.0
        %449 = vmatmul.mubr.f32.gmra.mrb[0].mxu0 %v377
        %v450 = vpop.f32.mrb[0].mxu0
        %v451 = vadd.f32 0.0, %v450
        %v452 = vpop.f32.mrb[0].mxu0
        %453 = vdwg.mxu0
        %v454 = vld [vmem:[%s3] sm:$0xff]
        %v455 = vld [vmem:[%s3 + $0x8] sm:$0xff]
        %v456 = vld [vmem:[%s3 + $0x10] sm:$0xff]
        %v457 = vld [vmem:[%s3 + $0x18] sm:$0xff]
        %vm458 = vcmask 130048
        %v460 = vsel %vm458, %v451, 0
        %462 = vmatprep.subr.mxu0 0.0
        %463 = vmatpush1.msra.mxu0 %v456
        %464 = vmatprep.subr.mxu0 0.0
        %465 = vmatpush1.msra.mxu0 %v457
        %466 = vmatprep.subr.mxu0 0.0
        %467 = vmatpush1.msra.mxu0 0.0
        %468 = vmatprep.subr.mxu0 0.0
        %469 = vmatpush1.msra.mxu0 0.0
        %470 = vmatprep.subr.mxu0 0.0
        %471 = vmatpush1.msra.mxu0 0.0
        %472 = vmatprep.subr.mxu0 0.0
        %473 = vmatpush1.msra.mxu0 0.0
        %474 = vmatprep.subr.mxu0 0.0
        %475 = vmatpush1.msra.mxu0 0.0
        %476 = vmatprep.subr.mxu0 0.0
        %477 = vmatpush1.msra.mxu0 0.0
        %478 = vmatprep.subr.mxu0 0.0
        %479 = vmatpush1.msra.mxu0 0.0
        %480 = vmatprep.subr.mxu0 0.0
        %481 = vmatpush1.msra.mxu0 0.0
        %482 = vmatprep.subr.mxu0 0.0
        %483 = vmatpush1.msra.mxu0 0.0
        %484 = vmatprep.subr.mxu0 0.0
        %485 = vmatpush1.msra.mxu0 0.0
        %486 = vmatprep.subr.mxu0 0.0
        %487 = vmatpush1.msra.mxu0 0.0
        %488 = vmatprep.subr.mxu0 0.0
        %489 = vmatpush1.msra.mxu0 0.0
        %490 = vmatprep.subr.mxu0 0.0
        %491 = vmatpush1.msra.mxu0 0.0
        %492 = vmatprep.subr.mxu0 0.0
        %493 = vmatpush1.msra.mxu0 0.0
        %494 = vmatprep.subr.mxu0 0.0
        %495 = vmatpush1.msra.mxu0 0.0
        %496 = vmatprep.subr.mxu0 0.0
        %497 = vmatpush1.msra.mxu0 0.0
        %498 = vmatprep.subr.mxu0 0.0
        %499 = vmatpush1.msra.mxu0 0.0
        %500 = vmatprep.subr.mxu0 0.0
        %501 = vmatpush1.msra.mxu0 0.0
        %502 = vmatprep.subr.mxu0 0.0
        %503 = vmatpush1.msra.mxu0 0.0
        %504 = vmatprep.subr.mxu0 0.0
        %505 = vmatpush1.msra.mxu0 0.0
        %506 = vmatprep.subr.mxu0 0.0
        %507 = vmatpush1.msra.mxu0 0.0
        %508 = vmatprep.subr.mxu0 0.0
        %509 = vmatpush1.msra.mxu0 0.0
        %510 = vmatprep.subr.mxu0 0.0
        %511 = vmatpush1.msra.mxu0 0.0
        %512 = vmatprep.subr.mxu0 0.0
        %513 = vmatpush1.msra.mxu0 0.0
        %514 = vmatprep.subr.mxu0 0.0
        %515 = vmatpush1.msra.mxu0 0.0
        %516 = vmatprep.subr.mxu0 0.0
        %517 = vmatpush1.msra.mxu0 0.0
        %518 = vmatprep.subr.mxu0 0.0
        %519 = vmatpush1.msra.mxu0 0.0
        %520 = vmatprep.subr.mxu0 0.0
        %521 = vmatpush1.msra.mxu0 0.0
        %522 = vmatprep.subr.mxu0 0.0
        %523 = vmatpush1.msra.mxu0 0.0
        %524 = vmatprep.subr.mxu0 0.0
        %525 = vmatpush1.msra.mxu0 0.0
        %526 = vmatprep.mubr.f32.mxu0 0.0
        %527 = vmatmul.mubr.f32.gmra.mrb[0].mxu0 %v460
        %v528 = vpop.f32.mrb[0].mxu0
        %v529 = vadd.f32 0.0, %v528
        %v530 = vpop.f32.mrb[0].mxu0
        %531 = vdwg.mxu0
        %v533 = vsel %vm458, %v446, 0
        %535 = vmatprep.subr.mxu0 0.0
        %536 = vmatpush1.msra.mxu0 %v454
        %537 = vmatprep.subr.mxu0 0.0
        %538 = vmatpush1.msra.mxu0 %v455
        %539 = vmatprep.subr.mxu0 0.0
        %540 = vmatpush1.msra.mxu0 0.0
        %541 = vmatprep.subr.mxu0 0.0
        %542 = vmatpush1.msra.mxu0 0.0
        %543 = vmatprep.subr.mxu0 0.0
        %544 = vmatpush1.msra.mxu0 0.0
        %545 = vmatprep.subr.mxu0 0.0
        %546 = vmatpush1.msra.mxu0 0.0
        %547 = vmatprep.subr.mxu0 0.0
        %548 = vmatpush1.msra.mxu0 0.0
        %549 = vmatprep.subr.mxu0 0.0
        %550 = vmatpush1.msra.mxu0 0.0
        %551 = vmatprep.subr.mxu0 0.0
        %552 = vmatpush1.msra.mxu0 0.0
        %553 = vmatprep.subr.mxu0 0.0
        %554 = vmatpush1.msra.mxu0 0.0
        %555 = vmatprep.subr.mxu0 0.0
        %556 = vmatpush1.msra.mxu0 0.0
        %557 = vmatprep.subr.mxu0 0.0
        %558 = vmatpush1.msra.mxu0 0.0
        %559 = vmatprep.subr.mxu0 0.0
        %560 = vmatpush1.msra.mxu0 0.0
        %561 = vmatprep.subr.mxu0 0.0
        %562 = vmatpush1.msra.mxu0 0.0
        %563 = vmatprep.subr.mxu0 0.0
        %564 = vmatpush1.msra.mxu0 0.0
        %565 = vmatprep.subr.mxu0 0.0
        %566 = vmatpush1.msra.mxu0 0.0
        %567 = vmatprep.subr.mxu0 0.0
        %568 = vmatpush1.msra.mxu0 0.0
        %569 = vmatprep.subr.mxu0 0.0
        %570 = vmatpush1.msra.mxu0 0.0
        %571 = vmatprep.subr.mxu0 0.0
        %572 = vmatpush1.msra.mxu0 0.0
        %573 = vmatprep.subr.mxu0 0.0
        %574 = vmatpush1.msra.mxu0 0.0
        %575 = vmatprep.subr.mxu0 0.0
        %576 = vmatpush1.msra.mxu0 0.0
        %577 = vmatprep.subr.mxu0 0.0
        %578 = vmatpush1.msra.mxu0 0.0
        %579 = vmatprep.subr.mxu0 0.0
        %580 = vmatpush1.msra.mxu0 0.0
        %581 = vmatprep.subr.mxu0 0.0
        %582 = vmatpush1.msra.mxu0 0.0
        %583 = vmatprep.subr.mxu0 0.0
        %584 = vmatpush1.msra.mxu0 0.0
        %585 = vmatprep.subr.mxu0 0.0
        %586 = vmatpush1.msra.mxu0 0.0
        %587 = vmatprep.subr.mxu0 0.0
        %588 = vmatpush1.msra.mxu0 0.0
        %589 = vmatprep.subr.mxu0 0.0
        %590 = vmatpush1.msra.mxu0 0.0
        %591 = vmatprep.subr.mxu0 0.0
        %592 = vmatpush1.msra.mxu0 0.0
        %593 = vmatprep.subr.mxu0 0.0
        %594 = vmatpush1.msra.mxu0 0.0
        %595 = vmatprep.subr.mxu0 0.0
        %596 = vmatpush1.msra.mxu0 0.0
        %597 = vmatprep.subr.mxu0 0.0
        %598 = vmatpush1.msra.mxu0 0.0
        %599 = vmatprep.mubr.f32.mxu0 0.0
        %600 = vmatmul.mubr.f32.gmra.mrb[0].mxu0 %v533
        %v601 = vpop.f32.mrb[0].mxu0
        %v602 = vadd.f32 %v529, %v601
        %v603 = vpop.f32.mrb[0].mxu0
        %604 = vdwg.mxu0
        %v605 = vld [vmem:[%s2 + $0x10] sm:$0xff]
        %607 = vset.pattern.permute.xlu0 0
        %608 = vperm.xlu0 %607, %v605
        %v609 = vpop.permute.xlu0 %608
        %v611 = vadd.f32 %v602, %v609
        %v612 = vmax.f32 %v611, 0.0
        %v613 = vld [vmem:[%s2 + $0x18] sm:$0xff]
        %vm614 = vcmask 64512
        %v616 = vsel %vm614, %v613, 0
        %618 = vmatprep.subr.mxu0 0.0
        %619 = vmatpush1.msra.mxu0 %v612
        %620 = vmatprep.subr.mxu0 0.0
        %621 = vmatpush1.msra.mxu0 0.0
        %622 = vmatprep.subr.mxu0 0.0
        %623 = vmatpush1.msra.mxu0 0.0
        %624 = vmatprep.subr.mxu0 0.0
        %625 = vmatpush1.msra.mxu0 0.0
        %626 = vmatprep.subr.mxu0 0.0
        %627 = vmatpush1.msra.mxu0 0.0
        %628 = vmatprep.subr.mxu0 0.0
        %629 = vmatpush1.msra.mxu0 0.0
        %630 = vmatprep.subr.mxu0 0.0
        %631 = vmatpush1.msra.mxu0 0.0
        %632 = vmatprep.subr.mxu0 0.0
        %633 = vmatpush1.msra.mxu0 0.0
        %634 = vmatprep.subr.mxu0 0.0
        %635 = vmatpush1.msra.mxu0 0.0
        %636 = vmatprep.subr.mxu0 0.0
        %637 = vmatpush1.msra.mxu0 0.0
        %638 = vmatprep.subr.mxu0 0.0
        %639 = vmatpush1.msra.mxu0 0.0
        %640 = vmatprep.subr.mxu0 0.0
        %641 = vmatpush1.msra.mxu0 0.0
        %642 = vmatprep.subr.mxu0 0.0
        %643 = vmatpush1.msra.mxu0 0.0
        %644 = vmatprep.subr.mxu0 0.0
        %645 = vmatpush1.msra.mxu0 0.0
        %646 = vmatprep.subr.mxu0 0.0
        %647 = vmatpush1.msra.mxu0 0.0
        %648 = vmatprep.subr.mxu0 0.0
        %649 = vmatpush1.msra.mxu0 0.0
        %650 = vmatprep.subr.mxu0 0.0
        %651 = vmatpush1.msra.mxu0 0.0
        %652 = vmatprep.subr.mxu0 0.0
        %653 = vmatpush1.msra.mxu0 0.0
        %654 = vmatprep.subr.mxu0 0.0
        %655 = vmatpush1.msra.mxu0 0.0
        %656 = vmatprep.subr.mxu0 0.0
        %657 = vmatpush1.msra.mxu0 0.0
        %658 = vmatprep.subr.mxu0 0.0
        %659 = vmatpush1.msra.mxu0 0.0
        %660 = vmatprep.subr.mxu0 0.0
        %661 = vmatpush1.msra.mxu0 0.0
        %662 = vmatprep.subr.mxu0 0.0
        %663 = vmatpush1.msra.mxu0 0.0
        %664 = vmatprep.subr.mxu0 0.0
        %665 = vmatpush1.msra.mxu0 0.0
        %666 = vmatprep.subr.mxu0 0.0
        %667 = vmatpush1.msra.mxu0 0.0
        %668 = vmatprep.subr.mxu0 0.0
        %669 = vmatpush1.msra.mxu0 0.0
        %670 = vmatprep.subr.mxu0 0.0
        %671 = vmatpush1.msra.mxu0 0.0
        %672 = vmatprep.subr.mxu0 0.0
        %673 = vmatpush1.msra.mxu0 0.0
        %674 = vmatprep.subr.mxu0 0.0
        %675 = vmatpush1.msra.mxu0 0.0
        %676 = vmatprep.subr.mxu0 0.0
        %677 = vmatpush1.msra.mxu0 0.0
        %678 = vmatprep.subr.mxu0 0.0
        %679 = vmatpush1.msra.mxu0 0.0
        %680 = vmatprep.subr.mxu0 0.0
        %681 = vmatpush1.msra.mxu0 0.0
        %682 = vmatprep.mubr.f32.mxu0 0.0
        %683 = vmatmul.mubr.f32.gmra.mrb[0].mxu0 %v616
        %v684 = vpop.f32.mrb[0].mxu0
        %v685 = vadd.f32 0.0, %v684
        %v686 = vpop.f32.mrb[0].mxu0
        %687 = vdwg.mxu0
        %v688 = vadd.f32 %v368, %v685
        %v689 = vld [vmem:[%s2 + $0x20] sm:$0xff]
        %v690 = vld [vmem:[%s2 + $0x28] sm:$0xff]
        %v691 = vld [vmem:[%s2 + $0x30] sm:$0xff]
        %v692 = vld [vmem:[%s2 + $0x38] sm:$0xff]
        %v694 = vsel %vm293, %v689, 0
        %v697 = vsel %vm293, %v690, 0
        %v700 = vsel %vm293, %v691, 0
        %v703 = vsel %vm293, %v692, 0
        %705 = vmatprep.subr.mxu0 0.0
        %706 = vmatpush1.msra.mxu0 %v299
        %707 = vmatprep.subr.mxu0 0.0
        %708 = vmatpush1.msra.mxu0 0.0
        %709 = vmatprep.subr.mxu0 0.0
        %710 = vmatpush1.msra.mxu0 0.0
        %711 = vmatprep.subr.mxu0 0.0
        %712 = vmatpush1.msra.mxu0 0.0
        %713 = vmatprep.subr.mxu0 0.0
        %714 = vmatpush1.msra.mxu0 0.0
        %715 = vmatprep.subr.mxu0 0.0
        %716 = vmatpush1.msra.mxu0 0.0
        %717 = vmatprep.subr.mxu0 0.0
        %718 = vmatpush1.msra.mxu0 0.0
        %719 = vmatprep.subr.mxu0 0.0
        %720 = vmatpush1.msra.mxu0 0.0
        %721 = vmatprep.subr.mxu0 0.0
        %722 = vmatpush1.msra.mxu0 0.0
        %723 = vmatprep.subr.mxu0 0.0
        %724 = vmatpush1.msra.mxu0 0.0
        %725 = vmatprep.subr.mxu0 0.0
        %726 = vmatpush1.msra.mxu0 0.0
        %727 = vmatprep.subr.mxu0 0.0
        %728 = vmatpush1.msra.mxu0 0.0
        %729 = vmatprep.subr.mxu0 0.0
        %730 = vmatpush1.msra.mxu0 0.0
        %731 = vmatprep.subr.mxu0 0.0
        %732 = vmatpush1.msra.mxu0 0.0
        %733 = vmatprep.subr.mxu0 0.0
        %734 = vmatpush1.msra.mxu0 0.0
        %735 = vmatprep.subr.mxu0 0.0
        %736 = vmatpush1.msra.mxu0 0.0
        %737 = vmatprep.subr.mxu0 0.0
        %738 = vmatpush1.msra.mxu0 0.0
        %739 = vmatprep.subr.mxu0 0.0
        %740 = vmatpush1.msra.mxu0 0.0
        %741 = vmatprep.subr.mxu0 0.0
        %742 = vmatpush1.msra.mxu0 0.0
        %743 = vmatprep.subr.mxu0 0.0
        %744 = vmatpush1.msra.mxu0 0.0
        %745 = vmatprep.subr.mxu0 0.0
        %746 = vmatpush1.msra.mxu0 0.0
        %747 = vmatprep.subr.mxu0 0.0
        %748 = vmatpush1.msra.mxu0 0.0
        %749 = vmatprep.subr.mxu0 0.0
        %750 = vmatpush1.msra.mxu0 0.0
        %751 = vmatprep.subr.mxu0 0.0
        %752 = vmatpush1.msra.mxu0 0.0
        %753 = vmatprep.subr.mxu0 0.0
        %754 = vmatpush1.msra.mxu0 0.0
        %755 = vmatprep.subr.mxu0 0.0
        %756 = vmatpush1.msra.mxu0 0.0
        %757 = vmatprep.subr.mxu0 0.0
        %758 = vmatpush1.msra.mxu0 0.0
        %759 = vmatprep.subr.mxu0 0.0
        %760 = vmatpush1.msra.mxu0 0.0
        %761 = vmatprep.subr.mxu0 0.0
        %762 = vmatpush1.msra.mxu0 0.0
        %763 = vmatprep.subr.mxu0 0.0
        %764 = vmatpush1.msra.mxu0 0.0
        %765 = vmatprep.subr.mxu0 0.0
        %766 = vmatpush1.msra.mxu0 0.0
        %767 = vmatprep.subr.mxu0 0.0
        %768 = vmatpush1.msra.mxu0 0.0
        %769 = vmatprep.mubr.f32.mxu0 0.0
        %770 = vmatmul.mubr.f32.gmra.mrb[0].mxu0 %v694
        %v771 = vpop.f32.mrb[0].mxu0
        %v772 = vadd.f32 0.0, %v771
        %v773 = vpop.f32.mrb[0].mxu0
        %774 = vmatprep.mubr.f32.mxu0 0.0
        %775 = vmatmul.mubr.f32.gmra.mrb[0].mxu0 %v697
        %v776 = vpop.f32.mrb[0].mxu0
        %v777 = vadd.f32 0.0, %v776
        %v778 = vpop.f32.mrb[0].mxu0
        %779 = vmatprep.mubr.f32.mxu0 0.0
        %780 = vmatmul.mubr.f32.gmra.mrb[0].mxu0 %v700
        %v781 = vpop.f32.mrb[0].mxu0
        %v782 = vadd.f32 0.0, %v781
        %v783 = vpop.f32.mrb[0].mxu0
        %784 = vmatprep.mubr.f32.mxu0 0.0
        %785 = vmatmul.mubr.f32.gmra.mrb[0].mxu0 %v703
        %v786 = vpop.f32.mrb[0].mxu0
        %v787 = vadd.f32 0.0, %v786
        %v788 = vpop.f32.mrb[0].mxu0
        %789 = vdwg.mxu0
        %v790 = vld [vmem:[%s3 + $0x20] sm:$0xff]
        %v791 = vld [vmem:[%s3 + $0x28] sm:$0xff]
        %v792 = vld [vmem:[%s3 + $0x30] sm:$0xff]
        %v793 = vld [vmem:[%s3 + $0x38] sm:$0xff]
        %v795 = vsel %vm458, %v777, 0
        %797 = vmatprep.subr.mxu0 0.0
        %798 = vmatpush1.msra.mxu0 %v792
        %799 = vmatprep.subr.mxu0 0.0
        %800 = vmatpush1.msra.mxu0 %v793
        %801 = vmatprep.subr.mxu0 0.0
        %802 = vmatpush1.msra.mxu0 0.0
        %803 = vmatprep.subr.mxu0 0.0
        %804 = vmatpush1.msra.mxu0 0.0
        %805 = vmatprep.subr.mxu0 0.0
        %806 = vmatpush1.msra.mxu0 0.0
        %807 = vmatprep.subr.mxu0 0.0
        %808 = vmatpush1.msra.mxu0 0.0
        %809 = vmatprep.subr.mxu0 0.0
        %810 = vmatpush1.msra.mxu0 0.0
        %811 = vmatprep.subr.mxu0 0.0
        %812 = vmatpush1.msra.mxu0 0.0
        %813 = vmatprep.subr.mxu0 0.0
        %814 = vmatpush1.msra.mxu0 0.0
        %815 = vmatprep.subr.mxu0 0.0
        %816 = vmatpush1.msra.mxu0 0.0
        %817 = vmatprep.subr.mxu0 0.0
        %818 = vmatpush1.msra.mxu0 0.0
        %819 = vmatprep.subr.mxu0 0.0
        %820 = vmatpush1.msra.mxu0 0.0
        %821 = vmatprep.subr.mxu0 0.0
        %822 = vmatpush1.msra.mxu0 0.0
        %823 = vmatprep.subr.mxu0 0.0
        %824 = vmatpush1.msra.mxu0 0.0
        %825 = vmatprep.subr.mxu0 0.0
        %826 = vmatpush1.msra.mxu0 0.0
        %827 = vmatprep.subr.mxu0 0.0
        %828 = vmatpush1.msra.mxu0 0.0
        %829 = vmatprep.subr.mxu0 0.0
        %830 = vmatpush1.msra.mxu0 0.0
        %831 = vmatprep.subr.mxu0 0.0
        %832 = vmatpush1.msra.mxu0 0.0
        %833 = vmatprep.subr.mxu0 0.0
        %834 = vmatpush1.msra.mxu0 0.0
        %835 = vmatprep.subr.mxu0 0.0
        %836 = vmatpush1.msra.mxu0 0.0
        %837 = vmatprep.subr.mxu0 0.0
        %838 = vmatpush1.msra.mxu0 0.0
        %839 = vmatprep.subr.mxu0 0.0
        %840 = vmatpush1.msra.mxu0 0.0
        %841 = vmatprep.subr.mxu0 0.0
        %842 = vmatpush1.msra.mxu0 0.0
        %843 = vmatprep.subr.mxu0 0.0
        %844 = vmatpush1.msra.mxu0 0.0
        %845 = vmatprep.subr.mxu0 0.0
        %846 = vmatpush1.msra.mxu0 0.0
        %847 = vmatprep.subr.mxu0 0.0
        %848 = vmatpush1.msra.mxu0 0.0
        %849 = vmatprep.subr.mxu0 0.0
        %850 = vmatpush1.msra.mxu0 0.0
        %851 = vmatprep.subr.mxu0 0.0
        %852 = vmatpush1.msra.mxu0 0.0
        %853 = vmatprep.subr.mxu0 0.0
        %854 = vmatpush1.msra.mxu0 0.0
        %855 = vmatprep.subr.mxu0 0.0
        %856 = vmatpush1.msra.mxu0 0.0
        %857 = vmatprep.subr.mxu0 0.0
        %858 = vmatpush1.msra.mxu0 0.0
        %859 = vmatprep.subr.mxu0 0.0
        %860 = vmatpush1.msra.mxu0 0.0
        %861 = vmatprep.mubr.f32.mxu0 0.0
        %862 = vmatmul.mubr.f32.gmra.mrb[0].mxu0 %v795
        %v863 = vpop.f32.mrb[0].mxu0
        %v864 = vadd.f32 0.0, %v863
        %v865 = vpop.f32.mrb[0].mxu0
        %866 = vdwg.mxu0
        %v868 = vsel %vm458, %v772, 0
        %870 = vmatprep.subr.mxu0 0.0
        %871 = vmatpush1.msra.mxu0 %v790
        %872 = vmatprep.subr.mxu0 0.0
        %873 = vmatpush1.msra.mxu0 %v791
        %874 = vmatprep.subr.mxu0 0.0
        %875 = vmatpush1.msra.mxu0 0.0
        %876 = vmatprep.subr.mxu0 0.0
        %877 = vmatpush1.msra.mxu0 0.0
        %878 = vmatprep.subr.mxu0 0.0
        %879 = vmatpush1.msra.mxu0 0.0
        %880 = vmatprep.subr.mxu0 0.0
        %881 = vmatpush1.msra.mxu0 0.0
        %882 = vmatprep.subr.mxu0 0.0
        %883 = vmatpush1.msra.mxu0 0.0
        %884 = vmatprep.subr.mxu0 0.0
        %885 = vmatpush1.msra.mxu0 0.0
        %886 = vmatprep.subr.mxu0 0.0
        %887 = vmatpush1.msra.mxu0 0.0
        %888 = vmatprep.subr.mxu0 0.0
        %889 = vmatpush1.msra.mxu0 0.0
        %890 = vmatprep.subr.mxu0 0.0
        %891 = vmatpush1.msra.mxu0 0.0
        %892 = vmatprep.subr.mxu0 0.0
        %893 = vmatpush1.msra.mxu0 0.0
        %894 = vmatprep.subr.mxu0 0.0
        %895 = vmatpush1.msra.mxu0 0.0
        %896 = vmatprep.subr.mxu0 0.0
        %897 = vmatpush1.msra.mxu0 0.0
        %898 = vmatprep.subr.mxu0 0.0
        %899 = vmatpush1.msra.mxu0 0.0
        %900 = vmatprep.subr.mxu0 0.0
        %901 = vmatpush1.msra.mxu0 0.0
        %902 = vmatprep.subr.mxu0 0.0
        %903 = vmatpush1.msra.mxu0 0.0
        %904 = vmatprep.subr.mxu0 0.0
        %905 = vmatpush1.msra.mxu0 0.0
        %906 = vmatprep.subr.mxu0 0.0
        %907 = vmatpush1.msra.mxu0 0.0
        %908 = vmatprep.subr.mxu0 0.0
        %909 = vmatpush1.msra.mxu0 0.0
        %910 = vmatprep.subr.mxu0 0.0
        %911 = vmatpush1.msra.mxu0 0.0
        %912 = vmatprep.subr.mxu0 0.0
        %913 = vmatpush1.msra.mxu0 0.0
        %914 = vmatprep.subr.mxu0 0.0
        %915 = vmatpush1.msra.mxu0 0.0
        %916 = vmatprep.subr.mxu0 0.0
        %917 = vmatpush1.msra.mxu0 0.0
        %918 = vmatprep.subr.mxu0 0.0
        %919 = vmatpush1.msra.mxu0 0.0
        %920 = vmatprep.subr.mxu0 0.0
        %921 = vmatpush1.msra.mxu0 0.0
        %922 = vmatprep.subr.mxu0 0.0
        %923 = vmatpush1.msra.mxu0 0.0
        %924 = vmatprep.subr.mxu0 0.0
        %925 = vmatpush1.msra.mxu0 0.0
        %926 = vmatprep.subr.mxu0 0.0
        %927 = vmatpush1.msra.mxu0 0.0
        %928 = vmatprep.subr.mxu0 0.0
        %929 = vmatpush1.msra.mxu0 0.0
        %930 = vmatprep.subr.mxu0 0.0
        %931 = vmatpush1.msra.mxu0 0.0
        %932 = vmatprep.subr.mxu0 0.0
        %933 = vmatpush1.msra.mxu0 0.0
        %934 = vmatprep.mubr.f32.mxu0 0.0
        %935 = vmatmul.mubr.f32.gmra.mrb[0].mxu0 %v868
        %v936 = vpop.f32.mrb[0].mxu0
        %v937 = vadd.f32 %v864, %v936
        %v938 = vpop.f32.mrb[0].mxu0
        %939 = vdwg.mxu0
        %v940 = vld [vmem:[%s3 + $0x40] sm:$0xff]
        %v941 = vld [vmem:[%s3 + $0x48] sm:$0xff]
        %v943 = vsel %vm458, %v782, 0
        %945 = vmatprep.subr.mxu0 0.0
        %946 = vmatpush1.msra.mxu0 %v940
        %947 = vmatprep.subr.mxu0 0.0
        %948 = vmatpush1.msra.mxu0 %v941
        %949 = vmatprep.subr.mxu0 0.0
        %950 = vmatpush1.msra.mxu0 0.0
        %951 = vmatprep.subr.mxu0 0.0
        %952 = vmatpush1.msra.mxu0 0.0
        %953 = vmatprep.subr.mxu0 0.0
        %954 = vmatpush1.msra.mxu0 0.0
        %955 = vmatprep.subr.mxu0 0.0
        %956 = vmatpush1.msra.mxu0 0.0
        %957 = vmatprep.subr.mxu0 0.0
        %958 = vmatpush1.msra.mxu0 0.0
        %959 = vmatprep.subr.mxu0 0.0
        %960 = vmatpush1.msra.mxu0 0.0
        %961 = vmatprep.subr.mxu0 0.0
        %962 = vmatpush1.msra.mxu0 0.0
        %963 = vmatprep.subr.mxu0 0.0
        %964 = vmatpush1.msra.mxu0 0.0
        %965 = vmatprep.subr.mxu0 0.0
        %966 = vmatpush1.msra.mxu0 0.0
        %967 = vmatprep.subr.mxu0 0.0
        %968 = vmatpush1.msra.mxu0 0.0
        %969 = vmatprep.subr.mxu0 0.0
        %970 = vmatpush1.msra.mxu0 0.0
        %971 = vmatprep.subr.mxu0 0.0
        %972 = vmatpush1.msra.mxu0 0.0
        %973 = vmatprep.subr.mxu0 0.0
        %974 = vmatpush1.msra.mxu0 0.0
        %975 = vmatprep.subr.mxu0 0.0
        %976 = vmatpush1.msra.mxu0 0.0
        %977 = vmatprep.subr.mxu0 0.0
        %978 = vmatpush1.msra.mxu0 0.0
        %979 = vmatprep.subr.mxu0 0.0
        %980 = vmatpush1.msra.mxu0 0.0
        %981 = vmatprep.subr.mxu0 0.0
        %982 = vmatpush1.msra.mxu0 0.0
        %983 = vmatprep.subr.mxu0 0.0
        %984 = vmatpush1.msra.mxu0 0.0
        %985 = vmatprep.subr.mxu0 0.0
        %986 = vmatpush1.msra.mxu0 0.0
        %987 = vmatprep.subr.mxu0 0.0
        %988 = vmatpush1.msra.mxu0 0.0
        %989 = vmatprep.subr.mxu0 0.0
        %990 = vmatpush1.msra.mxu0 0.0
        %991 = vmatprep.subr.mxu0 0.0
        %992 = vmatpush1.msra.mxu0 0.0
        %993 = vmatprep.subr.mxu0 0.0
        %994 = vmatpush1.msra.mxu0 0.0
        %995 = vmatprep.subr.mxu0 0.0
        %996 = vmatpush1.msra.mxu0 0.0
        %997 = vmatprep.subr.mxu0 0.0
        %998 = vmatpush1.msra.mxu0 0.0
        %999 = vmatprep.subr.mxu0 0.0
        %1000 = vmatpush1.msra.mxu0 0.0
        %1001 = vmatprep.subr.mxu0 0.0
        %1002 = vmatpush1.msra.mxu0 0.0
        %1003 = vmatprep.subr.mxu0 0.0
        %1004 = vmatpush1.msra.mxu0 0.0
        %1005 = vmatprep.subr.mxu0 0.0
        %1006 = vmatpush1.msra.mxu0 0.0
        %1007 = vmatprep.subr.mxu0 0.0
        %1008 = vmatpush1.msra.mxu0 0.0
        %1009 = vmatprep.mubr.f32.mxu0 0.0
        %1010 = vmatmul.mubr.f32.gmra.mrb[0].mxu0 %v943
        %v1011 = vpop.f32.mrb[0].mxu0
        %v1012 = vadd.f32 0.0, %v1011
        %v1013 = vpop.f32.mrb[0].mxu0
        %1014 = vdwg.mxu0
        %v1015 = vadd.f32 %v937, %v1012
        %v1016 = vld [vmem:[%s3 + $0x50] sm:$0xff]
        %v1017 = vld [vmem:[%s3 + $0x58] sm:$0xff]
        %v1019 = vsel %vm458, %v787, 0
        %1021 = vmatprep.subr.mxu0 0.0
        %1022 = vmatpush1.msra.mxu0 %v1016
        %1023 = vmatprep.subr.mxu0 0.0
        %1024 = vmatpush1.msra.mxu0 %v1017
        %1025 = vmatprep.subr.mxu0 0.0
        %1026 = vmatpush1.msra.mxu0 0.0
        %1027 = vmatprep.subr.mxu0 0.0
        %1028 = vmatpush1.msra.mxu0 0.0
        %1029 = vmatprep.subr.mxu0 0.0
        %1030 = vmatpush1.msra.mxu0 0.0
        %1031 = vmatprep.subr.mxu0 0.0
        %1032 = vmatpush1.msra.mxu0 0.0
        %1033 = vmatprep.subr.mxu0 0.0
        %1034 = vmatpush1.msra.mxu0 0.0
        %1035 = vmatprep.subr.mxu0 0.0
        %1036 = vmatpush1.msra.mxu0 0.0
        %1037 = vmatprep.subr.mxu0 0.0
        %1038 = vmatpush1.msra.mxu0 0.0
        %1039 = vmatprep.subr.mxu0 0.0
        %1040 = vmatpush1.msra.mxu0 0.0
        %1041 = vmatprep.subr.mxu0 0.0
        %1042 = vmatpush1.msra.mxu0 0.0
        %1043 = vmatprep.subr.mxu0 0.0
        %1044 = vmatpush1.msra.mxu0 0.0
        %1045 = vmatprep.subr.mxu0 0.0
        %1046 = vmatpush1.msra.mxu0 0.0
        %1047 = vmatprep.subr.mxu0 0.0
        %1048 = vmatpush1.msra.mxu0 0.0
        %1049 = vmatprep.subr.mxu0 0.0
        %1050 = vmatpush1.msra.mxu0 0.0
        %1051 = vmatprep.subr.mxu0 0.0
        %1052 = vmatpush1.msra.mxu0 0.0
        %1053 = vmatprep.subr.mxu0 0.0
        %1054 = vmatpush1.msra.mxu0 0.0
        %1055 = vmatprep.subr.mxu0 0.0
        %1056 = vmatpush1.msra.mxu0 0.0
        %1057 = vmatprep.subr.mxu0 0.0
        %1058 = vmatpush1.msra.mxu0 0.0
        %1059 = vmatprep.subr.mxu0 0.0
        %1060 = vmatpush1.msra.mxu0 0.0
        %1061 = vmatprep.subr.mxu0 0.0
        %1062 = vmatpush1.msra.mxu0 0.0
        %1063 = vmatprep.subr.mxu0 0.0
        %1064 = vmatpush1.msra.mxu0 0.0
        %1065 = vmatprep.subr.mxu0 0.0
        %1066 = vmatpush1.msra.mxu0 0.0
        %1067 = vmatprep.subr.mxu0 0.0
        %1068 = vmatpush1.msra.mxu0 0.0
        %1069 = vmatprep.subr.mxu0 0.0
        %1070 = vmatpush1.msra.mxu0 0.0
        %1071 = vmatprep.subr.mxu0 0.0
        %1072 = vmatpush1.msra.mxu0 0.0
        %1073 = vmatprep.subr.mxu0 0.0
        %1074 = vmatpush1.msra.mxu0 0.0
        %1075 = vmatprep.subr.mxu0 0.0
        %1076 = vmatpush1.msra.mxu0 0.0
        %1077 = vmatprep.subr.mxu0 0.0
        %1078 = vmatpush1.msra.mxu0 0.0
        %1079 = vmatprep.subr.mxu0 0.0
        %1080 = vmatpush1.msra.mxu0 0.0
        %1081 = vmatprep.subr.mxu0 0.0
        %1082 = vmatpush1.msra.mxu0 0.0
        %1083 = vmatprep.subr.mxu0 0.0
        %1084 = vmatpush1.msra.mxu0 0.0
        %1085 = vmatprep.mubr.f32.mxu0 0.0
        %1086 = vmatmul.mubr.f32.gmra.mrb[0].mxu0 %v1019
        %v1087 = vpop.f32.mrb[0].mxu0
        %v1088 = vadd.f32 0.0, %v1087
        %v1089 = vpop.f32.mrb[0].mxu0
        %1090 = vdwg.mxu0
        %v1091 = vadd.f32 %v1015, %v1088
        %v1092 = vld [vmem:[%s2 + $0x40] sm:$0xff]
        %1094 = vset.pattern.permute.xlu0 0
        %1095 = vperm.xlu0 %1094, %v1092
        %v1096 = vpop.permute.xlu0 %1095
        %v1098 = vadd.f32 %v1091, %v1096
        %v1099 = vmax.f32 %v1098, 0.0
        %v1100 = vld [vmem:[%s2 + $0x48] sm:$0xff]
        %v1102 = vsel %vm614, %v1100, 0
        %1104 = vmatprep.subr.mxu0 0.0
        %1105 = vmatpush1.msra.mxu0 %v1099
        %1106 = vmatprep.subr.mxu0 0.0
        %1107 = vmatpush1.msra.mxu0 0.0
        %1108 = vmatprep.subr.mxu0 0.0
        %1109 = vmatpush1.msra.mxu0 0.0
        %1110 = vmatprep.subr.mxu0 0.0
        %1111 = vmatpush1.msra.mxu0 0.0
        %1112 = vmatprep.subr.mxu0 0.0
        %1113 = vmatpush1.msra.mxu0 0.0
        %1114 = vmatprep.subr.mxu0 0.0
        %1115 = vmatpush1.msra.mxu0 0.0
        %1116 = vmatprep.subr.mxu0 0.0
        %1117 = vmatpush1.msra.mxu0 0.0
        %1118 = vmatprep.subr.mxu0 0.0
        %1119 = vmatpush1.msra.mxu0 0.0
        %1120 = vmatprep.subr.mxu0 0.0
        %1121 = vmatpush1.msra.mxu0 0.0
        %1122 = vmatprep.subr.mxu0 0.0
        %1123 = vmatpush1.msra.mxu0 0.0
        %1124 = vmatprep.subr.mxu0 0.0
        %1125 = vmatpush1.msra.mxu0 0.0
        %1126 = vmatprep.subr.mxu0 0.0
        %1127 = vmatpush1.msra.mxu0 0.0
        %1128 = vmatprep.subr.mxu0 0.0
        %1129 = vmatpush1.msra.mxu0 0.0
        %1130 = vmatprep.subr.mxu0 0.0
        %1131 = vmatpush1.msra.mxu0 0.0
        %1132 = vmatprep.subr.mxu0 0.0
        %1133 = vmatpush1.msra.mxu0 0.0
        %1134 = vmatprep.subr.mxu0 0.0
        %1135 = vmatpush1.msra.mxu0 0.0
        %1136 = vmatprep.subr.mxu0 0.0
        %1137 = vmatpush1.msra.mxu0 0.0
        %1138 = vmatprep.subr.mxu0 0.0
        %1139 = vmatpush1.msra.mxu0 0.0
        %1140 = vmatprep.subr.mxu0 0.0
        %1141 = vmatpush1.msra.mxu0 0.0
        %1142 = vmatprep.subr.mxu0 0.0
        %1143 = vmatpush1.msra.mxu0 0.0
        %1144 = vmatprep.subr.mxu0 0.0
        %1145 = vmatpush1.msra.mxu0 0.0
        %1146 = vmatprep.subr.mxu0 0.0
        %1147 = vmatpush1.msra.mxu0 0.0
        %1148 = vmatprep.subr.mxu0 0.0
        %1149 = vmatpush1.msra.mxu0 0.0
        %1150 = vmatprep.subr.mxu0 0.0
        %1151 = vmatpush1.msra.mxu0 0.0
        %1152 = vmatprep.subr.mxu0 0.0
        %1153 = vmatpush1.msra.mxu0 0.0
        %1154 = vmatprep.subr.mxu0 0.0
        %1155 = vmatpush1.msra.mxu0 0.0
        %1156 = vmatprep.subr.mxu0 0.0
        %1157 = vmatpush1.msra.mxu0 0.0
        %1158 = vmatprep.subr.mxu0 0.0
        %1159 = vmatpush1.msra.mxu0 0.0
        %1160 = vmatprep.subr.mxu0 0.0
        %1161 = vmatpush1.msra.mxu0 0.0
        %1162 = vmatprep.subr.mxu0 0.0
        %1163 = vmatpush1.msra.mxu0 0.0
        %1164 = vmatprep.subr.mxu0 0.0
        %1165 = vmatpush1.msra.mxu0 0.0
        %1166 = vmatprep.subr.mxu0 0.0
        %1167 = vmatpush1.msra.mxu0 0.0
        %1168 = vmatprep.mubr.f32.mxu0 0.0
        %1169 = vmatmul.mubr.f32.gmra.mrb[0].mxu0 %v1102
        %v1170 = vpop.f32.mrb[0].mxu0
        %v1171 = vadd.f32 0.0, %v1170
        %v1172 = vpop.f32.mrb[0].mxu0
        %1173 = vdwg.mxu0
        %v1174 = vadd.f32 %v688, %v1171
        %v1175 = vld [vmem:[%s2 + $0x60] sm:$0xff]
        %v1176 = vld [vmem:[%s2 + $0x68] sm:$0xff]
        %v1177 = vld [vmem:[%s2 + $0x70] sm:$0xff]
        %v1179 = vsel %vm614, %v1175, 0
        %v1182 = vsel %vm614, %v1176, 0
        %v1185 = vsel %vm614, %v1177, 0
        %1187 = vmatprep.subr.mxu0 0.0
        %1188 = vmatpush1.msra.mxu0 %v1174
        %1189 = vmatprep.subr.mxu0 0.0
        %1190 = vmatpush1.msra.mxu0 0.0
        %1191 = vmatprep.subr.mxu0 0.0
        %1192 = vmatpush1.msra.mxu0 0.0
        %1193 = vmatprep.subr.mxu0 0.0
        %1194 = vmatpush1.msra.mxu0 0.0
        %1195 = vmatprep.subr.mxu0 0.0
        %1196 = vmatpush1.msra.mxu0 0.0
        %1197 = vmatprep.subr.mxu0 0.0
        %1198 = vmatpush1.msra.mxu0 0.0
        %1199 = vmatprep.subr.mxu0 0.0
        %1200 = vmatpush1.msra.mxu0 0.0
        %1201 = vmatprep.subr.mxu0 0.0
        %1202 = vmatpush1.msra.mxu0 0.0
        %1203 = vmatprep.subr.mxu0 0.0
        %1204 = vmatpush1.msra.mxu0 0.0
        %1205 = vmatprep.subr.mxu0 0.0
        %1206 = vmatpush1.msra.mxu0 0.0
        %1207 = vmatprep.subr.mxu0 0.0
        %1208 = vmatpush1.msra.mxu0 0.0
        %1209 = vmatprep.subr.mxu0 0.0
        %1210 = vmatpush1.msra.mxu0 0.0
        %1211 = vmatprep.subr.mxu0 0.0
        %1212 = vmatpush1.msra.mxu0 0.0
        %1213 = vmatprep.subr.mxu0 0.0
        %1214 = vmatpush1.msra.mxu0 0.0
        %1215 = vmatprep.subr.mxu0 0.0
        %1216 = vmatpush1.msra.mxu0 0.0
        %1217 = vmatprep.subr.mxu0 0.0
        %1218 = vmatpush1.msra.mxu0 0.0
        %1219 = vmatprep.subr.mxu0 0.0
        %1220 = vmatpush1.msra.mxu0 0.0
        %1221 = vmatprep.subr.mxu0 0.0
        %1222 = vmatpush1.msra.mxu0 0.0
        %1223 = vmatprep.subr.mxu0 0.0
        %1224 = vmatpush1.msra.mxu0 0.0
        %1225 = vmatprep.subr.mxu0 0.0
        %1226 = vmatpush1.msra.mxu0 0.0
        %1227 = vmatprep.subr.mxu0 0.0
        %1228 = vmatpush1.msra.mxu0 0.0
        %1229 = vmatprep.subr.mxu0 0.0
        %1230 = vmatpush1.msra.mxu0 0.0
        %1231 = vmatprep.subr.mxu0 0.0
        %1232 = vmatpush1.msra.mxu0 0.0
        %1233 = vmatprep.subr.mxu0 0.0
        %1234 = vmatpush1.msra.mxu0 0.0
        %1235 = vmatprep.subr.mxu0 0.0
        %1236 = vmatpush1.msra.mxu0 0.0
        %1237 = vmatprep.subr.mxu0 0.0
        %1238 = vmatpush1.msra.mxu0 0.0
        %1239 = vmatprep.subr.mxu0 0.0
        %1240 = vmatpush1.msra.mxu0 0.0
        %1241 = vmatprep.subr.mxu0 0.0
        %1242 = vmatpush1.msra.mxu0 0.0
        %1243 = vmatprep.subr.mxu0 0.0
        %1244 = vmatpush1.msra.mxu0 0.0
        %1245 = vmatprep.subr.mxu0 0.0
        %1246 = vmatpush1.msra.mxu0 0.0
        %1247 = vmatprep.subr.mxu0 0.0
        %1248 = vmatpush1.msra.mxu0 0.0
        %1249 = vmatprep.subr.mxu0 0.0
        %1250 = vmatpush1.msra.mxu0 0.0
        %1251 = vmatprep.mubr.f32.mxu0 0.0
        %1252 = vmatmul.mubr.f32.gmra.mrb[0].mxu0 %v1179
        %v1253 = vpop.f32.mrb[0].mxu0
        %v1254 = vadd.f32 0.0, %v1253
        %v1255 = vpop.f32.mrb[0].mxu0
        %1256 = vmatprep.mubr.f32.mxu0 0.0
        %1257 = vmatmul.mubr.f32.gmra.mrb[0].mxu0 %v1182
        %v1258 = vpop.f32.mrb[0].mxu0
        %v1259 = vadd.f32 0.0, %v1258
        %v1260 = vpop.f32.mrb[0].mxu0
        %1261 = vmatprep.mubr.f32.mxu0 0.0
        %1262 = vmatmul.mubr.f32.gmra.mrb[0].mxu0 %v1185
        %v1263 = vpop.f32.mrb[0].mxu0
        %v1264 = vadd.f32 0.0, %v1263
        %v1265 = vpop.f32.mrb[0].mxu0
        %1266 = vdwg.mxu0
        %v1267 = vld [vmem:[%s3 + $0x60] sm:$0xff]
        %v1268 = vld [vmem:[%s3 + $0x68] sm:$0xff]
        %v1269 = vld [vmem:[%s3 + $0x70] sm:$0xff]
        %v1270 = vld [vmem:[%s3 + $0x78] sm:$0xff]
        %v1272 = vsel %vm458, %v1259, 0
        %1274 = vmatprep.subr.mxu0 0.0
        %1275 = vmatpush1.msra.mxu0 %v1269
        %1276 = vmatprep.subr.mxu0 0.0
        %1277 = vmatpush1.msra.mxu0 %v1270
        %1278 = vmatprep.subr.mxu0 0.0
        %1279 = vmatpush1.msra.mxu0 0.0
        %1280 = vmatprep.subr.mxu0 0.0
        %1281 = vmatpush1.msra.mxu0 0.0
        %1282 = vmatprep.subr.mxu0 0.0
        %1283 = vmatpush1.msra.mxu0 0.0
        %1284 = vmatprep.subr.mxu0 0.0
        %1285 = vmatpush1.msra.mxu0 0.0
        %1286 = vmatprep.subr.mxu0 0.0
        %1287 = vmatpush1.msra.mxu0 0.0
        %1288 = vmatprep.subr.mxu0 0.0
        %1289 = vmatpush1.msra.mxu0 0.0
        %1290 = vmatprep.subr.mxu0 0.0
        %1291 = vmatpush1.msra.mxu0 0.0
        %1292 = vmatprep.subr.mxu0 0.0
        %1293 = vmatpush1.msra.mxu0 0.0
        %1294 = vmatprep.subr.mxu0 0.0
        %1295 = vmatpush1.msra.mxu0 0.0
        %1296 = vmatprep.subr.mxu0 0.0
        %1297 = vmatpush1.msra.mxu0 0.0
        %1298 = vmatprep.subr.mxu0 0.0
        %1299 = vmatpush1.msra.mxu0 0.0
        %1300 = vmatprep.subr.mxu0 0.0
        %1301 = vmatpush1.msra.mxu0 0.0
        %1302 = vmatprep.subr.mxu0 0.0
        %1303 = vmatpush1.msra.mxu0 0.0
        %1304 = vmatprep.subr.mxu0 0.0
        %1305 = vmatpush1.msra.mxu0 0.0
        %1306 = vmatprep.subr.mxu0 0.0
        %1307 = vmatpush1.msra.mxu0 0.0
        %1308 = vmatprep.subr.mxu0 0.0
        %1309 = vmatpush1.msra.mxu0 0.0
        %1310 = vmatprep.subr.mxu0 0.0
        %1311 = vmatpush1.msra.mxu0 0.0
        %1312 = vmatprep.subr.mxu0 0.0
        %1313 = vmatpush1.msra.mxu0 0.0
        %1314 = vmatprep.subr.mxu0 0.0
        %1315 = vmatpush1.msra.mxu0 0.0
        %1316 = vmatprep.subr.mxu0 0.0
        %1317 = vmatpush1.msra.mxu0 0.0
        %1318 = vmatprep.subr.mxu0 0.0
        %1319 = vmatpush1.msra.mxu0 0.0
        %1320 = vmatprep.subr.mxu0 0.0
        %1321 = vmatpush1.msra.mxu0 0.0
        %1322 = vmatprep.subr.mxu0 0.0
        %1323 = vmatpush1.msra.mxu0 0.0
        %1324 = vmatprep.subr.mxu0 0.0
        %1325 = vmatpush1.msra.mxu0 0.0
        %1326 = vmatprep.subr.mxu0 0.0
        %1327 = vmatpush1.msra.mxu0 0.0
        %1328 = vmatprep.subr.mxu0 0.0
        %1329 = vmatpush1.msra.mxu0 0.0
        %1330 = vmatprep.subr.mxu0 0.0
        %1331 = vmatpush1.msra.mxu0 0.0
        %1332 = vmatprep.subr.mxu0 0.0
        %1333 = vmatpush1.msra.mxu0 0.0
        %1334 = vmatprep.subr.mxu0 0.0
        %1335 = vmatpush1.msra.mxu0 0.0
        %1336 = vmatprep.subr.mxu0 0.0
        %1337 = vmatpush1.msra.mxu0 0.0
        %1338 = vmatprep.mubr.f32.mxu0 0.0
        %1339 = vmatmul.mubr.f32.gmra.mrb[0].mxu0 %v1272
        %v1340 = vpop.f32.mrb[0].mxu0
        %v1341 = vadd.f32 0.0, %v1340
        %v1342 = vpop.f32.mrb[0].mxu0
        %1343 = vdwg.mxu0
        %v1345 = vsel %vm458, %v1254, 0
        %1347 = vmatprep.subr.mxu0 0.0
        %1348 = vmatpush1.msra.mxu0 %v1267
        %1349 = vmatprep.subr.mxu0 0.0
        %1350 = vmatpush1.msra.mxu0 %v1268
        %1351 = vmatprep.subr.mxu0 0.0
        %1352 = vmatpush1.msra.mxu0 0.0
        %1353 = vmatprep.subr.mxu0 0.0
        %1354 = vmatpush1.msra.mxu0 0.0
        %1355 = vmatprep.subr.mxu0 0.0
        %1356 = vmatpush1.msra.mxu0 0.0
        %1357 = vmatprep.subr.mxu0 0.0
        %1358 = vmatpush1.msra.mxu0 0.0
        %1359 = vmatprep.subr.mxu0 0.0
        %1360 = vmatpush1.msra.mxu0 0.0
        %1361 = vmatprep.subr.mxu0 0.0
        %1362 = vmatpush1.msra.mxu0 0.0
        %1363 = vmatprep.subr.mxu0 0.0
        %1364 = vmatpush1.msra.mxu0 0.0
        %1365 = vmatprep.subr.mxu0 0.0
        %1366 = vmatpush1.msra.mxu0 0.0
        %1367 = vmatprep.subr.mxu0 0.0
        %1368 = vmatpush1.msra.mxu0 0.0
        %1369 = vmatprep.subr.mxu0 0.0
        %1370 = vmatpush1.msra.mxu0 0.0
        %1371 = vmatprep.subr.mxu0 0.0
        %1372 = vmatpush1.msra.mxu0 0.0
        %1373 = vmatprep.subr.mxu0 0.0
        %1374 = vmatpush1.msra.mxu0 0.0
        %1375 = vmatprep.subr.mxu0 0.0
        %1376 = vmatpush1.msra.mxu0 0.0
        %1377 = vmatprep.subr.mxu0 0.0
        %1378 = vmatpush1.msra.mxu0 0.0
        %1379 = vmatprep.subr.mxu0 0.0
        %1380 = vmatpush1.msra.mxu0 0.0
        %1381 = vmatprep.subr.mxu0 0.0
        %1382 = vmatpush1.msra.mxu0 0.0
        %1383 = vmatprep.subr.mxu0 0.0
        %1384 = vmatpush1.msra.mxu0 0.0
        %1385 = vmatprep.subr.mxu0 0.0
        %1386 = vmatpush1.msra.mxu0 0.0
        %1387 = vmatprep.subr.mxu0 0.0
        %1388 = vmatpush1.msra.mxu0 0.0
        %1389 = vmatprep.subr.mxu0 0.0
        %1390 = vmatpush1.msra.mxu0 0.0
        %1391 = vmatprep.subr.mxu0 0.0
        %1392 = vmatpush1.msra.mxu0 0.0
        %1393 = vmatprep.subr.mxu0 0.0
        %1394 = vmatpush1.msra.mxu0 0.0
        %1395 = vmatprep.subr.mxu0 0.0
        %1396 = vmatpush1.msra.mxu0 0.0
        %1397 = vmatprep.subr.mxu0 0.0
        %1398 = vmatpush1.msra.mxu0 0.0
        %1399 = vmatprep.subr.mxu0 0.0
        %1400 = vmatpush1.msra.mxu0 0.0
        %1401 = vmatprep.subr.mxu0 0.0
        %1402 = vmatpush1.msra.mxu0 0.0
        %1403 = vmatprep.subr.mxu0 0.0
        %1404 = vmatpush1.msra.mxu0 0.0
        %1405 = vmatprep.subr.mxu0 0.0
        %1406 = vmatpush1.msra.mxu0 0.0
        %1407 = vmatprep.subr.mxu0 0.0
        %1408 = vmatpush1.msra.mxu0 0.0
        %1409 = vmatprep.subr.mxu0 0.0
        %1410 = vmatpush1.msra.mxu0 0.0
        %1411 = vmatprep.mubr.f32.mxu0 0.0
        %1412 = vmatmul.mubr.f32.gmra.mrb[0].mxu0 %v1345
        %v1413 = vpop.f32.mrb[0].mxu0
        %v1414 = vadd.f32 %v1341, %v1413
        %v1415 = vpop.f32.mrb[0].mxu0
        %1416 = vdwg.mxu0
        %v1417 = vld [vmem:[%s3 + $0x80] sm:$0xff]
        %v1418 = vld [vmem:[%s3 + $0x88] sm:$0xff]
        %v1420 = vsel %vm458, %v1264, 0
        %1422 = vmatprep.subr.mxu0 0.0
        %1423 = vmatpush1.msra.mxu0 %v1417
        %1424 = vmatprep.subr.mxu0 0.0
        %1425 = vmatpush1.msra.mxu0 %v1418
        %1426 = vmatprep.subr.mxu0 0.0
        %1427 = vmatpush1.msra.mxu0 0.0
        %1428 = vmatprep.subr.mxu0 0.0
        %1429 = vmatpush1.msra.mxu0 0.0
        %1430 = vmatprep.subr.mxu0 0.0
        %1431 = vmatpush1.msra.mxu0 0.0
        %1432 = vmatprep.subr.mxu0 0.0
        %1433 = vmatpush1.msra.mxu0 0.0
        %1434 = vmatprep.subr.mxu0 0.0
        %1435 = vmatpush1.msra.mxu0 0.0
        %1436 = vmatprep.subr.mxu0 0.0
        %1437 = vmatpush1.msra.mxu0 0.0
        %1438 = vmatprep.subr.mxu0 0.0
        %1439 = vmatpush1.msra.mxu0 0.0
        %1440 = vmatprep.subr.mxu0 0.0
        %1441 = vmatpush1.msra.mxu0 0.0
        %1442 = vmatprep.subr.mxu0 0.0
        %1443 = vmatpush1.msra.mxu0 0.0
        %1444 = vmatprep.subr.mxu0 0.0
        %1445 = vmatpush1.msra.mxu0 0.0
        %1446 = vmatprep.subr.mxu0 0.0
        %1447 = vmatpush1.msra.mxu0 0.0
        %1448 = vmatprep.subr.mxu0 0.0
        %1449 = vmatpush1.msra.mxu0 0.0
        %1450 = vmatprep.subr.mxu0 0.0
        %1451 = vmatpush1.msra.mxu0 0.0
        %1452 = vmatprep.subr.mxu0 0.0
        %1453 = vmatpush1.msra.mxu0 0.0
        %1454 = vmatprep.subr.mxu0 0.0
        %1455 = vmatpush1.msra.mxu0 0.0
        %1456 = vmatprep.subr.mxu0 0.0
        %1457 = vmatpush1.msra.mxu0 0.0
        %1458 = vmatprep.subr.mxu0 0.0
        %1459 = vmatpush1.msra.mxu0 0.0
        %1460 = vmatprep.subr.mxu0 0.0
        %1461 = vmatpush1.msra.mxu0 0.0
        %1462 = vmatprep.subr.mxu0 0.0
        %1463 = vmatpush1.msra.mxu0 0.0
        %1464 = vmatprep.subr.mxu0 0.0
        %1465 = vmatpush1.msra.mxu0 0.0
        %1466 = vmatprep.subr.mxu0 0.0
        %1467 = vmatpush1.msra.mxu0 0.0
        %1468 = vmatprep.subr.mxu0 0.0
        %1469 = vmatpush1.msra.mxu0 0.0
        %1470 = vmatprep.subr.mxu0 0.0
        %1471 = vmatpush1.msra.mxu0 0.0
        %1472 = vmatprep.subr.mxu0 0.0
        %1473 = vmatpush1.msra.mxu0 0.0
        %1474 = vmatprep.subr.mxu0 0.0
        %1475 = vmatpush1.msra.mxu0 0.0
        %1476 = vmatprep.subr.mxu0 0.0
        %1477 = vmatpush1.msra.mxu0 0.0
        %1478 = vmatprep.subr.mxu0 0.0
        %1479 = vmatpush1.msra.mxu0 0.0
        %1480 = vmatprep.subr.mxu0 0.0
        %1481 = vmatpush1.msra.mxu0 0.0
        %1482 = vmatprep.subr.mxu0 0.0
        %1483 = vmatpush1.msra.mxu0 0.0
        %1484 = vmatprep.subr.mxu0 0.0
        %1485 = vmatpush1.msra.mxu0 0.0
        %1486 = vmatprep.mubr.f32.mxu0 0.0
        %1487 = vmatmul.mubr.f32.gmra.mrb[0].mxu0 %v1420
        %v1488 = vpop.f32.mrb[0].mxu0
        %v1489 = vadd.f32 0.0, %v1488
        %v1490 = vpop.f32.mrb[0].mxu0
        %1491 = vdwg.mxu0
        %v1492 = vadd.f32 %v1414, %v1489
        %v1493 = vld [vmem:[%s2 + $0x78] sm:$0xff]
        %1495 = vset.pattern.permute.xlu0 0
        %1496 = vperm.xlu0 %1495, %v1493
        %v1497 = vpop.permute.xlu0 %1496
        %v1499 = vadd.f32 %v1492, %v1497
        %v1500 = vmax.f32 %v1499, 0.0
        %v1501 = vld [vmem:[%s2 + $0x80] sm:$0xff]
        %v1502 = vld [vmem:[%s2 + $0x88] sm:$0xff]
        %v1503 = vld [vmem:[%s2 + $0x90] sm:$0xff]
        %v1505 = vsel %vm614, %v1501, 0
        %v1508 = vsel %vm614, %v1502, 0
        %v1511 = vsel %vm614, %v1503, 0
        %1513 = vmatprep.subr.mxu0 0.0
        %1514 = vmatpush1.msra.mxu0 %v1500
        %1515 = vmatprep.subr.mxu0 0.0
        %1516 = vmatpush1.msra.mxu0 0.0
        %1517 = vmatprep.subr.mxu0 0.0
        %1518 = vmatpush1.msra.mxu0 0.0
        %1519 = vmatprep.subr.mxu0 0.0
        %1520 = vmatpush1.msra.mxu0 0.0
        %1521 = vmatprep.subr.mxu0 0.0
        %1522 = vmatpush1.msra.mxu0 0.0
        %1523 = vmatprep.subr.mxu0 0.0
        %1524 = vmatpush1.msra.mxu0 0.0
        %1525 = vmatprep.subr.mxu0 0.0
        %1526 = vmatpush1.msra.mxu0 0.0
        %1527 = vmatprep.subr.mxu0 0.0
        %1528 = vmatpush1.msra.mxu0 0.0
        %1529 = vmatprep.subr.mxu0 0.0
        %1530 = vmatpush1.msra.mxu0 0.0
        %1531 = vmatprep.subr.mxu0 0.0
        %1532 = vmatpush1.msra.mxu0 0.0
        %1533 = vmatprep.subr.mxu0 0.0
        %1534 = vmatpush1.msra.mxu0 0.0
        %1535 = vmatprep.subr.mxu0 0.0
        %1536 = vmatpush1.msra.mxu0 0.0
        %1537 = vmatprep.subr.mxu0 0.0
        %1538 = vmatpush1.msra.mxu0 0.0
        %1539 = vmatprep.subr.mxu0 0.0
        %1540 = vmatpush1.msra.mxu0 0.0
        %1541 = vmatprep.subr.mxu0 0.0
        %1542 = vmatpush1.msra.mxu0 0.0
        %1543 = vmatprep.subr.mxu0 0.0
        %1544 = vmatpush1.msra.mxu0 0.0
        %1545 = vmatprep.subr.mxu0 0.0
        %1546 = vmatpush1.msra.mxu0 0.0
        %1547 = vmatprep.subr.mxu0 0.0
        %1548 = vmatpush1.msra.mxu0 0.0
        %1549 = vmatprep.subr.mxu0 0.0
        %1550 = vmatpush1.msra.mxu0 0.0
        %1551 = vmatprep.subr.mxu0 0.0
        %1552 = vmatpush1.msra.mxu0 0.0
        %1553 = vmatprep.subr.mxu0 0.0
        %1554 = vmatpush1.msra.mxu0 0.0
        %1555 = vmatprep.subr.mxu0 0.0
        %1556 = vmatpush1.msra.mxu0 0.0
        %1557 = vmatprep.subr.mxu0 0.0
        %1558 = vmatpush1.msra.mxu0 0.0
        %1559 = vmatprep.subr.mxu0 0.0
        %1560 = vmatpush1.msra.mxu0 0.0
        %1561 = vmatprep.subr.mxu0 0.0
        %1562 = vmatpush1.msra.mxu0 0.0
        %1563 = vmatprep.subr.mxu0 0.0
        %1564 = vmatpush1.msra.mxu0 0.0
        %1565 = vmatprep.subr.mxu0 0.0
        %1566 = vmatpush1.msra.mxu0 0.0
        %1567 = vmatprep.subr.mxu0 0.0
        %1568 = vmatpush1.msra.mxu0 0.0
        %1569 = vmatprep.subr.mxu0 0.0
        %1570 = vmatpush1.msra.mxu0 0.0
        %1571 = vmatprep.subr.mxu0 0.0
        %1572 = vmatpush1.msra.mxu0 0.0
        %1573 = vmatprep.subr.mxu0 0.0
        %1574 = vmatpush1.msra.mxu0 0.0
        %1575 = vmatprep.subr.mxu0 0.0
        %1576 = vmatpush1.msra.mxu0 0.0
        %1577 = vmatprep.mubr.f32.mxu0 0.0
        %1578 = vmatmul.mubr.f32.gmra.mrb[0].mxu0 %v1505
        %v1579 = vpop.f32.mrb[0].mxu0
        %v1580 = vadd.f32 0.0, %v1579
        %v1581 = vpop.f32.mrb[0].mxu0
        %1582 = vmatprep.mubr.f32.mxu0 0.0
        %1583 = vmatmul.mubr.f32.gmra.mrb[0].mxu0 %v1508
        %v1584 = vpop.f32.mrb[0].mxu0
        %v1585 = vadd.f32 0.0, %v1584
        %v1586 = vpop.f32.mrb[0].mxu0
        %1587 = vmatprep.mubr.f32.mxu0 0.0
        %1588 = vmatmul.mubr.f32.gmra.mrb[0].mxu0 %v1511
        %v1589 = vpop.f32.mrb[0].mxu0
        %v1590 = vadd.f32 0.0, %v1589
        %v1591 = vpop.f32.mrb[0].mxu0
        %1592 = vdwg.mxu0
        %v1593 = vld [vmem:[%s3 + $0x90] sm:$0xff]
        %v1594 = vld [vmem:[%s3 + $0x98] sm:$0xff]
        %v1595 = vld [vmem:[%s3 + $0xa0] sm:$0xff]
        %v1596 = vld [vmem:[%s3 + $0xa8] sm:$0xff]
        %v1598 = vsel %vm458, %v1585, 0
        %1600 = vmatprep.subr.mxu0 0.0
        %1601 = vmatpush1.msra.mxu0 %v1595
        %1602 = vmatprep.subr.mxu0 0.0
        %1603 = vmatpush1.msra.mxu0 %v1596
        %1604 = vmatprep.subr.mxu0 0.0
        %1605 = vmatpush1.msra.mxu0 0.0
        %1606 = vmatprep.subr.mxu0 0.0
        %1607 = vmatpush1.msra.mxu0 0.0
        %1608 = vmatprep.subr.mxu0 0.0
        %1609 = vmatpush1.msra.mxu0 0.0
        %1610 = vmatprep.subr.mxu0 0.0
        %1611 = vmatpush1.msra.mxu0 0.0
        %1612 = vmatprep.subr.mxu0 0.0
        %1613 = vmatpush1.msra.mxu0 0.0
        %1614 = vmatprep.subr.mxu0 0.0
        %1615 = vmatpush1.msra.mxu0 0.0
        %1616 = vmatprep.subr.mxu0 0.0
        %1617 = vmatpush1.msra.mxu0 0.0
        %1618 = vmatprep.subr.mxu0 0.0
        %1619 = vmatpush1.msra.mxu0 0.0
        %1620 = vmatprep.subr.mxu0 0.0
        %1621 = vmatpush1.msra.mxu0 0.0
        %1622 = vmatprep.subr.mxu0 0.0
        %1623 = vmatpush1.msra.mxu0 0.0
        %1624 = vmatprep.subr.mxu0 0.0
        %1625 = vmatpush1.msra.mxu0 0.0
        %1626 = vmatprep.subr.mxu0 0.0
        %1627 = vmatpush1.msra.mxu0 0.0
        %1628 = vmatprep.subr.mxu0 0.0
        %1629 = vmatpush1.msra.mxu0 0.0
        %1630 = vmatprep.subr.mxu0 0.0
        %1631 = vmatpush1.msra.mxu0 0.0
        %1632 = vmatprep.subr.mxu0 0.0
        %1633 = vmatpush1.msra.mxu0 0.0
        %1634 = vmatprep.subr.mxu0 0.0
        %1635 = vmatpush1.msra.mxu0 0.0
        %1636 = vmatprep.subr.mxu0 0.0
        %1637 = vmatpush1.msra.mxu0 0.0
        %1638 = vmatprep.subr.mxu0 0.0
        %1639 = vmatpush1.msra.mxu0 0.0
        %1640 = vmatprep.subr.mxu0 0.0
        %1641 = vmatpush1.msra.mxu0 0.0
        %1642 = vmatprep.subr.mxu0 0.0
        %1643 = vmatpush1.msra.mxu0 0.0
        %1644 = vmatprep.subr.mxu0 0.0
        %1645 = vmatpush1.msra.mxu0 0.0
        %1646 = vmatprep.subr.mxu0 0.0
        %1647 = vmatpush1.msra.mxu0 0.0
        %1648 = vmatprep.subr.mxu0 0.0
        %1649 = vmatpush1.msra.mxu0 0.0
        %1650 = vmatprep.subr.mxu0 0.0
        %1651 = vmatpush1.msra.mxu0 0.0
        %1652 = vmatprep.subr.mxu0 0.0
        %1653 = vmatpush1.msra.mxu0 0.0
        %1654 = vmatprep.subr.mxu0 0.0
        %1655 = vmatpush1.msra.mxu0 0.0
        %1656 = vmatprep.subr.mxu0 0.0
        %1657 = vmatpush1.msra.mxu0 0.0
        %1658 = vmatprep.subr.mxu0 0.0
        %1659 = vmatpush1.msra.mxu0 0.0
        %1660 = vmatprep.subr.mxu0 0.0
        %1661 = vmatpush1.msra.mxu0 0.0
        %1662 = vmatprep.subr.mxu0 0.0
        %1663 = vmatpush1.msra.mxu0 0.0
        %1664 = vmatprep.mubr.f32.mxu0 0.0
        %1665 = vmatmul.mubr.f32.gmra.mrb[0].mxu0 %v1598
        %v1666 = vpop.f32.mrb[0].mxu0
        %v1667 = vadd.f32 0.0, %v1666
        %v1668 = vpop.f32.mrb[0].mxu0
        %1669 = vdwg.mxu0
        %v1671 = vsel %vm458, %v1580, 0
        %1673 = vmatprep.subr.mxu0 0.0
        %1674 = vmatpush1.msra.mxu0 %v1593
        %1675 = vmatprep.subr.mxu0 0.0
        %1676 = vmatpush1.msra.mxu0 %v1594
        %1677 = vmatprep.subr.mxu0 0.0
        %1678 = vmatpush1.msra.mxu0 0.0
        %1679 = vmatprep.subr.mxu0 0.0
        %1680 = vmatpush1.msra.mxu0 0.0
        %1681 = vmatprep.subr.mxu0 0.0
        %1682 = vmatpush1.msra.mxu0 0.0
        %1683 = vmatprep.subr.mxu0 0.0
        %1684 = vmatpush1.msra.mxu0 0.0
        %1685 = vmatprep.subr.mxu0 0.0
        %1686 = vmatpush1.msra.mxu0 0.0
        %1687 = vmatprep.subr.mxu0 0.0
        %1688 = vmatpush1.msra.mxu0 0.0
        %1689 = vmatprep.subr.mxu0 0.0
        %1690 = vmatpush1.msra.mxu0 0.0
        %1691 = vmatprep.subr.mxu0 0.0
        %1692 = vmatpush1.msra.mxu0 0.0
        %1693 = vmatprep.subr.mxu0 0.0
        %1694 = vmatpush1.msra.mxu0 0.0
        %1695 = vmatprep.subr.mxu0 0.0
        %1696 = vmatpush1.msra.mxu0 0.0
        %1697 = vmatprep.subr.mxu0 0.0
        %1698 = vmatpush1.msra.mxu0 0.0
        %1699 = vmatprep.subr.mxu0 0.0
        %1700 = vmatpush1.msra.mxu0 0.0
        %1701 = vmatprep.subr.mxu0 0.0
        %1702 = vmatpush1.msra.mxu0 0.0
        %1703 = vmatprep.subr.mxu0 0.0
        %1704 = vmatpush1.msra.mxu0 0.0
        %1705 = vmatprep.subr.mxu0 0.0
        %1706 = vmatpush1.msra.mxu0 0.0
        %1707 = vmatprep.subr.mxu0 0.0
        %1708 = vmatpush1.msra.mxu0 0.0
        %1709 = vmatprep.subr.mxu0 0.0
        %1710 = vmatpush1.msra.mxu0 0.0
        %1711 = vmatprep.subr.mxu0 0.0
        %1712 = vmatpush1.msra.mxu0 0.0
        %1713 = vmatprep.subr.mxu0 0.0
        %1714 = vmatpush1.msra.mxu0 0.0
        %1715 = vmatprep.subr.mxu0 0.0
        %1716 = vmatpush1.msra.mxu0 0.0
        %1717 = vmatprep.subr.mxu0 0.0
        %1718 = vmatpush1.msra.mxu0 0.0
        %1719 = vmatprep.subr.mxu0 0.0
        %1720 = vmatpush1.msra.mxu0 0.0
        %1721 = vmatprep.subr.mxu0 0.0
        %1722 = vmatpush1.msra.mxu0 0.0
        %1723 = vmatprep.subr.mxu0 0.0
        %1724 = vmatpush1.msra.mxu0 0.0
        %1725 = vmatprep.subr.mxu0 0.0
        %1726 = vmatpush1.msra.mxu0 0.0
        %1727 = vmatprep.subr.mxu0 0.0
        %1728 = vmatpush1.msra.mxu0 0.0
        %1729 = vmatprep.subr.mxu0 0.0
        %1730 = vmatpush1.msra.mxu0 0.0
        %1731 = vmatprep.subr.mxu0 0.0
        %1732 = vmatpush1.msra.mxu0 0.0
        %1733 = vmatprep.subr.mxu0 0.0
        %1734 = vmatpush1.msra.mxu0 0.0
        %1735 = vmatprep.subr.mxu0 0.0
        %1736 = vmatpush1.msra.mxu0 0.0
        %1737 = vmatprep.mubr.f32.mxu0 0.0
        %1738 = vmatmul.mubr.f32.gmra.mrb[0].mxu0 %v1671
        %v1739 = vpop.f32.mrb[0].mxu0
        %v1740 = vadd.f32 %v1667, %v1739
        %v1741 = vpop.f32.mrb[0].mxu0
        %1742 = vdwg.mxu0
        %v1743 = vld [vmem:[%s3 + $0xb0] sm:$0xff]
        %v1744 = vld [vmem:[%s3 + $0xb8] sm:$0xff]
        %v1746 = vsel %vm458, %v1590, 0
        %1748 = vmatprep.subr.mxu0 0.0
        %1749 = vmatpush1.msra.mxu0 %v1743
        %1750 = vmatprep.subr.mxu0 0.0
        %1751 = vmatpush1.msra.mxu0 %v1744
        %1752 = vmatprep.subr.mxu0 0.0
        %1753 = vmatpush1.msra.mxu0 0.0
        %1754 = vmatprep.subr.mxu0 0.0
        %1755 = vmatpush1.msra.mxu0 0.0
        %1756 = vmatprep.subr.mxu0 0.0
        %1757 = vmatpush1.msra.mxu0 0.0
        %1758 = vmatprep.subr.mxu0 0.0
        %1759 = vmatpush1.msra.mxu0 0.0
        %1760 = vmatprep.subr.mxu0 0.0
        %1761 = vmatpush1.msra.mxu0 0.0
        %1762 = vmatprep.subr.mxu0 0.0
        %1763 = vmatpush1.msra.mxu0 0.0
        %1764 = vmatprep.subr.mxu0 0.0
        %1765 = vmatpush1.msra.mxu0 0.0
        %1766 = vmatprep.subr.mxu0 0.0
        %1767 = vmatpush1.msra.mxu0 0.0
        %1768 = vmatprep.subr.mxu0 0.0
        %1769 = vmatpush1.msra.mxu0 0.0
        %1770 = vmatprep.subr.mxu0 0.0
        %1771 = vmatpush1.msra.mxu0 0.0
        %1772 = vmatprep.subr.mxu0 0.0
        %1773 = vmatpush1.msra.mxu0 0.0
        %1774 = vmatprep.subr.mxu0 0.0
        %1775 = vmatpush1.msra.mxu0 0.0
        %1776 = vmatprep.subr.mxu0 0.0
        %1777 = vmatpush1.msra.mxu0 0.0
        %1778 = vmatprep.subr.mxu0 0.0
        %1779 = vmatpush1.msra.mxu0 0.0
        %1780 = vmatprep.subr.mxu0 0.0
        %1781 = vmatpush1.msra.mxu0 0.0
        %1782 = vmatprep.subr.mxu0 0.0
        %1783 = vmatpush1.msra.mxu0 0.0
        %1784 = vmatprep.subr.mxu0 0.0
        %1785 = vmatpush1.msra.mxu0 0.0
        %1786 = vmatprep.subr.mxu0 0.0
        %1787 = vmatpush1.msra.mxu0 0.0
        %1788 = vmatprep.subr.mxu0 0.0
        %1789 = vmatpush1.msra.mxu0 0.0
        %1790 = vmatprep.subr.mxu0 0.0
        %1791 = vmatpush1.msra.mxu0 0.0
        %1792 = vmatprep.subr.mxu0 0.0
        %1793 = vmatpush1.msra.mxu0 0.0
        %1794 = vmatprep.subr.mxu0 0.0
        %1795 = vmatpush1.msra.mxu0 0.0
        %1796 = vmatprep.subr.mxu0 0.0
        %1797 = vmatpush1.msra.mxu0 0.0
        %1798 = vmatprep.subr.mxu0 0.0
        %1799 = vmatpush1.msra.mxu0 0.0
        %1800 = vmatprep.subr.mxu0 0.0
        %1801 = vmatpush1.msra.mxu0 0.0
        %1802 = vmatprep.subr.mxu0 0.0
        %1803 = vmatpush1.msra.mxu0 0.0
        %1804 = vmatprep.subr.mxu0 0.0
        %1805 = vmatpush1.msra.mxu0 0.0
        %1806 = vmatprep.subr.mxu0 0.0
        %1807 = vmatpush1.msra.mxu0 0.0
        %1808 = vmatprep.subr.mxu0 0.0
        %1809 = vmatpush1.msra.mxu0 0.0
        %1810 = vmatprep.subr.mxu0 0.0
        %1811 = vmatpush1.msra.mxu0 0.0
        %1812 = vmatprep.mubr.f32.mxu0 0.0
        %1813 = vmatmul.mubr.f32.gmra.mrb[0].mxu0 %v1746
        %v1814 = vpop.f32.mrb[0].mxu0
        %v1815 = vadd.f32 0.0, %v1814
        %v1816 = vpop.f32.mrb[0].mxu0
        %1817 = vdwg.mxu0
        %v1818 = vadd.f32 %v1740, %v1815
        %v1819 = vld [vmem:[%s2 + $0x98] sm:$0xff]
        %1821 = vset.pattern.permute.xlu0 0
        %1822 = vperm.xlu0 %1821, %v1819
        %v1823 = vpop.permute.xlu0 %1822
        %v1825 = vadd.f32 %v1818, %v1823
        %v1826 = vmax.f32 %v1825, 0.0
        %v1827 = vld [vmem:[%s2 + $0xa0] sm:$0xff]
        %v1828 = vld [vmem:[%s2 + $0xa8] sm:$0xff]
        %v1829 = vsel %vm614, %v1826, 0.0
        %1830 = vadd.xlane.f32.xlu0 %v1829
        %v1831 = vpop.xlane.xlu0 %1830
        %v1832 = vrcp.pop 8.0
        %v1833 = vmul.f32 %v1831, %v1832
        %v1834 = vsub.f32 %v1826, %v1833
        %v1835 = vmul.f32 %v1834, %v1834
        %v1836 = vsel %vm614, %v1835, 0.0
        %1837 = vadd.xlane.f32.xlu0 %v1836
        %v1838 = vpop.xlane.xlu0 %1837
        %v1839 = vmul.f32 %v1838, %v1832
        %v1840 = vadd.f32 %v1839, 1e-05
        %v1841 = vrsqrt.pop %v1840
        %v1842 = vmul.f32 %v1834, %v1841
        %1844 = vset.pattern.permute.xlu0 0
        %1845 = vperm.xlu0 %1844, %v1827
        %v1846 = vpop.permute.xlu0 %1845
        %v1848 = vmul.f32 %v1842, %v1846
        %1850 = vset.pattern.permute.xlu0 0
        %1851 = vperm.xlu0 %1850, %v1828
        %v1852 = vpop.permute.xlu0 %1851
        %v1854 = vadd.f32 %v1848, %v1852
        %v1855 = vld [vmem:[%s3 + $0xc0] sm:$0xff]
        %v1856 = vld [vmem:[%s3 + $0xc8] sm:$0xff]
        %v1858 = vsel %vm458, %v1174, 0
        %1860 = vmatprep.subr.mxu0 0.0
        %1861 = vmatpush1.msra.mxu0 %v1855
        %1862 = vmatprep.subr.mxu0 0.0
        %1863 = vmatpush1.msra.mxu0 %v1856
        %1864 = vmatprep.subr.mxu0 0.0
        %1865 = vmatpush1.msra.mxu0 0.0
        %1866 = vmatprep.subr.mxu0 0.0
        %1867 = vmatpush1.msra.mxu0 0.0
        %1868 = vmatprep.subr.mxu0 0.0
        %1869 = vmatpush1.msra.mxu0 0.0
        %1870 = vmatprep.subr.mxu0 0.0
        %1871 = vmatpush1.msra.mxu0 0.0
        %1872 = vmatprep.subr.mxu0 0.0
        %1873 = vmatpush1.msra.mxu0 0.0
        %1874 = vmatprep.subr.mxu0 0.0
        %1875 = vmatpush1.msra.mxu0 0.0
        %1876 = vmatprep.subr.mxu0 0.0
        %1877 = vmatpush1.msra.mxu0 0.0
        %1878 = vmatprep.subr.mxu0 0.0
        %1879 = vmatpush1.msra.mxu0 0.0
        %1880 = vmatprep.subr.mxu0 0.0
        %1881 = vmatpush1.msra.mxu0 0.0
        %1882 = vmatprep.subr.mxu0 0.0
        %1883 = vmatpush1.msra.mxu0 0.0
        %1884 = vmatprep.subr.mxu0 0.0
        %1885 = vmatpush1.msra.mxu0 0.0
        %1886 = vmatprep.subr.mxu0 0.0
        %1887 = vmatpush1.msra.mxu0 0.0
        %1888 = vmatprep.subr.mxu0 0.0
        %1889 = vmatpush1.msra.mxu0 0.0
        %1890 = vmatprep.subr.mxu0 0.0
        %1891 = vmatpush1.msra.mxu0 0.0
        %1892 = vmatprep.subr.mxu0 0.0
        %1893 = vmatpush1.msra.mxu0 0.0
        %1894 = vmatprep.subr.mxu0 0.0
        %1895 = vmatpush1.msra.mxu0 0.0
        %1896 = vmatprep.subr.mxu0 0.0
        %1897 = vmatpush1.msra.mxu0 0.0
        %1898 = vmatprep.subr.mxu0 0.0
        %1899 = vmatpush1.msra.mxu0 0.0
        %1900 = vmatprep.subr.mxu0 0.0
        %1901 = vmatpush1.msra.mxu0 0.0
        %1902 = vmatprep.subr.mxu0 0.0
        %1903 = vmatpush1.msra.mxu0 0.0
        %1904 = vmatprep.subr.mxu0 0.0
        %1905 = vmatpush1.msra.mxu0 0.0
        %1906 = vmatprep.subr.mxu0 0.0
        %1907 = vmatpush1.msra.mxu0 0.0
        %1908 = vmatprep.subr.mxu0 0.0
        %1909 = vmatpush1.msra.mxu0 0.0
        %1910 = vmatprep.subr.mxu0 0.0
        %1911 = vmatpush1.msra.mxu0 0.0
        %1912 = vmatprep.subr.mxu0 0.0
        %1913 = vmatpush1.msra.mxu0 0.0
        %1914 = vmatprep.subr.mxu0 0.0
        %1915 = vmatpush1.msra.mxu0 0.0
        %1916 = vmatprep.subr.mxu0 0.0
        %1917 = vmatpush1.msra.mxu0 0.0
        %1918 = vmatprep.subr.mxu0 0.0
        %1919 = vmatpush1.msra.mxu0 0.0
        %1920 = vmatprep.subr.mxu0 0.0
        %1921 = vmatpush1.msra.mxu0 0.0
        %1922 = vmatprep.subr.mxu0 0.0
        %1923 = vmatpush1.msra.mxu0 0.0
        %1924 = vmatprep.mubr.f32.mxu0 0.0
        %1925 = vmatmul.mubr.f32.gmra.mrb[0].mxu0 %v1858
        %v1926 = vpop.f32.mrb[0].mxu0
        %v1927 = vadd.f32 0.0, %v1926
        %v1928 = vpop.f32.mrb[0].mxu0
        %1929 = vdwg.mxu0
        %v1930 = vadd.f32 %v1854, %v1927
        %v1931 = vld [vmem:[%s2 + $0xb0] sm:$0xff]
        %v1932 = vld [vmem:[%s2 + $0xb8] sm:$0xff]
        %1934 = vset.pattern.permute.xlu0 0
        %1935 = vperm.xlu0 %1934, %v1932
        %v1936 = vpop.permute.xlu0 %1935
        %v1939 = vsel %vm614, %v1931, 0
        %1941 = vmatprep.subr.mxu0 0.0
        %1942 = vmatpush1.msra.mxu0 %v1930
        %1943 = vmatprep.subr.mxu0 0.0
        %1944 = vmatpush1.msra.mxu0 0.0
        %1945 = vmatprep.subr.mxu0 0.0
        %1946 = vmatpush1.msra.mxu0 0.0
        %1947 = vmatprep.subr.mxu0 0.0
        %1948 = vmatpush1.msra.mxu0 0.0
        %1949 = vmatprep.subr.mxu0 0.0
        %1950 = vmatpush1.msra.mxu0 0.0
        %1951 = vmatprep.subr.mxu0 0.0
        %1952 = vmatpush1.msra.mxu0 0.0
        %1953 = vmatprep.subr.mxu0 0.0
        %1954 = vmatpush1.msra.mxu0 0.0
        %1955 = vmatprep.subr.mxu0 0.0
        %1956 = vmatpush1.msra.mxu0 0.0
        %1957 = vmatprep.subr.mxu0 0.0
        %1958 = vmatpush1.msra.mxu0 0.0
        %1959 = vmatprep.subr.mxu0 0.0
        %1960 = vmatpush1.msra.mxu0 0.0
        %1961 = vmatprep.subr.mxu0 0.0
        %1962 = vmatpush1.msra.mxu0 0.0
        %1963 = vmatprep.subr.mxu0 0.0
        %1964 = vmatpush1.msra.mxu0 0.0
        %1965 = vmatprep.subr.mxu0 0.0
        %1966 = vmatpush1.msra.mxu0 0.0
        %1967 = vmatprep.subr.mxu0 0.0
        %1968 = vmatpush1.msra.mxu0 0.0
        %1969 = vmatprep.subr.mxu0 0.0
        %1970 = vmatpush1.msra.mxu0 0.0
        %1971 = vmatprep.subr.mxu0 0.0
        %1972 = vmatpush1.msra.mxu0 0.0
        %1973 = vmatprep.subr.mxu0 0.0
        %1974 = vmatpush1.msra.mxu0 0.0
        %1975 = vmatprep.subr.mxu0 0.0
        %1976 = vmatpush1.msra.mxu0 0.0
        %1977 = vmatprep.subr.mxu0 0.0
        %1978 = vmatpush1.msra.mxu0 0.0
        %1979 = vmatprep.subr.mxu0 0.0
        %1980 = vmatpush1.msra.mxu0 0.0
        %1981 = vmatprep.subr.mxu0 0.0
        %1982 = vmatpush1.msra.mxu0 0.0
        %1983 = vmatprep.subr.mxu0 0.0
        %1984 = vmatpush1.msra.mxu0 0.0
        %1985 = vmatprep.subr.mxu0 0.0
        %1986 = vmatpush1.msra.mxu0 0.0
        %1987 = vmatprep.subr.mxu0 0.0
        %1988 = vmatpush1.msra.mxu0 0.0
        %1989 = vmatprep.subr.mxu0 0.0
        %1990 = vmatpush1.msra.mxu0 0.0
        %1991 = vmatprep.subr.mxu0 0.0
        %1992 = vmatpush1.msra.mxu0 0.0
        %1993 = vmatprep.subr.mxu0 0.0
        %1994 = vmatpush1.msra.mxu0 0.0
        %1995 = vmatprep.subr.mxu0 0.0
        %1996 = vmatpush1.msra.mxu0 0.0
        %1997 = vmatprep.subr.mxu0 0.0
        %1998 = vmatpush1.msra.mxu0 0.0
        %1999 = vmatprep.subr.mxu0 0.0
        %2000 = vmatpush1.msra.mxu0 0.0
        %2001 = vmatprep.subr.mxu0 0.0
        %2002 = vmatpush1.msra.mxu0 0.0
        %2003 = vmatprep.subr.mxu0 0.0
        %2004 = vmatpush1.msra.mxu0 0.0
        %2005 = vmatprep.mubr.f32.mxu0 0.0
        %2006 = vmatmul.mubr.f32.gmra.mrb[0].mxu0 %v1939
        %v2007 = vpop.f32.mrb[0].mxu0
        %v2008 = vadd.f32 %v1936, %v2007
        %v2009 = vpop.f32.mrb[0].mxu0
        %2010 = vdwg.mxu0
        %v2011 = vmax.f32 %v2008, 0.0
        %v2012 = vld [vmem:[%s2 + $0xc0] sm:$0xff]
        %v2013 = vld [vmem:[%s2 + $0xc8] sm:$0xff]
        %2015 = vset.pattern.permute.xlu0 0
        %2016 = vperm.xlu0 %2015, %v2013
        %v2017 = vpop.permute.xlu0 %2016
        %v2020 = vsel %vm614, %v2012, 0
        %2022 = vmatprep.subr.mxu0 0.0
        %2023 = vmatpush1.msra.mxu0 %v2011
        %2024 = vmatprep.subr.mxu0 0.0
        %2025 = vmatpush1.msra.mxu0 0.0
        %2026 = vmatprep.subr.mxu0 0.0
        %2027 = vmatpush1.msra.mxu0 0.0
        %2028 = vmatprep.subr.mxu0 0.0
        %2029 = vmatpush1.msra.mxu0 0.0
        %2030 = vmatprep.subr.mxu0 0.0
        %2031 = vmatpush1.msra.mxu0 0.0
        %2032 = vmatprep.subr.mxu0 0.0
        %2033 = vmatpush1.msra.mxu0 0.0
        %2034 = vmatprep.subr.mxu0 0.0
        %2035 = vmatpush1.msra.mxu0 0.0
        %2036 = vmatprep.subr.mxu0 0.0
        %2037 = vmatpush1.msra.mxu0 0.0
        %2038 = vmatprep.subr.mxu0 0.0
        %2039 = vmatpush1.msra.mxu0 0.0
        %2040 = vmatprep.subr.mxu0 0.0
        %2041 = vmatpush1.msra.mxu0 0.0
        %2042 = vmatprep.subr.mxu0 0.0
        %2043 = vmatpush1.msra.mxu0 0.0
        %2044 = vmatprep.subr.mxu0 0.0
        %2045 = vmatpush1.msra.mxu0 0.0
        %2046 = vmatprep.subr.mxu0 0.0
        %2047 = vmatpush1.msra.mxu0 0.0
        %2048 = vmatprep.subr.mxu0 0.0
        %2049 = vmatpush1.msra.mxu0 0.0
        %2050 = vmatprep.subr.mxu0 0.0
        %2051 = vmatpush1.msra.mxu0 0.0
        %2052 = vmatprep.subr.mxu0 0.0
        %2053 = vmatpush1.msra.mxu0 0.0
        %2054 = vmatprep.subr.mxu0 0.0
        %2055 = vmatpush1.msra.mxu0 0.0
        %2056 = vmatprep.subr.mxu0 0.0
        %2057 = vmatpush1.msra.mxu0 0.0
        %2058 = vmatprep.subr.mxu0 0.0
        %2059 = vmatpush1.msra.mxu0 0.0
        %2060 = vmatprep.subr.mxu0 0.0
        %2061 = vmatpush1.msra.mxu0 0.0
        %2062 = vmatprep.subr.mxu0 0.0
        %2063 = vmatpush1.msra.mxu0 0.0
        %2064 = vmatprep.subr.mxu0 0.0
        %2065 = vmatpush1.msra.mxu0 0.0
        %2066 = vmatprep.subr.mxu0 0.0
        %2067 = vmatpush1.msra.mxu0 0.0
        %2068 = vmatprep.subr.mxu0 0.0
        %2069 = vmatpush1.msra.mxu0 0.0
        %2070 = vmatprep.subr.mxu0 0.0
        %2071 = vmatpush1.msra.mxu0 0.0
        %2072 = vmatprep.subr.mxu0 0.0
        %2073 = vmatpush1.msra.mxu0 0.0
        %2074 = vmatprep.subr.mxu0 0.0
        %2075 = vmatpush1.msra.mxu0 0.0
        %2076 = vmatprep.subr.mxu0 0.0
        %2077 = vmatpush1.msra.mxu0 0.0
        %2078 = vmatprep.subr.mxu0 0.0
        %2079 = vmatpush1.msra.mxu0 0.0
        %2080 = vmatprep.subr.mxu0 0.0
        %2081 = vmatpush1.msra.mxu0 0.0
        %2082 = vmatprep.subr.mxu0 0.0
        %2083 = vmatpush1.msra.mxu0 0.0
        %2084 = vmatprep.subr.mxu0 0.0
        %2085 = vmatpush1.msra.mxu0 0.0
        %2086 = vmatprep.mubr.f32.mxu0 0.0
        %2087 = vmatmul.mubr.f32.gmra.mrb[0].mxu0 %v2020
        %v2088 = vpop.f32.mrb[0].mxu0
        %v2089 = vadd.f32 %v2017, %v2088
        %v2090 = vpop.f32.mrb[0].mxu0
        %2091 = vdwg.mxu0
        %v2092 = vmax.f32 %v2089, 0.0
        %v2093 = vld [vmem:[%s2 + $0xd0] sm:$0xff]
        %v2094 = vld [vmem:[%s2 + $0xd8] sm:$0xff]
        %v2095 = vsel %vm614, %v2092, 0.0
        %2096 = vadd.xlane.f32.xlu0 %v2095
        %v2097 = vpop.xlane.xlu0 %2096
        %v2098 = vmul.f32 %v2097, %v1832
        %v2099 = vsub.f32 %v2092, %v2098
        %v2100 = vmul.f32 %v2099, %v2099
        %v2101 = vsel %vm614, %v2100, 0.0
        %2102 = vadd.xlane.f32.xlu0 %v2101
        %v2103 = vpop.xlane.xlu0 %2102
        %v2104 = vmul.f32 %v2103, %v1832
        %v2105 = vadd.f32 %v2104, 1e-05
        %v2106 = vrsqrt.pop %v2105
        %v2107 = vmul.f32 %v2099, %v2106
        %2109 = vset.pattern.permute.xlu0 0
        %2110 = vperm.xlu0 %2109, %v2093
        %v2111 = vpop.permute.xlu0 %2110
        %v2113 = vmul.f32 %v2107, %v2111
        %2115 = vset.pattern.permute.xlu0 0
        %2116 = vperm.xlu0 %2115, %v2094
        %v2117 = vpop.permute.xlu0 %2116
        %v2119 = vadd.f32 %v2113, %v2117
        %v2120 = vadd.f32 %v1930, %v2119
        %v2121 = vld [vmem:[%s2 + $0xe0] sm:$0xff]
        %v2122 = vld [vmem:[%s2 + $0xe8] sm:$0xff]
        %2124 = vset.pattern.permute.xlu0 0
        %2125 = vperm.xlu0 %2124, %v2122
        %v2126 = vpop.permute.xlu0 %2125
        %v2129 = vsel %vm614, %v2121, 0
        %2131 = vmatprep.subr.mxu0 0.0
        %2132 = vmatpush1.msra.mxu0 %v2120
        %2133 = vmatprep.subr.mxu0 0.0
        %2134 = vmatpush1.msra.mxu0 0.0
        %2135 = vmatprep.subr.mxu0 0.0
        %2136 = vmatpush1.msra.mxu0 0.0
        %2137 = vmatprep.subr.mxu0 0.0
        %2138 = vmatpush1.msra.mxu0 0.0
        %2139 = vmatprep.subr.mxu0 0.0
        %2140 = vmatpush1.msra.mxu0 0.0
        %2141 = vmatprep.subr.mxu0 0.0
        %2142 = vmatpush1.msra.mxu0 0.0
        %2143 = vmatprep.subr.mxu0 0.0
        %2144 = vmatpush1.msra.mxu0 0.0
        %2145 = vmatprep.subr.mxu0 0.0
        %2146 = vmatpush1.msra.mxu0 0.0
        %2147 = vmatprep.subr.mxu0 0.0
        %2148 = vmatpush1.msra.mxu0 0.0
        %2149 = vmatprep.subr.mxu0 0.0
        %2150 = vmatpush1.msra.mxu0 0.0
        %2151 = vmatprep.subr.mxu0 0.0
        %2152 = vmatpush1.msra.mxu0 0.0
        %2153 = vmatprep.subr.mxu0 0.0
        %2154 = vmatpush1.msra.mxu0 0.0
        %2155 = vmatprep.subr.mxu0 0.0
        %2156 = vmatpush1.msra.mxu0 0.0
        %2157 = vmatprep.subr.mxu0 0.0
        %2158 = vmatpush1.msra.mxu0 0.0
        %2159 = vmatprep.subr.mxu0 0.0
        %2160 = vmatpush1.msra.mxu0 0.0
        %2161 = vmatprep.subr.mxu0 0.0
        %2162 = vmatpush1.msra.mxu0 0.0
        %2163 = vmatprep.subr.mxu0 0.0
        %2164 = vmatpush1.msra.mxu0 0.0
        %2165 = vmatprep.subr.mxu0 0.0
        %2166 = vmatpush1.msra.mxu0 0.0
        %2167 = vmatprep.subr.mxu0 0.0
        %2168 = vmatpush1.msra.mxu0 0.0
        %2169 = vmatprep.subr.mxu0 0.0
        %2170 = vmatpush1.msra.mxu0 0.0
        %2171 = vmatprep.subr.mxu0 0.0
        %2172 = vmatpush1.msra.mxu0 0.0
        %2173 = vmatprep.subr.mxu0 0.0
        %2174 = vmatpush1.msra.mxu0 0.0
        %2175 = vmatprep.subr.mxu0 0.0
        %2176 = vmatpush1.msra.mxu0 0.0
        %2177 = vmatprep.subr.mxu0 0.0
        %2178 = vmatpush1.msra.mxu0 0.0
        %2179 = vmatprep.subr.mxu0 0.0
        %2180 = vmatpush1.msra.mxu0 0.0
        %2181 = vmatprep.subr.mxu0 0.0
        %2182 = vmatpush1.msra.mxu0 0.0
        %2183 = vmatprep.subr.mxu0 0.0
        %2184 = vmatpush1.msra.mxu0 0.0
        %2185 = vmatprep.subr.mxu0 0.0
        %2186 = vmatpush1.msra.mxu0 0.0
        %2187 = vmatprep.subr.mxu0 0.0
        %2188 = vmatpush1.msra.mxu0 0.0
        %2189 = vmatprep.subr.mxu0 0.0
        %2190 = vmatpush1.msra.mxu0 0.0
        %2191 = vmatprep.subr.mxu0 0.0
        %2192 = vmatpush1.msra.mxu0 0.0
        %2193 = vmatprep.subr.mxu0 0.0
        %2194 = vmatpush1.msra.mxu0 0.0
        %2195 = vmatprep.mubr.f32.mxu0 0.0
        %2196 = vmatmul.mubr.f32.gmra.mrb[0].mxu0 %v2129
        %v2197 = vpop.f32.mrb[0].mxu0
        %v2198 = vadd.f32 %v2126, %v2197
        %v2199 = vpop.f32.mrb[0].mxu0
        %2200 = vdwg.mxu0
        %v2201 = vsel %vm614, %v2198, 0.0
        %2202 = vadd.xlane.f32.xlu0 %v2201
        %v2203 = vpop.xlane.xlu0 %2202
        %v2204 = vmul.f32 %v2203, %v1832
        %v2205 = vld [vmem:[%s276] sm:$0xf]
        %v2206 = vld [vmem:[%s2 + $0x140] sm:$0xff]
        %v2207 = vld [vmem:[%s2 + $0x148] sm:$0xff]
        %2209 = vset.pattern.permute.xlu0 0
        %2210 = vperm.xlu0 %2209, %v2207
        %v2211 = vpop.permute.xlu0 %2210
        %v2214 = vsel %vm293, %v2206, 0
        %v2217 = vsel %vm297, %v2205, 0
        %2219 = vmatprep.subr.mxu0 0.0
        %2220 = vmatpush1.msra.mxu0 %v2217
        %2221 = vmatprep.subr.mxu0 0.0
        %2222 = vmatpush1.msra.mxu0 0.0
        %2223 = vmatprep.subr.mxu0 0.0
        %2224 = vmatpush1.msra.mxu0 0.0
        %2225 = vmatprep.subr.mxu0 0.0
        %2226 = vmatpush1.msra.mxu0 0.0
        %2227 = vmatprep.subr.mxu0 0.0
        %2228 = vmatpush1.msra.mxu0 0.0
        %2229 = vmatprep.subr.mxu0 0.0
        %2230 = vmatpush1.msra.mxu0 0.0
        %2231 = vmatprep.subr.mxu0 0.0
        %2232 = vmatpush1.msra.mxu0 0.0
        %2233 = vmatprep.subr.mxu0 0.0
        %2234 = vmatpush1.msra.mxu0 0.0
        %2235 = vmatprep.subr.mxu0 0.0
        %2236 = vmatpush1.msra.mxu0 0.0
        %2237 = vmatprep.subr.mxu0 0.0
        %2238 = vmatpush1.msra.mxu0 0.0
        %2239 = vmatprep.subr.mxu0 0.0
        %2240 = vmatpush1.msra.mxu0 0.0
        %2241 = vmatprep.subr.mxu0 0.0
        %2242 = vmatpush1.msra.mxu0 0.0
        %2243 = vmatprep.subr.mxu0 0.0
        %2244 = vmatpush1.msra.mxu0 0.0
        %2245 = vmatprep.subr.mxu0 0.0
        %2246 = vmatpush1.msra.mxu0 0.0
        %2247 = vmatprep.subr.mxu0 0.0
        %2248 = vmatpush1.msra.mxu0 0.0
        %2249 = vmatprep.subr.mxu0 0.0
        %2250 = vmatpush1.msra.mxu0 0.0
        %2251 = vmatprep.subr.mxu0 0.0
        %2252 = vmatpush1.msra.mxu0 0.0
        %2253 = vmatprep.subr.mxu0 0.0
        %2254 = vmatpush1.msra.mxu0 0.0
        %2255 = vmatprep.subr.mxu0 0.0
        %2256 = vmatpush1.msra.mxu0 0.0
        %2257 = vmatprep.subr.mxu0 0.0
        %2258 = vmatpush1.msra.mxu0 0.0
        %2259 = vmatprep.subr.mxu0 0.0
        %2260 = vmatpush1.msra.mxu0 0.0
        %2261 = vmatprep.subr.mxu0 0.0
        %2262 = vmatpush1.msra.mxu0 0.0
        %2263 = vmatprep.subr.mxu0 0.0
        %2264 = vmatpush1.msra.mxu0 0.0
        %2265 = vmatprep.subr.mxu0 0.0
        %2266 = vmatpush1.msra.mxu0 0.0
        %2267 = vmatprep.subr.mxu0 0.0
        %2268 = vmatpush1.msra.mxu0 0.0
        %2269 = vmatprep.subr.mxu0 0.0
        %2270 = vmatpush1.msra.mxu0 0.0
        %2271 = vmatprep.subr.mxu0 0.0
        %2272 = vmatpush1.msra.mxu0 0.0
        %2273 = vmatprep.subr.mxu0 0.0
        %2274 = vmatpush1.msra.mxu0 0.0
        %2275 = vmatprep.subr.mxu0 0.0
        %2276 = vmatpush1.msra.mxu0 0.0
        %2277 = vmatprep.subr.mxu0 0.0
        %2278 = vmatpush1.msra.mxu0 0.0
        %2279 = vmatprep.subr.mxu0 0.0
        %2280 = vmatpush1.msra.mxu0 0.0
        %2281 = vmatprep.subr.mxu0 0.0
        %2282 = vmatpush1.msra.mxu0 0.0
        %2283 = vmatprep.mubr.f32.mxu0 0.0
        %2284 = vmatmul.mubr.f32.gmra.mrb[0].mxu0 %v2214
        %v2285 = vpop.f32.mrb[0].mxu0
        %v2286 = vadd.f32 %v2211, %v2285
        %v2287 = vpop.f32.mrb[0].mxu0
        %2288 = vdwg.mxu0
        %v2289 = vld [vmem:[%s2 + $0xf0] sm:$0xff]
        %v2290 = vld [vmem:[%s2 + $0xf8] sm:$0xff]
        %v2292 = vsel %vm293, %v2289, 0
        %v2295 = vsel %vm293, %v2290, 0
        %2297 = vmatprep.subr.mxu0 0.0
        %2298 = vmatpush1.msra.mxu0 %v2217
        %2299 = vmatprep.subr.mxu0 0.0
        %2300 = vmatpush1.msra.mxu0 0.0
        %2301 = vmatprep.subr.mxu0 0.0
        %2302 = vmatpush1.msra.mxu0 0.0
        %2303 = vmatprep.subr.mxu0 0.0
        %2304 = vmatpush1.msra.mxu0 0.0
        %2305 = vmatprep.subr.mxu0 0.0
        %2306 = vmatpush1.msra.mxu0 0.0
        %2307 = vmatprep.subr.mxu0 0.0
        %2308 = vmatpush1.msra.mxu0 0.0
        %2309 = vmatprep.subr.mxu0 0.0
        %2310 = vmatpush1.msra.mxu0 0.0
        %2311 = vmatprep.subr.mxu0 0.0
        %2312 = vmatpush1.msra.mxu0 0.0
        %2313 = vmatprep.subr.mxu0 0.0
        %2314 = vmatpush1.msra.mxu0 0.0
        %2315 = vmatprep.subr.mxu0 0.0
        %2316 = vmatpush1.msra.mxu0 0.0
        %2317 = vmatprep.subr.mxu0 0.0
        %2318 = vmatpush1.msra.mxu0 0.0
        %2319 = vmatprep.subr.mxu0 0.0
        %2320 = vmatpush1.msra.mxu0 0.0
        %2321 = vmatprep.subr.mxu0 0.0
        %2322 = vmatpush1.msra.mxu0 0.0
        %2323 = vmatprep.subr.mxu0 0.0
        %2324 = vmatpush1.msra.mxu0 0.0
        %2325 = vmatprep.subr.mxu0 0.0
        %2326 = vmatpush1.msra.mxu0 0.0
        %2327 = vmatprep.subr.mxu0 0.0
        %2328 = vmatpush1.msra.mxu0 0.0
        %2329 = vmatprep.subr.mxu0 0.0
        %2330 = vmatpush1.msra.mxu0 0.0
        %2331 = vmatprep.subr.mxu0 0.0
        %2332 = vmatpush1.msra.mxu0 0.0
        %2333 = vmatprep.subr.mxu0 0.0
        %2334 = vmatpush1.msra.mxu0 0.0
        %2335 = vmatprep.subr.mxu0 0.0
        %2336 = vmatpush1.msra.mxu0 0.0
        %2337 = vmatprep.subr.mxu0 0.0
        %2338 = vmatpush1.msra.mxu0 0.0
        %2339 = vmatprep.subr.mxu0 0.0
        %2340 = vmatpush1.msra.mxu0 0.0
        %2341 = vmatprep.subr.mxu0 0.0
        %2342 = vmatpush1.msra.mxu0 0.0
        %2343 = vmatprep.subr.mxu0 0.0
        %2344 = vmatpush1.msra.mxu0 0.0
        %2345 = vmatprep.subr.mxu0 0.0
        %2346 = vmatpush1.msra.mxu0 0.0
        %2347 = vmatprep.subr.mxu0 0.0
        %2348 = vmatpush1.msra.mxu0 0.0
        %2349 = vmatprep.subr.mxu0 0.0
        %2350 = vmatpush1.msra.mxu0 0.0
        %2351 = vmatprep.subr.mxu0 0.0
        %2352 = vmatpush1.msra.mxu0 0.0
        %2353 = vmatprep.subr.mxu0 0.0
        %2354 = vmatpush1.msra.mxu0 0.0
        %2355 = vmatprep.subr.mxu0 0.0
        %2356 = vmatpush1.msra.mxu0 0.0
        %2357 = vmatprep.subr.mxu0 0.0
        %2358 = vmatpush1.msra.mxu0 0.0
        %2359 = vmatprep.subr.mxu0 0.0
        %2360 = vmatpush1.msra.mxu0 0.0
        %2361 = vmatprep.mubr.f32.mxu0 0.0
        %2362 = vmatmul.mubr.f32.gmra.mrb[0].mxu0 %v2292
        %v2363 = vpop.f32.mrb[0].mxu0
        %v2364 = vadd.f32 0.0, %v2363
        %v2365 = vpop.f32.mrb[0].mxu0
        %2366 = vmatprep.mubr.f32.mxu0 0.0
        %2367 = vmatmul.mubr.f32.gmra.mrb[0].mxu0 %v2295
        %v2368 = vpop.f32.mrb[0].mxu0
        %v2369 = vadd.f32 0.0, %v2368
        %v2370 = vpop.f32.mrb[0].mxu0
        %2371 = vdwg.mxu0
        %v2373 = vsel %vm458, %v2369, 0
        %2375 = vmatprep.subr.mxu0 0.0
        %2376 = vmatpush1.msra.mxu0 %v456
        %2377 = vmatprep.subr.mxu0 0.0
        %2378 = vmatpush1.msra.mxu0 %v457
        %2379 = vmatprep.subr.mxu0 0.0
        %2380 = vmatpush1.msra.mxu0 0.0
        %2381 = vmatprep.subr.mxu0 0.0
        %2382 = vmatpush1.msra.mxu0 0.0
        %2383 = vmatprep.subr.mxu0 0.0
        %2384 = vmatpush1.msra.mxu0 0.0
        %2385 = vmatprep.subr.mxu0 0.0
        %2386 = vmatpush1.msra.mxu0 0.0
        %2387 = vmatprep.subr.mxu0 0.0
        %2388 = vmatpush1.msra.mxu0 0.0
        %2389 = vmatprep.subr.mxu0 0.0
        %2390 = vmatpush1.msra.mxu0 0.0
        %2391 = vmatprep.subr.mxu0 0.0
        %2392 = vmatpush1.msra.mxu0 0.0
        %2393 = vmatprep.subr.mxu0 0.0
        %2394 = vmatpush1.msra.mxu0 0.0
        %2395 = vmatprep.subr.mxu0 0.0
        %2396 = vmatpush1.msra.mxu0 0.0
        %2397 = vmatprep.subr.mxu0 0.0
        %2398 = vmatpush1.msra.mxu0 0.0
        %2399 = vmatprep.subr.mxu0 0.0
        %2400 = vmatpush1.msra.mxu0 0.0
        %2401 = vmatprep.subr.mxu0 0.0
        %2402 = vmatpush1.msra.mxu0 0.0
        %2403 = vmatprep.subr.mxu0 0.0
        %2404 = vmatpush1.msra.mxu0 0.0
        %2405 = vmatprep.subr.mxu0 0.0
        %2406 = vmatpush1.msra.mxu0 0.0
        %2407 = vmatprep.subr.mxu0 0.0
        %2408 = vmatpush1.msra.mxu0 0.0
        %2409 = vmatprep.subr.mxu0 0.0
        %2410 = vmatpush1.msra.mxu0 0.0
        %2411 = vmatprep.subr.mxu0 0.0
        %2412 = vmatpush1.msra.mxu0 0.0
        %2413 = vmatprep.subr.mxu0 0.0
        %2414 = vmatpush1.msra.mxu0 0.0
        %2415 = vmatprep.subr.mxu0 0.0
        %2416 = vmatpush1.msra.mxu0 0.0
        %2417 = vmatprep.subr.mxu0 0.0
        %2418 = vmatpush1.msra.mxu0 0.0
        %2419 = vmatprep.subr.mxu0 0.0
        %2420 = vmatpush1.msra.mxu0 0.0
        %2421 = vmatprep.subr.mxu0 0.0
        %2422 = vmatpush1.msra.mxu0 0.0
        %2423 = vmatprep.subr.mxu0 0.0
        %2424 = vmatpush1.msra.mxu0 0.0
        %2425 = vmatprep.subr.mxu0 0.0
        %2426 = vmatpush1.msra.mxu0 0.0
        %2427 = vmatprep.subr.mxu0 0.0
        %2428 = vmatpush1.msra.mxu0 0.0
        %2429 = vmatprep.subr.mxu0 0.0
        %2430 = vmatpush1.msra.mxu0 0.0
        %2431 = vmatprep.subr.mxu0 0.0
        %2432 = vmatpush1.msra.mxu0 0.0
        %2433 = vmatprep.subr.mxu0 0.0
        %2434 = vmatpush1.msra.mxu0 0.0
        %2435 = vmatprep.subr.mxu0 0.0
        %2436 = vmatpush1.msra.mxu0 0.0
        %2437 = vmatprep.subr.mxu0 0.0
        %2438 = vmatpush1.msra.mxu0 0.0
        %2439 = vmatprep.mubr.f32.mxu0 0.0
        %2440 = vmatmul.mubr.f32.gmra.mrb[0].mxu0 %v2373
        %v2441 = vpop.f32.mrb[0].mxu0
        %v2442 = vadd.f32 0.0, %v2441
        %v2443 = vpop.f32.mrb[0].mxu0
        %2444 = vdwg.mxu0
        %v2446 = vsel %vm458, %v2364, 0
        %2448 = vmatprep.subr.mxu0 0.0
        %2449 = vmatpush1.msra.mxu0 %v454
        %2450 = vmatprep.subr.mxu0 0.0
        %2451 = vmatpush1.msra.mxu0 %v455
        %2452 = vmatprep.subr.mxu0 0.0
        %2453 = vmatpush1.msra.mxu0 0.0
        %2454 = vmatprep.subr.mxu0 0.0
        %2455 = vmatpush1.msra.mxu0 0.0
        %2456 = vmatprep.subr.mxu0 0.0
        %2457 = vmatpush1.msra.mxu0 0.0
        %2458 = vmatprep.subr.mxu0 0.0
        %2459 = vmatpush1.msra.mxu0 0.0
        %2460 = vmatprep.subr.mxu0 0.0
        %2461 = vmatpush1.msra.mxu0 0.0
        %2462 = vmatprep.subr.mxu0 0.0
        %2463 = vmatpush1.msra.mxu0 0.0
        %2464 = vmatprep.subr.mxu0 0.0
        %2465 = vmatpush1.msra.mxu0 0.0
        %2466 = vmatprep.subr.mxu0 0.0
        %2467 = vmatpush1.msra.mxu0 0.0
        %2468 = vmatprep.subr.mxu0 0.0
        %2469 = vmatpush1.msra.mxu0 0.0
        %2470 = vmatprep.subr.mxu0 0.0
        %2471 = vmatpush1.msra.mxu0 0.0
        %2472 = vmatprep.subr.mxu0 0.0
        %2473 = vmatpush1.msra.mxu0 0.0
        %2474 = vmatprep.subr.mxu0 0.0
        %2475 = vmatpush1.msra.mxu0 0.0
        %2476 = vmatprep.subr.mxu0 0.0
        %2477 = vmatpush1.msra.mxu0 0.0
        %2478 = vmatprep.subr.mxu0 0.0
        %2479 = vmatpush1.msra.mxu0 0.0
        %2480 = vmatprep.subr.mxu0 0.0
        %2481 = vmatpush1.msra.mxu0 0.0
        %2482 = vmatprep.subr.mxu0 0.0
        %2483 = vmatpush1.msra.mxu0 0.0
        %2484 = vmatprep.subr.mxu0 0.0
        %2485 = vmatpush1.msra.mxu0 0.0
        %2486 = vmatprep.subr.mxu0 0.0
        %2487 = vmatpush1.msra.mxu0 0.0
        %2488 = vmatprep.subr.mxu0 0.0
        %2489 = vmatpush1.msra.mxu0 0.0
        %2490 = vmatprep.subr.mxu0 0.0
        %2491 = vmatpush1.msra.mxu0 0.0
        %2492 = vmatprep.subr.mxu0 0.0
        %2493 = vmatpush1.msra.mxu0 0.0
        %2494 = vmatprep.subr.mxu0 0.0
        %2495 = vmatpush1.msra.mxu0 0.0
        %2496 = vmatprep.subr.mxu0 0.0
        %2497 = vmatpush1.msra.mxu0 0.0
        %2498 = vmatprep.subr.mxu0 0.0
        %2499 = vmatpush1.msra.mxu0 0.0
        %2500 = vmatprep.subr.mxu0 0.0
        %2501 = vmatpush1.msra.mxu0 0.0
        %2502 = vmatprep.subr.mxu0 0.0
        %2503 = vmatpush1.msra.mxu0 0.0
        %2504 = vmatprep.subr.mxu0 0.0
        %2505 = vmatpush1.msra.mxu0 0.0
        %2506 = vmatprep.subr.mxu0 0.0
        %2507 = vmatpush1.msra.mxu0 0.0
        %2508 = vmatprep.subr.mxu0 0.0
        %2509 = vmatpush1.msra.mxu0 0.0
        %2510 = vmatprep.subr.mxu0 0.0
        %2511 = vmatpush1.msra.mxu0 0.0
        %2512 = vmatprep.mubr.f32.mxu0 0.0
        %2513 = vmatmul.mubr.f32.gmra.mrb[0].mxu0 %v2446
        %v2514 = vpop.f32.mrb[0].mxu0
        %v2515 = vadd.f32 %v2442, %v2514
        %v2516 = vpop.f32.mrb[0].mxu0
        %2517 = vdwg.mxu0
        %v2518 = vld [vmem:[%s2 + $0x100] sm:$0xff]
        %2520 = vset.pattern.permute.xlu0 0
        %2521 = vperm.xlu0 %2520, %v2518
        %v2522 = vpop.permute.xlu0 %2521
        %v2524 = vadd.f32 %v2515, %v2522
        %v2525 = vmax.f32 %v2524, 0.0
        %v2526 = vld [vmem:[%s2 + $0x108] sm:$0xff]
        %v2528 = vsel %vm614, %v2526, 0
        %2530 = vmatprep.subr.mxu0 0.0
        %2531 = vmatpush1.msra.mxu0 %v2525
        %2532 = vmatprep.subr.mxu0 0.0
        %2533 = vmatpush1.msra.mxu0 0.0
        %2534 = vmatprep.subr.mxu0 0.0
        %2535 = vmatpush1.msra.mxu0 0.0
        %2536 = vmatprep.subr.mxu0 0.0
        %2537 = vmatpush1.msra.mxu0 0.0
        %2538 = vmatprep.subr.mxu0 0.0
        %2539 = vmatpush1.msra.mxu0 0.0
        %2540 = vmatprep.subr.mxu0 0.0
        %2541 = vmatpush1.msra.mxu0 0.0
        %2542 = vmatprep.subr.mxu0 0.0
        %2543 = vmatpush1.msra.mxu0 0.0
        %2544 = vmatprep.subr.mxu0 0.0
        %2545 = vmatpush1.msra.mxu0 0.0
        %2546 = vmatprep.subr.mxu0 0.0
        %2547 = vmatpush1.msra.mxu0 0.0
        %2548 = vmatprep.subr.mxu0 0.0
        %2549 = vmatpush1.msra.mxu0 0.0
        %2550 = vmatprep.subr.mxu0 0.0
        %2551 = vmatpush1.msra.mxu0 0.0
        %2552 = vmatprep.subr.mxu0 0.0
        %2553 = vmatpush1.msra.mxu0 0.0
        %2554 = vmatprep.subr.mxu0 0.0
        %2555 = vmatpush1.msra.mxu0 0.0
        %2556 = vmatprep.subr.mxu0 0.0
        %2557 = vmatpush1.msra.mxu0 0.0
        %2558 = vmatprep.subr.mxu0 0.0
        %2559 = vmatpush1.msra.mxu0 0.0
        %2560 = vmatprep.subr.mxu0 0.0
        %2561 = vmatpush1.msra.mxu0 0.0
        %2562 = vmatprep.subr.mxu0 0.0
        %2563 = vmatpush1.msra.mxu0 0.0
        %2564 = vmatprep.subr.mxu0 0.0
        %2565 = vmatpush1.msra.mxu0 0.0
        %2566 = vmatprep.subr.mxu0 0.0
        %2567 = vmatpush1.msra.mxu0 0.0
        %2568 = vmatprep.subr.mxu0 0.0
        %2569 = vmatpush1.msra.mxu0 0.0
        %2570 = vmatprep.subr.mxu0 0.0
        %2571 = vmatpush1.msra.mxu0 0.0
        %2572 = vmatprep.subr.mxu0 0.0
        %2573 = vmatpush1.msra.mxu0 0.0
        %2574 = vmatprep.subr.mxu0 0.0
        %2575 = vmatpush1.msra.mxu0 0.0
        %2576 = vmatprep.subr.mxu0 0.0
        %2577 = vmatpush1.msra.mxu0 0.0
        %2578 = vmatprep.subr.mxu0 0.0
        %2579 = vmatpush1.msra.mxu0 0.0
        %2580 = vmatprep.subr.mxu0 0.0
        %2581 = vmatpush1.msra.mxu0 0.0
        %2582 = vmatprep.subr.mxu0 0.0
        %2583 = vmatpush1.msra.mxu0 0.0
        %2584 = vmatprep.subr.mxu0 0.0
        %2585 = vmatpush1.msra.mxu0 0.0
        %2586 = vmatprep.subr.mxu0 0.0
        %2587 = vmatpush1.msra.mxu0 0.0
        %2588 = vmatprep.subr.mxu0 0.0
        %2589 = vmatpush1.msra.mxu0 0.0
        %2590 = vmatprep.subr.mxu0 0.0
        %2591 = vmatpush1.msra.mxu0 0.0
        %2592 = vmatprep.subr.mxu0 0.0
        %2593 = vmatpush1.msra.mxu0 0.0
        %2594 = vmatprep.mubr.f32.mxu0 0.0
        %2595 = vmatmul.mubr.f32.gmra.mrb[0].mxu0 %v2528
        %v2596 = vpop.f32.mrb[0].mxu0
        %v2597 = vadd.f32 0.0, %v2596
        %v2598 = vpop.f32.mrb[0].mxu0
        %2599 = vdwg.mxu0
        %v2600 = vadd.f32 %v2286, %v2597
        %v2601 = vld [vmem:[%s2 + $0x110] sm:$0xff]
        %v2602 = vld [vmem:[%s2 + $0x118] sm:$0xff]
        %v2603 = vld [vmem:[%s2 + $0x120] sm:$0xff]
        %v2604 = vld [vmem:[%s2 + $0x128] sm:$0xff]
        %v2606 = vsel %vm293, %v2601, 0
        %v2609 = vsel %vm293, %v2602, 0
        %v2612 = vsel %vm293, %v2603, 0
        %v2615 = vsel %vm293, %v2604, 0
        %2617 = vmatprep.subr.mxu0 0.0
        %2618 = vmatpush1.msra.mxu0 %v2217
        %2619 = vmatprep.subr.mxu0 0.0
        %2620 = vmatpush1.msra.mxu0 0.0
        %2621 = vmatprep.subr.mxu0 0.0
        %2622 = vmatpush1.msra.mxu0 0.0
        %2623 = vmatprep.subr.mxu0 0.0
        %2624 = vmatpush1.msra.mxu0 0.0
        %2625 = vmatprep.subr.mxu0 0.0
        %2626 = vmatpush1.msra.mxu0 0.0
        %2627 = vmatprep.subr.mxu0 0.0
        %2628 = vmatpush1.msra.mxu0 0.0
        %2629 = vmatprep.subr.mxu0 0.0
        %2630 = vmatpush1.msra.mxu0 0.0
        %2631 = vmatprep.subr.mxu0 0.0
        %2632 = vmatpush1.msra.mxu0 0.0
        %2633 = vmatprep.subr.mxu0 0.0
        %2634 = vmatpush1.msra.mxu0 0.0
        %2635 = vmatprep.subr.mxu0 0.0
        %2636 = vmatpush1.msra.mxu0 0.0
        %2637 = vmatprep.subr.mxu0 0.0
        %2638 = vmatpush1.msra.mxu0 0.0
        %2639 = vmatprep.subr.mxu0 0.0
        %2640 = vmatpush1.msra.mxu0 0.0
        %2641 = vmatprep.subr.mxu0 0.0
        %2642 = vmatpush1.msra.mxu0 0.0
        %2643 = vmatprep.subr.mxu0 0.0
        %2644 = vmatpush1.msra.mxu0 0.0
        %2645 = vmatprep.subr.mxu0 0.0
        %2646 = vmatpush1.msra.mxu0 0.0
        %2647 = vmatprep.subr.mxu0 0.0
        %2648 = vmatpush1.msra.mxu0 0.0
        %2649 = vmatprep.subr.mxu0 0.0
        %2650 = vmatpush1.msra.mxu0 0.0
        %2651 = vmatprep.subr.mxu0 0.0
        %2652 = vmatpush1.msra.mxu0 0.0
        %2653 = vmatprep.subr.mxu0 0.0
        %2654 = vmatpush1.msra.mxu0 0.0
        %2655 = vmatprep.subr.mxu0 0.0
        %2656 = vmatpush1.msra.mxu0 0.0
        %2657 = vmatprep.subr.mxu0 0.0
        %2658 = vmatpush1.msra.mxu0 0.0
        %2659 = vmatprep.subr.mxu0 0.0
        %2660 = vmatpush1.msra.mxu0 0.0
        %2661 = vmatprep.subr.mxu0 0.0
        %2662 = vmatpush1.msra.mxu0 0.0
        %2663 = vmatprep.subr.mxu0 0.0
        %2664 = vmatpush1.msra.mxu0 0.0
        %2665 = vmatprep.subr.mxu0 0.0
        %2666 = vmatpush1.msra.mxu0 0.0
        %2667 = vmatprep.subr.mxu0 0.0
        %2668 = vmatpush1.msra.mxu0 0.0
        %2669 = vmatprep.subr.mxu0 0.0
        %2670 = vmatpush1.msra.mxu0 0.0
        %2671 = vmatprep.subr.mxu0 0.0
        %2672 = vmatpush1.msra.mxu0 0.0
        %2673 = vmatprep.subr.mxu0 0.0
        %2674 = vmatpush1.msra.mxu0 0.0
        %2675 = vmatprep.subr.mxu0 0.0
        %2676 = vmatpush1.msra.mxu0 0.0
        %2677 = vmatprep.subr.mxu0 0.0
        %2678 = vmatpush1.msra.mxu0 0.0
        %2679 = vmatprep.subr.mxu0 0.0
        %2680 = vmatpush1.msra.mxu0 0.0
        %2681 = vmatprep.mubr.f32.mxu0 0.0
        %2682 = vmatmul.mubr.f32.gmra.mrb[0].mxu0 %v2606
        %v2683 = vpop.f32.mrb[0].mxu0
        %v2684 = vadd.f32 0.0, %v2683
        %v2685 = vpop.f32.mrb[0].mxu0
        %2686 = vmatprep.mubr.f32.mxu0 0.0
        %2687 = vmatmul.mubr.f32.gmra.mrb[0].mxu0 %v2609
        %v2688 = vpop.f32.mrb[0].mxu0
        %v2689 = vadd.f32 0.0, %v2688
        %v2690 = vpop.f32.mrb[0].mxu0
        %2691 = vmatprep.mubr.f32.mxu0 0.0
        %2692 = vmatmul.mubr.f32.gmra.mrb[0].mxu0 %v2612
        %v2693 = vpop.f32.mrb[0].mxu0
        %v2694 = vadd.f32 0.0, %v2693
        %v2695 = vpop.f32.mrb[0].mxu0
        %2696 = vmatprep.mubr.f32.mxu0 0.0
        %2697 = vmatmul.mubr.f32.gmra.mrb[0].mxu0 %v2615
        %v2698 = vpop.f32.mrb[0].mxu0
        %v2699 = vadd.f32 0.0, %v2698
        %v2700 = vpop.f32.mrb[0].mxu0
        %2701 = vdwg.mxu0
        %v2703 = vsel %vm458, %v2689, 0
        %2705 = vmatprep.subr.mxu0 0.0
        %2706 = vmatpush1.msra.mxu0 %v792
        %2707 = vmatprep.subr.mxu0 0.0
        %2708 = vmatpush1.msra.mxu0 %v793
        %2709 = vmatprep.subr.mxu0 0.0
        %2710 = vmatpush1.msra.mxu0 0.0
        %2711 = vmatprep.subr.mxu0 0.0
        %2712 = vmatpush1.msra.mxu0 0.0
        %2713 = vmatprep.subr.mxu0 0.0
        %2714 = vmatpush1.msra.mxu0 0.0
        %2715 = vmatprep.subr.mxu0 0.0
        %2716 = vmatpush1.msra.mxu0 0.0
        %2717 = vmatprep.subr.mxu0 0.0
        %2718 = vmatpush1.msra.mxu0 0.0
        %2719 = vmatprep.subr.mxu0 0.0
        %2720 = vmatpush1.msra.mxu0 0.0
        %2721 = vmatprep.subr.mxu0 0.0
        %2722 = vmatpush1.msra.mxu0 0.0
        %2723 = vmatprep.subr.mxu0 0.0
        %2724 = vmatpush1.msra.mxu0 0.0
        %2725 = vmatprep.subr.mxu0 0.0
        %2726 = vmatpush1.msra.mxu0 0.0
        %2727 = vmatprep.subr.mxu0 0.0
        %2728 = vmatpush1.msra.mxu0 0.0
        %2729 = vmatprep.subr.mxu0 0.0
        %2730 = vmatpush1.msra.mxu0 0.0
        %2731 = vmatprep.subr.mxu0 0.0
        %2732 = vmatpush1.msra.mxu0 0.0
        %2733 = vmatprep.subr.mxu0 0.0
        %2734 = vmatpush1.msra.mxu0 0.0
        %2735 = vmatprep.subr.mxu0 0.0
        %2736 = vmatpush1.msra.mxu0 0.0
        %2737 = vmatprep.subr.mxu0 0.0
        %2738 = vmatpush1.msra.mxu0 0.0
        %2739 = vmatprep.subr.mxu0 0.0
        %2740 = vmatpush1.msra.mxu0 0.0
        %2741 = vmatprep.subr.mxu0 0.0
        %2742 = vmatpush1.msra.mxu0 0.0
        %2743 = vmatprep.subr.mxu0 0.0
        %2744 = vmatpush1.msra.mxu0 0.0
        %2745 = vmatprep.subr.mxu0 0.0
        %2746 = vmatpush1.msra.mxu0 0.0
        %2747 = vmatprep.subr.mxu0 0.0
        %2748 = vmatpush1.msra.mxu0 0.0
        %2749 = vmatprep.subr.mxu0 0.0
        %2750 = vmatpush1.msra.mxu0 0.0
        %2751 = vmatprep.subr.mxu0 0.0
        %2752 = vmatpush1.msra.mxu0 0.0
        %2753 = vmatprep.subr.mxu0 0.0
        %2754 = vmatpush1.msra.mxu0 0.0
        %2755 = vmatprep.subr.mxu0 0.0
        %2756 = vmatpush1.msra.mxu0 0.0
        %2757 = vmatprep.subr.mxu0 0.0
        %2758 = vmatpush1.msra.mxu0 0.0
        %2759 = vmatprep.subr.mxu0 0.0
        %2760 = vmatpush1.msra.mxu0 0.0
        %2761 = vmatprep.subr.mxu0 0.0
        %2762 = vmatpush1.msra.mxu0 0.0
        %2763 = vmatprep.subr.mxu0 0.0
        %2764 = vmatpush1.msra.mxu0 0.0
        %2765 = vmatprep.subr.mxu0 0.0
        %2766 = vmatpush1.msra.mxu0 0.0
        %2767 = vmatprep.subr.mxu0 0.0
        %2768 = vmatpush1.msra.mxu0 0.0
        %2769 = vmatprep.mubr.f32.mxu0 0.0
        %2770 = vmatmul.mubr.f32.gmra.mrb[0].mxu0 %v2703
        %v2771 = vpop.f32.mrb[0].mxu0
        %v2772 = vadd.f32 0.0, %v2771
        %v2773 = vpop.f32.mrb[0].mxu0
        %2774 = vdwg.mxu0
        %v2776 = vsel %vm458, %v2684, 0
        %2778 = vmatprep.subr.mxu0 0.0
        %2779 = vmatpush1.msra.mxu0 %v790
        %2780 = vmatprep.subr.mxu0 0.0
        %2781 = vmatpush1.msra.mxu0 %v791
        %2782 = vmatprep.subr.mxu0 0.0
        %2783 = vmatpush1.msra.mxu0 0.0
        %2784 = vmatprep.subr.mxu0 0.0
        %2785 = vmatpush1.msra.mxu0 0.0
        %2786 = vmatprep.subr.mxu0 0.0
        %2787 = vmatpush1.msra.mxu0 0.0
        %2788 = vmatprep.subr.mxu0 0.0
        %2789 = vmatpush1.msra.mxu0 0.0
        %2790 = vmatprep.subr.mxu0 0.0
        %2791 = vmatpush1.msra.mxu0 0.0
        %2792 = vmatprep.subr.mxu0 0.0
        %2793 = vmatpush1.msra.mxu0 0.0
        %2794 = vmatprep.subr.mxu0 0.0
        %2795 = vmatpush1.msra.mxu0 0.0
        %2796 = vmatprep.subr.mxu0 0.0
        %2797 = vmatpush1.msra.mxu0 0.0
        %2798 = vmatprep.subr.mxu0 0.0
        %2799 = vmatpush1.msra.mxu0 0.0
        %2800 = vmatprep.subr.mxu0 0.0
        %2801 = vmatpush1.msra.mxu0 0.0
        %2802 = vmatprep.subr.mxu0 0.0
        %2803 = vmatpush1.msra.mxu0 0.0
        %2804 = vmatprep.subr.mxu0 0.0
        %2805 = vmatpush1.msra.mxu0 0.0
        %2806 = vmatprep.subr.mxu0 0.0
        %2807 = vmatpush1.msra.mxu0 0.0
        %2808 = vmatprep.subr.mxu0 0.0
        %2809 = vmatpush1.msra.mxu0 0.0
        %2810 = vmatprep.subr.mxu0 0.0
        %2811 = vmatpush1.msra.mxu0 0.0
        %2812 = vmatprep.subr.mxu0 0.0
        %2813 = vmatpush1.msra.mxu0 0.0
        %2814 = vmatprep.subr.mxu0 0.0
        %2815 = vmatpush1.msra.mxu0 0.0
        %2816 = vmatprep.subr.mxu0 0.0
        %2817 = vmatpush1.msra.mxu0 0.0
        %2818 = vmatprep.subr.mxu0 0.0
        %2819 = vmatpush1.msra.mxu0 0.0
        %2820 = vmatprep.subr.mxu0 0.0
        %2821 = vmatpush1.msra.mxu0 0.0
        %2822 = vmatprep.subr.mxu0 0.0
        %2823 = vmatpush1.msra.mxu0 0.0
        %2824 = vmatprep.subr.mxu0 0.0
        %2825 = vmatpush1.msra.mxu0 0.0
        %2826 = vmatprep.subr.mxu0 0.0
        %2827 = vmatpush1.msra.mxu0 0.0
        %2828 = vmatprep.subr.mxu0 0.0
        %2829 = vmatpush1.msra.mxu0 0.0
        %2830 = vmatprep.subr.mxu0 0.0
        %2831 = vmatpush1.msra.mxu0 0.0
        %2832 = vmatprep.subr.mxu0 0.0
        %2833 = vmatpush1.msra.mxu0 0.0
        %2834 = vmatprep.subr.mxu0 0.0
        %2835 = vmatpush1.msra.mxu0 0.0
        %2836 = vmatprep.subr.mxu0 0.0
        %2837 = vmatpush1.msra.mxu0 0.0
        %2838 = vmatprep.subr.mxu0 0.0
        %2839 = vmatpush1.msra.mxu0 0.0
        %2840 = vmatprep.subr.mxu0 0.0
        %2841 = vmatpush1.msra.mxu0 0.0
        %2842 = vmatprep.mubr.f32.mxu0 0.0
        %2843 = vmatmul.mubr.f32.gmra.mrb[0].mxu0 %v2776
        %v2844 = vpop.f32.mrb[0].mxu0
        %v2845 = vadd.f32 %v2772, %v2844
        %v2846 = vpop.f32.mrb[0].mxu0
        %2847 = vdwg.mxu0
        %v2849 = vsel %vm458, %v2694, 0
        %2851 = vmatprep.subr.mxu0 0.0
        %2852 = vmatpush1.msra.mxu0 %v940
        %2853 = vmatprep.subr.mxu0 0.0
        %2854 = vmatpush1.msra.mxu0 %v941
        %2855 = vmatprep.subr.mxu0 0.0
        %2856 = vmatpush1.msra.mxu0 0.0
        %2857 = vmatprep.subr.mxu0 0.0
        %2858 = vmatpush1.msra.mxu0 0.0
        %2859 = vmatprep.subr.mxu0 0.0
        %2860 = vmatpush1.msra.mxu0 0.0
        %2861 = vmatprep.subr.mxu0 0.0
        %2862 = vmatpush1.msra.mxu0 0.0
        %2863 = vmatprep.subr.mxu0 0.0
        %2864 = vmatpush1.msra.mxu0 0.0
        %2865 = vmatprep.subr.mxu0 0.0
        %2866 = vmatpush1.msra.mxu0 0.0
        %2867 = vmatprep.subr.mxu0 0.0
        %2868 = vmatpush1.msra.mxu0 0.0
        %2869 = vmatprep.subr.mxu0 0.0
        %2870 = vmatpush1.msra.mxu0 0.0
        %2871 = vmatprep.subr.mxu0 0.0
        %2872 = vmatpush1.msra.mxu0 0.0
        %2873 = vmatprep.subr.mxu0 0.0
        %2874 = vmatpush1.msra.mxu0 0.0
        %2875 = vmatprep.subr.mxu0 0.0
        %2876 = vmatpush1.msra.mxu0 0.0
        %2877 = vmatprep.subr.mxu0 0.0
        %2878 = vmatpush1.msra.mxu0 0.0
        %2879 = vmatprep.subr.mxu0 0.0
        %2880 = vmatpush1.msra.mxu0 0.0
        %2881 = vmatprep.subr.mxu0 0.0
        %2882 = vmatpush1.msra.mxu0 0.0
        %2883 = vmatprep.subr.mxu0 0.0
        %2884 = vmatpush1.msra.mxu0 0.0
        %2885 = vmatprep.subr.mxu0 0.0
        %2886 = vmatpush1.msra.mxu0 0.0
        %2887 = vmatprep.subr.mxu0 0.0
        %2888 = vmatpush1.msra.mxu0 0.0
        %2889 = vmatprep.subr.mxu0 0.0
        %2890 = vmatpush1.msra.mxu0 0.0
        %2891 = vmatprep.subr.mxu0 0.0
        %2892 = vmatpush1.msra.mxu0 0.0
        %2893 = vmatprep.subr.mxu0 0.0
        %2894 = vmatpush1.msra.mxu0 0.0
        %2895 = vmatprep.subr.mxu0 0.0
        %2896 = vmatpush1.msra.mxu0 0.0
        %2897 = vmatprep.subr.mxu0 0.0
        %2898 = vmatpush1.msra.mxu0 0.0
        %2899 = vmatprep.subr.mxu0 0.0
        %2900 = vmatpush1.msra.mxu0 0.0
        %2901 = vmatprep.subr.mxu0 0.0
        %2902 = vmatpush1.msra.mxu0 0.0
        %2903 = vmatprep.subr.mxu0 0.0
        %2904 = vmatpush1.msra.mxu0 0.0
        %2905 = vmatprep.subr.mxu0 0.0
        %2906 = vmatpush1.msra.mxu0 0.0
        %2907 = vmatprep.subr.mxu0 0.0
        %2908 = vmatpush1.msra.mxu0 0.0
        %2909 = vmatprep.subr.mxu0 0.0
        %2910 = vmatpush1.msra.mxu0 0.0
        %2911 = vmatprep.subr.mxu0 0.0
        %2912 = vmatpush1.msra.mxu0 0.0
        %2913 = vmatprep.subr.mxu0 0.0
        %2914 = vmatpush1.msra.mxu0 0.0
        %2915 = vmatprep.mubr.f32.mxu0 0.0
        %2916 = vmatmul.mubr.f32.gmra.mrb[0].mxu0 %v2849
        %v2917 = vpop.f32.mrb[0].mxu0
        %v2918 = vadd.f32 0.0, %v2917
        %v2919 = vpop.f32.mrb[0].mxu0
        %2920 = vdwg.mxu0
        %v2921 = vadd.f32 %v2845, %v2918
        %v2923 = vsel %vm458, %v2699, 0
        %2925 = vmatprep.subr.mxu0 0.0
        %2926 = vmatpush1.msra.mxu0 %v1016
        %2927 = vmatprep.subr.mxu0 0.0
        %2928 = vmatpush1.msra.mxu0 %v1017
        %2929 = vmatprep.subr.mxu0 0.0
        %2930 = vmatpush1.msra.mxu0 0.0
        %2931 = vmatprep.subr.mxu0 0.0
        %2932 = vmatpush1.msra.mxu0 0.0
        %2933 = vmatprep.subr.mxu0 0.0
        %2934 = vmatpush1.msra.mxu0 0.0
        %2935 = vmatprep.subr.mxu0 0.0
        %2936 = vmatpush1.msra.mxu0 0.0
        %2937 = vmatprep.subr.mxu0 0.0
        %2938 = vmatpush1.msra.mxu0 0.0
        %2939 = vmatprep.subr.mxu0 0.0
        %2940 = vmatpush1.msra.mxu0 0.0
        %2941 = vmatprep.subr.mxu0 0.0
        %2942 = vmatpush1.msra.mxu0 0.0
        %2943 = vmatprep.subr.mxu0 0.0
        %2944 = vmatpush1.msra.mxu0 0.0
        %2945 = vmatprep.subr.mxu0 0.0
        %2946 = vmatpush1.msra.mxu0 0.0
        %2947 = vmatprep.subr.mxu0 0.0
        %2948 = vmatpush1.msra.mxu0 0.0
        %2949 = vmatprep.subr.mxu0 0.0
        %2950 = vmatpush1.msra.mxu0 0.0
        %2951 = vmatprep.subr.mxu0 0.0
        %2952 = vmatpush1.msra.mxu0 0.0
        %2953 = vmatprep.subr.mxu0 0.0
        %2954 = vmatpush1.msra.mxu0 0.0
        %2955 = vmatprep.subr.mxu0 0.0
        %2956 = vmatpush1.msra.mxu0 0.0
        %2957 = vmatprep.subr.mxu0 0.0
        %2958 = vmatpush1.msra.mxu0 0.0
        %2959 = vmatprep.subr.mxu0 0.0
        %2960 = vmatpush1.msra.mxu0 0.0
        %2961 = vmatprep.subr.mxu0 0.0
        %2962 = vmatpush1.msra.mxu0 0.0
        %2963 = vmatprep.subr.mxu0 0.0
        %2964 = vmatpush1.msra.mxu0 0.0
        %2965 = vmatprep.subr.mxu0 0.0
        %2966 = vmatpush1.msra.mxu0 0.0
        %2967 = vmatprep.subr.mxu0 0.0
        %2968 = vmatpush1.msra.mxu0 0.0
        %2969 = vmatprep.subr.mxu0 0.0
        %2970 = vmatpush1.msra.mxu0 0.0
        %2971 = vmatprep.subr.mxu0 0.0
        %2972 = vmatpush1.msra.mxu0 0.0
        %2973 = vmatprep.subr.mxu0 0.0
        %2974 = vmatpush1.msra.mxu0 0.0
        %2975 = vmatprep.subr.mxu0 0.0
        %2976 = vmatpush1.msra.mxu0 0.0
        %2977 = vmatprep.subr.mxu0 0.0
        %2978 = vmatpush1.msra.mxu0 0.0
        %2979 = vmatprep.subr.mxu0 0.0
        %2980 = vmatpush1.msra.mxu0 0.0
        %2981 = vmatprep.subr.mxu0 0.0
        %2982 = vmatpush1.msra.mxu0 0.0
        %2983 = vmatprep.subr.mxu0 0.0
        %2984 = vmatpush1.msra.mxu0 0.0
        %2985 = vmatprep.subr.mxu0 0.0
        %2986 = vmatpush1.msra.mxu0 0.0
        %2987 = vmatprep.subr.mxu0 0.0
        %2988 = vmatpush1.msra.mxu0 0.0
        %2989 = vmatprep.mubr.f32.mxu0 0.0
        %2990 = vmatmul.mubr.f32.gmra.mrb[0].mxu0 %v2923
        %v2991 = vpop.f32.mrb[0].mxu0
        %v2992 = vadd.f32 0.0, %v2991
        %v2993 = vpop.f32.mrb[0].mxu0
        %2994 = vdwg.mxu0
        %v2995 = vadd.f32 %v2921, %v2992
        %v2996 = vld [vmem:[%s2 + $0x130] sm:$0xff]
        %2998 = vset.pattern.permute.xlu0 0
        %2999 = vperm.xlu0 %2998, %v2996
        %v3000 = vpop.permute.xlu0 %2999
        %v3002 = vadd.f32 %v2995, %v3000
        %v3003 = vmax.f32 %v3002, 0.0
        %v3004 = vld [vmem:[%s2 + $0x138] sm:$0xff]
        %v3006 = vsel %vm614, %v3004, 0
        %3008 = vmatprep.subr.mxu0 0.0
        %3009 = vmatpush1.msra.mxu0 %v3003
        %3010 = vmatprep.subr.mxu0 0.0
        %3011 = vmatpush1.msra.mxu0 0.0
        %3012 = vmatprep.subr.mxu0 0.0
        %3013 = vmatpush1.msra.mxu0 0.0
        %3014 = vmatprep.subr.mxu0 0.0
        %3015 = vmatpush1.msra.mxu0 0.0
        %3016 = vmatprep.subr.mxu0 0.0
        %3017 = vmatpush1.msra.mxu0 0.0
        %3018 = vmatprep.subr.mxu0 0.0
        %3019 = vmatpush1.msra.mxu0 0.0
        %3020 = vmatprep.subr.mxu0 0.0
        %3021 = vmatpush1.msra.mxu0 0.0
        %3022 = vmatprep.subr.mxu0 0.0
        %3023 = vmatpush1.msra.mxu0 0.0
        %3024 = vmatprep.subr.mxu0 0.0
        %3025 = vmatpush1.msra.mxu0 0.0
        %3026 = vmatprep.subr.mxu0 0.0
        %3027 = vmatpush1.msra.mxu0 0.0
        %3028 = vmatprep.subr.mxu0 0.0
        %3029 = vmatpush1.msra.mxu0 0.0
        %3030 = vmatprep.subr.mxu0 0.0
        %3031 = vmatpush1.msra.mxu0 0.0
        %3032 = vmatprep.subr.mxu0 0.0
        %3033 = vmatpush1.msra.mxu0 0.0
        %3034 = vmatprep.subr.mxu0 0.0
        %3035 = vmatpush1.msra.mxu0 0.0
        %3036 = vmatprep.subr.mxu0 0.0
        %3037 = vmatpush1.msra.mxu0 0.0
        %3038 = vmatprep.subr.mxu0 0.0
        %3039 = vmatpush1.msra.mxu0 0.0
        %3040 = vmatprep.subr.mxu0 0.0
        %3041 = vmatpush1.msra.mxu0 0.0
        %3042 = vmatprep.subr.mxu0 0.0
        %3043 = vmatpush1.msra.mxu0 0.0
        %3044 = vmatprep.subr.mxu0 0.0
        %3045 = vmatpush1.msra.mxu0 0.0
        %3046 = vmatprep.subr.mxu0 0.0
        %3047 = vmatpush1.msra.mxu0 0.0
        %3048 = vmatprep.subr.mxu0 0.0
        %3049 = vmatpush1.msra.mxu0 0.0
        %3050 = vmatprep.subr.mxu0 0.0
        %3051 = vmatpush1.msra.mxu0 0.0
        %3052 = vmatprep.subr.mxu0 0.0
        %3053 = vmatpush1.msra.mxu0 0.0
        %3054 = vmatprep.subr.mxu0 0.0
        %3055 = vmatpush1.msra.mxu0 0.0
        %3056 = vmatprep.subr.mxu0 0.0
        %3057 = vmatpush1.msra.mxu0 0.0
        %3058 = vmatprep.subr.mxu0 0.0
        %3059 = vmatpush1.msra.mxu0 0.0
        %3060 = vmatprep.subr.mxu0 0.0
        %3061 = vmatpush1.msra.mxu0 0.0
        %3062 = vmatprep.subr.mxu0 0.0
        %3063 = vmatpush1.msra.mxu0 0.0
        %3064 = vmatprep.subr.mxu0 0.0
        %3065 = vmatpush1.msra.mxu0 0.0
        %3066 = vmatprep.subr.mxu0 0.0
        %3067 = vmatpush1.msra.mxu0 0.0
        %3068 = vmatprep.subr.mxu0 0.0
        %3069 = vmatpush1.msra.mxu0 0.0
        %3070 = vmatprep.subr.mxu0 0.0
        %3071 = vmatpush1.msra.mxu0 0.0
        %3072 = vmatprep.mubr.f32.mxu0 0.0
        %3073 = vmatmul.mubr.f32.gmra.mrb[0].mxu0 %v3006
        %v3074 = vpop.f32.mrb[0].mxu0
        %v3075 = vadd.f32 0.0, %v3074
        %v3076 = vpop.f32.mrb[0].mxu0
        %3077 = vdwg.mxu0
        %v3078 = vadd.f32 %v2600, %v3075
        %v3079 = vld [vmem:[%s2 + $0x150] sm:$0xff]
        %v3080 = vld [vmem:[%s2 + $0x158] sm:$0xff]
        %v3081 = vld [vmem:[%s2 + $0x160] sm:$0xff]
        %v3083 = vsel %vm614, %v3079, 0
        %v3086 = vsel %vm614, %v3080, 0
        %v3089 = vsel %vm614, %v3081, 0
        %3091 = vmatprep.subr.mxu0 0.0
        %3092 = vmatpush1.msra.mxu0 %v3078
        %3093 = vmatprep.subr.mxu0 0.0
        %3094 = vmatpush1.msra.mxu0 0.0
        %3095 = vmatprep.subr.mxu0 0.0
        %3096 = vmatpush1.msra.mxu0 0.0
        %3097 = vmatprep.subr.mxu0 0.0
        %3098 = vmatpush1.msra.mxu0 0.0
        %3099 = vmatprep.subr.mxu0 0.0
        %3100 = vmatpush1.msra.mxu0 0.0
        %3101 = vmatprep.subr.mxu0 0.0
        %3102 = vmatpush1.msra.mxu0 0.0
        %3103 = vmatprep.subr.mxu0 0.0
        %3104 = vmatpush1.msra.mxu0 0.0
        %3105 = vmatprep.subr.mxu0 0.0
        %3106 = vmatpush1.msra.mxu0 0.0
        %3107 = vmatprep.subr.mxu0 0.0
        %3108 = vmatpush1.msra.mxu0 0.0
        %3109 = vmatprep.subr.mxu0 0.0
        %3110 = vmatpush1.msra.mxu0 0.0
        %3111 = vmatprep.subr.mxu0 0.0
        %3112 = vmatpush1.msra.mxu0 0.0
        %3113 = vmatprep.subr.mxu0 0.0
        %3114 = vmatpush1.msra.mxu0 0.0
        %3115 = vmatprep.subr.mxu0 0.0
        %3116 = vmatpush1.msra.mxu0 0.0
        %3117 = vmatprep.subr.mxu0 0.0
        %3118 = vmatpush1.msra.mxu0 0.0
        %3119 = vmatprep.subr.mxu0 0.0
        %3120 = vmatpush1.msra.mxu0 0.0
        %3121 = vmatprep.subr.mxu0 0.0
        %3122 = vmatpush1.msra.mxu0 0.0
        %3123 = vmatprep.subr.mxu0 0.0
        %3124 = vmatpush1.msra.mxu0 0.0
        %3125 = vmatprep.subr.mxu0 0.0
        %3126 = vmatpush1.msra.mxu0 0.0
        %3127 = vmatprep.subr.mxu0 0.0
        %3128 = vmatpush1.msra.mxu0 0.0
        %3129 = vmatprep.subr.mxu0 0.0
        %3130 = vmatpush1.msra.mxu0 0.0
        %3131 = vmatprep.subr.mxu0 0.0
        %3132 = vmatpush1.msra.mxu0 0.0
        %3133 = vmatprep.subr.mxu0 0.0
        %3134 = vmatpush1.msra.mxu0 0.0
        %3135 = vmatprep.subr.mxu0 0.0
        %3136 = vmatpush1.msra.mxu0 0.0
        %3137 = vmatprep.subr.mxu0 0.0
        %3138 = vmatpush1.msra.mxu0 0.0
        %3139 = vmatprep.subr.mxu0 0.0
        %3140 = vmatpush1.msra.mxu0 0.0
        %3141 = vmatprep.subr.mxu0 0.0
        %3142 = vmatpush1.msra.mxu0 0.0
        %3143 = vmatprep.subr.mxu0 0.0
        %3144 = vmatpush1.msra.mxu0 0.0
        %3145 = vmatprep.subr.mxu0 0.0
        %3146 = vmatpush1.msra.mxu0 0.0
        %3147 = vmatprep.subr.mxu0 0.0
        %3148 = vmatpush1.msra.mxu0 0.0
        %3149 = vmatprep.subr.mxu0 0.0
        %3150 = vmatpush1.msra.mxu0 0.0
        %3151 = vmatprep.subr.mxu0 0.0
        %3152 = vmatpush1.msra.mxu0 0.0
        %3153 = vmatprep.subr.mxu0 0.0
        %3154 = vmatpush1.msra.mxu0 0.0
        %3155 = vmatprep.mubr.f32.mxu0 0.0
        %3156 = vmatmul.mubr.f32.gmra.mrb[0].mxu0 %v3083
        %v3157 = vpop.f32.mrb[0].mxu0
        %v3158 = vadd.f32 0.0, %v3157
        %v3159 = vpop.f32.mrb[0].mxu0
        %3160 = vmatprep.mubr.f32.mxu0 0.0
        %3161 = vmatmul.mubr.f32.gmra.mrb[0].mxu0 %v3086
        %v3162 = vpop.f32.mrb[0].mxu0
        %v3163 = vadd.f32 0.0, %v3162
        %v3164 = vpop.f32.mrb[0].mxu0
        %3165 = vmatprep.mubr.f32.mxu0 0.0
        %3166 = vmatmul.mubr.f32.gmra.mrb[0].mxu0 %v3089
        %v3167 = vpop.f32.mrb[0].mxu0
        %v3168 = vadd.f32 0.0, %v3167
        %v3169 = vpop.f32.mrb[0].mxu0
        %3170 = vdwg.mxu0
        %v3172 = vsel %vm458, %v3163, 0
        %3174 = vmatprep.subr.mxu0 0.0
        %3175 = vmatpush1.msra.mxu0 %v1269
        %3176 = vmatprep.subr.mxu0 0.0
        %3177 = vmatpush1.msra.mxu0 %v1270
        %3178 = vmatprep.subr.mxu0 0.0
        %3179 = vmatpush1.msra.mxu0 0.0
        %3180 = vmatprep.subr.mxu0 0.0
        %3181 = vmatpush1.msra.mxu0 0.0
        %3182 = vmatprep.subr.mxu0 0.0
        %3183 = vmatpush1.msra.mxu0 0.0
        %3184 = vmatprep.subr.mxu0 0.0
        %3185 = vmatpush1.msra.mxu0 0.0
        %3186 = vmatprep.subr.mxu0 0.0
        %3187 = vmatpush1.msra.mxu0 0.0
        %3188 = vmatprep.subr.mxu0 0.0
        %3189 = vmatpush1.msra.mxu0 0.0
        %3190 = vmatprep.subr.mxu0 0.0
        %3191 = vmatpush1.msra.mxu0 0.0
        %3192 = vmatprep.subr.mxu0 0.0
        %3193 = vmatpush1.msra.mxu0 0.0
        %3194 = vmatprep.subr.mxu0 0.0
        %3195 = vmatpush1.msra.mxu0 0.0
        %3196 = vmatprep.subr.mxu0 0.0
        %3197 = vmatpush1.msra.mxu0 0.0
        %3198 = vmatprep.subr.mxu0 0.0
        %3199 = vmatpush1.msra.mxu0 0.0
        %3200 = vmatprep.subr.mxu0 0.0
        %3201 = vmatpush1.msra.mxu0 0.0
        %3202 = vmatprep.subr.mxu0 0.0
        %3203 = vmatpush1.msra.mxu0 0.0
        %3204 = vmatprep.subr.mxu0 0.0
        %3205 = vmatpush1.msra.mxu0 0.0
        %3206 = vmatprep.subr.mxu0 0.0
        %3207 = vmatpush1.msra.mxu0 0.0
        %3208 = vmatprep.subr.mxu0 0.0
        %3209 = vmatpush1.msra.mxu0 0.0
        %3210 = vmatprep.subr.mxu0 0.0
        %3211 = vmatpush1.msra.mxu0 0.0
        %3212 = vmatprep.subr.mxu0 0.0
        %3213 = vmatpush1.msra.mxu0 0.0
        %3214 = vmatprep.subr.mxu0 0.0
        %3215 = vmatpush1.msra.mxu0 0.0
        %3216 = vmatprep.subr.mxu0 0.0
        %3217 = vmatpush1.msra.mxu0 0.0
        %3218 = vmatprep.subr.mxu0 0.0
        %3219 = vmatpush1.msra.mxu0 0.0
        %3220 = vmatprep.subr.mxu0 0.0
        %3221 = vmatpush1.msra.mxu0 0.0
        %3222 = vmatprep.subr.mxu0 0.0
        %3223 = vmatpush1.msra.mxu0 0.0
        %3224 = vmatprep.subr.mxu0 0.0
        %3225 = vmatpush1.msra.mxu0 0.0
        %3226 = vmatprep.subr.mxu0 0.0
        %3227 = vmatpush1.msra.mxu0 0.0
        %3228 = vmatprep.subr.mxu0 0.0
        %3229 = vmatpush1.msra.mxu0 0.0
        %3230 = vmatprep.subr.mxu0 0.0
        %3231 = vmatpush1.msra.mxu0 0.0
        %3232 = vmatprep.subr.mxu0 0.0
        %3233 = vmatpush1.msra.mxu0 0.0
        %3234 = vmatprep.subr.mxu0 0.0
        %3235 = vmatpush1.msra.mxu0 0.0
        %3236 = vmatprep.subr.mxu0 0.0
        %3237 = vmatpush1.msra.mxu0 0.0
        %3238 = vmatprep.mubr.f32.mxu0 0.0
        %3239 = vmatmul.mubr.f32.gmra.mrb[0].mxu0 %v3172
        %v3240 = vpop.f32.mrb[0].mxu0
        %v3241 = vadd.f32 0.0, %v3240
        %v3242 = vpop.f32.mrb[0].mxu0
        %3243 = vdwg.mxu0
        %v3245 = vsel %vm458, %v3158, 0
        %3247 = vmatprep.subr.mxu0 0.0
        %3248 = vmatpush1.msra.mxu0 %v1267
        %3249 = vmatprep.subr.mxu0 0.0
        %3250 = vmatpush1.msra.mxu0 %v1268
        %3251 = vmatprep.subr.mxu0 0.0
        %3252 = vmatpush1.msra.mxu0 0.0
        %3253 = vmatprep.subr.mxu0 0.0
        %3254 = vmatpush1.msra.mxu0 0.0
        %3255 = vmatprep.subr.mxu0 0.0
        %3256 = vmatpush1.msra.mxu0 0.0
        %3257 = vmatprep.subr.mxu0 0.0
        %3258 = vmatpush1.msra.mxu0 0.0
        %3259 = vmatprep.subr.mxu0 0.0
        %3260 = vmatpush1.msra.mxu0 0.0
        %3261 = vmatprep.subr.mxu0 0.0
        %3262 = vmatpush1.msra.mxu0 0.0
        %3263 = vmatprep.subr.mxu0 0.0
        %3264 = vmatpush1.msra.mxu0 0.0
        %3265 = vmatprep.subr.mxu0 0.0
        %3266 = vmatpush1.msra.mxu0 0.0
        %3267 = vmatprep.subr.mxu0 0.0
        %3268 = vmatpush1.msra.mxu0 0.0
        %3269 = vmatprep.subr.mxu0 0.0
        %3270 = vmatpush1.msra.mxu0 0.0
        %3271 = vmatprep.subr.mxu0 0.0
        %3272 = vmatpush1.msra.mxu0 0.0
        %3273 = vmatprep.subr.mxu0 0.0
        %3274 = vmatpush1.msra.mxu0 0.0
        %3275 = vmatprep.subr.mxu0 0.0
        %3276 = vmatpush1.msra.mxu0 0.0
        %3277 = vmatprep.subr.mxu0 0.0
        %3278 = vmatpush1.msra.mxu0 0.0
        %3279 = vmatprep.subr.mxu0 0.0
        %3280 = vmatpush1.msra.mxu0 0.0
        %3281 = vmatprep.subr.mxu0 0.0
        %3282 = vmatpush1.msra.mxu0 0.0
        %3283 = vmatprep.subr.mxu0 0.0
        %3284 = vmatpush1.msra.mxu0 0.0
        %3285 = vmatprep.subr.mxu0 0.0
        %3286 = vmatpush1.msra.mxu0 0.0
        %3287 = vmatprep.subr.mxu0 0.0
        %3288 = vmatpush1.msra.mxu0 0.0
        %3289 = vmatprep.subr.mxu0 0.0
        %3290 = vmatpush1.msra.mxu0 0.0
        %3291 = vmatprep.subr.mxu0 0.0
        %3292 = vmatpush1.msra.mxu0 0.0
        %3293 = vmatprep.subr.mxu0 0.0
        %3294 = vmatpush1.msra.mxu0 0.0
        %3295 = vmatprep.subr.mxu0 0.0
        %3296 = vmatpush1.msra.mxu0 0.0
        %3297 = vmatprep.subr.mxu0 0.0
        %3298 = vmatpush1.msra.mxu0 0.0
        %3299 = vmatprep.subr.mxu0 0.0
        %3300 = vmatpush1.msra.mxu0 0.0
        %3301 = vmatprep.subr.mxu0 0.0
        %3302 = vmatpush1.msra.mxu0 0.0
        %3303 = vmatprep.subr.mxu0 0.0
        %3304 = vmatpush1.msra.mxu0 0.0
        %3305 = vmatprep.subr.mxu0 0.0
        %3306 = vmatpush1.msra.mxu0 0.0
        %3307 = vmatprep.subr.mxu0 0.0
        %3308 = vmatpush1.msra.mxu0 0.0
        %3309 = vmatprep.subr.mxu0 0.0
        %3310 = vmatpush1.msra.mxu0 0.0
        %3311 = vmatprep.mubr.f32.mxu0 0.0
        %3312 = vmatmul.mubr.f32.gmra.mrb[0].mxu0 %v3245
        %v3313 = vpop.f32.mrb[0].mxu0
        %v3314 = vadd.f32 %v3241, %v3313
        %v3315 = vpop.f32.mrb[0].mxu0
        %3316 = vdwg.mxu0
        %v3318 = vsel %vm458, %v3168, 0
        %3320 = vmatprep.subr.mxu0 0.0
        %3321 = vmatpush1.msra.mxu0 %v1417
        %3322 = vmatprep.subr.mxu0 0.0
        %3323 = vmatpush1.msra.mxu0 %v1418
        %3324 = vmatprep.subr.mxu0 0.0
        %3325 = vmatpush1.msra.mxu0 0.0
        %3326 = vmatprep.subr.mxu0 0.0
        %3327 = vmatpush1.msra.mxu0 0.0
        %3328 = vmatprep.subr.mxu0 0.0
        %3329 = vmatpush1.msra.mxu0 0.0
        %3330 = vmatprep.subr.mxu0 0.0
        %3331 = vmatpush1.msra.mxu0 0.0
        %3332 = vmatprep.subr.mxu0 0.0
        %3333 = vmatpush1.msra.mxu0 0.0
        %3334 = vmatprep.subr.mxu0 0.0
        %3335 = vmatpush1.msra.mxu0 0.0
        %3336 = vmatprep.subr.mxu0 0.0
        %3337 = vmatpush1.msra.mxu0 0.0
        %3338 = vmatprep.subr.mxu0 0.0
        %3339 = vmatpush1.msra.mxu0 0.0
        %3340 = vmatprep.subr.mxu0 0.0
        %3341 = vmatpush1.msra.mxu0 0.0
        %3342 = vmatprep.subr.mxu0 0.0
        %3343 = vmatpush1.msra.mxu0 0.0
        %3344 = vmatprep.subr.mxu0 0.0
        %3345 = vmatpush1.msra.mxu0 0.0
        %3346 = vmatprep.subr.mxu0 0.0
        %3347 = vmatpush1.msra.mxu0 0.0
        %3348 = vmatprep.subr.mxu0 0.0
        %3349 = vmatpush1.msra.mxu0 0.0
        %3350 = vmatprep.subr.mxu0 0.0
        %3351 = vmatpush1.msra.mxu0 0.0
        %3352 = vmatprep.subr.mxu0 0.0
        %3353 = vmatpush1.msra.mxu0 0.0
        %3354 = vmatprep.subr.mxu0 0.0
        %3355 = vmatpush1.msra.mxu0 0.0
        %3356 = vmatprep.subr.mxu0 0.0
        %3357 = vmatpush1.msra.mxu0 0.0
        %3358 = vmatprep.subr.mxu0 0.0
        %3359 = vmatpush1.msra.mxu0 0.0
        %3360 = vmatprep.subr.mxu0 0.0
        %3361 = vmatpush1.msra.mxu0 0.0
        %3362 = vmatprep.subr.mxu0 0.0
        %3363 = vmatpush1.msra.mxu0 0.0
        %3364 = vmatprep.subr.mxu0 0.0
        %3365 = vmatpush1.msra.mxu0 0.0
        %3366 = vmatprep.subr.mxu0 0.0
        %3367 = vmatpush1.msra.mxu0 0.0
        %3368 = vmatprep.subr.mxu0 0.0
        %3369 = vmatpush1.msra.mxu0 0.0
        %3370 = vmatprep.subr.mxu0 0.0
        %3371 = vmatpush1.msra.mxu0 0.0
        %3372 = vmatprep.subr.mxu0 0.0
        %3373 = vmatpush1.msra.mxu0 0.0
        %3374 = vmatprep.subr.mxu0 0.0
        %3375 = vmatpush1.msra.mxu0 0.0
        %3376 = vmatprep.subr.mxu0 0.0
        %3377 = vmatpush1.msra.mxu0 0.0
        %3378 = vmatprep.subr.mxu0 0.0
        %3379 = vmatpush1.msra.mxu0 0.0
        %3380 = vmatprep.subr.mxu0 0.0
        %3381 = vmatpush1.msra.mxu0 0.0
        %3382 = vmatprep.subr.mxu0 0.0
        %3383 = vmatpush1.msra.mxu0 0.0
        %3384 = vmatprep.mubr.f32.mxu0 0.0
        %3385 = vmatmul.mubr.f32.gmra.mrb[0].mxu0 %v3318
        %v3386 = vpop.f32.mrb[0].mxu0
        %v3387 = vadd.f32 0.0, %v3386
        %v3388 = vpop.f32.mrb[0].mxu0
        %3389 = vdwg.mxu0
        %v3390 = vadd.f32 %v3314, %v3387
        %v3391 = vld [vmem:[%s2 + $0x168] sm:$0xff]
        %3393 = vset.pattern.permute.xlu0 0
        %3394 = vperm.xlu0 %3393, %v3391
        %v3395 = vpop.permute.xlu0 %3394
        %v3397 = vadd.f32 %v3390, %v3395
        %v3398 = vmax.f32 %v3397, 0.0
        %v3399 = vld [vmem:[%s2 + $0x170] sm:$0xff]
        %v3400 = vld [vmem:[%s2 + $0x178] sm:$0xff]
        %v3401 = vld [vmem:[%s2 + $0x180] sm:$0xff]
        %v3403 = vsel %vm614, %v3399, 0
        %v3406 = vsel %vm614, %v3400, 0
        %v3409 = vsel %vm614, %v3401, 0
        %3411 = vmatprep.subr.mxu0 0.0
        %3412 = vmatpush1.msra.mxu0 %v3398
        %3413 = vmatprep.subr.mxu0 0.0
        %3414 = vmatpush1.msra.mxu0 0.0
        %3415 = vmatprep.subr.mxu0 0.0
        %3416 = vmatpush1.msra.mxu0 0.0
        %3417 = vmatprep.subr.mxu0 0.0
        %3418 = vmatpush1.msra.mxu0 0.0
        %3419 = vmatprep.subr.mxu0 0.0
        %3420 = vmatpush1.msra.mxu0 0.0
        %3421 = vmatprep.subr.mxu0 0.0
        %3422 = vmatpush1.msra.mxu0 0.0
        %3423 = vmatprep.subr.mxu0 0.0
        %3424 = vmatpush1.msra.mxu0 0.0
        %3425 = vmatprep.subr.mxu0 0.0
        %3426 = vmatpush1.msra.mxu0 0.0
        %3427 = vmatprep.subr.mxu0 0.0
        %3428 = vmatpush1.msra.mxu0 0.0
        %3429 = vmatprep.subr.mxu0 0.0
        %3430 = vmatpush1.msra.mxu0 0.0
        %3431 = vmatprep.subr.mxu0 0.0
        %3432 = vmatpush1.msra.mxu0 0.0
        %3433 = vmatprep.subr.mxu0 0.0
        %3434 = vmatpush1.msra.mxu0 0.0
        %3435 = vmatprep.subr.mxu0 0.0
        %3436 = vmatpush1.msra.mxu0 0.0
        %3437 = vmatprep.subr.mxu0 0.0
        %3438 = vmatpush1.msra.mxu0 0.0
        %3439 = vmatprep.subr.mxu0 0.0
        %3440 = vmatpush1.msra.mxu0 0.0
        %3441 = vmatprep.subr.mxu0 0.0
        %3442 = vmatpush1.msra.mxu0 0.0
        %3443 = vmatprep.subr.mxu0 0.0
        %3444 = vmatpush1.msra.mxu0 0.0
        %3445 = vmatprep.subr.mxu0 0.0
        %3446 = vmatpush1.msra.mxu0 0.0
        %3447 = vmatprep.subr.mxu0 0.0
        %3448 = vmatpush1.msra.mxu0 0.0
        %3449 = vmatprep.subr.mxu0 0.0
        %3450 = vmatpush1.msra.mxu0 0.0
        %3451 = vmatprep.subr.mxu0 0.0
        %3452 = vmatpush1.msra.mxu0 0.0
        %3453 = vmatprep.subr.mxu0 0.0
        %3454 = vmatpush1.msra.mxu0 0.0
        %3455 = vmatprep.subr.mxu0 0.0
        %3456 = vmatpush1.msra.mxu0 0.0
        %3457 = vmatprep.subr.mxu0 0.0
        %3458 = vmatpush1.msra.mxu0 0.0
        %3459 = vmatprep.subr.mxu0 0.0
        %3460 = vmatpush1.msra.mxu0 0.0
        %3461 = vmatprep.subr.mxu0 0.0
        %3462 = vmatpush1.msra.mxu0 0.0
        %3463 = vmatprep.subr.mxu0 0.0
        %3464 = vmatpush1.msra.mxu0 0.0
        %3465 = vmatprep.subr.mxu0 0.0
        %3466 = vmatpush1.msra.mxu0 0.0
        %3467 = vmatprep.subr.mxu0 0.0
        %3468 = vmatpush1.msra.mxu0 0.0
        %3469 = vmatprep.subr.mxu0 0.0
        %3470 = vmatpush1.msra.mxu0 0.0
        %3471 = vmatprep.subr.mxu0 0.0
        %3472 = vmatpush1.msra.mxu0 0.0
        %3473 = vmatprep.subr.mxu0 0.0
        %3474 = vmatpush1.msra.mxu0 0.0
        %3475 = vmatprep.mubr.f32.mxu0 0.0
        %3476 = vmatmul.mubr.f32.gmra.mrb[0].mxu0 %v3403
        %v3477 = vpop.f32.mrb[0].mxu0
        %v3478 = vadd.f32 0.0, %v3477
        %v3479 = vpop.f32.mrb[0].mxu0
        %3480 = vmatprep.mubr.f32.mxu0 0.0
        %3481 = vmatmul.mubr.f32.gmra.mrb[0].mxu0 %v3406
        %v3482 = vpop.f32.mrb[0].mxu0
        %v3483 = vadd.f32 0.0, %v3482
        %v3484 = vpop.f32.mrb[0].mxu0
        %3485 = vmatprep.mubr.f32.mxu0 0.0
        %3486 = vmatmul.mubr.f32.gmra.mrb[0].mxu0 %v3409
        %v3487 = vpop.f32.mrb[0].mxu0
        %v3488 = vadd.f32 0.0, %v3487
        %v3489 = vpop.f32.mrb[0].mxu0
        %3490 = vdwg.mxu0
        %v3492 = vsel %vm458, %v3483, 0
        %3494 = vmatprep.subr.mxu0 0.0
        %3495 = vmatpush1.msra.mxu0 %v1595
        %3496 = vmatprep.subr.mxu0 0.0
        %3497 = vmatpush1.msra.mxu0 %v1596
        %3498 = vmatprep.subr.mxu0 0.0
        %3499 = vmatpush1.msra.mxu0 0.0
        %3500 = vmatprep.subr.mxu0 0.0
        %3501 = vmatpush1.msra.mxu0 0.0
        %3502 = vmatprep.subr.mxu0 0.0
        %3503 = vmatpush1.msra.mxu0 0.0
        %3504 = vmatprep.subr.mxu0 0.0
        %3505 = vmatpush1.msra.mxu0 0.0
        %3506 = vmatprep.subr.mxu0 0.0
        %3507 = vmatpush1.msra.mxu0 0.0
        %3508 = vmatprep.subr.mxu0 0.0
        %3509 = vmatpush1.msra.mxu0 0.0
        %3510 = vmatprep.subr.mxu0 0.0
        %3511 = vmatpush1.msra.mxu0 0.0
        %3512 = vmatprep.subr.mxu0 0.0
        %3513 = vmatpush1.msra.mxu0 0.0
        %3514 = vmatprep.subr.mxu0 0.0
        %3515 = vmatpush1.msra.mxu0 0.0
        %3516 = vmatprep.subr.mxu0 0.0
        %3517 = vmatpush1.msra.mxu0 0.0
        %3518 = vmatprep.subr.mxu0 0.0
        %3519 = vmatpush1.msra.mxu0 0.0
        %3520 = vmatprep.subr.mxu0 0.0
        %3521 = vmatpush1.msra.mxu0 0.0
        %3522 = vmatprep.subr.mxu0 0.0
        %3523 = vmatpush1.msra.mxu0 0.0
        %3524 = vmatprep.subr.mxu0 0.0
        %3525 = vmatpush1.msra.mxu0 0.0
        %3526 = vmatprep.subr.mxu0 0.0
        %3527 = vmatpush1.msra.mxu0 0.0
        %3528 = vmatprep.subr.mxu0 0.0
        %3529 = vmatpush1.msra.mxu0 0.0
        %3530 = vmatprep.subr.mxu0 0.0
        %3531 = vmatpush1.msra.mxu0 0.0
        %3532 = vmatprep.subr.mxu0 0.0
        %3533 = vmatpush1.msra.mxu0 0.0
        %3534 = vmatprep.subr.mxu0 0.0
        %3535 = vmatpush1.msra.mxu0 0.0
        %3536 = vmatprep.subr.mxu0 0.0
        %3537 = vmatpush1.msra.mxu0 0.0
        %3538 = vmatprep.subr.mxu0 0.0
        %3539 = vmatpush1.msra.mxu0 0.0
        %3540 = vmatprep.subr.mxu0 0.0
        %3541 = vmatpush1.msra.mxu0 0.0
        %3542 = vmatprep.subr.mxu0 0.0
        %3543 = vmatpush1.msra.mxu0 0.0
        %3544 = vmatprep.subr.mxu0 0.0
        %3545 = vmatpush1.msra.mxu0 0.0
        %3546 = vmatprep.subr.mxu0 0.0
        %3547 = vmatpush1.msra.mxu0 0.0
        %3548 = vmatprep.subr.mxu0 0.0
        %3549 = vmatpush1.msra.mxu0 0.0
        %3550 = vmatprep.subr.mxu0 0.0
        %3551 = vmatpush1.msra.mxu0 0.0
        %3552 = vmatprep.subr.mxu0 0.0
        %3553 = vmatpush1.msra.mxu0 0.0
        %3554 = vmatprep.subr.mxu0 0.0
        %3555 = vmatpush1.msra.mxu0 0.0
        %3556 = vmatprep.subr.mxu0 0.0
        %3557 = vmatpush1.msra.mxu0 0.0
        %3558 = vmatprep.mubr.f32.mxu0 0.0
        %3559 = vmatmul.mubr.f32.gmra.mrb[0].mxu0 %v3492
        %v3560 = vpop.f32.mrb[0].mxu0
        %v3561 = vadd.f32 0.0, %v3560
        %v3562 = vpop.f32.mrb[0].mxu0
        %3563 = vdwg.mxu0
        %v3565 = vsel %vm458, %v3478, 0
        %3567 = vmatprep.subr.mxu0 0.0
        %3568 = vmatpush1.msra.mxu0 %v1593
        %3569 = vmatprep.subr.mxu0 0.0
        %3570 = vmatpush1.msra.mxu0 %v1594
        %3571 = vmatprep.subr.mxu0 0.0
        %3572 = vmatpush1.msra.mxu0 0.0
        %3573 = vmatprep.subr.mxu0 0.0
        %3574 = vmatpush1.msra.mxu0 0.0
        %3575 = vmatprep.subr.mxu0 0.0
        %3576 = vmatpush1.msra.mxu0 0.0
        %3577 = vmatprep.subr.mxu0 0.0
        %3578 = vmatpush1.msra.mxu0 0.0
        %3579 = vmatprep.subr.mxu0 0.0
        %3580 = vmatpush1.msra.mxu0 0.0
        %3581 = vmatprep.subr.mxu0 0.0
        %3582 = vmatpush1.msra.mxu0 0.0
        %3583 = vmatprep.subr.mxu0 0.0
        %3584 = vmatpush1.msra.mxu0 0.0
        %3585 = vmatprep.subr.mxu0 0.0
        %3586 = vmatpush1.msra.mxu0 0.0
        %3587 = vmatprep.subr.mxu0 0.0
        %3588 = vmatpush1.msra.mxu0 0.0
        %3589 = vmatprep.subr.mxu0 0.0
        %3590 = vmatpush1.msra.mxu0 0.0
        %3591 = vmatprep.subr.mxu0 0.0
        %3592 = vmatpush1.msra.mxu0 0.0
        %3593 = vmatprep.subr.mxu0 0.0
        %3594 = vmatpush1.msra.mxu0 0.0
        %3595 = vmatprep.subr.mxu0 0.0
        %3596 = vmatpush1.msra.mxu0 0.0
        %3597 = vmatprep.subr.mxu0 0.0
        %3598 = vmatpush1.msra.mxu0 0.0
        %3599 = vmatprep.subr.mxu0 0.0
        %3600 = vmatpush1.msra.mxu0 0.0
        %3601 = vmatprep.subr.mxu0 0.0
        %3602 = vmatpush1.msra.mxu0 0.0
        %3603 = vmatprep.subr.mxu0 0.0
        %3604 = vmatpush1.msra.mxu0 0.0
        %3605 = vmatprep.subr.mxu0 0.0
        %3606 = vmatpush1.msra.mxu0 0.0
        %3607 = vmatprep.subr.mxu0 0.0
        %3608 = vmatpush1.msra.mxu0 0.0
        %3609 = vmatprep.subr.mxu0 0.0
        %3610 = vmatpush1.msra.mxu0 0.0
        %3611 = vmatprep.subr.mxu0 0.0
        %3612 = vmatpush1.msra.mxu0 0.0
        %3613 = vmatprep.subr.mxu0 0.0
        %3614 = vmatpush1.msra.mxu0 0.0
        %3615 = vmatprep.subr.mxu0 0.0
        %3616 = vmatpush1.msra.mxu0 0.0
        %3617 = vmatprep.subr.mxu0 0.0
        %3618 = vmatpush1.msra.mxu0 0.0
        %3619 = vmatprep.subr.mxu0 0.0
        %3620 = vmatpush1.msra.mxu0 0.0
        %3621 = vmatprep.subr.mxu0 0.0
        %3622 = vmatpush1.msra.mxu0 0.0
        %3623 = vmatprep.subr.mxu0 0.0
        %3624 = vmatpush1.msra.mxu0 0.0
        %3625 = vmatprep.subr.mxu0 0.0
        %3626 = vmatpush1.msra.mxu0 0.0
        %3627 = vmatprep.subr.mxu0 0.0
        %3628 = vmatpush1.msra.mxu0 0.0
        %3629 = vmatprep.subr.mxu0 0.0
        %3630 = vmatpush1.msra.mxu0 0.0
        %3631 = vmatprep.mubr.f32.mxu0 0.0
        %3632 = vmatmul.mubr.f32.gmra.mrb[0].mxu0 %v3565
        %v3633 = vpop.f32.mrb[0].mxu0
        %v3634 = vadd.f32 %v3561, %v3633
        %v3635 = vpop.f32.mrb[0].mxu0
        %3636 = vdwg.mxu0
        %v3638 = vsel %vm458, %v3488, 0
        %3640 = vmatprep.subr.mxu0 0.0
        %3641 = vmatpush1.msra.mxu0 %v1743
        %3642 = vmatprep.subr.mxu0 0.0
        %3643 = vmatpush1.msra.mxu0 %v1744
        %3644 = vmatprep.subr.mxu0 0.0
        %3645 = vmatpush1.msra.mxu0 0.0
        %3646 = vmatprep.subr.mxu0 0.0
        %3647 = vmatpush1.msra.mxu0 0.0
        %3648 = vmatprep.subr.mxu0 0.0
        %3649 = vmatpush1.msra.mxu0 0.0
        %3650 = vmatprep.subr.mxu0 0.0
        %3651 = vmatpush1.msra.mxu0 0.0
        %3652 = vmatprep.subr.mxu0 0.0
        %3653 = vmatpush1.msra.mxu0 0.0
        %3654 = vmatprep.subr.mxu0 0.0
        %3655 = vmatpush1.msra.mxu0 0.0
        %3656 = vmatprep.subr.mxu0 0.0
        %3657 = vmatpush1.msra.mxu0 0.0
        %3658 = vmatprep.subr.mxu0 0.0
        %3659 = vmatpush1.msra.mxu0 0.0
        %3660 = vmatprep.subr.mxu0 0.0
        %3661 = vmatpush1.msra.mxu0 0.0
        %3662 = vmatprep.subr.mxu0 0.0
        %3663 = vmatpush1.msra.mxu0 0.0
        %3664 = vmatprep.subr.mxu0 0.0
        %3665 = vmatpush1.msra.mxu0 0.0
        %3666 = vmatprep.subr.mxu0 0.0
        %3667 = vmatpush1.msra.mxu0 0.0
        %3668 = vmatprep.subr.mxu0 0.0
        %3669 = vmatpush1.msra.mxu0 0.0
        %3670 = vmatprep.subr.mxu0 0.0
        %3671 = vmatpush1.msra.mxu0 0.0
        %3672 = vmatprep.subr.mxu0 0.0
        %3673 = vmatpush1.msra.mxu0 0.0
        %3674 = vmatprep.subr.mxu0 0.0
        %3675 = vmatpush1.msra.mxu0 0.0
        %3676 = vmatprep.subr.mxu0 0.0
        %3677 = vmatpush1.msra.mxu0 0.0
        %3678 = vmatprep.subr.mxu0 0.0
        %3679 = vmatpush1.msra.mxu0 0.0
        %3680 = vmatprep.subr.mxu0 0.0
        %3681 = vmatpush1.msra.mxu0 0.0
        %3682 = vmatprep.subr.mxu0 0.0
        %3683 = vmatpush1.msra.mxu0 0.0
        %3684 = vmatprep.subr.mxu0 0.0
        %3685 = vmatpush1.msra.mxu0 0.0
        %3686 = vmatprep.subr.mxu0 0.0
        %3687 = vmatpush1.msra.mxu0 0.0
        %3688 = vmatprep.subr.mxu0 0.0
        %3689 = vmatpush1.msra.mxu0 0.0
        %3690 = vmatprep.subr.mxu0 0.0
        %3691 = vmatpush1.msra.mxu0 0.0
        %3692 = vmatprep.subr.mxu0 0.0
        %3693 = vmatpush1.msra.mxu0 0.0
        %3694 = vmatprep.subr.mxu0 0.0
        %3695 = vmatpush1.msra.mxu0 0.0
        %3696 = vmatprep.subr.mxu0 0.0
        %3697 = vmatpush1.msra.mxu0 0.0
        %3698 = vmatprep.subr.mxu0 0.0
        %3699 = vmatpush1.msra.mxu0 0.0
        %3700 = vmatprep.subr.mxu0 0.0
        %3701 = vmatpush1.msra.mxu0 0.0
        %3702 = vmatprep.subr.mxu0 0.0
        %3703 = vmatpush1.msra.mxu0 0.0
        %3704 = vmatprep.mubr.f32.mxu0 0.0
        %3705 = vmatmul.mubr.f32.gmra.mrb[0].mxu0 %v3638
        %v3706 = vpop.f32.mrb[0].mxu0
        %v3707 = vadd.f32 0.0, %v3706
        %v3708 = vpop.f32.mrb[0].mxu0
        %3709 = vdwg.mxu0
        %v3710 = vadd.f32 %v3634, %v3707
        %v3711 = vld [vmem:[%s2 + $0x188] sm:$0xff]
        %3713 = vset.pattern.permute.xlu0 0
        %3714 = vperm.xlu0 %3713, %v3711
        %v3715 = vpop.permute.xlu0 %3714
        %v3717 = vadd.f32 %v3710, %v3715
        %v3718 = vmax.f32 %v3717, 0.0
        %v3719 = vld [vmem:[%s2 + $0x190] sm:$0xff]
        %v3720 = vld [vmem:[%s2 + $0x198] sm:$0xff]
        %v3721 = vsel %vm614, %v3718, 0.0
        %3722 = vadd.xlane.f32.xlu0 %v3721
        %v3723 = vpop.xlane.xlu0 %3722
        %v3724 = vmul.f32 %v3723, %v1832
        %v3725 = vsub.f32 %v3718, %v3724
        %v3726 = vmul.f32 %v3725, %v3725
        %v3727 = vsel %vm614, %v3726, 0.0
        %3728 = vadd.xlane.f32.xlu0 %v3727
        %v3729 = vpop.xlane.xlu0 %3728
        %v3730 = vmul.f32 %v3729, %v1832
        %v3731 = vadd.f32 %v3730, 1e-05
        %v3732 = vrsqrt.pop %v3731
        %v3733 = vmul.f32 %v3725, %v3732
        %3735 = vset.pattern.permute.xlu0 0
        %3736 = vperm.xlu0 %3735, %v3719
        %v3737 = vpop.permute.xlu0 %3736
        %v3739 = vmul.f32 %v3733, %v3737
        %3741 = vset.pattern.permute.xlu0 0
        %3742 = vperm.xlu0 %3741, %v3720
        %v3743 = vpop.permute.xlu0 %3742
        %v3745 = vadd.f32 %v3739, %v3743
        %v3747 = vsel %vm458, %v3078, 0
        %3749 = vmatprep.subr.mxu0 0.0
        %3750 = vmatpush1.msra.mxu0 %v1855
        %3751 = vmatprep.subr.mxu0 0.0
        %3752 = vmatpush1.msra.mxu0 %v1856
        %3753 = vmatprep.subr.mxu0 0.0
        %3754 = vmatpush1.msra.mxu0 0.0
        %3755 = vmatprep.subr.mxu0 0.0
        %3756 = vmatpush1.msra.mxu0 0.0
        %3757 = vmatprep.subr.mxu0 0.0
        %3758 = vmatpush1.msra.mxu0 0.0
        %3759 = vmatprep.subr.mxu0 0.0
        %3760 = vmatpush1.msra.mxu0 0.0
        %3761 = vmatprep.subr.mxu0 0.0
        %3762 = vmatpush1.msra.mxu0 0.0
        %3763 = vmatprep.subr.mxu0 0.0
        %3764 = vmatpush1.msra.mxu0 0.0
        %3765 = vmatprep.subr.mxu0 0.0
        %3766 = vmatpush1.msra.mxu0 0.0
        %3767 = vmatprep.subr.mxu0 0.0
        %3768 = vmatpush1.msra.mxu0 0.0
        %3769 = vmatprep.subr.mxu0 0.0
        %3770 = vmatpush1.msra.mxu0 0.0
        %3771 = vmatprep.subr.mxu0 0.0
        %3772 = vmatpush1.msra.mxu0 0.0
        %3773 = vmatprep.subr.mxu0 0.0
        %3774 = vmatpush1.msra.mxu0 0.0
        %3775 = vmatprep.subr.mxu0 0.0
        %3776 = vmatpush1.msra.mxu0 0.0
        %3777 = vmatprep.subr.mxu0 0.0
        %3778 = vmatpush1.msra.mxu0 0.0
        %3779 = vmatprep.subr.mxu0 0.0
        %3780 = vmatpush1.msra.mxu0 0.0
        %3781 = vmatprep.subr.mxu0 0.0
        %3782 = vmatpush1.msra.mxu0 0.0
        %3783 = vmatprep.subr.mxu0 0.0
        %3784 = vmatpush1.msra.mxu0 0.0
        %3785 = vmatprep.subr.mxu0 0.0
        %3786 = vmatpush1.msra.mxu0 0.0
        %3787 = vmatprep.subr.mxu0 0.0
        %3788 = vmatpush1.msra.mxu0 0.0
        %3789 = vmatprep.subr.mxu0 0.0
        %3790 = vmatpush1.msra.mxu0 0.0
        %3791 = vmatprep.subr.mxu0 0.0
        %3792 = vmatpush1.msra.mxu0 0.0
        %3793 = vmatprep.subr.mxu0 0.0
        %3794 = vmatpush1.msra.mxu0 0.0
        %3795 = vmatprep.subr.mxu0 0.0
        %3796 = vmatpush1.msra.mxu0 0.0
        %3797 = vmatprep.subr.mxu0 0.0
        %3798 = vmatpush1.msra.mxu0 0.0
        %3799 = vmatprep.subr.mxu0 0.0
        %3800 = vmatpush1.msra.mxu0 0.0
        %3801 = vmatprep.subr.mxu0 0.0
        %3802 = vmatpush1.msra.mxu0 0.0
        %3803 = vmatprep.subr.mxu0 0.0
        %3804 = vmatpush1.msra.mxu0 0.0
        %3805 = vmatprep.subr.mxu0 0.0
        %3806 = vmatpush1.msra.mxu0 0.0
        %3807 = vmatprep.subr.mxu0 0.0
        %3808 = vmatpush1.msra.mxu0 0.0
        %3809 = vmatprep.subr.mxu0 0.0
        %3810 = vmatpush1.msra.mxu0 0.0
        %3811 = vmatprep.subr.mxu0 0.0
        %3812 = vmatpush1.msra.mxu0 0.0
        %3813 = vmatprep.mubr.f32.mxu0 0.0
        %3814 = vmatmul.mubr.f32.gmra.mrb[0].mxu0 %v3747
        %v3815 = vpop.f32.mrb[0].mxu0
        %v3816 = vadd.f32 0.0, %v3815
        %v3817 = vpop.f32.mrb[0].mxu0
        %3818 = vdwg.mxu0
        %v3819 = vadd.f32 %v3745, %v3816
        %v3820 = vld [vmem:[%s2 + $0x1a0] sm:$0xff]
        %v3821 = vld [vmem:[%s2 + $0x1a8] sm:$0xff]
        %3823 = vset.pattern.permute.xlu0 0
        %3824 = vperm.xlu0 %3823, %v3821
        %v3825 = vpop.permute.xlu0 %3824
        %v3828 = vsel %vm614, %v3820, 0
        %3830 = vmatprep.subr.mxu0 0.0
        %3831 = vmatpush1.msra.mxu0 %v3819
        %3832 = vmatprep.subr.mxu0 0.0
        %3833 = vmatpush1.msra.mxu0 0.0
        %3834 = vmatprep.subr.mxu0 0.0
        %3835 = vmatpush1.msra.mxu0 0.0
        %3836 = vmatprep.subr.mxu0 0.0
        %3837 = vmatpush1.msra.mxu0 0.0
        %3838 = vmatprep.subr.mxu0 0.0
        %3839 = vmatpush1.msra.mxu0 0.0
        %3840 = vmatprep.subr.mxu0 0.0
        %3841 = vmatpush1.msra.mxu0 0.0
        %3842 = vmatprep.subr.mxu0 0.0
        %3843 = vmatpush1.msra.mxu0 0.0
        %3844 = vmatprep.subr.mxu0 0.0
        %3845 = vmatpush1.msra.mxu0 0.0
        %3846 = vmatprep.subr.mxu0 0.0
        %3847 = vmatpush1.msra.mxu0 0.0
        %3848 = vmatprep.subr.mxu0 0.0
        %3849 = vmatpush1.msra.mxu0 0.0
        %3850 = vmatprep.subr.mxu0 0.0
        %3851 = vmatpush1.msra.mxu0 0.0
        %3852 = vmatprep.subr.mxu0 0.0
        %3853 = vmatpush1.msra.mxu0 0.0
        %3854 = vmatprep.subr.mxu0 0.0
        %3855 = vmatpush1.msra.mxu0 0.0
        %3856 = vmatprep.subr.mxu0 0.0
        %3857 = vmatpush1.msra.mxu0 0.0
        %3858 = vmatprep.subr.mxu0 0.0
        %3859 = vmatpush1.msra.mxu0 0.0
        %3860 = vmatprep.subr.mxu0 0.0
        %3861 = vmatpush1.msra.mxu0 0.0
        %3862 = vmatprep.subr.mxu0 0.0
        %3863 = vmatpush1.msra.mxu0 0.0
        %3864 = vmatprep.subr.mxu0 0.0
        %3865 = vmatpush1.msra.mxu0 0.0
        %3866 = vmatprep.subr.mxu0 0.0
        %3867 = vmatpush1.msra.mxu0 0.0
        %3868 = vmatprep.subr.mxu0 0.0
        %3869 = vmatpush1.msra.mxu0 0.0
        %3870 = vmatprep.subr.mxu0 0.0
        %3871 = vmatpush1.msra.mxu0 0.0
        %3872 = vmatprep.subr.mxu0 0.0
        %3873 = vmatpush1.msra.mxu0 0.0
        %3874 = vmatprep.subr.mxu0 0.0
        %3875 = vmatpush1.msra.mxu0 0.0
        %3876 = vmatprep.subr.mxu0 0.0
        %3877 = vmatpush1.msra.mxu0 0.0
        %3878 = vmatprep.subr.mxu0 0.0
        %3879 = vmatpush1.msra.mxu0 0.0
        %3880 = vmatprep.subr.mxu0 0.0
        %3881 = vmatpush1.msra.mxu0 0.0
        %3882 = vmatprep.subr.mxu0 0.0
        %3883 = vmatpush1.msra.mxu0 0.0
        %3884 = vmatprep.subr.mxu0 0.0
        %3885 = vmatpush1.msra.mxu0 0.0
        %3886 = vmatprep.subr.mxu0 0.0
        %3887 = vmatpush1.msra.mxu0 0.0
        %3888 = vmatprep.subr.mxu0 0.0
        %3889 = vmatpush1.msra.mxu0 0.0
        %3890 = vmatprep.subr.mxu0 0.0
        %3891 = vmatpush1.msra.mxu0 0.0
        %3892 = vmatprep.subr.mxu0 0.0
        %3893 = vmatpush1.msra.mxu0 0.0
        %3894 = vmatprep.mubr.f32.mxu0 0.0
        %3895 = vmatmul.mubr.f32.gmra.mrb[0].mxu0 %v3828
        %v3896 = vpop.f32.mrb[0].mxu0
        %v3897 = vadd.f32 %v3825, %v3896
        %v3898 = vpop.f32.mrb[0].mxu0
        %3899 = vdwg.mxu0
        %v3900 = vmax.f32 %v3897, 0.0
        %v3901 = vld [vmem:[%s2 + $0x1b0] sm:$0xff]
        %v3902 = vld [vmem:[%s2 + $0x1b8] sm:$0xff]
        %3904 = vset.pattern.permute.xlu0 0
        %3905 = vperm.xlu0 %3904, %v3902
        %v3906 = vpop.permute.xlu0 %3905
        %v3909 = vsel %vm614, %v3901, 0
        %3911 = vmatprep.subr.mxu0 0.0
        %3912 = vmatpush1.msra.mxu0 %v3900
        %3913 = vmatprep.subr.mxu0 0.0
        %3914 = vmatpush1.msra.mxu0 0.0
        %3915 = vmatprep.subr.mxu0 0.0
        %3916 = vmatpush1.msra.mxu0 0.0
        %3917 = vmatprep.subr.mxu0 0.0
        %3918 = vmatpush1.msra.mxu0 0.0
        %3919 = vmatprep.subr.mxu0 0.0
        %3920 = vmatpush1.msra.mxu0 0.0
        %3921 = vmatprep.subr.mxu0 0.0
        %3922 = vmatpush1.msra.mxu0 0.0
        %3923 = vmatprep.subr.mxu0 0.0
        %3924 = vmatpush1.msra.mxu0 0.0
        %3925 = vmatprep.subr.mxu0 0.0
        %3926 = vmatpush1.msra.mxu0 0.0
        %3927 = vmatprep.subr.mxu0 0.0
        %3928 = vmatpush1.msra.mxu0 0.0
        %3929 = vmatprep.subr.mxu0 0.0
        %3930 = vmatpush1.msra.mxu0 0.0
        %3931 = vmatprep.subr.mxu0 0.0
        %3932 = vmatpush1.msra.mxu0 0.0
        %3933 = vmatprep.subr.mxu0 0.0
        %3934 = vmatpush1.msra.mxu0 0.0
        %3935 = vmatprep.subr.mxu0 0.0
        %3936 = vmatpush1.msra.mxu0 0.0
        %3937 = vmatprep.subr.mxu0 0.0
        %3938 = vmatpush1.msra.mxu0 0.0
        %3939 = vmatprep.subr.mxu0 0.0
        %3940 = vmatpush1.msra.mxu0 0.0
        %3941 = vmatprep.subr.mxu0 0.0
        %3942 = vmatpush1.msra.mxu0 0.0
        %3943 = vmatprep.subr.mxu0 0.0
        %3944 = vmatpush1.msra.mxu0 0.0
        %3945 = vmatprep.subr.mxu0 0.0
        %3946 = vmatpush1.msra.mxu0 0.0
        %3947 = vmatprep.subr.mxu0 0.0
        %3948 = vmatpush1.msra.mxu0 0.0
        %3949 = vmatprep.subr.mxu0 0.0
        %3950 = vmatpush1.msra.mxu0 0.0
        %3951 = vmatprep.subr.mxu0 0.0
        %3952 = vmatpush1.msra.mxu0 0.0
        %3953 = vmatprep.subr.mxu0 0.0
        %3954 = vmatpush1.msra.mxu0 0.0
        %3955 = vmatprep.subr.mxu0 0.0
        %3956 = vmatpush1.msra.mxu0 0.0
        %3957 = vmatprep.subr.mxu0 0.0
        %3958 = vmatpush1.msra.mxu0 0.0
        %3959 = vmatprep.subr.mxu0 0.0
        %3960 = vmatpush1.msra.mxu0 0.0
        %3961 = vmatprep.subr.mxu0 0.0
        %3962 = vmatpush1.msra.mxu0 0.0
        %3963 = vmatprep.subr.mxu0 0.0
        %3964 = vmatpush1.msra.mxu0 0.0
        %3965 = vmatprep.subr.mxu0 0.0
        %3966 = vmatpush1.msra.mxu0 0.0
        %3967 = vmatprep.subr.mxu0 0.0
        %3968 = vmatpush1.msra.mxu0 0.0
        %3969 = vmatprep.subr.mxu0 0.0
        %3970 = vmatpush1.msra.mxu0 0.0
        %3971 = vmatprep.subr.mxu0 0.0
        %3972 = vmatpush1.msra.mxu0 0.0
        %3973 = vmatprep.subr.mxu0 0.0
        %3974 = vmatpush1.msra.mxu0 0.0
        %3975 = vmatprep.mubr.f32.mxu0 0.0
        %3976 = vmatmul.mubr.f32.gmra.mrb[0].mxu0 %v3909
        %v3977 = vpop.f32.mrb[0].mxu0
        %v3978 = vadd.f32 %v3906, %v3977
        %v3979 = vpop.f32.mrb[0].mxu0
        %3980 = vdwg.mxu0
        %v3981 = vmax.f32 %v3978, 0.0
        %v3982 = vld [vmem:[%s2 + $0x1c0] sm:$0xff]
        %v3983 = vld [vmem:[%s2 + $0x1c8] sm:$0xff]
        %v3984 = vsel %vm614, %v3981, 0.0
        %3985 = vadd.xlane.f32.xlu0 %v3984
        %v3986 = vpop.xlane.xlu0 %3985
        %v3987 = vmul.f32 %v3986, %v1832
        %v3988 = vsub.f32 %v3981, %v3987
        %v3989 = vmul.f32 %v3988, %v3988
        %v3990 = vsel %vm614, %v3989, 0.0
        %3991 = vadd.xlane.f32.xlu0 %v3990
        %v3992 = vpop.xlane.xlu0 %3991
        %v3993 = vmul.f32 %v3992, %v1832
        %v3994 = vadd.f32 %v3993, 1e-05
        %v3995 = vrsqrt.pop %v3994
        %v3996 = vmul.f32 %v3988, %v3995
        %3998 = vset.pattern.permute.xlu0 0
        %3999 = vperm.xlu0 %3998, %v3982
        %v4000 = vpop.permute.xlu0 %3999
        %v4002 = vmul.f32 %v3996, %v4000
        %4004 = vset.pattern.permute.xlu0 0
        %4005 = vperm.xlu0 %4004, %v3983
        %v4006 = vpop.permute.xlu0 %4005
        %v4008 = vadd.f32 %v4002, %v4006
        %v4009 = vadd.f32 %v3819, %v4008
        %v4010 = vld [vmem:[%s2 + $0x1d0] sm:$0xff]
        %v4011 = vld [vmem:[%s2 + $0x1d8] sm:$0xff]
        %4013 = vset.pattern.permute.xlu0 0
        %4014 = vperm.xlu0 %4013, %v4011
        %v4015 = vpop.permute.xlu0 %4014
        %v4018 = vsel %vm614, %v4010, 0
        %4020 = vmatprep.subr.mxu0 0.0
        %4021 = vmatpush1.msra.mxu0 %v4009
        %4022 = vmatprep.subr.mxu0 0.0
        %4023 = vmatpush1.msra.mxu0 0.0
        %4024 = vmatprep.subr.mxu0 0.0
        %4025 = vmatpush1.msra.mxu0 0.0
        %4026 = vmatprep.subr.mxu0 0.0
        %4027 = vmatpush1.msra.mxu0 0.0
        %4028 = vmatprep.subr.mxu0 0.0
        %4029 = vmatpush1.msra.mxu0 0.0
        %4030 = vmatprep.subr.mxu0 0.0
        %4031 = vmatpush1.msra.mxu0 0.0
        %4032 = vmatprep.subr.mxu0 0.0
        %4033 = vmatpush1.msra.mxu0 0.0
        %4034 = vmatprep.subr.mxu0 0.0
        %4035 = vmatpush1.msra.mxu0 0.0
        %4036 = vmatprep.subr.mxu0 0.0
        %4037 = vmatpush1.msra.mxu0 0.0
        %4038 = vmatprep.subr.mxu0 0.0
        %4039 = vmatpush1.msra.mxu0 0.0
        %4040 = vmatprep.subr.mxu0 0.0
        %4041 = vmatpush1.msra.mxu0 0.0
        %4042 = vmatprep.subr.mxu0 0.0
        %4043 = vmatpush1.msra.mxu0 0.0
        %4044 = vmatprep.subr.mxu0 0.0
        %4045 = vmatpush1.msra.mxu0 0.0
        %4046 = vmatprep.subr.mxu0 0.0
        %4047 = vmatpush1.msra.mxu0 0.0
        %4048 = vmatprep.subr.mxu0 0.0
        %4049 = vmatpush1.msra.mxu0 0.0
        %4050 = vmatprep.subr.mxu0 0.0
        %4051 = vmatpush1.msra.mxu0 0.0
        %4052 = vmatprep.subr.mxu0 0.0
        %4053 = vmatpush1.msra.mxu0 0.0
        %4054 = vmatprep.subr.mxu0 0.0
        %4055 = vmatpush1.msra.mxu0 0.0
        %4056 = vmatprep.subr.mxu0 0.0
        %4057 = vmatpush1.msra.mxu0 0.0
        %4058 = vmatprep.subr.mxu0 0.0
        %4059 = vmatpush1.msra.mxu0 0.0
        %4060 = vmatprep.subr.mxu0 0.0
        %4061 = vmatpush1.msra.mxu0 0.0
        %4062 = vmatprep.subr.mxu0 0.0
        %4063 = vmatpush1.msra.mxu0 0.0
        %4064 = vmatprep.subr.mxu0 0.0
        %4065 = vmatpush1.msra.mxu0 0.0
        %4066 = vmatprep.subr.mxu0 0.0
        %4067 = vmatpush1.msra.mxu0 0.0
        %4068 = vmatprep.subr.mxu0 0.0
        %4069 = vmatpush1.msra.mxu0 0.0
        %4070 = vmatprep.subr.mxu0 0.0
        %4071 = vmatpush1.msra.mxu0 0.0
        %4072 = vmatprep.subr.mxu0 0.0
        %4073 = vmatpush1.msra.mxu0 0.0
        %4074 = vmatprep.subr.mxu0 0.0
        %4075 = vmatpush1.msra.mxu0 0.0
        %4076 = vmatprep.subr.mxu0 0.0
        %4077 = vmatpush1.msra.mxu0 0.0
        %4078 = vmatprep.subr.mxu0 0.0
        %4079 = vmatpush1.msra.mxu0 0.0
        %4080 = vmatprep.subr.mxu0 0.0
        %4081 = vmatpush1.msra.mxu0 0.0
        %4082 = vmatprep.subr.mxu0 0.0
        %4083 = vmatpush1.msra.mxu0 0.0
        %4084 = vmatprep.mubr.f32.mxu0 0.0
        %4085 = vmatmul.mubr.f32.gmra.mrb[0].mxu0 %v4018
        %v4086 = vpop.f32.mrb[0].mxu0
        %v4087 = vadd.f32 %v4015, %v4086
        %v4088 = vpop.f32.mrb[0].mxu0
        %4089 = vdwg.mxu0
        %v4090 = vld [vmem:[%s2 + $0x1e0] sm:$0xff]
        %v4091 = vld [vmem:[%s2 + $0x1e8] sm:$0xff]
        %4093 = vset.pattern.permute.xlu0 0
        %4094 = vperm.xlu0 %4093, %v4091
        %v4095 = vpop.permute.xlu0 %4094
        %v4098 = vsel %vm614, %v4090, 0
        %4100 = vmatprep.subr.mxu0 0.0
        %4101 = vmatpush1.msra.mxu0 %v4087
        %4102 = vmatprep.subr.mxu0 0.0
        %4103 = vmatpush1.msra.mxu0 0.0
        %4104 = vmatprep.subr.mxu0 0.0
        %4105 = vmatpush1.msra.mxu0 0.0
        %4106 = vmatprep.subr.mxu0 0.0
        %4107 = vmatpush1.msra.mxu0 0.0
        %4108 = vmatprep.subr.mxu0 0.0
        %4109 = vmatpush1.msra.mxu0 0.0
        %4110 = vmatprep.subr.mxu0 0.0
        %4111 = vmatpush1.msra.mxu0 0.0
        %4112 = vmatprep.subr.mxu0 0.0
        %4113 = vmatpush1.msra.mxu0 0.0
        %4114 = vmatprep.subr.mxu0 0.0
        %4115 = vmatpush1.msra.mxu0 0.0
        %4116 = vmatprep.subr.mxu0 0.0
        %4117 = vmatpush1.msra.mxu0 0.0
        %4118 = vmatprep.subr.mxu0 0.0
        %4119 = vmatpush1.msra.mxu0 0.0
        %4120 = vmatprep.subr.mxu0 0.0
        %4121 = vmatpush1.msra.mxu0 0.0
        %4122 = vmatprep.subr.mxu0 0.0
        %4123 = vmatpush1.msra.mxu0 0.0
        %4124 = vmatprep.subr.mxu0 0.0
        %4125 = vmatpush1.msra.mxu0 0.0
        %4126 = vmatprep.subr.mxu0 0.0
        %4127 = vmatpush1.msra.mxu0 0.0
        %4128 = vmatprep.subr.mxu0 0.0
        %4129 = vmatpush1.msra.mxu0 0.0
        %4130 = vmatprep.subr.mxu0 0.0
        %4131 = vmatpush1.msra.mxu0 0.0
        %4132 = vmatprep.subr.mxu0 0.0
        %4133 = vmatpush1.msra.mxu0 0.0
        %4134 = vmatprep.subr.mxu0 0.0
        %4135 = vmatpush1.msra.mxu0 0.0
        %4136 = vmatprep.subr.mxu0 0.0
        %4137 = vmatpush1.msra.mxu0 0.0
        %4138 = vmatprep.subr.mxu0 0.0
        %4139 = vmatpush1.msra.mxu0 0.0
        %4140 = vmatprep.subr.mxu0 0.0
        %4141 = vmatpush1.msra.mxu0 0.0
        %4142 = vmatprep.subr.mxu0 0.0
        %4143 = vmatpush1.msra.mxu0 0.0
        %4144 = vmatprep.subr.mxu0 0.0
        %4145 = vmatpush1.msra.mxu0 0.0
        %4146 = vmatprep.subr.mxu0 0.0
        %4147 = vmatpush1.msra.mxu0 0.0
        %4148 = vmatprep.subr.mxu0 0.0
        %4149 = vmatpush1.msra.mxu0 0.0
        %4150 = vmatprep.subr.mxu0 0.0
        %4151 = vmatpush1.msra.mxu0 0.0
        %4152 = vmatprep.subr.mxu0 0.0
        %4153 = vmatpush1.msra.mxu0 0.0
        %4154 = vmatprep.subr.mxu0 0.0
        %4155 = vmatpush1.msra.mxu0 0.0
        %4156 = vmatprep.subr.mxu0 0.0
        %4157 = vmatpush1.msra.mxu0 0.0
        %4158 = vmatprep.subr.mxu0 0.0
        %4159 = vmatpush1.msra.mxu0 0.0
        %4160 = vmatprep.subr.mxu0 0.0
        %4161 = vmatpush1.msra.mxu0 0.0
        %4162 = vmatprep.subr.mxu0 0.0
        %4163 = vmatpush1.msra.mxu0 0.0
        %4164 = vmatprep.mubr.f32.mxu0 0.0
        %4165 = vmatmul.mubr.f32.gmra.mrb[0].mxu0 %v4098
        %v4166 = vpop.f32.mrb[0].mxu0
        %v4167 = vadd.f32 %v4095, %v4166
        %v4168 = vpop.f32.mrb[0].mxu0
        %4169 = vdwg.mxu0
        %v4170 = vld [vmem:[%s2 + $0x1f0] sm:$0xff]
        %v4171 = vld [vmem:[%s2 + $0x1f8] sm:$0xff]
        %v4172 = vld [vmem:[%s2 + $0x200] sm:$0xff]
        %v4174 = vsel %vm614, %v4170, 0
        %v4177 = vsel %vm614, %v4171, 0
        %v4180 = vsel %vm614, %v4172, 0
        %4182 = vmatprep.subr.mxu0 0.0
        %4183 = vmatpush1.msra.mxu0 %v4167
        %4184 = vmatprep.subr.mxu0 0.0
        %4185 = vmatpush1.msra.mxu0 0.0
        %4186 = vmatprep.subr.mxu0 0.0
        %4187 = vmatpush1.msra.mxu0 0.0
        %4188 = vmatprep.subr.mxu0 0.0
        %4189 = vmatpush1.msra.mxu0 0.0
        %4190 = vmatprep.subr.mxu0 0.0
        %4191 = vmatpush1.msra.mxu0 0.0
        %4192 = vmatprep.subr.mxu0 0.0
        %4193 = vmatpush1.msra.mxu0 0.0
        %4194 = vmatprep.subr.mxu0 0.0
        %4195 = vmatpush1.msra.mxu0 0.0
        %4196 = vmatprep.subr.mxu0 0.0
        %4197 = vmatpush1.msra.mxu0 0.0
        %4198 = vmatprep.subr.mxu0 0.0
        %4199 = vmatpush1.msra.mxu0 0.0
        %4200 = vmatprep.subr.mxu0 0.0
        %4201 = vmatpush1.msra.mxu0 0.0
        %4202 = vmatprep.subr.mxu0 0.0
        %4203 = vmatpush1.msra.mxu0 0.0
        %4204 = vmatprep.subr.mxu0 0.0
        %4205 = vmatpush1.msra.mxu0 0.0
        %4206 = vmatprep.subr.mxu0 0.0
        %4207 = vmatpush1.msra.mxu0 0.0
        %4208 = vmatprep.subr.mxu0 0.0
        %4209 = vmatpush1.msra.mxu0 0.0
        %4210 = vmatprep.subr.mxu0 0.0
        %4211 = vmatpush1.msra.mxu0 0.0
        %4212 = vmatprep.subr.mxu0 0.0
        %4213 = vmatpush1.msra.mxu0 0.0
        %4214 = vmatprep.subr.mxu0 0.0
        %4215 = vmatpush1.msra.mxu0 0.0
        %4216 = vmatprep.subr.mxu0 0.0
        %4217 = vmatpush1.msra.mxu0 0.0
        %4218 = vmatprep.subr.mxu0 0.0
        %4219 = vmatpush1.msra.mxu0 0.0
        %4220 = vmatprep.subr.mxu0 0.0
        %4221 = vmatpush1.msra.mxu0 0.0
        %4222 = vmatprep.subr.mxu0 0.0
        %4223 = vmatpush1.msra.mxu0 0.0
        %4224 = vmatprep.subr.mxu0 0.0
        %4225 = vmatpush1.msra.mxu0 0.0
        %4226 = vmatprep.subr.mxu0 0.0
        %4227 = vmatpush1.msra.mxu0 0.0
        %4228 = vmatprep.subr.mxu0 0.0
        %4229 = vmatpush1.msra.mxu0 0.0
        %4230 = vmatprep.subr.mxu0 0.0
        %4231 = vmatpush1.msra.mxu0 0.0
        %4232 = vmatprep.subr.mxu0 0.0
        %4233 = vmatpush1.msra.mxu0 0.0
        %4234 = vmatprep.subr.mxu0 0.0
        %4235 = vmatpush1.msra.mxu0 0.0
        %4236 = vmatprep.subr.mxu0 0.0
        %4237 = vmatpush1.msra.mxu0 0.0
        %4238 = vmatprep.subr.mxu0 0.0
        %4239 = vmatpush1.msra.mxu0 0.0
        %4240 = vmatprep.subr.mxu0 0.0
        %4241 = vmatpush1.msra.mxu0 0.0
        %4242 = vmatprep.subr.mxu0 0.0
        %4243 = vmatpush1.msra.mxu0 0.0
        %4244 = vmatprep.subr.mxu0 0.0
        %4245 = vmatpush1.msra.mxu0 0.0
        %4246 = vmatprep.mubr.f32.mxu0 0.0
        %4247 = vmatmul.mubr.f32.gmra.mrb[0].mxu0 %v4174
        %v4248 = vpop.f32.mrb[0].mxu0
        %v4249 = vadd.f32 0.0, %v4248
        %v4250 = vpop.f32.mrb[0].mxu0
        %4251 = vmatprep.mubr.f32.mxu0 0.0
        %4252 = vmatmul.mubr.f32.gmra.mrb[0].mxu0 %v4177
        %v4253 = vpop.f32.mrb[0].mxu0
        %v4254 = vadd.f32 0.0, %v4253
        %v4255 = vpop.f32.mrb[0].mxu0
        %4256 = vmatprep.mubr.f32.mxu0 0.0
        %4257 = vmatmul.mubr.f32.gmra.mrb[0].mxu0 %v4180
        %v4258 = vpop.f32.mrb[0].mxu0
        %v4259 = vadd.f32 0.0, %v4258
        %v4260 = vpop.f32.mrb[0].mxu0
        %4261 = vdwg.mxu0
        %v4262 = vld [vmem:[%s3 + $0xd0] sm:$0xff]
        %v4263 = vld [vmem:[%s3 + $0xd8] sm:$0xff]
        %v4265 = vsel %vm614, %v4254, 0
        %4267 = vmatprep.subr.mxu0 0.0
        %4268 = vmatpush1.msra.mxu0 %v4263
        %4269 = vmatprep.subr.mxu0 0.0
        %4270 = vmatpush1.msra.mxu0 0.0
        %4271 = vmatprep.subr.mxu0 0.0
        %4272 = vmatpush1.msra.mxu0 0.0
        %4273 = vmatprep.subr.mxu0 0.0
        %4274 = vmatpush1.msra.mxu0 0.0
        %4275 = vmatprep.subr.mxu0 0.0
        %4276 = vmatpush1.msra.mxu0 0.0
        %4277 = vmatprep.subr.mxu0 0.0
        %4278 = vmatpush1.msra.mxu0 0.0
        %4279 = vmatprep.subr.mxu0 0.0
        %4280 = vmatpush1.msra.mxu0 0.0
        %4281 = vmatprep.subr.mxu0 0.0
        %4282 = vmatpush1.msra.mxu0 0.0
        %4283 = vmatprep.subr.mxu0 0.0
        %4284 = vmatpush1.msra.mxu0 0.0
        %4285 = vmatprep.subr.mxu0 0.0
        %4286 = vmatpush1.msra.mxu0 0.0
        %4287 = vmatprep.subr.mxu0 0.0
        %4288 = vmatpush1.msra.mxu0 0.0
        %4289 = vmatprep.subr.mxu0 0.0
        %4290 = vmatpush1.msra.mxu0 0.0
        %4291 = vmatprep.subr.mxu0 0.0
        %4292 = vmatpush1.msra.mxu0 0.0
        %4293 = vmatprep.subr.mxu0 0.0
        %4294 = vmatpush1.msra.mxu0 0.0
        %4295 = vmatprep.subr.mxu0 0.0
        %4296 = vmatpush1.msra.mxu0 0.0
        %4297 = vmatprep.subr.mxu0 0.0
        %4298 = vmatpush1.msra.mxu0 0.0
        %4299 = vmatprep.subr.mxu0 0.0
        %4300 = vmatpush1.msra.mxu0 0.0
        %4301 = vmatprep.subr.mxu0 0.0
        %4302 = vmatpush1.msra.mxu0 0.0
        %4303 = vmatprep.subr.mxu0 0.0
        %4304 = vmatpush1.msra.mxu0 0.0
        %4305 = vmatprep.subr.mxu0 0.0
        %4306 = vmatpush1.msra.mxu0 0.0
        %4307 = vmatprep.subr.mxu0 0.0
        %4308 = vmatpush1.msra.mxu0 0.0
        %4309 = vmatprep.subr.mxu0 0.0
        %4310 = vmatpush1.msra.mxu0 0.0
        %4311 = vmatprep.subr.mxu0 0.0
        %4312 = vmatpush1.msra.mxu0 0.0
        %4313 = vmatprep.subr.mxu0 0.0
        %4314 = vmatpush1.msra.mxu0 0.0
        %4315 = vmatprep.subr.mxu0 0.0
        %4316 = vmatpush1.msra.mxu0 0.0
        %4317 = vmatprep.subr.mxu0 0.0
        %4318 = vmatpush1.msra.mxu0 0.0
        %4319 = vmatprep.subr.mxu0 0.0
        %4320 = vmatpush1.msra.mxu0 0.0
        %4321 = vmatprep.subr.mxu0 0.0
        %4322 = vmatpush1.msra.mxu0 0.0
        %4323 = vmatprep.subr.mxu0 0.0
        %4324 = vmatpush1.msra.mxu0 0.0
        %4325 = vmatprep.subr.mxu0 0.0
        %4326 = vmatpush1.msra.mxu0 0.0
        %4327 = vmatprep.subr.mxu0 0.0
        %4328 = vmatpush1.msra.mxu0 0.0
        %4329 = vmatprep.subr.mxu0 0.0
        %4330 = vmatpush1.msra.mxu0 0.0
        %4331 = vmatprep.mubr.f32.mxu0 0.0
        %4332 = vmatmul.mubr.f32.gmra.mrb[0].mxu0 %v4265
        %v4333 = vpop.f32.mrb[0].mxu0
        %v4334 = vadd.f32 0.0, %v4333
        %v4335 = vpop.f32.mrb[0].mxu0
        %4336 = vdwg.mxu0
        %v4338 = vsel %vm614, %v4249, 0
        %4340 = vmatprep.subr.mxu0 0.0
        %4341 = vmatpush1.msra.mxu0 %v4262
        %4342 = vmatprep.subr.mxu0 0.0
        %4343 = vmatpush1.msra.mxu0 0.0
        %4344 = vmatprep.subr.mxu0 0.0
        %4345 = vmatpush1.msra.mxu0 0.0
        %4346 = vmatprep.subr.mxu0 0.0
        %4347 = vmatpush1.msra.mxu0 0.0
        %4348 = vmatprep.subr.mxu0 0.0
        %4349 = vmatpush1.msra.mxu0 0.0
        %4350 = vmatprep.subr.mxu0 0.0
        %4351 = vmatpush1.msra.mxu0 0.0
        %4352 = vmatprep.subr.mxu0 0.0
        %4353 = vmatpush1.msra.mxu0 0.0
        %4354 = vmatprep.subr.mxu0 0.0
        %4355 = vmatpush1.msra.mxu0 0.0
        %4356 = vmatprep.subr.mxu0 0.0
        %4357 = vmatpush1.msra.mxu0 0.0
        %4358 = vmatprep.subr.mxu0 0.0
        %4359 = vmatpush1.msra.mxu0 0.0
        %4360 = vmatprep.subr.mxu0 0.0
        %4361 = vmatpush1.msra.mxu0 0.0
        %4362 = vmatprep.subr.mxu0 0.0
        %4363 = vmatpush1.msra.mxu0 0.0
        %4364 = vmatprep.subr.mxu0 0.0
        %4365 = vmatpush1.msra.mxu0 0.0
        %4366 = vmatprep.subr.mxu0 0.0
        %4367 = vmatpush1.msra.mxu0 0.0
        %4368 = vmatprep.subr.mxu0 0.0
        %4369 = vmatpush1.msra.mxu0 0.0
        %4370 = vmatprep.subr.mxu0 0.0
        %4371 = vmatpush1.msra.mxu0 0.0
        %4372 = vmatprep.subr.mxu0 0.0
        %4373 = vmatpush1.msra.mxu0 0.0
        %4374 = vmatprep.subr.mxu0 0.0
        %4375 = vmatpush1.msra.mxu0 0.0
        %4376 = vmatprep.subr.mxu0 0.0
        %4377 = vmatpush1.msra.mxu0 0.0
        %4378 = vmatprep.subr.mxu0 0.0
        %4379 = vmatpush1.msra.mxu0 0.0
        %4380 = vmatprep.subr.mxu0 0.0
        %4381 = vmatpush1.msra.mxu0 0.0
        %4382 = vmatprep.subr.mxu0 0.0
        %4383 = vmatpush1.msra.mxu0 0.0
        %4384 = vmatprep.subr.mxu0 0.0
        %4385 = vmatpush1.msra.mxu0 0.0
        %4386 = vmatprep.subr.mxu0 0.0
        %4387 = vmatpush1.msra.mxu0 0.0
        %4388 = vmatprep.subr.mxu0 0.0
        %4389 = vmatpush1.msra.mxu0 0.0
        %4390 = vmatprep.subr.mxu0 0.0
        %4391 = vmatpush1.msra.mxu0 0.0
        %4392 = vmatprep.subr.mxu0 0.0
        %4393 = vmatpush1.msra.mxu0 0.0
        %4394 = vmatprep.subr.mxu0 0.0
        %4395 = vmatpush1.msra.mxu0 0.0
        %4396 = vmatprep.subr.mxu0 0.0
        %4397 = vmatpush1.msra.mxu0 0.0
        %4398 = vmatprep.subr.mxu0 0.0
        %4399 = vmatpush1.msra.mxu0 0.0
        %4400 = vmatprep.subr.mxu0 0.0
        %4401 = vmatpush1.msra.mxu0 0.0
        %4402 = vmatprep.subr.mxu0 0.0
        %4403 = vmatpush1.msra.mxu0 0.0
        %4404 = vmatprep.mubr.f32.mxu0 0.0
        %4405 = vmatmul.mubr.f32.gmra.mrb[0].mxu0 %v4338
        %v4406 = vpop.f32.mrb[0].mxu0
        %v4407 = vadd.f32 %v4334, %v4406
        %v4408 = vpop.f32.mrb[0].mxu0
        %4409 = vdwg.mxu0
        %v4410 = vld [vmem:[%s3 + $0xe0] sm:$0xff]
        %v4412 = vsel %vm614, %v4259, 0
        %4414 = vmatprep.subr.mxu0 0.0
        %4415 = vmatpush1.msra.mxu0 %v4410
        %4416 = vmatprep.subr.mxu0 0.0
        %4417 = vmatpush1.msra.mxu0 0.0
        %4418 = vmatprep.subr.mxu0 0.0
        %4419 = vmatpush1.msra.mxu0 0.0
        %4420 = vmatprep.subr.mxu0 0.0
        %4421 = vmatpush1.msra.mxu0 0.0
        %4422 = vmatprep.subr.mxu0 0.0
        %4423 = vmatpush1.msra.mxu0 0.0
        %4424 = vmatprep.subr.mxu0 0.0
        %4425 = vmatpush1.msra.mxu0 0.0
        %4426 = vmatprep.subr.mxu0 0.0
        %4427 = vmatpush1.msra.mxu0 0.0
        %4428 = vmatprep.subr.mxu0 0.0
        %4429 = vmatpush1.msra.mxu0 0.0
        %4430 = vmatprep.subr.mxu0 0.0
        %4431 = vmatpush1.msra.mxu0 0.0
        %4432 = vmatprep.subr.mxu0 0.0
        %4433 = vmatpush1.msra.mxu0 0.0
        %4434 = vmatprep.subr.mxu0 0.0
        %4435 = vmatpush1.msra.mxu0 0.0
        %4436 = vmatprep.subr.mxu0 0.0
        %4437 = vmatpush1.msra.mxu0 0.0
        %4438 = vmatprep.subr.mxu0 0.0
        %4439 = vmatpush1.msra.mxu0 0.0
        %4440 = vmatprep.subr.mxu0 0.0
        %4441 = vmatpush1.msra.mxu0 0.0
        %4442 = vmatprep.subr.mxu0 0.0
        %4443 = vmatpush1.msra.mxu0 0.0
        %4444 = vmatprep.subr.mxu0 0.0
        %4445 = vmatpush1.msra.mxu0 0.0
        %4446 = vmatprep.subr.mxu0 0.0
        %4447 = vmatpush1.msra.mxu0 0.0
        %4448 = vmatprep.subr.mxu0 0.0
        %4449 = vmatpush1.msra.mxu0 0.0
        %4450 = vmatprep.subr.mxu0 0.0
        %4451 = vmatpush1.msra.mxu0 0.0
        %4452 = vmatprep.subr.mxu0 0.0
        %4453 = vmatpush1.msra.mxu0 0.0
        %4454 = vmatprep.subr.mxu0 0.0
        %4455 = vmatpush1.msra.mxu0 0.0
        %4456 = vmatprep.subr.mxu0 0.0
        %4457 = vmatpush1.msra.mxu0 0.0
        %4458 = vmatprep.subr.mxu0 0.0
        %4459 = vmatpush1.msra.mxu0 0.0
        %4460 = vmatprep.subr.mxu0 0.0
        %4461 = vmatpush1.msra.mxu0 0.0
        %4462 = vmatprep.subr.mxu0 0.0
        %4463 = vmatpush1.msra.mxu0 0.0
        %4464 = vmatprep.subr.mxu0 0.0
        %4465 = vmatpush1.msra.mxu0 0.0
        %4466 = vmatprep.subr.mxu0 0.0
        %4467 = vmatpush1.msra.mxu0 0.0
        %4468 = vmatprep.subr.mxu0 0.0
        %4469 = vmatpush1.msra.mxu0 0.0
        %4470 = vmatprep.subr.mxu0 0.0
        %4471 = vmatpush1.msra.mxu0 0.0
        %4472 = vmatprep.subr.mxu0 0.0
        %4473 = vmatpush1.msra.mxu0 0.0
        %4474 = vmatprep.subr.mxu0 0.0
        %4475 = vmatpush1.msra.mxu0 0.0
        %4476 = vmatprep.subr.mxu0 0.0
        %4477 = vmatpush1.msra.mxu0 0.0
        %4478 = vmatprep.mubr.f32.mxu0 0.0
        %4479 = vmatmul.mubr.f32.gmra.mrb[0].mxu0 %v4412
        %v4480 = vpop.f32.mrb[0].mxu0
        %v4481 = vadd.f32 0.0, %v4480
        %v4482 = vpop.f32.mrb[0].mxu0
        %4483 = vdwg.mxu0
        %v4484 = vadd.f32 %v4407, %v4481
        %v4485 = vld [vmem:[%s2 + $0x208] sm:$0xff]
        %v4487 = vsel %vm614, %v4485, 0
        %4489 = vmatprep.subr.mxu0 0.0
        %4490 = vmatpush1.msra.mxu0 %v2204
        %4491 = vmatprep.subr.mxu0 0.0
        %4492 = vmatpush1.msra.mxu0 0.0
        %4493 = vmatprep.subr.mxu0 0.0
        %4494 = vmatpush1.msra.mxu0 0.0
        %4495 = vmatprep.subr.mxu0 0.0
        %4496 = vmatpush1.msra.mxu0 0.0
        %4497 = vmatprep.subr.mxu0 0.0
        %4498 = vmatpush1.msra.mxu0 0.0
        %4499 = vmatprep.subr.mxu0 0.0
        %4500 = vmatpush1.msra.mxu0 0.0
        %4501 = vmatprep.subr.mxu0 0.0
        %4502 = vmatpush1.msra.mxu0 0.0
        %4503 = vmatprep.subr.mxu0 0.0
        %4504 = vmatpush1.msra.mxu0 0.0
        %4505 = vmatprep.subr.mxu0 0.0
        %4506 = vmatpush1.msra.mxu0 0.0
        %4507 = vmatprep.subr.mxu0 0.0
        %4508 = vmatpush1.msra.mxu0 0.0
        %4509 = vmatprep.subr.mxu0 0.0
        %4510 = vmatpush1.msra.mxu0 0.0
        %4511 = vmatprep.subr.mxu0 0.0
        %4512 = vmatpush1.msra.mxu0 0.0
        %4513 = vmatprep.subr.mxu0 0.0
        %4514 = vmatpush1.msra.mxu0 0.0
        %4515 = vmatprep.subr.mxu0 0.0
        %4516 = vmatpush1.msra.mxu0 0.0
        %4517 = vmatprep.subr.mxu0 0.0
        %4518 = vmatpush1.msra.mxu0 0.0
        %4519 = vmatprep.subr.mxu0 0.0
        %4520 = vmatpush1.msra.mxu0 0.0
        %4521 = vmatprep.subr.mxu0 0.0
        %4522 = vmatpush1.msra.mxu0 0.0
        %4523 = vmatprep.subr.mxu0 0.0
        %4524 = vmatpush1.msra.mxu0 0.0
        %4525 = vmatprep.subr.mxu0 0.0
        %4526 = vmatpush1.msra.mxu0 0.0
        %4527 = vmatprep.subr.mxu0 0.0
        %4528 = vmatpush1.msra.mxu0 0.0
        %4529 = vmatprep.subr.mxu0 0.0
        %4530 = vmatpush1.msra.mxu0 0.0
        %4531 = vmatprep.subr.mxu0 0.0
        %4532 = vmatpush1.msra.mxu0 0.0
        %4533 = vmatprep.subr.mxu0 0.0
        %4534 = vmatpush1.msra.mxu0 0.0
        %4535 = vmatprep.subr.mxu0 0.0
        %4536 = vmatpush1.msra.mxu0 0.0
        %4537 = vmatprep.subr.mxu0 0.0
        %4538 = vmatpush1.msra.mxu0 0.0
        %4539 = vmatprep.subr.mxu0 0.0
        %4540 = vmatpush1.msra.mxu0 0.0
        %4541 = vmatprep.subr.mxu0 0.0
        %4542 = vmatpush1.msra.mxu0 0.0
        %4543 = vmatprep.subr.mxu0 0.0
        %4544 = vmatpush1.msra.mxu0 0.0
        %4545 = vmatprep.subr.mxu0 0.0
        %4546 = vmatpush1.msra.mxu0 0.0
        %4547 = vmatprep.subr.mxu0 0.0
        %4548 = vmatpush1.msra.mxu0 0.0
        %4549 = vmatprep.subr.mxu0 0.0
        %4550 = vmatpush1.msra.mxu0 0.0
        %4551 = vmatprep.subr.mxu0 0.0
        %4552 = vmatpush1.msra.mxu0 0.0
        %4553 = vmatprep.mubr.f32.mxu0 0.0
        %4554 = vmatmul.mubr.f32.gmra.mrb[0].mxu0 %v4487
        %v4555 = vpop.f32.mrb[0].mxu0
        %v4556 = vadd.f32 0.0, %v4555
        %v4557 = vpop.f32.mrb[0].mxu0
        %4558 = vdwg.mxu0
        %4560 = vset.pattern.permute.xlu0 0
        %4561 = vperm.xlu0 %4560, %v4556
        %v4562 = vpop.permute.xlu0 %4561
        %v4564 = vadd.f32 %v4484, %v4562
        %v4565 = vld [vmem:[%s2 + $0x210] sm:$0xff]
        %4567 = vset.pattern.permute.xlu0 0
        %4568 = vperm.xlu0 %4567, %v4565
        %v4569 = vpop.permute.xlu0 %4568
        %v4571 = vadd.f32 %v4564, %v4569
        %v4572 = vmax.f32 %v4571, 0.0
        %v4573 = vld [vmem:[%s2 + $0x218] sm:$0xff]
        %v4574 = vld [vmem:[%s2 + $0x220] sm:$0xff]
        %v4575 = vld [vmem:[%s2 + $0x228] sm:$0xff]
        %v4577 = vsel %vm614, %v4573, 0
        %v4580 = vsel %vm614, %v4574, 0
        %v4583 = vsel %vm614, %v4575, 0
        %4585 = vmatprep.subr.mxu0 0.0
        %4586 = vmatpush1.msra.mxu0 %v4572
        %4587 = vmatprep.subr.mxu0 0.0
        %4588 = vmatpush1.msra.mxu0 0.0
        %4589 = vmatprep.subr.mxu0 0.0
        %4590 = vmatpush1.msra.mxu0 0.0
        %4591 = vmatprep.subr.mxu0 0.0
        %4592 = vmatpush1.msra.mxu0 0.0
        %4593 = vmatprep.subr.mxu0 0.0
        %4594 = vmatpush1.msra.mxu0 0.0
        %4595 = vmatprep.subr.mxu0 0.0
        %4596 = vmatpush1.msra.mxu0 0.0
        %4597 = vmatprep.subr.mxu0 0.0
        %4598 = vmatpush1.msra.mxu0 0.0
        %4599 = vmatprep.subr.mxu0 0.0
        %4600 = vmatpush1.msra.mxu0 0.0
        %4601 = vmatprep.subr.mxu0 0.0
        %4602 = vmatpush1.msra.mxu0 0.0
        %4603 = vmatprep.subr.mxu0 0.0
        %4604 = vmatpush1.msra.mxu0 0.0
        %4605 = vmatprep.subr.mxu0 0.0
        %4606 = vmatpush1.msra.mxu0 0.0
        %4607 = vmatprep.subr.mxu0 0.0
        %4608 = vmatpush1.msra.mxu0 0.0
        %4609 = vmatprep.subr.mxu0 0.0
        %4610 = vmatpush1.msra.mxu0 0.0
        %4611 = vmatprep.subr.mxu0 0.0
        %4612 = vmatpush1.msra.mxu0 0.0
        %4613 = vmatprep.subr.mxu0 0.0
        %4614 = vmatpush1.msra.mxu0 0.0
        %4615 = vmatprep.subr.mxu0 0.0
        %4616 = vmatpush1.msra.mxu0 0.0
        %4617 = vmatprep.subr.mxu0 0.0
        %4618 = vmatpush1.msra.mxu0 0.0
        %4619 = vmatprep.subr.mxu0 0.0
        %4620 = vmatpush1.msra.mxu0 0.0
        %4621 = vmatprep.subr.mxu0 0.0
        %4622 = vmatpush1.msra.mxu0 0.0
        %4623 = vmatprep.subr.mxu0 0.0
        %4624 = vmatpush1.msra.mxu0 0.0
        %4625 = vmatprep.subr.mxu0 0.0
        %4626 = vmatpush1.msra.mxu0 0.0
        %4627 = vmatprep.subr.mxu0 0.0
        %4628 = vmatpush1.msra.mxu0 0.0
        %4629 = vmatprep.subr.mxu0 0.0
        %4630 = vmatpush1.msra.mxu0 0.0
        %4631 = vmatprep.subr.mxu0 0.0
        %4632 = vmatpush1.msra.mxu0 0.0
        %4633 = vmatprep.subr.mxu0 0.0
        %4634 = vmatpush1.msra.mxu0 0.0
        %4635 = vmatprep.subr.mxu0 0.0
        %4636 = vmatpush1.msra.mxu0 0.0
        %4637 = vmatprep.subr.mxu0 0.0
        %4638 = vmatpush1.msra.mxu0 0.0
        %4639 = vmatprep.subr.mxu0 0.0
        %4640 = vmatpush1.msra.mxu0 0.0
        %4641 = vmatprep.subr.mxu0 0.0
        %4642 = vmatpush1.msra.mxu0 0.0
        %4643 = vmatprep.subr.mxu0 0.0
        %4644 = vmatpush1.msra.mxu0 0.0
        %4645 = vmatprep.subr.mxu0 0.0
        %4646 = vmatpush1.msra.mxu0 0.0
        %4647 = vmatprep.subr.mxu0 0.0
        %4648 = vmatpush1.msra.mxu0 0.0
        %4649 = vmatprep.mubr.f32.mxu0 0.0
        %4650 = vmatmul.mubr.f32.gmra.mrb[0].mxu0 %v4577
        %v4651 = vpop.f32.mrb[0].mxu0
        %v4652 = vadd.f32 0.0, %v4651
        %v4653 = vpop.f32.mrb[0].mxu0
        %4654 = vmatprep.mubr.f32.mxu0 0.0
        %4655 = vmatmul.mubr.f32.gmra.mrb[0].mxu0 %v4580
        %v4656 = vpop.f32.mrb[0].mxu0
        %v4657 = vadd.f32 0.0, %v4656
        %v4658 = vpop.f32.mrb[0].mxu0
        %4659 = vmatprep.mubr.f32.mxu0 0.0
        %4660 = vmatmul.mubr.f32.gmra.mrb[0].mxu0 %v4583
        %v4661 = vpop.f32.mrb[0].mxu0
        %v4662 = vadd.f32 0.0, %v4661
        %v4663 = vpop.f32.mrb[0].mxu0
        %4664 = vdwg.mxu0
        %v4666 = vsel %vm614, %v4657, 0
        %4668 = vmatprep.subr.mxu0 0.0
        %4669 = vmatpush1.msra.mxu0 %v4263
        %4670 = vmatprep.subr.mxu0 0.0
        %4671 = vmatpush1.msra.mxu0 0.0
        %4672 = vmatprep.subr.mxu0 0.0
        %4673 = vmatpush1.msra.mxu0 0.0
        %4674 = vmatprep.subr.mxu0 0.0
        %4675 = vmatpush1.msra.mxu0 0.0
        %4676 = vmatprep.subr.mxu0 0.0
        %4677 = vmatpush1.msra.mxu0 0.0
        %4678 = vmatprep.subr.mxu0 0.0
        %4679 = vmatpush1.msra.mxu0 0.0
        %4680 = vmatprep.subr.mxu0 0.0
        %4681 = vmatpush1.msra.mxu0 0.0
        %4682 = vmatprep.subr.mxu0 0.0
        %4683 = vmatpush1.msra.mxu0 0.0
        %4684 = vmatprep.subr.mxu0 0.0
        %4685 = vmatpush1.msra.mxu0 0.0
        %4686 = vmatprep.subr.mxu0 0.0
        %4687 = vmatpush1.msra.mxu0 0.0
        %4688 = vmatprep.subr.mxu0 0.0
        %4689 = vmatpush1.msra.mxu0 0.0
        %4690 = vmatprep.subr.mxu0 0.0
        %4691 = vmatpush1.msra.mxu0 0.0
        %4692 = vmatprep.subr.mxu0 0.0
        %4693 = vmatpush1.msra.mxu0 0.0
        %4694 = vmatprep.subr.mxu0 0.0
        %4695 = vmatpush1.msra.mxu0 0.0
        %4696 = vmatprep.subr.mxu0 0.0
        %4697 = vmatpush1.msra.mxu0 0.0
        %4698 = vmatprep.subr.mxu0 0.0
        %4699 = vmatpush1.msra.mxu0 0.0
        %4700 = vmatprep.subr.mxu0 0.0
        %4701 = vmatpush1.msra.mxu0 0.0
        %4702 = vmatprep.subr.mxu0 0.0
        %4703 = vmatpush1.msra.mxu0 0.0
        %4704 = vmatprep.subr.mxu0 0.0
        %4705 = vmatpush1.msra.mxu0 0.0
        %4706 = vmatprep.subr.mxu0 0.0
        %4707 = vmatpush1.msra.mxu0 0.0
        %4708 = vmatprep.subr.mxu0 0.0
        %4709 = vmatpush1.msra.mxu0 0.0
        %4710 = vmatprep.subr.mxu0 0.0
        %4711 = vmatpush1.msra.mxu0 0.0
        %4712 = vmatprep.subr.mxu0 0.0
        %4713 = vmatpush1.msra.mxu0 0.0
        %4714 = vmatprep.subr.mxu0 0.0
        %4715 = vmatpush1.msra.mxu0 0.0
        %4716 = vmatprep.subr.mxu0 0.0
        %4717 = vmatpush1.msra.mxu0 0.0
        %4718 = vmatprep.subr.mxu0 0.0
        %4719 = vmatpush1.msra.mxu0 0.0
        %4720 = vmatprep.subr.mxu0 0.0
        %4721 = vmatpush1.msra.mxu0 0.0
        %4722 = vmatprep.subr.mxu0 0.0
        %4723 = vmatpush1.msra.mxu0 0.0
        %4724 = vmatprep.subr.mxu0 0.0
        %4725 = vmatpush1.msra.mxu0 0.0
        %4726 = vmatprep.subr.mxu0 0.0
        %4727 = vmatpush1.msra.mxu0 0.0
        %4728 = vmatprep.subr.mxu0 0.0
        %4729 = vmatpush1.msra.mxu0 0.0
        %4730 = vmatprep.subr.mxu0 0.0
        %4731 = vmatpush1.msra.mxu0 0.0
        %4732 = vmatprep.mubr.f32.mxu0 0.0
        %4733 = vmatmul.mubr.f32.gmra.mrb[0].mxu0 %v4666
        %v4734 = vpop.f32.mrb[0].mxu0
        %v4735 = vadd.f32 0.0, %v4734
        %v4736 = vpop.f32.mrb[0].mxu0
        %4737 = vdwg.mxu0
        %v4739 = vsel %vm614, %v4652, 0
        %4741 = vmatprep.subr.mxu0 0.0
        %4742 = vmatpush1.msra.mxu0 %v4262
        %4743 = vmatprep.subr.mxu0 0.0
        %4744 = vmatpush1.msra.mxu0 0.0
        %4745 = vmatprep.subr.mxu0 0.0
        %4746 = vmatpush1.msra.mxu0 0.0
        %4747 = vmatprep.subr.mxu0 0.0
        %4748 = vmatpush1.msra.mxu0 0.0
        %4749 = vmatprep.subr.mxu0 0.0
        %4750 = vmatpush1.msra.mxu0 0.0
        %4751 = vmatprep.subr.mxu0 0.0
        %4752 = vmatpush1.msra.mxu0 0.0
        %4753 = vmatprep.subr.mxu0 0.0
        %4754 = vmatpush1.msra.mxu0 0.0
        %4755 = vmatprep.subr.mxu0 0.0
        %4756 = vmatpush1.msra.mxu0 0.0
        %4757 = vmatprep.subr.mxu0 0.0
        %4758 = vmatpush1.msra.mxu0 0.0
        %4759 = vmatprep.subr.mxu0 0.0
        %4760 = vmatpush1.msra.mxu0 0.0
        %4761 = vmatprep.subr.mxu0 0.0
        %4762 = vmatpush1.msra.mxu0 0.0
        %4763 = vmatprep.subr.mxu0 0.0
        %4764 = vmatpush1.msra.mxu0 0.0
        %4765 = vmatprep.subr.mxu0 0.0
        %4766 = vmatpush1.msra.mxu0 0.0
        %4767 = vmatprep.subr.mxu0 0.0
        %4768 = vmatpush1.msra.mxu0 0.0
        %4769 = vmatprep.subr.mxu0 0.0
        %4770 = vmatpush1.msra.mxu0 0.0
        %4771 = vmatprep.subr.mxu0 0.0
        %4772 = vmatpush1.msra.mxu0 0.0
        %4773 = vmatprep.subr.mxu0 0.0
        %4774 = vmatpush1.msra.mxu0 0.0
        %4775 = vmatprep.subr.mxu0 0.0
        %4776 = vmatpush1.msra.mxu0 0.0
        %4777 = vmatprep.subr.mxu0 0.0
        %4778 = vmatpush1.msra.mxu0 0.0
        %4779 = vmatprep.subr.mxu0 0.0
        %4780 = vmatpush1.msra.mxu0 0.0
        %4781 = vmatprep.subr.mxu0 0.0
        %4782 = vmatpush1.msra.mxu0 0.0
        %4783 = vmatprep.subr.mxu0 0.0
        %4784 = vmatpush1.msra.mxu0 0.0
        %4785 = vmatprep.subr.mxu0 0.0
        %4786 = vmatpush1.msra.mxu0 0.0
        %4787 = vmatprep.subr.mxu0 0.0
        %4788 = vmatpush1.msra.mxu0 0.0
        %4789 = vmatprep.subr.mxu0 0.0
        %4790 = vmatpush1.msra.mxu0 0.0
        %4791 = vmatprep.subr.mxu0 0.0
        %4792 = vmatpush1.msra.mxu0 0.0
        %4793 = vmatprep.subr.mxu0 0.0
        %4794 = vmatpush1.msra.mxu0 0.0
        %4795 = vmatprep.subr.mxu0 0.0
        %4796 = vmatpush1.msra.mxu0 0.0
        %4797 = vmatprep.subr.mxu0 0.0
        %4798 = vmatpush1.msra.mxu0 0.0
        %4799 = vmatprep.subr.mxu0 0.0
        %4800 = vmatpush1.msra.mxu0 0.0
        %4801 = vmatprep.subr.mxu0 0.0
        %4802 = vmatpush1.msra.mxu0 0.0
        %4803 = vmatprep.subr.mxu0 0.0
        %4804 = vmatpush1.msra.mxu0 0.0
        %4805 = vmatprep.mubr.f32.mxu0 0.0
        %4806 = vmatmul.mubr.f32.gmra.mrb[0].mxu0 %v4739
        %v4807 = vpop.f32.mrb[0].mxu0
        %v4808 = vadd.f32 %v4735, %v4807
        %v4809 = vpop.f32.mrb[0].mxu0
        %4810 = vdwg.mxu0
        %v4812 = vsel %vm614, %v4662, 0
        %4814 = vmatprep.subr.mxu0 0.0
        %4815 = vmatpush1.msra.mxu0 %v4410
        %4816 = vmatprep.subr.mxu0 0.0
        %4817 = vmatpush1.msra.mxu0 0.0
        %4818 = vmatprep.subr.mxu0 0.0
        %4819 = vmatpush1.msra.mxu0 0.0
        %4820 = vmatprep.subr.mxu0 0.0
        %4821 = vmatpush1.msra.mxu0 0.0
        %4822 = vmatprep.subr.mxu0 0.0
        %4823 = vmatpush1.msra.mxu0 0.0
        %4824 = vmatprep.subr.mxu0 0.0
        %4825 = vmatpush1.msra.mxu0 0.0
        %4826 = vmatprep.subr.mxu0 0.0
        %4827 = vmatpush1.msra.mxu0 0.0
        %4828 = vmatprep.subr.mxu0 0.0
        %4829 = vmatpush1.msra.mxu0 0.0
        %4830 = vmatprep.subr.mxu0 0.0
        %4831 = vmatpush1.msra.mxu0 0.0
        %4832 = vmatprep.subr.mxu0 0.0
        %4833 = vmatpush1.msra.mxu0 0.0
        %4834 = vmatprep.subr.mxu0 0.0
        %4835 = vmatpush1.msra.mxu0 0.0
        %4836 = vmatprep.subr.mxu0 0.0
        %4837 = vmatpush1.msra.mxu0 0.0
        %4838 = vmatprep.subr.mxu0 0.0
        %4839 = vmatpush1.msra.mxu0 0.0
        %4840 = vmatprep.subr.mxu0 0.0
        %4841 = vmatpush1.msra.mxu0 0.0
        %4842 = vmatprep.subr.mxu0 0.0
        %4843 = vmatpush1.msra.mxu0 0.0
        %4844 = vmatprep.subr.mxu0 0.0
        %4845 = vmatpush1.msra.mxu0 0.0
        %4846 = vmatprep.subr.mxu0 0.0
        %4847 = vmatpush1.msra.mxu0 0.0
        %4848 = vmatprep.subr.mxu0 0.0
        %4849 = vmatpush1.msra.mxu0 0.0
        %4850 = vmatprep.subr.mxu0 0.0
        %4851 = vmatpush1.msra.mxu0 0.0
        %4852 = vmatprep.subr.mxu0 0.0
        %4853 = vmatpush1.msra.mxu0 0.0
        %4854 = vmatprep.subr.mxu0 0.0
        %4855 = vmatpush1.msra.mxu0 0.0
        %4856 = vmatprep.subr.mxu0 0.0
        %4857 = vmatpush1.msra.mxu0 0.0
        %4858 = vmatprep.subr.mxu0 0.0
        %4859 = vmatpush1.msra.mxu0 0.0
        %4860 = vmatprep.subr.mxu0 0.0
        %4861 = vmatpush1.msra.mxu0 0.0
        %4862 = vmatprep.subr.mxu0 0.0
        %4863 = vmatpush1.msra.mxu0 0.0
        %4864 = vmatprep.subr.mxu0 0.0
        %4865 = vmatpush1.msra.mxu0 0.0
        %4866 = vmatprep.subr.mxu0 0.0
        %4867 = vmatpush1.msra.mxu0 0.0
        %4868 = vmatprep.subr.mxu0 0.0
        %4869 = vmatpush1.msra.mxu0 0.0
        %4870 = vmatprep.subr.mxu0 0.0
        %4871 = vmatpush1.msra.mxu0 0.0
        %4872 = vmatprep.subr.mxu0 0.0
        %4873 = vmatpush1.msra.mxu0 0.0
        %4874 = vmatprep.subr.mxu0 0.0
        %4875 = vmatpush1.msra.mxu0 0.0
        %4876 = vmatprep.subr.mxu0 0.0
        %4877 = vmatpush1.msra.mxu0 0.0
        %4878 = vmatprep.mubr.f32.mxu0 0.0
        %4879 = vmatmul.mubr.f32.gmra.mrb[0].mxu0 %v4812
        %v4880 = vpop.f32.mrb[0].mxu0
        %v4881 = vadd.f32 0.0, %v4880
        %v4882 = vpop.f32.mrb[0].mxu0
        %4883 = vdwg.mxu0
        %v4884 = vadd.f32 %v4808, %v4881
        %v4885 = vld [vmem:[%s2 + $0x230] sm:$0xff]
        %v4887 = vsel %vm614, %v4885, 0
        %4889 = vmatprep.subr.mxu0 0.0
        %4890 = vmatpush1.msra.mxu0 %v2204
        %4891 = vmatprep.subr.mxu0 0.0
        %4892 = vmatpush1.msra.mxu0 0.0
        %4893 = vmatprep.subr.mxu0 0.0
        %4894 = vmatpush1.msra.mxu0 0.0
        %4895 = vmatprep.subr.mxu0 0.0
        %4896 = vmatpush1.msra.mxu0 0.0
        %4897 = vmatprep.subr.mxu0 0.0
        %4898 = vmatpush1.msra.mxu0 0.0
        %4899 = vmatprep.subr.mxu0 0.0
        %4900 = vmatpush1.msra.mxu0 0.0
        %4901 = vmatprep.subr.mxu0 0.0
        %4902 = vmatpush1.msra.mxu0 0.0
        %4903 = vmatprep.subr.mxu0 0.0
        %4904 = vmatpush1.msra.mxu0 0.0
        %4905 = vmatprep.subr.mxu0 0.0
        %4906 = vmatpush1.msra.mxu0 0.0
        %4907 = vmatprep.subr.mxu0 0.0
        %4908 = vmatpush1.msra.mxu0 0.0
        %4909 = vmatprep.subr.mxu0 0.0
        %4910 = vmatpush1.msra.mxu0 0.0
        %4911 = vmatprep.subr.mxu0 0.0
        %4912 = vmatpush1.msra.mxu0 0.0
        %4913 = vmatprep.subr.mxu0 0.0
        %4914 = vmatpush1.msra.mxu0 0.0
        %4915 = vmatprep.subr.mxu0 0.0
        %4916 = vmatpush1.msra.mxu0 0.0
        %4917 = vmatprep.subr.mxu0 0.0
        %4918 = vmatpush1.msra.mxu0 0.0
        %4919 = vmatprep.subr.mxu0 0.0
        %4920 = vmatpush1.msra.mxu0 0.0
        %4921 = vmatprep.subr.mxu0 0.0
        %4922 = vmatpush1.msra.mxu0 0.0
        %4923 = vmatprep.subr.mxu0 0.0
        %4924 = vmatpush1.msra.mxu0 0.0
        %4925 = vmatprep.subr.mxu0 0.0
        %4926 = vmatpush1.msra.mxu0 0.0
        %4927 = vmatprep.subr.mxu0 0.0
        %4928 = vmatpush1.msra.mxu0 0.0
        %4929 = vmatprep.subr.mxu0 0.0
        %4930 = vmatpush1.msra.mxu0 0.0
        %4931 = vmatprep.subr.mxu0 0.0
        %4932 = vmatpush1.msra.mxu0 0.0
        %4933 = vmatprep.subr.mxu0 0.0
        %4934 = vmatpush1.msra.mxu0 0.0
        %4935 = vmatprep.subr.mxu0 0.0
        %4936 = vmatpush1.msra.mxu0 0.0
        %4937 = vmatprep.subr.mxu0 0.0
        %4938 = vmatpush1.msra.mxu0 0.0
        %4939 = vmatprep.subr.mxu0 0.0
        %4940 = vmatpush1.msra.mxu0 0.0
        %4941 = vmatprep.subr.mxu0 0.0
        %4942 = vmatpush1.msra.mxu0 0.0
        %4943 = vmatprep.subr.mxu0 0.0
        %4944 = vmatpush1.msra.mxu0 0.0
        %4945 = vmatprep.subr.mxu0 0.0
        %4946 = vmatpush1.msra.mxu0 0.0
        %4947 = vmatprep.subr.mxu0 0.0
        %4948 = vmatpush1.msra.mxu0 0.0
        %4949 = vmatprep.subr.mxu0 0.0
        %4950 = vmatpush1.msra.mxu0 0.0
        %4951 = vmatprep.subr.mxu0 0.0
        %4952 = vmatpush1.msra.mxu0 0.0
        %4953 = vmatprep.mubr.f32.mxu0 0.0
        %4954 = vmatmul.mubr.f32.gmra.mrb[0].mxu0 %v4887
        %v4955 = vpop.f32.mrb[0].mxu0
        %v4956 = vadd.f32 0.0, %v4955
        %v4957 = vpop.f32.mrb[0].mxu0
        %4958 = vdwg.mxu0
        %4960 = vset.pattern.permute.xlu0 0
        %4961 = vperm.xlu0 %4960, %v4956
        %v4962 = vpop.permute.xlu0 %4961
        %v4964 = vadd.f32 %v4884, %v4962
        %v4965 = vld [vmem:[%s2 + $0x238] sm:$0xff]
        %4967 = vset.pattern.permute.xlu0 0
        %4968 = vperm.xlu0 %4967, %v4965
        %v4969 = vpop.permute.xlu0 %4968
        %v4971 = vadd.f32 %v4964, %v4969
        %v4972 = vmax.f32 %v4971, 0.0
        %v4973 = vld [vmem:[%s2 + $0x240] sm:$0xff]
        %v4974 = vld [vmem:[%s2 + $0x248] sm:$0xff]
        %v4975 = vld [vmem:[%s2 + $0x250] sm:$0xff]
        %v4977 = vsel %vm614, %v4973, 0
        %v4980 = vsel %vm614, %v4974, 0
        %v4983 = vsel %vm614, %v4975, 0
        %4985 = vmatprep.subr.mxu0 0.0
        %4986 = vmatpush1.msra.mxu0 %v4572
        %4987 = vmatprep.subr.mxu0 0.0
        %4988 = vmatpush1.msra.mxu0 0.0
        %4989 = vmatprep.subr.mxu0 0.0
        %4990 = vmatpush1.msra.mxu0 0.0
        %4991 = vmatprep.subr.mxu0 0.0
        %4992 = vmatpush1.msra.mxu0 0.0
        %4993 = vmatprep.subr.mxu0 0.0
        %4994 = vmatpush1.msra.mxu0 0.0
        %4995 = vmatprep.subr.mxu0 0.0
        %4996 = vmatpush1.msra.mxu0 0.0
        %4997 = vmatprep.subr.mxu0 0.0
        %4998 = vmatpush1.msra.mxu0 0.0
        %4999 = vmatprep.subr.mxu0 0.0
        %5000 = vmatpush1.msra.mxu0 0.0
        %5001 = vmatprep.subr.mxu0 0.0
        %5002 = vmatpush1.msra.mxu0 0.0
        %5003 = vmatprep.subr.mxu0 0.0
        %5004 = vmatpush1.msra.mxu0 0.0
        %5005 = vmatprep.subr.mxu0 0.0
        %5006 = vmatpush1.msra.mxu0 0.0
        %5007 = vmatprep.subr.mxu0 0.0
        %5008 = vmatpush1.msra.mxu0 0.0
        %5009 = vmatprep.subr.mxu0 0.0
        %5010 = vmatpush1.msra.mxu0 0.0
        %5011 = vmatprep.subr.mxu0 0.0
        %5012 = vmatpush1.msra.mxu0 0.0
        %5013 = vmatprep.subr.mxu0 0.0
        %5014 = vmatpush1.msra.mxu0 0.0
        %5015 = vmatprep.subr.mxu0 0.0
        %5016 = vmatpush1.msra.mxu0 0.0
        %5017 = vmatprep.subr.mxu0 0.0
        %5018 = vmatpush1.msra.mxu0 0.0
        %5019 = vmatprep.subr.mxu0 0.0
        %5020 = vmatpush1.msra.mxu0 0.0
        %5021 = vmatprep.subr.mxu0 0.0
        %5022 = vmatpush1.msra.mxu0 0.0
        %5023 = vmatprep.subr.mxu0 0.0
        %5024 = vmatpush1.msra.mxu0 0.0
        %5025 = vmatprep.subr.mxu0 0.0
        %5026 = vmatpush1.msra.mxu0 0.0
        %5027 = vmatprep.subr.mxu0 0.0
        %5028 = vmatpush1.msra.mxu0 0.0
        %5029 = vmatprep.subr.mxu0 0.0
        %5030 = vmatpush1.msra.mxu0 0.0
        %5031 = vmatprep.subr.mxu0 0.0
        %5032 = vmatpush1.msra.mxu0 0.0
        %5033 = vmatprep.subr.mxu0 0.0
        %5034 = vmatpush1.msra.mxu0 0.0
        %5035 = vmatprep.subr.mxu0 0.0
        %5036 = vmatpush1.msra.mxu0 0.0
        %5037 = vmatprep.subr.mxu0 0.0
        %5038 = vmatpush1.msra.mxu0 0.0
        %5039 = vmatprep.subr.mxu0 0.0
        %5040 = vmatpush1.msra.mxu0 0.0
        %5041 = vmatprep.subr.mxu0 0.0
        %5042 = vmatpush1.msra.mxu0 0.0
        %5043 = vmatprep.subr.mxu0 0.0
        %5044 = vmatpush1.msra.mxu0 0.0
        %5045 = vmatprep.subr.mxu0 0.0
        %5046 = vmatpush1.msra.mxu0 0.0
        %5047 = vmatprep.subr.mxu0 0.0
        %5048 = vmatpush1.msra.mxu0 0.0
        %5049 = vmatprep.mubr.f32.mxu0 0.0
        %5050 = vmatmul.mubr.f32.gmra.mrb[0].mxu0 %v4977
        %v5051 = vpop.f32.mrb[0].mxu0
        %v5052 = vadd.f32 0.0, %v5051
        %v5053 = vpop.f32.mrb[0].mxu0
        %5054 = vmatprep.mubr.f32.mxu0 0.0
        %5055 = vmatmul.mubr.f32.gmra.mrb[0].mxu0 %v4980
        %v5056 = vpop.f32.mrb[0].mxu0
        %v5057 = vadd.f32 0.0, %v5056
        %v5058 = vpop.f32.mrb[0].mxu0
        %5059 = vmatprep.mubr.f32.mxu0 0.0
        %5060 = vmatmul.mubr.f32.gmra.mrb[0].mxu0 %v4983
        %v5061 = vpop.f32.mrb[0].mxu0
        %v5062 = vadd.f32 0.0, %v5061
        %v5063 = vpop.f32.mrb[0].mxu0
        %5064 = vdwg.mxu0
        %v5066 = vsel %vm614, %v5057, 0
        %5068 = vmatprep.subr.mxu0 0.0
        %5069 = vmatpush1.msra.mxu0 %v4263
        %5070 = vmatprep.subr.mxu0 0.0
        %5071 = vmatpush1.msra.mxu0 0.0
        %5072 = vmatprep.subr.mxu0 0.0
        %5073 = vmatpush1.msra.mxu0 0.0
        %5074 = vmatprep.subr.mxu0 0.0
        %5075 = vmatpush1.msra.mxu0 0.0
        %5076 = vmatprep.subr.mxu0 0.0
        %5077 = vmatpush1.msra.mxu0 0.0
        %5078 = vmatprep.subr.mxu0 0.0
        %5079 = vmatpush1.msra.mxu0 0.0
        %5080 = vmatprep.subr.mxu0 0.0
        %5081 = vmatpush1.msra.mxu0 0.0
        %5082 = vmatprep.subr.mxu0 0.0
        %5083 = vmatpush1.msra.mxu0 0.0
        %5084 = vmatprep.subr.mxu0 0.0
        %5085 = vmatpush1.msra.mxu0 0.0
        %5086 = vmatprep.subr.mxu0 0.0
        %5087 = vmatpush1.msra.mxu0 0.0
        %5088 = vmatprep.subr.mxu0 0.0
        %5089 = vmatpush1.msra.mxu0 0.0
        %5090 = vmatprep.subr.mxu0 0.0
        %5091 = vmatpush1.msra.mxu0 0.0
        %5092 = vmatprep.subr.mxu0 0.0
        %5093 = vmatpush1.msra.mxu0 0.0
        %5094 = vmatprep.subr.mxu0 0.0
        %5095 = vmatpush1.msra.mxu0 0.0
        %5096 = vmatprep.subr.mxu0 0.0
        %5097 = vmatpush1.msra.mxu0 0.0
        %5098 = vmatprep.subr.mxu0 0.0
        %5099 = vmatpush1.msra.mxu0 0.0
        %5100 = vmatprep.subr.mxu0 0.0
        %5101 = vmatpush1.msra.mxu0 0.0
        %5102 = vmatprep.subr.mxu0 0.0
        %5103 = vmatpush1.msra.mxu0 0.0
        %5104 = vmatprep.subr.mxu0 0.0
        %5105 = vmatpush1.msra.mxu0 0.0
        %5106 = vmatprep.subr.mxu0 0.0
        %5107 = vmatpush1.msra.mxu0 0.0
        %5108 = vmatprep.subr.mxu0 0.0
        %5109 = vmatpush1.msra.mxu0 0.0
        %5110 = vmatprep.subr.mxu0 0.0
        %5111 = vmatpush1.msra.mxu0 0.0
        %5112 = vmatprep.subr.mxu0 0.0
        %5113 = vmatpush1.msra.mxu0 0.0
        %5114 = vmatprep.subr.mxu0 0.0
        %5115 = vmatpush1.msra.mxu0 0.0
        %5116 = vmatprep.subr.mxu0 0.0
        %5117 = vmatpush1.msra.mxu0 0.0
        %5118 = vmatprep.subr.mxu0 0.0
        %5119 = vmatpush1.msra.mxu0 0.0
        %5120 = vmatprep.subr.mxu0 0.0
        %5121 = vmatpush1.msra.mxu0 0.0
        %5122 = vmatprep.subr.mxu0 0.0
        %5123 = vmatpush1.msra.mxu0 0.0
        %5124 = vmatprep.subr.mxu0 0.0
        %5125 = vmatpush1.msra.mxu0 0.0
        %5126 = vmatprep.subr.mxu0 0.0
        %5127 = vmatpush1.msra.mxu0 0.0
        %5128 = vmatprep.subr.mxu0 0.0
        %5129 = vmatpush1.msra.mxu0 0.0
        %5130 = vmatprep.subr.mxu0 0.0
        %5131 = vmatpush1.msra.mxu0 0.0
        %5132 = vmatprep.mubr.f32.mxu0 0.0
        %5133 = vmatmul.mubr.f32.gmra.mrb[0].mxu0 %v5066
        %v5134 = vpop.f32.mrb[0].mxu0
        %v5135 = vadd.f32 0.0, %v5134
        %v5136 = vpop.f32.mrb[0].mxu0
        %5137 = vdwg.mxu0
        %v5139 = vsel %vm614, %v5052, 0
        %5141 = vmatprep.subr.mxu0 0.0
        %5142 = vmatpush1.msra.mxu0 %v4262
        %5143 = vmatprep.subr.mxu0 0.0
        %5144 = vmatpush1.msra.mxu0 0.0
        %5145 = vmatprep.subr.mxu0 0.0
        %5146 = vmatpush1.msra.mxu0 0.0
        %5147 = vmatprep.subr.mxu0 0.0
        %5148 = vmatpush1.msra.mxu0 0.0
        %5149 = vmatprep.subr.mxu0 0.0
        %5150 = vmatpush1.msra.mxu0 0.0
        %5151 = vmatprep.subr.mxu0 0.0
        %5152 = vmatpush1.msra.mxu0 0.0
        %5153 = vmatprep.subr.mxu0 0.0
        %5154 = vmatpush1.msra.mxu0 0.0
        %5155 = vmatprep.subr.mxu0 0.0
        %5156 = vmatpush1.msra.mxu0 0.0
        %5157 = vmatprep.subr.mxu0 0.0
        %5158 = vmatpush1.msra.mxu0 0.0
        %5159 = vmatprep.subr.mxu0 0.0
        %5160 = vmatpush1.msra.mxu0 0.0
        %5161 = vmatprep.subr.mxu0 0.0
        %5162 = vmatpush1.msra.mxu0 0.0
        %5163 = vmatprep.subr.mxu0 0.0
        %5164 = vmatpush1.msra.mxu0 0.0
        %5165 = vmatprep.subr.mxu0 0.0
        %5166 = vmatpush1.msra.mxu0 0.0
        %5167 = vmatprep.subr.mxu0 0.0
        %5168 = vmatpush1.msra.mxu0 0.0
        %5169 = vmatprep.subr.mxu0 0.0
        %5170 = vmatpush1.msra.mxu0 0.0
        %5171 = vmatprep.subr.mxu0 0.0
        %5172 = vmatpush1.msra.mxu0 0.0
        %5173 = vmatprep.subr.mxu0 0.0
        %5174 = vmatpush1.msra.mxu0 0.0
        %5175 = vmatprep.subr.mxu0 0.0
        %5176 = vmatpush1.msra.mxu0 0.0
        %5177 = vmatprep.subr.mxu0 0.0
        %5178 = vmatpush1.msra.mxu0 0.0
        %5179 = vmatprep.subr.mxu0 0.0
        %5180 = vmatpush1.msra.mxu0 0.0
        %5181 = vmatprep.subr.mxu0 0.0
        %5182 = vmatpush1.msra.mxu0 0.0
        %5183 = vmatprep.subr.mxu0 0.0
        %5184 = vmatpush1.msra.mxu0 0.0
        %5185 = vmatprep.subr.mxu0 0.0
        %5186 = vmatpush1.msra.mxu0 0.0
        %5187 = vmatprep.subr.mxu0 0.0
        %5188 = vmatpush1.msra.mxu0 0.0
        %5189 = vmatprep.subr.mxu0 0.0
        %5190 = vmatpush1.msra.mxu0 0.0
        %5191 = vmatprep.subr.mxu0 0.0
        %5192 = vmatpush1.msra.mxu0 0.0
        %5193 = vmatprep.subr.mxu0 0.0
        %5194 = vmatpush1.msra.mxu0 0.0
        %5195 = vmatprep.subr.mxu0 0.0
        %5196 = vmatpush1.msra.mxu0 0.0
        %5197 = vmatprep.subr.mxu0 0.0
        %5198 = vmatpush1.msra.mxu0 0.0
        %5199 = vmatprep.subr.mxu0 0.0
        %5200 = vmatpush1.msra.mxu0 0.0
        %5201 = vmatprep.subr.mxu0 0.0
        %5202 = vmatpush1.msra.mxu0 0.0
        %5203 = vmatprep.subr.mxu0 0.0
        %5204 = vmatpush1.msra.mxu0 0.0
        %5205 = vmatprep.mubr.f32.mxu0 0.0
        %5206 = vmatmul.mubr.f32.gmra.mrb[0].mxu0 %v5139
        %v5207 = vpop.f32.mrb[0].mxu0
        %v5208 = vadd.f32 %v5135, %v5207
        %v5209 = vpop.f32.mrb[0].mxu0
        %5210 = vdwg.mxu0
        %v5212 = vsel %vm614, %v5062, 0
        %5214 = vmatprep.subr.mxu0 0.0
        %5215 = vmatpush1.msra.mxu0 %v4410
        %5216 = vmatprep.subr.mxu0 0.0
        %5217 = vmatpush1.msra.mxu0 0.0
        %5218 = vmatprep.subr.mxu0 0.0
        %5219 = vmatpush1.msra.mxu0 0.0
        %5220 = vmatprep.subr.mxu0 0.0
        %5221 = vmatpush1.msra.mxu0 0.0
        %5222 = vmatprep.subr.mxu0 0.0
        %5223 = vmatpush1.msra.mxu0 0.0
        %5224 = vmatprep.subr.mxu0 0.0
        %5225 = vmatpush1.msra.mxu0 0.0
        %5226 = vmatprep.subr.mxu0 0.0
        %5227 = vmatpush1.msra.mxu0 0.0
        %5228 = vmatprep.subr.mxu0 0.0
        %5229 = vmatpush1.msra.mxu0 0.0
        %5230 = vmatprep.subr.mxu0 0.0
        %5231 = vmatpush1.msra.mxu0 0.0
        %5232 = vmatprep.subr.mxu0 0.0
        %5233 = vmatpush1.msra.mxu0 0.0
        %5234 = vmatprep.subr.mxu0 0.0
        %5235 = vmatpush1.msra.mxu0 0.0
        %5236 = vmatprep.subr.mxu0 0.0
        %5237 = vmatpush1.msra.mxu0 0.0
        %5238 = vmatprep.subr.mxu0 0.0
        %5239 = vmatpush1.msra.mxu0 0.0
        %5240 = vmatprep.subr.mxu0 0.0
        %5241 = vmatpush1.msra.mxu0 0.0
        %5242 = vmatprep.subr.mxu0 0.0
        %5243 = vmatpush1.msra.mxu0 0.0
        %5244 = vmatprep.subr.mxu0 0.0
        %5245 = vmatpush1.msra.mxu0 0.0
        %5246 = vmatprep.subr.mxu0 0.0
        %5247 = vmatpush1.msra.mxu0 0.0
        %5248 = vmatprep.subr.mxu0 0.0
        %5249 = vmatpush1.msra.mxu0 0.0
        %5250 = vmatprep.subr.mxu0 0.0
        %5251 = vmatpush1.msra.mxu0 0.0
        %5252 = vmatprep.subr.mxu0 0.0
        %5253 = vmatpush1.msra.mxu0 0.0
        %5254 = vmatprep.subr.mxu0 0.0
        %5255 = vmatpush1.msra.mxu0 0.0
        %5256 = vmatprep.subr.mxu0 0.0
        %5257 = vmatpush1.msra.mxu0 0.0
        %5258 = vmatprep.subr.mxu0 0.0
        %5259 = vmatpush1.msra.mxu0 0.0
        %5260 = vmatprep.subr.mxu0 0.0
        %5261 = vmatpush1.msra.mxu0 0.0
        %5262 = vmatprep.subr.mxu0 0.0
        %5263 = vmatpush1.msra.mxu0 0.0
        %5264 = vmatprep.subr.mxu0 0.0
        %5265 = vmatpush1.msra.mxu0 0.0
        %5266 = vmatprep.subr.mxu0 0.0
        %5267 = vmatpush1.msra.mxu0 0.0
        %5268 = vmatprep.subr.mxu0 0.0
        %5269 = vmatpush1.msra.mxu0 0.0
        %5270 = vmatprep.subr.mxu0 0.0
        %5271 = vmatpush1.msra.mxu0 0.0
        %5272 = vmatprep.subr.mxu0 0.0
        %5273 = vmatpush1.msra.mxu0 0.0
        %5274 = vmatprep.subr.mxu0 0.0
        %5275 = vmatpush1.msra.mxu0 0.0
        %5276 = vmatprep.subr.mxu0 0.0
        %5277 = vmatpush1.msra.mxu0 0.0
        %5278 = vmatprep.mubr.f32.mxu0 0.0
        %5279 = vmatmul.mubr.f32.gmra.mrb[0].mxu0 %v5212
        %v5280 = vpop.f32.mrb[0].mxu0
        %v5281 = vadd.f32 0.0, %v5280
        %v5282 = vpop.f32.mrb[0].mxu0
        %5283 = vdwg.mxu0
        %v5284 = vadd.f32 %v5208, %v5281
        %v5285 = vld [vmem:[%s2 + $0x258] sm:$0xff]
        %v5287 = vsel %vm614, %v5285, 0
        %5289 = vmatprep.subr.mxu0 0.0
        %5290 = vmatpush1.msra.mxu0 %v2204
        %5291 = vmatprep.subr.mxu0 0.0
        %5292 = vmatpush1.msra.mxu0 0.0
        %5293 = vmatprep.subr.mxu0 0.0
        %5294 = vmatpush1.msra.mxu0 0.0
        %5295 = vmatprep.subr.mxu0 0.0
        %5296 = vmatpush1.msra.mxu0 0.0
        %5297 = vmatprep.subr.mxu0 0.0
        %5298 = vmatpush1.msra.mxu0 0.0
        %5299 = vmatprep.subr.mxu0 0.0
        %5300 = vmatpush1.msra.mxu0 0.0
        %5301 = vmatprep.subr.mxu0 0.0
        %5302 = vmatpush1.msra.mxu0 0.0
        %5303 = vmatprep.subr.mxu0 0.0
        %5304 = vmatpush1.msra.mxu0 0.0
        %5305 = vmatprep.subr.mxu0 0.0
        %5306 = vmatpush1.msra.mxu0 0.0
        %5307 = vmatprep.subr.mxu0 0.0
        %5308 = vmatpush1.msra.mxu0 0.0
        %5309 = vmatprep.subr.mxu0 0.0
        %5310 = vmatpush1.msra.mxu0 0.0
        %5311 = vmatprep.subr.mxu0 0.0
        %5312 = vmatpush1.msra.mxu0 0.0
        %5313 = vmatprep.subr.mxu0 0.0
        %5314 = vmatpush1.msra.mxu0 0.0
        %5315 = vmatprep.subr.mxu0 0.0
        %5316 = vmatpush1.msra.mxu0 0.0
        %5317 = vmatprep.subr.mxu0 0.0
        %5318 = vmatpush1.msra.mxu0 0.0
        %5319 = vmatprep.subr.mxu0 0.0
        %5320 = vmatpush1.msra.mxu0 0.0
        %5321 = vmatprep.subr.mxu0 0.0
        %5322 = vmatpush1.msra.mxu0 0.0
        %5323 = vmatprep.subr.mxu0 0.0
        %5324 = vmatpush1.msra.mxu0 0.0
        %5325 = vmatprep.subr.mxu0 0.0
        %5326 = vmatpush1.msra.mxu0 0.0
        %5327 = vmatprep.subr.mxu0 0.0
        %5328 = vmatpush1.msra.mxu0 0.0
        %5329 = vmatprep.subr.mxu0 0.0
        %5330 = vmatpush1.msra.mxu0 0.0
        %5331 = vmatprep.subr.mxu0 0.0
        %5332 = vmatpush1.msra.mxu0 0.0
        %5333 = vmatprep.subr.mxu0 0.0
        %5334 = vmatpush1.msra.mxu0 0.0
        %5335 = vmatprep.subr.mxu0 0.0
        %5336 = vmatpush1.msra.mxu0 0.0
        %5337 = vmatprep.subr.mxu0 0.0
        %5338 = vmatpush1.msra.mxu0 0.0
        %5339 = vmatprep.subr.mxu0 0.0
        %5340 = vmatpush1.msra.mxu0 0.0
        %5341 = vmatprep.subr.mxu0 0.0
        %5342 = vmatpush1.msra.mxu0 0.0
        %5343 = vmatprep.subr.mxu0 0.0
        %5344 = vmatpush1.msra.mxu0 0.0
        %5345 = vmatprep.subr.mxu0 0.0
        %5346 = vmatpush1.msra.mxu0 0.0
        %5347 = vmatprep.subr.mxu0 0.0
        %5348 = vmatpush1.msra.mxu0 0.0
        %5349 = vmatprep.subr.mxu0 0.0
        %5350 = vmatpush1.msra.mxu0 0.0
        %5351 = vmatprep.subr.mxu0 0.0
        %5352 = vmatpush1.msra.mxu0 0.0
        %5353 = vmatprep.mubr.f32.mxu0 0.0
        %5354 = vmatmul.mubr.f32.gmra.mrb[0].mxu0 %v5287
        %v5355 = vpop.f32.mrb[0].mxu0
        %v5356 = vadd.f32 0.0, %v5355
        %v5357 = vpop.f32.mrb[0].mxu0
        %5358 = vdwg.mxu0
        %5360 = vset.pattern.permute.xlu0 0
        %5361 = vperm.xlu0 %5360, %v5356
        %v5362 = vpop.permute.xlu0 %5361
        %v5364 = vadd.f32 %v5284, %v5362
        %v5365 = vld [vmem:[%s2 + $0x260] sm:$0xff]
        %5367 = vset.pattern.permute.xlu0 0
        %5368 = vperm.xlu0 %5367, %v5365
        %v5369 = vpop.permute.xlu0 %5368
        %v5371 = vadd.f32 %v5364, %v5369
        %v5372 = vmax.f32 %v5371, 0.0
        %v5373 = vld [vmem:[%s3 + $0xe8] sm:$0xff]
        %v5374 = vld [vmem:[%s3 + $0xf0] sm:$0xff]
        %v5376 = vsel %vm614, %v5372, 0
        %5378 = vmatprep.subr.mxu0 0.0
        %5379 = vmatpush1.msra.mxu0 %v5374
        %5380 = vmatprep.subr.mxu0 0.0
        %5381 = vmatpush1.msra.mxu0 0.0
        %5382 = vmatprep.subr.mxu0 0.0
        %5383 = vmatpush1.msra.mxu0 0.0
        %5384 = vmatprep.subr.mxu0 0.0
        %5385 = vmatpush1.msra.mxu0 0.0
        %5386 = vmatprep.subr.mxu0 0.0
        %5387 = vmatpush1.msra.mxu0 0.0
        %5388 = vmatprep.subr.mxu0 0.0
        %5389 = vmatpush1.msra.mxu0 0.0
        %5390 = vmatprep.subr.mxu0 0.0
        %5391 = vmatpush1.msra.mxu0 0.0
        %5392 = vmatprep.subr.mxu0 0.0
        %5393 = vmatpush1.msra.mxu0 0.0
        %5394 = vmatprep.subr.mxu0 0.0
        %5395 = vmatpush1.msra.mxu0 0.0
        %5396 = vmatprep.subr.mxu0 0.0
        %5397 = vmatpush1.msra.mxu0 0.0
        %5398 = vmatprep.subr.mxu0 0.0
        %5399 = vmatpush1.msra.mxu0 0.0
        %5400 = vmatprep.subr.mxu0 0.0
        %5401 = vmatpush1.msra.mxu0 0.0
        %5402 = vmatprep.subr.mxu0 0.0
        %5403 = vmatpush1.msra.mxu0 0.0
        %5404 = vmatprep.subr.mxu0 0.0
        %5405 = vmatpush1.msra.mxu0 0.0
        %5406 = vmatprep.subr.mxu0 0.0
        %5407 = vmatpush1.msra.mxu0 0.0
        %5408 = vmatprep.subr.mxu0 0.0
        %5409 = vmatpush1.msra.mxu0 0.0
        %5410 = vmatprep.subr.mxu0 0.0
        %5411 = vmatpush1.msra.mxu0 0.0
        %5412 = vmatprep.subr.mxu0 0.0
        %5413 = vmatpush1.msra.mxu0 0.0
        %5414 = vmatprep.subr.mxu0 0.0
        %5415 = vmatpush1.msra.mxu0 0.0
        %5416 = vmatprep.subr.mxu0 0.0
        %5417 = vmatpush1.msra.mxu0 0.0
        %5418 = vmatprep.subr.mxu0 0.0
        %5419 = vmatpush1.msra.mxu0 0.0
        %5420 = vmatprep.subr.mxu0 0.0
        %5421 = vmatpush1.msra.mxu0 0.0
        %5422 = vmatprep.subr.mxu0 0.0
        %5423 = vmatpush1.msra.mxu0 0.0
        %5424 = vmatprep.subr.mxu0 0.0
        %5425 = vmatpush1.msra.mxu0 0.0
        %5426 = vmatprep.subr.mxu0 0.0
        %5427 = vmatpush1.msra.mxu0 0.0
        %5428 = vmatprep.subr.mxu0 0.0
        %5429 = vmatpush1.msra.mxu0 0.0
        %5430 = vmatprep.subr.mxu0 0.0
        %5431 = vmatpush1.msra.mxu0 0.0
        %5432 = vmatprep.subr.mxu0 0.0
        %5433 = vmatpush1.msra.mxu0 0.0
        %5434 = vmatprep.subr.mxu0 0.0
        %5435 = vmatpush1.msra.mxu0 0.0
        %5436 = vmatprep.subr.mxu0 0.0
        %5437 = vmatpush1.msra.mxu0 0.0
        %5438 = vmatprep.subr.mxu0 0.0
        %5439 = vmatpush1.msra.mxu0 0.0
        %5440 = vmatprep.subr.mxu0 0.0
        %5441 = vmatpush1.msra.mxu0 0.0
        %5442 = vmatprep.mubr.f32.mxu0 0.0
        %5443 = vmatmul.mubr.f32.gmra.mrb[0].mxu0 %v5376
        %v5444 = vpop.f32.mrb[0].mxu0
        %v5445 = vadd.f32 0.0, %v5444
        %v5446 = vpop.f32.mrb[0].mxu0
        %5447 = vdwg.mxu0
        %v5449 = vsel %vm614, %v4972, 0
        %5451 = vmatprep.subr.mxu0 0.0
        %5452 = vmatpush1.msra.mxu0 %v5373
        %5453 = vmatprep.subr.mxu0 0.0
        %5454 = vmatpush1.msra.mxu0 0.0
        %5455 = vmatprep.subr.mxu0 0.0
        %5456 = vmatpush1.msra.mxu0 0.0
        %5457 = vmatprep.subr.mxu0 0.0
        %5458 = vmatpush1.msra.mxu0 0.0
        %5459 = vmatprep.subr.mxu0 0.0
        %5460 = vmatpush1.msra.mxu0 0.0
        %5461 = vmatprep.subr.mxu0 0.0
        %5462 = vmatpush1.msra.mxu0 0.0
        %5463 = vmatprep.subr.mxu0 0.0
        %5464 = vmatpush1.msra.mxu0 0.0
        %5465 = vmatprep.subr.mxu0 0.0
        %5466 = vmatpush1.msra.mxu0 0.0
        %5467 = vmatprep.subr.mxu0 0.0
        %5468 = vmatpush1.msra.mxu0 0.0
        %5469 = vmatprep.subr.mxu0 0.0
        %5470 = vmatpush1.msra.mxu0 0.0
        %5471 = vmatprep.subr.mxu0 0.0
        %5472 = vmatpush1.msra.mxu0 0.0
        %5473 = vmatprep.subr.mxu0 0.0
        %5474 = vmatpush1.msra.mxu0 0.0
        %5475 = vmatprep.subr.mxu0 0.0
        %5476 = vmatpush1.msra.mxu0 0.0
        %5477 = vmatprep.subr.mxu0 0.0
        %5478 = vmatpush1.msra.mxu0 0.0
        %5479 = vmatprep.subr.mxu0 0.0
        %5480 = vmatpush1.msra.mxu0 0.0
        %5481 = vmatprep.subr.mxu0 0.0
        %5482 = vmatpush1.msra.mxu0 0.0
        %5483 = vmatprep.subr.mxu0 0.0
        %5484 = vmatpush1.msra.mxu0 0.0
        %5485 = vmatprep.subr.mxu0 0.0
        %5486 = vmatpush1.msra.mxu0 0.0
        %5487 = vmatprep.subr.mxu0 0.0
        %5488 = vmatpush1.msra.mxu0 0.0
        %5489 = vmatprep.subr.mxu0 0.0
        %5490 = vmatpush1.msra.mxu0 0.0
        %5491 = vmatprep.subr.mxu0 0.0
        %5492 = vmatpush1.msra.mxu0 0.0
        %5493 = vmatprep.subr.mxu0 0.0
        %5494 = vmatpush1.msra.mxu0 0.0
        %5495 = vmatprep.subr.mxu0 0.0
        %5496 = vmatpush1.msra.mxu0 0.0
        %5497 = vmatprep.subr.mxu0 0.0
        %5498 = vmatpush1.msra.mxu0 0.0
        %5499 = vmatprep.subr.mxu0 0.0
        %5500 = vmatpush1.msra.mxu0 0.0
        %5501 = vmatprep.subr.mxu0 0.0
        %5502 = vmatpush1.msra.mxu0 0.0
        %5503 = vmatprep.subr.mxu0 0.0
        %5504 = vmatpush1.msra.mxu0 0.0
        %5505 = vmatprep.subr.mxu0 0.0
        %5506 = vmatpush1.msra.mxu0 0.0
        %5507 = vmatprep.subr.mxu0 0.0
        %5508 = vmatpush1.msra.mxu0 0.0
        %5509 = vmatprep.subr.mxu0 0.0
        %5510 = vmatpush1.msra.mxu0 0.0
        %5511 = vmatprep.subr.mxu0 0.0
        %5512 = vmatpush1.msra.mxu0 0.0
        %5513 = vmatprep.subr.mxu0 0.0
        %5514 = vmatpush1.msra.mxu0 0.0
        %5515 = vmatprep.mubr.f32.mxu0 0.0
        %5516 = vmatmul.mubr.f32.gmra.mrb[0].mxu0 %v5449
        %v5517 = vpop.f32.mrb[0].mxu0
        %v5518 = vadd.f32 %v5445, %v5517
        %v5519 = vpop.f32.mrb[0].mxu0
        %5520 = vdwg.mxu0
        %v5521 = vld [vmem:[%s3 + $0xf8] sm:$0xff]
        %v5523 = vsel %vm614, %v4167, 0
        %5525 = vmatprep.subr.mxu0 0.0
        %5526 = vmatpush1.msra.mxu0 %v5521
        %5527 = vmatprep.subr.mxu0 0.0
        %5528 = vmatpush1.msra.mxu0 0.0
        %5529 = vmatprep.subr.mxu0 0.0
        %5530 = vmatpush1.msra.mxu0 0.0
        %5531 = vmatprep.subr.mxu0 0.0
        %5532 = vmatpush1.msra.mxu0 0.0
        %5533 = vmatprep.subr.mxu0 0.0
        %5534 = vmatpush1.msra.mxu0 0.0
        %5535 = vmatprep.subr.mxu0 0.0
        %5536 = vmatpush1.msra.mxu0 0.0
        %5537 = vmatprep.subr.mxu0 0.0
        %5538 = vmatpush1.msra.mxu0 0.0
        %5539 = vmatprep.subr.mxu0 0.0
        %5540 = vmatpush1.msra.mxu0 0.0
        %5541 = vmatprep.subr.mxu0 0.0
        %5542 = vmatpush1.msra.mxu0 0.0
        %5543 = vmatprep.subr.mxu0 0.0
        %5544 = vmatpush1.msra.mxu0 0.0
        %5545 = vmatprep.subr.mxu0 0.0
        %5546 = vmatpush1.msra.mxu0 0.0
        %5547 = vmatprep.subr.mxu0 0.0
        %5548 = vmatpush1.msra.mxu0 0.0
        %5549 = vmatprep.subr.mxu0 0.0
        %5550 = vmatpush1.msra.mxu0 0.0
        %5551 = vmatprep.subr.mxu0 0.0
        %5552 = vmatpush1.msra.mxu0 0.0
        %5553 = vmatprep.subr.mxu0 0.0
        %5554 = vmatpush1.msra.mxu0 0.0
        %5555 = vmatprep.subr.mxu0 0.0
        %5556 = vmatpush1.msra.mxu0 0.0
        %5557 = vmatprep.subr.mxu0 0.0
        %5558 = vmatpush1.msra.mxu0 0.0
        %5559 = vmatprep.subr.mxu0 0.0
        %5560 = vmatpush1.msra.mxu0 0.0
        %5561 = vmatprep.subr.mxu0 0.0
        %5562 = vmatpush1.msra.mxu0 0.0
        %5563 = vmatprep.subr.mxu0 0.0
        %5564 = vmatpush1.msra.mxu0 0.0
        %5565 = vmatprep.subr.mxu0 0.0
        %5566 = vmatpush1.msra.mxu0 0.0
        %5567 = vmatprep.subr.mxu0 0.0
        %5568 = vmatpush1.msra.mxu0 0.0
        %5569 = vmatprep.subr.mxu0 0.0
        %5570 = vmatpush1.msra.mxu0 0.0
        %5571 = vmatprep.subr.mxu0 0.0
        %5572 = vmatpush1.msra.mxu0 0.0
        %5573 = vmatprep.subr.mxu0 0.0
        %5574 = vmatpush1.msra.mxu0 0.0
        %5575 = vmatprep.subr.mxu0 0.0
        %5576 = vmatpush1.msra.mxu0 0.0
        %5577 = vmatprep.subr.mxu0 0.0
        %5578 = vmatpush1.msra.mxu0 0.0
        %5579 = vmatprep.subr.mxu0 0.0
        %5580 = vmatpush1.msra.mxu0 0.0
        %5581 = vmatprep.subr.mxu0 0.0
        %5582 = vmatpush1.msra.mxu0 0.0
        %5583 = vmatprep.subr.mxu0 0.0
        %5584 = vmatpush1.msra.mxu0 0.0
        %5585 = vmatprep.subr.mxu0 0.0
        %5586 = vmatpush1.msra.mxu0 0.0
        %5587 = vmatprep.subr.mxu0 0.0
        %5588 = vmatpush1.msra.mxu0 0.0
        %5589 = vmatprep.mubr.f32.mxu0 0.0
        %5590 = vmatmul.mubr.f32.gmra.mrb[0].mxu0 %v5523
        %v5591 = vpop.f32.mrb[0].mxu0
        %v5592 = vadd.f32 0.0, %v5591
        %v5593 = vpop.f32.mrb[0].mxu0
        %5594 = vdwg.mxu0
        %v5595 = vadd.f32 %v5518, %v5592
        %v5596 = vld [vmem:[%s2 + $0x268] sm:$0xff]
        %v5597 = vld [vmem:[%s2 + $0x270] sm:$0xff]
        %v5599 = vsel %vm614, %v5597, 0
        %5601 = vmatprep.subr.mxu0 0.0
        %5602 = vmatpush1.msra.mxu0 %v2204
        %5603 = vmatprep.subr.mxu0 0.0
        %5604 = vmatpush1.msra.mxu0 0.0
        %5605 = vmatprep.subr.mxu0 0.0
        %5606 = vmatpush1.msra.mxu0 0.0
        %5607 = vmatprep.subr.mxu0 0.0
        %5608 = vmatpush1.msra.mxu0 0.0
        %5609 = vmatprep.subr.mxu0 0.0
        %5610 = vmatpush1.msra.mxu0 0.0
        %5611 = vmatprep.subr.mxu0 0.0
        %5612 = vmatpush1.msra.mxu0 0.0
        %5613 = vmatprep.subr.mxu0 0.0
        %5614 = vmatpush1.msra.mxu0 0.0
        %5615 = vmatprep.subr.mxu0 0.0
        %5616 = vmatpush1.msra.mxu0 0.0
        %5617 = vmatprep.subr.mxu0 0.0
        %5618 = vmatpush1.msra.mxu0 0.0
        %5619 = vmatprep.subr.mxu0 0.0
        %5620 = vmatpush1.msra.mxu0 0.0
        %5621 = vmatprep.subr.mxu0 0.0
        %5622 = vmatpush1.msra.mxu0 0.0
        %5623 = vmatprep.subr.mxu0 0.0
        %5624 = vmatpush1.msra.mxu0 0.0
        %5625 = vmatprep.subr.mxu0 0.0
        %5626 = vmatpush1.msra.mxu0 0.0
        %5627 = vmatprep.subr.mxu0 0.0
        %5628 = vmatpush1.msra.mxu0 0.0
        %5629 = vmatprep.subr.mxu0 0.0
        %5630 = vmatpush1.msra.mxu0 0.0
        %5631 = vmatprep.subr.mxu0 0.0
        %5632 = vmatpush1.msra.mxu0 0.0
        %5633 = vmatprep.subr.mxu0 0.0
        %5634 = vmatpush1.msra.mxu0 0.0
        %5635 = vmatprep.subr.mxu0 0.0
        %5636 = vmatpush1.msra.mxu0 0.0
        %5637 = vmatprep.subr.mxu0 0.0
        %5638 = vmatpush1.msra.mxu0 0.0
        %5639 = vmatprep.subr.mxu0 0.0
        %5640 = vmatpush1.msra.mxu0 0.0
        %5641 = vmatprep.subr.mxu0 0.0
        %5642 = vmatpush1.msra.mxu0 0.0
        %5643 = vmatprep.subr.mxu0 0.0
        %5644 = vmatpush1.msra.mxu0 0.0
        %5645 = vmatprep.subr.mxu0 0.0
        %5646 = vmatpush1.msra.mxu0 0.0
        %5647 = vmatprep.subr.mxu0 0.0
        %5648 = vmatpush1.msra.mxu0 0.0
        %5649 = vmatprep.subr.mxu0 0.0
        %5650 = vmatpush1.msra.mxu0 0.0
        %5651 = vmatprep.subr.mxu0 0.0
        %5652 = vmatpush1.msra.mxu0 0.0
        %5653 = vmatprep.subr.mxu0 0.0
        %5654 = vmatpush1.msra.mxu0 0.0
        %5655 = vmatprep.subr.mxu0 0.0
        %5656 = vmatpush1.msra.mxu0 0.0
        %5657 = vmatprep.subr.mxu0 0.0
        %5658 = vmatpush1.msra.mxu0 0.0
        %5659 = vmatprep.subr.mxu0 0.0
        %5660 = vmatpush1.msra.mxu0 0.0
        %5661 = vmatprep.subr.mxu0 0.0
        %5662 = vmatpush1.msra.mxu0 0.0
        %5663 = vmatprep.subr.mxu0 0.0
        %5664 = vmatpush1.msra.mxu0 0.0
        %5665 = vmatprep.mubr.f32.mxu0 0.0
        %5666 = vmatmul.mubr.f32.gmra.mrb[0].mxu0 %v5599
        %v5667 = vpop.f32.mrb[0].mxu0
        %v5668 = vadd.f32 0.0, %v5667
        %v5669 = vpop.f32.mrb[0].mxu0
        %5670 = vdwg.mxu0
        %5672 = vset.pattern.permute.xlu0 0
        %5673 = vperm.xlu0 %5672, %v5668
        %v5674 = vpop.permute.xlu0 %5673
        %v5677 = vsel %vm614, %v5596, 0
        %5679 = vmatprep.subr.mxu0 0.0
        %5680 = vmatpush1.msra.mxu0 %v5595
        %5681 = vmatprep.subr.mxu0 0.0
        %5682 = vmatpush1.msra.mxu0 0.0
        %5683 = vmatprep.subr.mxu0 0.0
        %5684 = vmatpush1.msra.mxu0 0.0
        %5685 = vmatprep.subr.mxu0 0.0
        %5686 = vmatpush1.msra.mxu0 0.0
        %5687 = vmatprep.subr.mxu0 0.0
        %5688 = vmatpush1.msra.mxu0 0.0
        %5689 = vmatprep.subr.mxu0 0.0
        %5690 = vmatpush1.msra.mxu0 0.0
        %5691 = vmatprep.subr.mxu0 0.0
        %5692 = vmatpush1.msra.mxu0 0.0
        %5693 = vmatprep.subr.mxu0 0.0
        %5694 = vmatpush1.msra.mxu0 0.0
        %5695 = vmatprep.subr.mxu0 0.0
        %5696 = vmatpush1.msra.mxu0 0.0
        %5697 = vmatprep.subr.mxu0 0.0
        %5698 = vmatpush1.msra.mxu0 0.0
        %5699 = vmatprep.subr.mxu0 0.0
        %5700 = vmatpush1.msra.mxu0 0.0
        %5701 = vmatprep.subr.mxu0 0.0
        %5702 = vmatpush1.msra.mxu0 0.0
        %5703 = vmatprep.subr.mxu0 0.0
        %5704 = vmatpush1.msra.mxu0 0.0
        %5705 = vmatprep.subr.mxu0 0.0
        %5706 = vmatpush1.msra.mxu0 0.0
        %5707 = vmatprep.subr.mxu0 0.0
        %5708 = vmatpush1.msra.mxu0 0.0
        %5709 = vmatprep.subr.mxu0 0.0
        %5710 = vmatpush1.msra.mxu0 0.0
        %5711 = vmatprep.subr.mxu0 0.0
        %5712 = vmatpush1.msra.mxu0 0.0
        %5713 = vmatprep.subr.mxu0 0.0
        %5714 = vmatpush1.msra.mxu0 0.0
        %5715 = vmatprep.subr.mxu0 0.0
        %5716 = vmatpush1.msra.mxu0 0.0
        %5717 = vmatprep.subr.mxu0 0.0
        %5718 = vmatpush1.msra.mxu0 0.0
        %5719 = vmatprep.subr.mxu0 0.0
        %5720 = vmatpush1.msra.mxu0 0.0
        %5721 = vmatprep.subr.mxu0 0.0
        %5722 = vmatpush1.msra.mxu0 0.0
        %5723 = vmatprep.subr.mxu0 0.0
        %5724 = vmatpush1.msra.mxu0 0.0
        %5725 = vmatprep.subr.mxu0 0.0
        %5726 = vmatpush1.msra.mxu0 0.0
        %5727 = vmatprep.subr.mxu0 0.0
        %5728 = vmatpush1.msra.mxu0 0.0
        %5729 = vmatprep.subr.mxu0 0.0
        %5730 = vmatpush1.msra.mxu0 0.0
        %5731 = vmatprep.subr.mxu0 0.0
        %5732 = vmatpush1.msra.mxu0 0.0
        %5733 = vmatprep.subr.mxu0 0.0
        %5734 = vmatpush1.msra.mxu0 0.0
        %5735 = vmatprep.subr.mxu0 0.0
        %5736 = vmatpush1.msra.mxu0 0.0
        %5737 = vmatprep.subr.mxu0 0.0
        %5738 = vmatpush1.msra.mxu0 0.0
        %5739 = vmatprep.subr.mxu0 0.0
        %5740 = vmatpush1.msra.mxu0 0.0
        %5741 = vmatprep.subr.mxu0 0.0
        %5742 = vmatpush1.msra.mxu0 0.0
        %5743 = vmatprep.mubr.f32.mxu0 0.0
        %5744 = vmatmul.mubr.f32.gmra.mrb[0].mxu0 %v5677
        %v5745 = vpop.f32.mrb[0].mxu0
        %v5746 = vadd.f32 %v5674, %v5745
        %v5747 = vpop.f32.mrb[0].mxu0
        %5748 = vdwg.mxu0
        %v5749 = vld [vmem:[%s2 + $0x278] sm:$0xff]
        %5751 = vset.pattern.permute.xlu0 0
        %5752 = vperm.xlu0 %5751, %v5749
        %v5753 = vpop.permute.xlu0 %5752
        %v5755 = vadd.f32 %v5746, %v5753
        %v5756 = vmax.f32 %v5755, 0.0
        %v5757 = vld [vmem:[%s2 + $0x280] sm:$0xff]
        %v5758 = vld [vmem:[%s2 + $0x288] sm:$0xff]
        %v5760 = vsel %vm614, %v5758, 0
        %5762 = vmatprep.subr.mxu0 0.0
        %5763 = vmatpush1.msra.mxu0 %v2204
        %5764 = vmatprep.subr.mxu0 0.0
        %5765 = vmatpush1.msra.mxu0 0.0
        %5766 = vmatprep.subr.mxu0 0.0
        %5767 = vmatpush1.msra.mxu0 0.0
        %5768 = vmatprep.subr.mxu0 0.0
        %5769 = vmatpush1.msra.mxu0 0.0
        %5770 = vmatprep.subr.mxu0 0.0
        %5771 = vmatpush1.msra.mxu0 0.0
        %5772 = vmatprep.subr.mxu0 0.0
        %5773 = vmatpush1.msra.mxu0 0.0
        %5774 = vmatprep.subr.mxu0 0.0
        %5775 = vmatpush1.msra.mxu0 0.0
        %5776 = vmatprep.subr.mxu0 0.0
        %5777 = vmatpush1.msra.mxu0 0.0
        %5778 = vmatprep.subr.mxu0 0.0
        %5779 = vmatpush1.msra.mxu0 0.0
        %5780 = vmatprep.subr.mxu0 0.0
        %5781 = vmatpush1.msra.mxu0 0.0
        %5782 = vmatprep.subr.mxu0 0.0
        %5783 = vmatpush1.msra.mxu0 0.0
        %5784 = vmatprep.subr.mxu0 0.0
        %5785 = vmatpush1.msra.mxu0 0.0
        %5786 = vmatprep.subr.mxu0 0.0
        %5787 = vmatpush1.msra.mxu0 0.0
        %5788 = vmatprep.subr.mxu0 0.0
        %5789 = vmatpush1.msra.mxu0 0.0
        %5790 = vmatprep.subr.mxu0 0.0
        %5791 = vmatpush1.msra.mxu0 0.0
        %5792 = vmatprep.subr.mxu0 0.0
        %5793 = vmatpush1.msra.mxu0 0.0
        %5794 = vmatprep.subr.mxu0 0.0
        %5795 = vmatpush1.msra.mxu0 0.0
        %5796 = vmatprep.subr.mxu0 0.0
        %5797 = vmatpush1.msra.mxu0 0.0
        %5798 = vmatprep.subr.mxu0 0.0
        %5799 = vmatpush1.msra.mxu0 0.0
        %5800 = vmatprep.subr.mxu0 0.0
        %5801 = vmatpush1.msra.mxu0 0.0
        %5802 = vmatprep.subr.mxu0 0.0
        %5803 = vmatpush1.msra.mxu0 0.0
        %5804 = vmatprep.subr.mxu0 0.0
        %5805 = vmatpush1.msra.mxu0 0.0
        %5806 = vmatprep.subr.mxu0 0.0
        %5807 = vmatpush1.msra.mxu0 0.0
        %5808 = vmatprep.subr.mxu0 0.0
        %5809 = vmatpush1.msra.mxu0 0.0
        %5810 = vmatprep.subr.mxu0 0.0
        %5811 = vmatpush1.msra.mxu0 0.0
        %5812 = vmatprep.subr.mxu0 0.0
        %5813 = vmatpush1.msra.mxu0 0.0
        %5814 = vmatprep.subr.mxu0 0.0
        %5815 = vmatpush1.msra.mxu0 0.0
        %5816 = vmatprep.subr.mxu0 0.0
        %5817 = vmatpush1.msra.mxu0 0.0
        %5818 = vmatprep.subr.mxu0 0.0
        %5819 = vmatpush1.msra.mxu0 0.0
        %5820 = vmatprep.subr.mxu0 0.0
        %5821 = vmatpush1.msra.mxu0 0.0
        %5822 = vmatprep.subr.mxu0 0.0
        %5823 = vmatpush1.msra.mxu0 0.0
        %5824 = vmatprep.subr.mxu0 0.0
        %5825 = vmatpush1.msra.mxu0 0.0
        %5826 = vmatprep.mubr.f32.mxu0 0.0
        %5827 = vmatmul.mubr.f32.gmra.mrb[0].mxu0 %v5760
        %v5828 = vpop.f32.mrb[0].mxu0
        %v5829 = vadd.f32 0.0, %v5828
        %v5830 = vpop.f32.mrb[0].mxu0
        %5831 = vdwg.mxu0
        %5833 = vset.pattern.permute.xlu0 0
        %5834 = vperm.xlu0 %5833, %v5829
        %v5835 = vpop.permute.xlu0 %5834
        %v5838 = vsel %vm614, %v5757, 0
        %5840 = vmatprep.subr.mxu0 0.0
        %5841 = vmatpush1.msra.mxu0 %v5756
        %5842 = vmatprep.subr.mxu0 0.0
        %5843 = vmatpush1.msra.mxu0 0.0
        %5844 = vmatprep.subr.mxu0 0.0
        %5845 = vmatpush1.msra.mxu0 0.0
        %5846 = vmatprep.subr.mxu0 0.0
        %5847 = vmatpush1.msra.mxu0 0.0
        %5848 = vmatprep.subr.mxu0 0.0
        %5849 = vmatpush1.msra.mxu0 0.0
        %5850 = vmatprep.subr.mxu0 0.0
        %5851 = vmatpush1.msra.mxu0 0.0
        %5852 = vmatprep.subr.mxu0 0.0
        %5853 = vmatpush1.msra.mxu0 0.0
        %5854 = vmatprep.subr.mxu0 0.0
        %5855 = vmatpush1.msra.mxu0 0.0
        %5856 = vmatprep.subr.mxu0 0.0
        %5857 = vmatpush1.msra.mxu0 0.0
        %5858 = vmatprep.subr.mxu0 0.0
        %5859 = vmatpush1.msra.mxu0 0.0
        %5860 = vmatprep.subr.mxu0 0.0
        %5861 = vmatpush1.msra.mxu0 0.0
        %5862 = vmatprep.subr.mxu0 0.0
        %5863 = vmatpush1.msra.mxu0 0.0
        %5864 = vmatprep.subr.mxu0 0.0
        %5865 = vmatpush1.msra.mxu0 0.0
        %5866 = vmatprep.subr.mxu0 0.0
        %5867 = vmatpush1.msra.mxu0 0.0
        %5868 = vmatprep.subr.mxu0 0.0
        %5869 = vmatpush1.msra.mxu0 0.0
        %5870 = vmatprep.subr.mxu0 0.0
        %5871 = vmatpush1.msra.mxu0 0.0
        %5872 = vmatprep.subr.mxu0 0.0
        %5873 = vmatpush1.msra.mxu0 0.0
        %5874 = vmatprep.subr.mxu0 0.0
        %5875 = vmatpush1.msra.mxu0 0.0
        %5876 = vmatprep.subr.mxu0 0.0
        %5877 = vmatpush1.msra.mxu0 0.0
        %5878 = vmatprep.subr.mxu0 0.0
        %5879 = vmatpush1.msra.mxu0 0.0
        %5880 = vmatprep.subr.mxu0 0.0
        %5881 = vmatpush1.msra.mxu0 0.0
        %5882 = vmatprep.subr.mxu0 0.0
        %5883 = vmatpush1.msra.mxu0 0.0
        %5884 = vmatprep.subr.mxu0 0.0
        %5885 = vmatpush1.msra.mxu0 0.0
        %5886 = vmatprep.subr.mxu0 0.0
        %5887 = vmatpush1.msra.mxu0 0.0
        %5888 = vmatprep.subr.mxu0 0.0
        %5889 = vmatpush1.msra.mxu0 0.0
        %5890 = vmatprep.subr.mxu0 0.0
        %5891 = vmatpush1.msra.mxu0 0.0
        %5892 = vmatprep.subr.mxu0 0.0
        %5893 = vmatpush1.msra.mxu0 0.0
        %5894 = vmatprep.subr.mxu0 0.0
        %5895 = vmatpush1.msra.mxu0 0.0
        %5896 = vmatprep.subr.mxu0 0.0
        %5897 = vmatpush1.msra.mxu0 0.0
        %5898 = vmatprep.subr.mxu0 0.0
        %5899 = vmatpush1.msra.mxu0 0.0
        %5900 = vmatprep.subr.mxu0 0.0
        %5901 = vmatpush1.msra.mxu0 0.0
        %5902 = vmatprep.subr.mxu0 0.0
        %5903 = vmatpush1.msra.mxu0 0.0
        %5904 = vmatprep.mubr.f32.mxu0 0.0
        %5905 = vmatmul.mubr.f32.gmra.mrb[0].mxu0 %v5838
        %v5906 = vpop.f32.mrb[0].mxu0
        %v5907 = vadd.f32 %v5835, %v5906
        %v5908 = vpop.f32.mrb[0].mxu0
        %5909 = vdwg.mxu0
        %v5910 = vld [vmem:[%s2 + $0x290] sm:$0xff]
        %5912 = vset.pattern.permute.xlu0 0
        %5913 = vperm.xlu0 %5912, %v5910
        %v5914 = vpop.permute.xlu0 %5913
        %v5916 = vadd.f32 %v5907, %v5914
        %v5917 = vmax.f32 %v5916, 0.0
        %v5918 = vadd.f32 %v5595, %v5917
        %v5919 = vld [vmem:[%s2 + $0x298] sm:$0xf]
        %v5920 = vld [vmem:[%s2 + $0x2a0] sm:$0xf]
        %5922 = vset.pattern.permute.xlu0 0
        %5923 = vperm.xlu0 %5922, %v5920
        %v5924 = vpop.permute.xlu0 %5923
        %v5927 = vsel %vm614, %v5919, 0
        %5929 = vmatprep.subr.mxu0 0.0
        %5930 = vmatpush1.msra.mxu0 %v5918
        %5931 = vmatprep.subr.mxu0 0.0
        %5932 = vmatpush1.msra.mxu0 0.0
        %5933 = vmatprep.subr.mxu0 0.0
        %5934 = vmatpush1.msra.mxu0 0.0
        %5935 = vmatprep.subr.mxu0 0.0
        %5936 = vmatpush1.msra.mxu0 0.0
        %5937 = vmatprep.subr.mxu0 0.0
        %5938 = vmatpush1.msra.mxu0 0.0
        %5939 = vmatprep.subr.mxu0 0.0
        %5940 = vmatpush1.msra.mxu0 0.0
        %5941 = vmatprep.subr.mxu0 0.0
        %5942 = vmatpush1.msra.mxu0 0.0
        %5943 = vmatprep.subr.mxu0 0.0
        %5944 = vmatpush1.msra.mxu0 0.0
        %5945 = vmatprep.subr.mxu0 0.0
        %5946 = vmatpush1.msra.mxu0 0.0
        %5947 = vmatprep.subr.mxu0 0.0
        %5948 = vmatpush1.msra.mxu0 0.0
        %5949 = vmatprep.subr.mxu0 0.0
        %5950 = vmatpush1.msra.mxu0 0.0
        %5951 = vmatprep.subr.mxu0 0.0
        %5952 = vmatpush1.msra.mxu0 0.0
        %5953 = vmatprep.subr.mxu0 0.0
        %5954 = vmatpush1.msra.mxu0 0.0
        %5955 = vmatprep.subr.mxu0 0.0
        %5956 = vmatpush1.msra.mxu0 0.0
        %5957 = vmatprep.subr.mxu0 0.0
        %5958 = vmatpush1.msra.mxu0 0.0
        %5959 = vmatprep.subr.mxu0 0.0
        %5960 = vmatpush1.msra.mxu0 0.0
        %5961 = vmatprep.subr.mxu0 0.0
        %5962 = vmatpush1.msra.mxu0 0.0
        %5963 = vmatprep.subr.mxu0 0.0
        %5964 = vmatpush1.msra.mxu0 0.0
        %5965 = vmatprep.subr.mxu0 0.0
        %5966 = vmatpush1.msra.mxu0 0.0
        %5967 = vmatprep.subr.mxu0 0.0
        %5968 = vmatpush1.msra.mxu0 0.0
        %5969 = vmatprep.subr.mxu0 0.0
        %5970 = vmatpush1.msra.mxu0 0.0
        %5971 = vmatprep.subr.mxu0 0.0
        %5972 = vmatpush1.msra.mxu0 0.0
        %5973 = vmatprep.subr.mxu0 0.0
        %5974 = vmatpush1.msra.mxu0 0.0
        %5975 = vmatprep.subr.mxu0 0.0
        %5976 = vmatpush1.msra.mxu0 0.0
        %5977 = vmatprep.subr.mxu0 0.0
        %5978 = vmatpush1.msra.mxu0 0.0
        %5979 = vmatprep.subr.mxu0 0.0
        %5980 = vmatpush1.msra.mxu0 0.0
        %5981 = vmatprep.subr.mxu0 0.0
        %5982 = vmatpush1.msra.mxu0 0.0
        %5983 = vmatprep.subr.mxu0 0.0
        %5984 = vmatpush1.msra.mxu0 0.0
        %5985 = vmatprep.subr.mxu0 0.0
        %5986 = vmatpush1.msra.mxu0 0.0
        %5987 = vmatprep.subr.mxu0 0.0
        %5988 = vmatpush1.msra.mxu0 0.0
        %5989 = vmatprep.subr.mxu0 0.0
        %5990 = vmatpush1.msra.mxu0 0.0
        %5991 = vmatprep.subr.mxu0 0.0
        %5992 = vmatpush1.msra.mxu0 0.0
        %5993 = vmatprep.mubr.f32.mxu0 0.0
        %5994 = vmatmul.mubr.f32.gmra.mrb[0].mxu0 %v5927
        %v5995 = vpop.f32.mrb[0].mxu0
        %v5996 = vadd.f32 %v5924, %v5995
        %v5997 = vpop.f32.mrb[0].mxu0
        %5998 = vdwg.mxu0
        %5999 = vst.msk [vmem:[%s259] sm:$0xff] %vm614, %v4087
        %vm6000 = vcmask 7168
        %6001 = vst.msk [vmem:[%s284] sm:$0xff] %vm6000, %v2204
        %vm6002 = vcmask 125952
        %6003 = vst.msk [vmem:[%s272] sm:$0xf] %vm6002, %v5996
        %s6004 = sand.u32 %s126, 1
        %s6005 = scalar_lea.sflag [#allocation3], %s6004
        %s6006 = sand.u32 %s126, 1
        %s6007 = smul.addr %s6006, 8
        %s6008 = scalar_lea.vmem [#allocation2], %s6007
        %p6009 = scmp.lt.s32.totalorder %s24, 1
        %s6010 = scalar_select %p6009, %s24, 1
        %s6011 = smul.addr %s6010, 8
        %s6012 = scalar_lea.vmem %s5, %s6011
        %s6013 = sand.u32 %s178, 1
        %s6014 = scalar_lea.sflag [#allocation5], %s6013
        %s6015 = sand.u32 %s178, 1
        %s6016 = smul.addr %s6015, 4
        %s6017 = scalar_lea.vmem [#allocation4], %s6016
        // Predicated region
        $region37: #{tpu_custom_call.1} parent=35 // pred_check
          %p6018 = pneg %p136
        $region38: #{tpu_custom_call.1} parent=35 // pred_check_branch
          %6020 = sbr.rel (%p6018) target = $region40
        $region39: #{tpu_custom_call.1} parent=35 // pred_region
          %s6022 = ssub.s32 128, 128
          %6023 = vsyncadd %s6005, %s6022
          %s6024 = smul.addr %s24, 128
          %s6025 = scalar_lea.hbm %s4, %s6024
          %s6027 = sshll.u32 %s6008, 4
          %s6028 = int_to_ptr.vmem [resolvable:$true] %s6027
          %6030 = dma.vmem_to_hbm [thread:$0]  %s6028, 128, %s6025, %s6005
        $region40: #{tpu_custom_call.1} parent=35 // pred_fallthru
          _
        // Predicated region
        $region41: #{tpu_custom_call.1} parent=35 // pred_check
          %p6031 = pneg %p162
        $region42: #{tpu_custom_call.1} parent=35 // pred_check_branch
          %6033 = sbr.rel (%p6031) target = $region44
        $region43: #{tpu_custom_call.1} parent=35 // pred_region
          _
        $region44: #{tpu_custom_call.1} parent=35 // pred_fallthru
          _
        // Predicated region
        $region45: #{tpu_custom_call.1} parent=35 // pred_check
          %p6034 = pneg %p188
        $region46: #{tpu_custom_call.1} parent=35 // pred_check_branch
          %6036 = sbr.rel (%p6034) target = $region48
        $region47: #{tpu_custom_call.1} parent=35 // pred_region
          %s6038 = ssub.s32 64, 64
          %6039 = vsyncadd %s6014, %s6038
          %s6040 = smul.addr %s24, 64
          %s6041 = scalar_lea.hbm %s6, %s6040
          %s6043 = sshll.u32 %s6017, 4
          %s6044 = int_to_ptr.vmem [resolvable:$true] %s6043
          %6046 = dma.vmem_to_hbm [thread:$0]  %s6044, 64, %s6041, %s6014
        $region48: #{tpu_custom_call.1} parent=35 // pred_fallthru
          _
      $region36: #{tpu_custom_call.1} parent=5 // pred_fallthru
        _
      %p6047 = scmp.le.s32.totalorder 2, %s19
      // Predicated region
      $region49: #{tpu_custom_call.1} parent=5 // pred_check
        %p6048 = pneg %p6047
      $region50: #{tpu_custom_call.1} parent=5 // pred_check_branch
        %6050 = sbr.rel (%p6048) target = $region52
      $region51: #{tpu_custom_call.1} parent=5 // pred_region
        %s6051 = ssub.s32 %s19, 2
        // Predicated region
        $region53: #{tpu_custom_call.1} parent=51 // pred_check
          %p6052 = pneg %p142
        $region54: #{tpu_custom_call.1} parent=51 // pred_check_branch
          %6054 = sbr.rel (%p6052) target = $region56
        $region55: #{tpu_custom_call.1} parent=51 // pred_region
          %s6055 = sand.u32 %s127, 1
          %s6056 = scalar_lea.sflag [#allocation3], %s6055
          %s6057 = sand.u32 %s127, 1
          %s6058 = smul.addr %s6057, 8
          %s6059 = scalar_lea.vmem [#allocation2], %s6058
          %6060 = dma.done %s6056, 128
        $region56: #{tpu_custom_call.1} parent=51 // pred_fallthru
          _
        // Predicated region
        $region57: #{tpu_custom_call.1} parent=51 // pred_check
          %p6061 = pneg %p168
        $region58: #{tpu_custom_call.1} parent=51 // pred_check_branch
          %6063 = sbr.rel (%p6061) target = $region60
        $region59: #{tpu_custom_call.1} parent=51 // pred_region
          %p6064 = scmp.lt.s32.totalorder %s25, 1
          %s6065 = scalar_select %p6064, %s25, 1
          %s6066 = smul.addr %s6065, 8
          %s6067 = scalar_lea.vmem %s5, %s6066
        $region60: #{tpu_custom_call.1} parent=51 // pred_fallthru
          _
        // Predicated region
        $region61: #{tpu_custom_call.1} parent=51 // pred_check
          %p6068 = pneg %p194
        $region62: #{tpu_custom_call.1} parent=51 // pred_check_branch
          %6070 = sbr.rel (%p6068) target = $region64
        $region63: #{tpu_custom_call.1} parent=51 // pred_region
          %s6071 = sand.u32 %s179, 1
          %s6072 = scalar_lea.sflag [#allocation5], %s6071
          %s6073 = sand.u32 %s179, 1
          %s6074 = smul.addr %s6073, 4
          %s6075 = scalar_lea.vmem [#allocation4], %s6074
          %6076 = dma.done %s6072, 64
        $region64: #{tpu_custom_call.1} parent=51 // pred_fallthru
          _
      $region52: #{tpu_custom_call.1} parent=5 // pred_fallthru
        _
    $region6: #{tpu_custom_call.1} parent=1 // loop_footer
      %s23 = sadd.s32 1, %s19
    $region7: #{tpu_custom_call.1} parent=1 // loop_footer_branch
      %18 = sbr.rel target = $region3
    $region8: #{tpu_custom_call.1} parent=1 // loop_exit
      _
    %6077 = vsyncpa [#allocation3], 1
    %s6078 = scalar_lea.sflag [#allocation3], 1
    %6079 = vsyncpa %s6078, 1
    %6080 = vsyncpa [#allocation5], 1
    %s6081 = scalar_lea.sflag [#allocation5], 1
    %6082 = vsyncpa %s6081, 1

</llo_original>
